<compile_context>
chip_gen: v7x
topology: tpu7x:2x2x1
jax: 0.10.0
libtpu: 0.0.40
codegen_flags: <defaults>
</compile_context>

<pallas_src>
import math

import jax
import jax.numpy as jnp
from jax import lax
from jax.experimental import pallas as pl
from jax.experimental.pallas import tpu as pltpu


def _l2_normalize(x, eps=1e-12):
    """F.normalize(x, dim=-1): x / max(||x||_2, eps)  (reference oracle)."""
    n = jnp.sqrt(jnp.sum(x * x, axis=-1, keepdims=True))
    return x / jnp.maximum(n, eps)


def _make_man_kernel(tt, batch, in_size, hidd, mem, gate, gamma):
    H, N, B = hidd, mem, batch
    G4 = 4 * H

    def kernel(x_ref, wih_ref, whh_ref, b_ref, o_ref,
               h_ref, c_ref, m_ref, wu_ref, wr_ref, xg_ref):
        # Initialize recurrent / memory state once, before the first block.
        # Scratch persists across the (sequential) grid.
        @pl.when(pl.program_id(0) == 0)
        def _init():
            h_ref[...] = jnp.zeros_like(h_ref)
            c_ref[...] = jnp.zeros_like(c_ref)
            m_ref[...] = jnp.zeros_like(m_ref)      # module memory starts at zero
            wu_ref[...] = jnp.zeros_like(wu_ref)
            wr_ref[...] = jnp.zeros_like(wr_ref)

        # Resident weights; hoist loads and the iota out of the time loop.
        whh = whh_ref[...]                          # (H, 4H)
        lane = lax.broadcasted_iota(jnp.int32, (B, N), 1)

        # ---- hoisted input projection: ONE (B*tt, in)x(in, 4H) matmul + bias
        # per grid block (off the serial per-timestep critical path).
        x2 = x_ref[...].reshape(B * tt, in_size)
        xg_ref[...] = (jnp.dot(x2, wih_ref[...], preferred_element_type=jnp.float32)
                       + b_ref[...]).reshape(B, tt, G4)

        h = h_ref[...]
        c = c_ref[...]
        M = m_ref[...]
        w_u = wu_ref[...]
        prev_w_r = wr_ref[...]

        # Static unroll over the (capped) time block: every time index is a
        # static sublane offset, so x-gate loads / output stores are cheap.
        # tt is capped at 16 in the wrapper to bound code size.
        for t in range(tt):
            # ---- LSTMCell (PyTorch gate order i, f, g, o) ----
            gates = xg_ref[:, t, :] + jnp.dot(h, whh,
                                              preferred_element_type=jnp.float32)
            # TODO(synk): if production H is not a multiple of 128, pad H so
            # these gate slices (and the output lane slices) are vreg-aligned.
            i_g = jax.nn.sigmoid(gates[:, 0:H])
            f_g = jax.nn.sigmoid(gates[:, H:2 * H])
            g_g = jnp.tanh(gates[:, 2 * H:3 * H])
            o_g = jax.nn.sigmoid(gates[:, 3 * H:4 * H])
            c = f_g * c + i_g * g_g
            h = o_g * jnp.tanh(c)

            # ---- read head: cosine similarity via pre-normalized operands.
            # cos = (h/||h||) @ (M/||M rows||)^T  (one MXU op instead of two;
            # rsqrt runs on the otherwise-idle EUP slot).  Matches the
            # reference inner/(||h||*||m|| + 1e-8) to ~1e-8 for nonzero rows
            # and gives exactly 0 for the all-zero memory at t=0.
            h_n = h * lax.rsqrt(jnp.sum(h * h, axis=-1, keepdims=True) + 1e-16)
            M_n = M * lax.rsqrt(jnp.sum(M * M, axis=-1, keepdims=True) + 1e-16)
            cos = lax.dot_general(h_n, M_n, (((1,), (1,)), ((), ())),
                                  preferred_element_type=jnp.float32)     # (B, N)
            cm = jnp.max(cos, axis=-1, keepdims=True)
            e = jnp.exp(cos - cm)
            w_r = e * pl.reciprocal(jnp.sum(e, axis=-1, keepdims=True),
                                    approx=True)                          # softmax
            read_i = jnp.dot(w_r, M, preferred_element_type=jnp.float32)  # (B, H)

            # Single fused store of cat([h, read_i], -1) per timestep.
            o_ref[:, t, :] = jnp.concatenate([h, read_i],
                                             axis=-1).astype(o_ref.dtype)

            # ---- write head (least-used-slot write) ----
            min_u = jnp.min(w_u, axis=-1, keepdims=True)
            first_min = jnp.min(jnp.where(w_u == min_u, lane, N),
                                axis=-1, keepdims=True)                   # (B, 1)
            w_lu = (1.0 - gate) * (lane == first_min).astype(jnp.float32)  # (B, N)
            w_w = gate * prev_w_r + w_lu                                   # (B, N)
            k_w = lax.dot_general(w_w, h, (((0,), (0,)), ((), ())),
                                  preferred_element_type=jnp.float32)      # (N, H)
            # F.normalize via EUP rsqrt: 1/max(n,1e-12) == min(rsqrt(n^2),1e12)
            Mk = M + k_w
            M = Mk * jnp.minimum(
                lax.rsqrt(jnp.sum(Mk * Mk, axis=-1, keepdims=True)), 1e12)
            un = gamma * w_u + w_r + w_w
            w_u = un * jnp.minimum(
                lax.rsqrt(jnp.sum(un * un, axis=-1, keepdims=True)), 1e12)
            prev_w_r = w_r

        # Carry state to the next time block.
        h_ref[...] = h
        c_ref[...] = c
        m_ref[...] = M
        wu_ref[...] = w_u
        wr_ref[...] = prev_w_r

    return kernel


def man_forward(x, w_ih, w_hh, b_ih, b_hh, *, memory_size=50, alpha_sig=-0.4,
                gamma=0.3, time_block=16):
    """Pallas forward pass of MAN.  x: (B, T, in_size) -> (B, T, 2*hidd_size)."""
    x = jnp.asarray(x, jnp.float32)
    B, T, in_size = x.shape
    H = w_hh.shape[1]
    N = memory_size
    gate = 1.0 / (1.0 + math.exp(-alpha_sig))

    # Timesteps per grid step: the full sequence if it fits, otherwise a
    # multiple-of-8 cap (second-to-last block dim must be a multiple of 8 or
    # the full extent).  grid = cdiv handles any T (no divisor search); a
    # partial tail block is processed with harmless padded timesteps.
    cap = max(8, (time_block // 8) * 8)
    tt = T if T <= cap else cap
    grid = pl.cdiv(T, tt)

    wih_t = jnp.asarray(w_ih, jnp.float32).T                             # (in, 4H)
    whh_t = jnp.asarray(w_hh, jnp.float32).T                             # (H, 4H)
    bias = (jnp.asarray(b_ih, jnp.float32)
            + jnp.asarray(b_hh, jnp.float32)).reshape(1, 4 * H)

    kernel = _make_man_kernel(tt, B, in_size, H, N, gate, gamma)

    # Explicit VMEM budget (v5e default scoped limit is 16 MiB; v7x physical
    # VMEM is 64 MiB per core) — resident weights + state + double-buffered
    # x/out blocks + xg scratch, with generous headroom.
    est_bytes = 4 * (in_size * 4 * H + H * 4 * H + 4 * H        # weights + bias
                     + N * H + 2 * B * H + 2 * B * N            # M, h, c, w_u, w_r
                     + B * tt * 4 * H                           # xg scratch
                     + 2 * B * tt * in_size + 2 * B * tt * 2 * H)  # x / out blocks
    vmem_limit = int(min(max(6 * est_bytes, 16 * 2 ** 20), 48 * 2 ** 20))

    out = pl.pallas_call(
        kernel,
        out_shape=jax.ShapeDtypeStruct((B, T, 2 * H), jnp.float32),
        grid_spec=pltpu.PrefetchScalarGridSpec(
            num_scalar_prefetch=0,
            grid=(grid,),
            in_specs=[
                pl.BlockSpec((B, tt, in_size), lambda i: (0, i, 0)),     # x (batch-major)
                pl.BlockSpec((in_size, 4 * H), lambda i: (0, 0)),        # W_ih^T (resident)
                pl.BlockSpec((H, 4 * H), lambda i: (0, 0)),              # W_hh^T (resident)
                pl.BlockSpec((1, 4 * H), lambda i: (0, 0)),              # b_ih + b_hh
            ],
            out_specs=pl.BlockSpec((B, tt, 2 * H), lambda i: (0, i, 0)),
            scratch_shapes=[
                pltpu.VMEM((B, H), jnp.float32),          # h
                pltpu.VMEM((B, H), jnp.float32),          # c
                pltpu.VMEM((N, H), jnp.float32),          # M (external memory)
                pltpu.VMEM((B, N), jnp.float32),          # w_u (usage)
                pltpu.VMEM((B, N), jnp.float32),          # prev_w_r
                pltpu.VMEM((B, tt, 4 * H), jnp.float32),  # hoisted x-gates
            ],
        ),
        compiler_params=pltpu.CompilerParams(
            # The time recurrence is sequential: keep the single grid axis
            # "arbitrary" (it must not be sharded across TensorCores).
            dimension_semantics=("arbitrary",),
            vmem_limit_bytes=vmem_limit,
        ),
    )(x, wih_t, whh_t, bias)

    return out                                                            # (B, T, 2H)


def man_reference(x, w_ih, w_hh, b_ih, b_hh, *, memory_size=50, alpha_sig=-0.4,
                  gamma=0.3):
    """Pure-JAX port of MAN.forward (correctness oracle)."""
    x = jnp.asarray(x, jnp.float32)
    B, T, _ = x.shape
    H = w_hh.shape[1]
    N = memory_size
    gate = 1.0 / (1.0 + math.exp(-alpha_sig))

    h = jnp.zeros((B, H), jnp.float32)
    c = jnp.zeros((B, H), jnp.float32)
    M = jnp.zeros((N, H), jnp.float32)
    w_u = jnp.zeros((B, N), jnp.float32)
    prev_w_r = jnp.zeros((B, N), jnp.float32)
    bias = b_ih + b_hh

    outs = []
    for t in range(T):
        gates = x[:, t, :] @ w_ih.T + h @ w_hh.T + bias
        i_g = jax.nn.sigmoid(gates[:, 0:H])
        f_g = jax.nn.sigmoid(gates[:, H:2 * H])
        g_g = jnp.tanh(gates[:, 2 * H:3 * H])
        o_g = jax.nn.sigmoid(gates[:, 3 * H:4 * H])
        c = f_g * c + i_g * g_g
        h = o_g * jnp.tanh(c)

        inner = h @ M.T
        k_sq = jnp.sqrt(jnp.sum(h * h, axis=-1, keepdims=True))
        m_sq = jnp.sqrt(jnp.sum(M * M, axis=-1, keepdims=True))
        w_r = jax.nn.softmax(inner / (k_sq @ m_sq.T + 1e-8), axis=-1)
        read_i = w_r @ M
        outs.append(jnp.concatenate([h, read_i], axis=-1))

        idx = jnp.argmin(w_u, axis=-1)
        w_lu = (1.0 - gate) * jax.nn.one_hot(idx, N, dtype=jnp.float32)
        w_w = gate * prev_w_r + w_lu
        k_w = w_w.T @ h
        M = _l2_normalize(M + k_w)
        w_u_new = _l2_normalize(gamma * w_u + w_r + w_w)
        prev_w_r = w_r
        w_u = w_u_new
    return jnp.stack(outs, axis=1)


if __name__ == "__main__":
    # TODO(synk): the back=True (time-reversed) iteration path of MAN.forward
    # is not implemented; only the default forward direction is covered.
    B, T, IN, HID, MEM = 2, 8, 16, 32, 50
    key = jax.random.PRNGKey(0)
    kx, kwi, kwh, kbi, kbh = jax.random.split(key, 5)
    bound = 1.0 / math.sqrt(HID)

    x = jax.random.normal(kx, (B, T, IN), dtype=jnp.float32)
    w_ih = jax.random.uniform(kwi, (4 * HID, IN), jnp.float32, -bound, bound)
    w_hh = jax.random.uniform(kwh, (4 * HID, HID), jnp.float32, -bound, bound)
    b_ih = jax.random.uniform(kbi, (4 * HID,), jnp.float32, -bound, bound)
    b_hh = jax.random.uniform(kbh, (4 * HID,), jnp.float32, -bound, bound)

    y = man_forward(x, w_ih, w_hh, b_ih, b_hh, memory_size=MEM)
    jax.block_until_ready(y)

    y_ref = man_reference(x, w_ih, w_hh, b_ih, b_hh, memory_size=MEM)
    assert y.shape == (B, T, 2 * HID), (y.shape, (B, T, 2 * HID))
    assert y.shape == y_ref.shape, (y.shape, y_ref.shape)
    max_err = float(jnp.max(jnp.abs(y - y_ref)))
    assert jnp.allclose(y, y_ref, atol=2e-2, rtol=2e-2), f"max abs err {max_err}"
    print("KERNEL_OK")
</pallas_src>

<mosaic_0001>
module attributes {stable_mosaic.version = 11 : i64} {
  func.func @kernel(%arg0: i32, %arg1: memref<2x8x16xf32, #tpu.memory_space<vmem>>, %arg2: memref<16x128xf32, #tpu.memory_space<vmem>>, %arg3: memref<32x128xf32, #tpu.memory_space<vmem>>, %arg4: memref<1x128xf32, #tpu.memory_space<vmem>>, %arg5: memref<2x8x64xf32, #tpu.memory_space<vmem>>, %arg6: memref<2x32xf32, #tpu.memory_space<vmem>>, %arg7: memref<2x32xf32, #tpu.memory_space<vmem>>, %arg8: memref<50x32xf32, #tpu.memory_space<vmem>>, %arg9: memref<2x50xf32, #tpu.memory_space<vmem>>, %arg10: memref<2x50xf32, #tpu.memory_space<vmem>>, %arg11: memref<2x8x128xf32, #tpu.memory_space<vmem>>) attributes {dimension_semantics = [#tpu.dimension_semantics<arbitrary>], iteration_bounds = array<i64: 1>, scalar_prefetch = 0 : i64, scratch_operands = 6 : i64, tpu.core_type = #tpu.core_type<tc>, window_params = [{transform_indices = @transform_0, window_bounds = array<i64: 2, 8, 16>}, {pipeline_mode = #tpu.pipeline_mode<synchronous>, transform_indices = @transform_1, window_bounds = array<i64: 16, 128>}, {pipeline_mode = #tpu.pipeline_mode<synchronous>, transform_indices = @transform_2, window_bounds = array<i64: 32, 128>}, {pipeline_mode = #tpu.pipeline_mode<synchronous>, transform_indices = @transform_3, window_bounds = array<i64: 1, 128>}, {transform_indices = @transform_4, window_bounds = array<i64: 2, 8, 64>}]} {
    %c0_i32 = arith.constant 0 : i32
    %0 = arith.cmpi eq, %arg0, %c0_i32 : i32
    %1 = arith.extui %0 : i1 to i32
    %c0_i32_0 = arith.constant 0 : i32
    %2 = arith.cmpi ne, %1, %c0_i32_0 : i32
    scf.if %2 {
      %cst_256 = arith.constant 0.000000e+00 : f32
      %824 = vector.broadcast %cst_256 : f32 to vector<2x32xf32>
      %c0_257 = arith.constant 0 : index
      %c0_258 = arith.constant 0 : index
      %825 = vector.load %arg6[%c0_257, %c0_258] : memref<2x32xf32, #tpu.memory_space<vmem>>, vector<2x32xf32>
      tpu.vector_store %arg6[%c0_257, %c0_258], %824 {strides = array<i32>} : memref<2x32xf32, #tpu.memory_space<vmem>>, vector<2x32xf32>,
      %cst_259 = arith.constant 0.000000e+00 : f32
      %826 = vector.broadcast %cst_259 : f32 to vector<2x32xf32>
      %c0_260 = arith.constant 0 : index
      %c0_261 = arith.constant 0 : index
      %827 = vector.load %arg7[%c0_260, %c0_261] : memref<2x32xf32, #tpu.memory_space<vmem>>, vector<2x32xf32>
      tpu.vector_store %arg7[%c0_260, %c0_261], %826 {strides = array<i32>} : memref<2x32xf32, #tpu.memory_space<vmem>>, vector<2x32xf32>,
      %cst_262 = arith.constant 0.000000e+00 : f32
      %828 = vector.broadcast %cst_262 : f32 to vector<50x32xf32>
      %c0_263 = arith.constant 0 : index
      %c0_264 = arith.constant 0 : index
      %829 = vector.load %arg8[%c0_263, %c0_264] : memref<50x32xf32, #tpu.memory_space<vmem>>, vector<50x32xf32>
      tpu.vector_store %arg8[%c0_263, %c0_264], %828 {strides = array<i32>} : memref<50x32xf32, #tpu.memory_space<vmem>>, vector<50x32xf32>,
      %cst_265 = arith.constant 0.000000e+00 : f32
      %830 = vector.broadcast %cst_265 : f32 to vector<2x50xf32>
      %c0_266 = arith.constant 0 : index
      %c0_267 = arith.constant 0 : index
      %831 = vector.load %arg9[%c0_266, %c0_267] : memref<2x50xf32, #tpu.memory_space<vmem>>, vector<2x50xf32>
      tpu.vector_store %arg9[%c0_266, %c0_267], %830 {strides = array<i32>} : memref<2x50xf32, #tpu.memory_space<vmem>>, vector<2x50xf32>,
      %cst_268 = arith.constant 0.000000e+00 : f32
      %832 = vector.broadcast %cst_268 : f32 to vector<2x50xf32>
      %c0_269 = arith.constant 0 : index
      %c0_270 = arith.constant 0 : index
      %833 = vector.load %arg10[%c0_269, %c0_270] : memref<2x50xf32, #tpu.memory_space<vmem>>, vector<2x50xf32>
      tpu.vector_store %arg10[%c0_269, %c0_270], %832 {strides = array<i32>} : memref<2x50xf32, #tpu.memory_space<vmem>>, vector<2x50xf32>,
    } else {
    }
    %c0 = arith.constant 0 : index
    %c0_1 = arith.constant 0 : index
    %3 = vector.load %arg3[%c0, %c0_1] : memref<32x128xf32, #tpu.memory_space<vmem>>, vector<32x128xf32>
    %4 = tpu.iota {dimensions = array<i32: 1>} : vector<2x50xi32>
    %c0_2 = arith.constant 0 : index
    %c0_3 = arith.constant 0 : index
    %c0_4 = arith.constant 0 : index
    %5 = vector.load %arg1[%c0_2, %c0_3, %c0_4] : memref<2x8x16xf32, #tpu.memory_space<vmem>>, vector<2x8x16xf32>
    %6 = vector.shape_cast %5 : vector<2x8x16xf32> to vector<16x16xf32>
    %c0_5 = arith.constant 0 : index
    %c0_6 = arith.constant 0 : index
    %7 = vector.load %arg2[%c0_5, %c0_6] : memref<16x128xf32, #tpu.memory_space<vmem>>, vector<16x128xf32>
    %cst = arith.constant dense<0.000000e+00> : vector<16x128xf32>
    %8 = tpu.matmul %6, %7, %cst {dimension_numbers = #tpu.dot_dimension_numbers<[1], [0], [0], [1], [0, 0, 1, 1], [], []>} : vector<16x16xf32>, vector<16x128xf32>, vector<16x128xf32> -> vector<16x128xf32>
    %c0_7 = arith.constant 0 : index
    %c0_8 = arith.constant 0 : index
    %9 = vector.load %arg4[%c0_7, %c0_8] : memref<1x128xf32, #tpu.memory_space<vmem>>, vector<1x128xf32>
    %10 = vector.broadcast %9 : vector<1x128xf32> to vector<16x128xf32>
    %11 = arith.addf %8, %10 : vector<16x128xf32>
    %12 = vector.shape_cast %11 : vector<16x128xf32> to vector<2x8x128xf32>
    %c0_9 = arith.constant 0 : index
    %c0_10 = arith.constant 0 : index
    %c0_11 = arith.constant 0 : index
    %13 = vector.load %arg11[%c0_9, %c0_10, %c0_11] : memref<2x8x128xf32, #tpu.memory_space<vmem>>, vector<2x8x128xf32>
    tpu.vector_store %arg11[%c0_9, %c0_10, %c0_11], %12 {strides = array<i32>} : memref<2x8x128xf32, #tpu.memory_space<vmem>>, vector<2x8x128xf32>,
    %c0_12 = arith.constant 0 : index
    %c0_13 = arith.constant 0 : index
    %14 = vector.load %arg6[%c0_12, %c0_13] : memref<2x32xf32, #tpu.memory_space<vmem>>, vector<2x32xf32>
    %c0_14 = arith.constant 0 : index
    %c0_15 = arith.constant 0 : index
    %15 = vector.load %arg7[%c0_14, %c0_15] : memref<2x32xf32, #tpu.memory_space<vmem>>, vector<2x32xf32>
    %c0_16 = arith.constant 0 : index
    %c0_17 = arith.constant 0 : index
    %16 = vector.load %arg8[%c0_16, %c0_17] : memref<50x32xf32, #tpu.memory_space<vmem>>, vector<50x32xf32>
    %c0_18 = arith.constant 0 : index
    %c0_19 = arith.constant 0 : index
    %17 = vector.load %arg9[%c0_18, %c0_19] : memref<2x50xf32, #tpu.memory_space<vmem>>, vector<2x50xf32>
    %c0_20 = arith.constant 0 : index
    %c0_21 = arith.constant 0 : index
    %18 = vector.load %arg10[%c0_20, %c0_21] : memref<2x50xf32, #tpu.memory_space<vmem>>, vector<2x50xf32>
    %c0_22 = arith.constant 0 : index
    %c0_23 = arith.constant 0 : index
    %c0_24 = arith.constant 0 : index
    %19 = vector.load %arg11[%c0_22, %c0_23, %c0_24] : memref<2x8x128xf32, #tpu.memory_space<vmem>>, vector<2x1x128xf32>
    %20 = vector.shape_cast %19 : vector<2x1x128xf32> to vector<2x128xf32>
    %cst_25 = arith.constant dense<0.000000e+00> : vector<2x128xf32>
    %21 = tpu.matmul %14, %3, %cst_25 {dimension_numbers = #tpu.dot_dimension_numbers<[1], [0], [0], [1], [0, 0, 1, 1], [], []>} : vector<2x32xf32>, vector<32x128xf32>, vector<2x128xf32> -> vector<2x128xf32>
    %22 = arith.addf %20, %21 : vector<2x128xf32>
    %23 = vector.extract_strided_slice %22 {offsets = [0, 0], sizes = [2, 32], strides = [1, 1]} : vector<2x128xf32> to vector<2x32xf32>
    %24 = arith.negf %23 : vector<2x32xf32>
    %25 = math.exp %24 : vector<2x32xf32>
    %cst_26 = arith.constant 1.000000e+00 : f32
    %26 = vector.broadcast %cst_26 : f32 to vector<2x32xf32>
    %27 = arith.addf %26, %25 : vector<2x32xf32>
    %28 = arith.divf %26, %27 : vector<2x32xf32>
    %29 = vector.extract_strided_slice %22 {offsets = [0, 32], sizes = [2, 32], strides = [1, 1]} : vector<2x128xf32> to vector<2x32xf32>
    %30 = arith.negf %29 : vector<2x32xf32>
    %31 = math.exp %30 : vector<2x32xf32>
    %cst_27 = arith.constant 1.000000e+00 : f32
    %32 = vector.broadcast %cst_27 : f32 to vector<2x32xf32>
    %33 = arith.addf %32, %31 : vector<2x32xf32>
    %34 = arith.divf %32, %33 : vector<2x32xf32>
    %35 = vector.extract_strided_slice %22 {offsets = [0, 64], sizes = [2, 32], strides = [1, 1]} : vector<2x128xf32> to vector<2x32xf32>
    %36 = math.tanh %35 : vector<2x32xf32>
    %37 = vector.extract_strided_slice %22 {offsets = [0, 96], sizes = [2, 32], strides = [1, 1]} : vector<2x128xf32> to vector<2x32xf32>
    %38 = arith.negf %37 : vector<2x32xf32>
    %39 = math.exp %38 : vector<2x32xf32>
    %cst_28 = arith.constant 1.000000e+00 : f32
    %40 = vector.broadcast %cst_28 : f32 to vector<2x32xf32>
    %41 = arith.addf %40, %39 : vector<2x32xf32>
    %42 = arith.divf %40, %41 : vector<2x32xf32>
    %43 = arith.mulf %34, %15 : vector<2x32xf32>
    %44 = arith.mulf %28, %36 : vector<2x32xf32>
    %45 = arith.addf %43, %44 : vector<2x32xf32>
    %46 = math.tanh %45 : vector<2x32xf32>
    %47 = arith.mulf %42, %46 : vector<2x32xf32>
    %48 = arith.mulf %47, %47 : vector<2x32xf32>
    %cst_29 = arith.constant dense<0.000000e+00> : vector<2xf32>
    %49 = vector.multi_reduction <add>, %48, %cst_29 [1] : vector<2x32xf32> to vector<2xf32>
    %50 = vector.shape_cast %49 : vector<2xf32> to vector<2x1xf32>
    %cst_30 = arith.constant 1.000000e-16 : f32
    %51 = vector.broadcast %cst_30 : f32 to vector<2x1xf32>
    %52 = arith.addf %50, %51 : vector<2x1xf32>
    %53 = math.rsqrt %52 : vector<2x1xf32>
    %54 = vector.broadcast %53 : vector<2x1xf32> to vector<2x32xf32>
    %55 = arith.mulf %47, %54 : vector<2x32xf32>
    %56 = arith.mulf %16, %16 : vector<50x32xf32>
    %cst_31 = arith.constant dense<0.000000e+00> : vector<50xf32>
    %57 = vector.multi_reduction <add>, %56, %cst_31 [1] : vector<50x32xf32> to vector<50xf32>
    %58 = vector.shape_cast %57 : vector<50xf32> to vector<50x1xf32>
    %cst_32 = arith.constant 1.000000e-16 : f32
    %59 = vector.broadcast %cst_32 : f32 to vector<50x1xf32>
    %60 = arith.addf %58, %59 : vector<50x1xf32>
    %61 = math.rsqrt %60 : vector<50x1xf32>
    %62 = vector.broadcast %61 : vector<50x1xf32> to vector<50x32xf32>
    %63 = arith.mulf %16, %62 : vector<50x32xf32>
    %cst_33 = arith.constant dense<0.000000e+00> : vector<2x50xf32>
    %64 = tpu.matmul %55, %63, %cst_33 {dimension_numbers = #tpu.dot_dimension_numbers<[1], [1], [0], [0], [0, 0, 1, 0], [], []>} : vector<2x32xf32>, vector<50x32xf32>, vector<2x50xf32> -> vector<2x50xf32>
    %cst_34 = arith.constant dense<0xFF800000> : vector<2xf32>
    %65 = vector.multi_reduction <maximumf>, %64, %cst_34 [1] : vector<2x50xf32> to vector<2xf32>
    %66 = vector.shape_cast %65 : vector<2xf32> to vector<2x1xf32>
    %67 = vector.broadcast %66 : vector<2x1xf32> to vector<2x50xf32>
    %68 = arith.subf %64, %67 : vector<2x50xf32>
    %69 = math.exp %68 : vector<2x50xf32>
    %cst_35 = arith.constant dense<0.000000e+00> : vector<2xf32>
    %70 = vector.multi_reduction <add>, %69, %cst_35 [1] : vector<2x50xf32> to vector<2xf32>
    %71 = vector.shape_cast %70 : vector<2xf32> to vector<2x1xf32>
    %72 = tpu.reciprocal %71 {approx = true} : vector<2x1xf32> -> vector<2x1xf32>
    %73 = vector.broadcast %72 : vector<2x1xf32> to vector<2x50xf32>
    %74 = arith.mulf %69, %73 : vector<2x50xf32>
    %cst_36 = arith.constant dense<0.000000e+00> : vector<2x32xf32>
    %75 = tpu.matmul %74, %16, %cst_36 {dimension_numbers = #tpu.dot_dimension_numbers<[1], [0], [0], [1], [0, 0, 1, 1], [], []>} : vector<2x50xf32>, vector<50x32xf32>, vector<2x32xf32> -> vector<2x32xf32>
    %76 = tpu.concatenate %47, %75 in 1 : vector<2x32xf32>, vector<2x32xf32> -> vector<2x64xf32>
    %c0_37 = arith.constant 0 : index
    %c0_38 = arith.constant 0 : index
    %c0_39 = arith.constant 0 : index
    %77 = vector.load %arg5[%c0_37, %c0_38, %c0_39] : memref<2x8x64xf32, #tpu.memory_space<vmem>>, vector<2x1x64xf32>
    %78 = vector.shape_cast %77 : vector<2x1x64xf32> to vector<2x64xf32>
    %79 = vector.shape_cast %76 : vector<2x64xf32> to vector<2x1x64xf32>
    tpu.vector_store %arg5[%c0_37, %c0_38, %c0_39], %79 {strides = array<i32>} : memref<2x8x64xf32, #tpu.memory_space<vmem>>, vector<2x1x64xf32>,
    %cst_40 = arith.constant dense<0x7F800000> : vector<2xf32>
    %80 = vector.multi_reduction <minimumf>, %17, %cst_40 [1] : vector<2x50xf32> to vector<2xf32>
    %81 = vector.shape_cast %80 : vector<2xf32> to vector<2x1xf32>
    %82 = vector.broadcast %81 : vector<2x1xf32> to vector<2x50xf32>
    %83 = arith.cmpf oeq, %17, %82 : vector<2x50xf32>
    %c50_i32 = arith.constant 50 : i32
    %84 = vector.broadcast %c50_i32 : i32 to vector<2x50xi32>
    %85 = arith.select %83, %4, %84 : vector<2x50xi1>, vector<2x50xi32>
    %cst_41 = arith.constant dense<2147483647> : vector<2xi32>
    %86 = vector.multi_reduction <minsi>, %85, %cst_41 [1] : vector<2x50xi32> to vector<2xi32>
    %87 = vector.shape_cast %86 : vector<2xi32> to vector<2x1xi32>
    %88 = vector.broadcast %87 : vector<2x1xi32> to vector<2x50xi32>
    %89 = arith.cmpi eq, %4, %88 : vector<2x50xi32>
    %90 = arith.extui %89 : vector<2x50xi1> to vector<2x50xi32>
    %91 = arith.sitofp %90 : vector<2x50xi32> to vector<2x50xf32>
    %cst_42 = arith.constant 0.598687648 : f32
    %92 = vector.broadcast %cst_42 : f32 to vector<2x50xf32>
    %93 = arith.mulf %92, %91 : vector<2x50xf32>
    %cst_43 = arith.constant 0.401312351 : f32
    %94 = vector.broadcast %cst_43 : f32 to vector<2x50xf32>
    %95 = arith.mulf %94, %18 : vector<2x50xf32>
    %96 = arith.addf %95, %93 : vector<2x50xf32>
    %cst_44 = arith.constant dense<0.000000e+00> : vector<50x32xf32>
    %97 = tpu.matmul %96, %47, %cst_44 {dimension_numbers = #tpu.dot_dimension_numbers<[0], [0], [1], [1], [0, 1, 1, 1], [], []>} : vector<2x50xf32>, vector<2x32xf32>, vector<50x32xf32> -> vector<50x32xf32>
    %98 = arith.addf %16, %97 : vector<50x32xf32>
    %99 = arith.mulf %98, %98 : vector<50x32xf32>
    %cst_45 = arith.constant dense<0.000000e+00> : vector<50xf32>
    %100 = vector.multi_reduction <add>, %99, %cst_45 [1] : vector<50x32xf32> to vector<50xf32>
    %101 = vector.shape_cast %100 : vector<50xf32> to vector<50x1xf32>
    %102 = math.rsqrt %101 : vector<50x1xf32>
    %cst_46 = arith.constant 9.99999995E+11 : f32
    %103 = vector.broadcast %cst_46 : f32 to vector<50x1xf32>
    %104 = arith.minimumf %102, %103 : vector<50x1xf32>
    %105 = vector.broadcast %104 : vector<50x1xf32> to vector<50x32xf32>
    %106 = arith.mulf %98, %105 : vector<50x32xf32>
    %cst_47 = arith.constant 3.000000e-01 : f32
    %107 = vector.broadcast %cst_47 : f32 to vector<2x50xf32>
    %108 = arith.mulf %107, %17 : vector<2x50xf32>
    %109 = arith.addf %108, %74 : vector<2x50xf32>
    %110 = arith.addf %109, %96 : vector<2x50xf32>
    %111 = arith.mulf %110, %110 : vector<2x50xf32>
    %cst_48 = arith.constant dense<0.000000e+00> : vector<2xf32>
    %112 = vector.multi_reduction <add>, %111, %cst_48 [1] : vector<2x50xf32> to vector<2xf32>
    %113 = vector.shape_cast %112 : vector<2xf32> to vector<2x1xf32>
    %114 = math.rsqrt %113 : vector<2x1xf32>
    %cst_49 = arith.constant 9.99999995E+11 : f32
    %115 = vector.broadcast %cst_49 : f32 to vector<2x1xf32>
    %116 = arith.minimumf %114, %115 : vector<2x1xf32>
    %117 = vector.broadcast %116 : vector<2x1xf32> to vector<2x50xf32>
    %118 = arith.mulf %110, %117 : vector<2x50xf32>
    %c0_50 = arith.constant 0 : index
    %c1 = arith.constant 1 : index
    %c0_51 = arith.constant 0 : index
    %119 = vector.load %arg11[%c0_50, %c1, %c0_51] : memref<2x8x128xf32, #tpu.memory_space<vmem>>, vector<2x1x128xf32>
    %120 = vector.shape_cast %119 : vector<2x1x128xf32> to vector<2x128xf32>
    %cst_52 = arith.constant dense<0.000000e+00> : vector<2x128xf32>
    %121 = tpu.matmul %47, %3, %cst_52 {dimension_numbers = #tpu.dot_dimension_numbers<[1], [0], [0], [1], [0, 0, 1, 1], [], []>} : vector<2x32xf32>, vector<32x128xf32>, vector<2x128xf32> -> vector<2x128xf32>
    %122 = arith.addf %120, %121 : vector<2x128xf32>
    %123 = vector.extract_strided_slice %122 {offsets = [0, 0], sizes = [2, 32], strides = [1, 1]} : vector<2x128xf32> to vector<2x32xf32>
    %124 = arith.negf %123 : vector<2x32xf32>
    %125 = math.exp %124 : vector<2x32xf32>
    %cst_53 = arith.constant 1.000000e+00 : f32
    %126 = vector.broadcast %cst_53 : f32 to vector<2x32xf32>
    %127 = arith.addf %126, %125 : vector<2x32xf32>
    %128 = arith.divf %126, %127 : vector<2x32xf32>
    %129 = vector.extract_strided_slice %122 {offsets = [0, 32], sizes = [2, 32], strides = [1, 1]} : vector<2x128xf32> to vector<2x32xf32>
    %130 = arith.negf %129 : vector<2x32xf32>
    %131 = math.exp %130 : vector<2x32xf32>
    %cst_54 = arith.constant 1.000000e+00 : f32
    %132 = vector.broadcast %cst_54 : f32 to vector<2x32xf32>
    %133 = arith.addf %132, %131 : vector<2x32xf32>
    %134 = arith.divf %132, %133 : vector<2x32xf32>
    %135 = vector.extract_strided_slice %122 {offsets = [0, 64], sizes = [2, 32], strides = [1, 1]} : vector<2x128xf32> to vector<2x32xf32>
    %136 = math.tanh %135 : vector<2x32xf32>
    %137 = vector.extract_strided_slice %122 {offsets = [0, 96], sizes = [2, 32], strides = [1, 1]} : vector<2x128xf32> to vector<2x32xf32>
    %138 = arith.negf %137 : vector<2x32xf32>
    %139 = math.exp %138 : vector<2x32xf32>
    %cst_55 = arith.constant 1.000000e+00 : f32
    %140 = vector.broadcast %cst_55 : f32 to vector<2x32xf32>
    %141 = arith.addf %140, %139 : vector<2x32xf32>
    %142 = arith.divf %140, %141 : vector<2x32xf32>
    %143 = arith.mulf %134, %45 : vector<2x32xf32>
    %144 = arith.mulf %128, %136 : vector<2x32xf32>
    %145 = arith.addf %143, %144 : vector<2x32xf32>
    %146 = math.tanh %145 : vector<2x32xf32>
    %147 = arith.mulf %142, %146 : vector<2x32xf32>
    %148 = arith.mulf %147, %147 : vector<2x32xf32>
    %cst_56 = arith.constant dense<0.000000e+00> : vector<2xf32>
    %149 = vector.multi_reduction <add>, %148, %cst_56 [1] : vector<2x32xf32> to vector<2xf32>
    %150 = vector.shape_cast %149 : vector<2xf32> to vector<2x1xf32>
    %cst_57 = arith.constant 1.000000e-16 : f32
    %151 = vector.broadcast %cst_57 : f32 to vector<2x1xf32>
    %152 = arith.addf %150, %151 : vector<2x1xf32>
    %153 = math.rsqrt %152 : vector<2x1xf32>
    %154 = vector.broadcast %153 : vector<2x1xf32> to vector<2x32xf32>
    %155 = arith.mulf %147, %154 : vector<2x32xf32>
    %156 = arith.mulf %106, %106 : vector<50x32xf32>
    %cst_58 = arith.constant dense<0.000000e+00> : vector<50xf32>
    %157 = vector.multi_reduction <add>, %156, %cst_58 [1] : vector<50x32xf32> to vector<50xf32>
    %158 = vector.shape_cast %157 : vector<50xf32> to vector<50x1xf32>
    %cst_59 = arith.constant 1.000000e-16 : f32
    %159 = vector.broadcast %cst_59 : f32 to vector<50x1xf32>
    %160 = arith.addf %158, %159 : vector<50x1xf32>
    %161 = math.rsqrt %160 : vector<50x1xf32>
    %162 = vector.broadcast %161 : vector<50x1xf32> to vector<50x32xf32>
    %163 = arith.mulf %106, %162 : vector<50x32xf32>
    %cst_60 = arith.constant dense<0.000000e+00> : vector<2x50xf32>
    %164 = tpu.matmul %155, %163, %cst_60 {dimension_numbers = #tpu.dot_dimension_numbers<[1], [1], [0], [0], [0, 0, 1, 0], [], []>} : vector<2x32xf32>, vector<50x32xf32>, vector<2x50xf32> -> vector<2x50xf32>
    %cst_61 = arith.constant dense<0xFF800000> : vector<2xf32>
    %165 = vector.multi_reduction <maximumf>, %164, %cst_61 [1] : vector<2x50xf32> to vector<2xf32>
    %166 = vector.shape_cast %165 : vector<2xf32> to vector<2x1xf32>
    %167 = vector.broadcast %166 : vector<2x1xf32> to vector<2x50xf32>
    %168 = arith.subf %164, %167 : vector<2x50xf32>
    %169 = math.exp %168 : vector<2x50xf32>
    %cst_62 = arith.constant dense<0.000000e+00> : vector<2xf32>
    %170 = vector.multi_reduction <add>, %169, %cst_62 [1] : vector<2x50xf32> to vector<2xf32>
    %171 = vector.shape_cast %170 : vector<2xf32> to vector<2x1xf32>
    %172 = tpu.reciprocal %171 {approx = true} : vector<2x1xf32> -> vector<2x1xf32>
    %173 = vector.broadcast %172 : vector<2x1xf32> to vector<2x50xf32>
    %174 = arith.mulf %169, %173 : vector<2x50xf32>
    %cst_63 = arith.constant dense<0.000000e+00> : vector<2x32xf32>
    %175 = tpu.matmul %174, %106, %cst_63 {dimension_numbers = #tpu.dot_dimension_numbers<[1], [0], [0], [1], [0, 0, 1, 1], [], []>} : vector<2x50xf32>, vector<50x32xf32>, vector<2x32xf32> -> vector<2x32xf32>
    %176 = tpu.concatenate %147, %175 in 1 : vector<2x32xf32>, vector<2x32xf32> -> vector<2x64xf32>
    %c0_64 = arith.constant 0 : index
    %c1_65 = arith.constant 1 : index
    %c0_66 = arith.constant 0 : index
    %177 = vector.load %arg5[%c0_64, %c1_65, %c0_66] : memref<2x8x64xf32, #tpu.memory_space<vmem>>, vector<2x1x64xf32>
    %178 = vector.shape_cast %177 : vector<2x1x64xf32> to vector<2x64xf32>
    %179 = vector.shape_cast %176 : vector<2x64xf32> to vector<2x1x64xf32>
    tpu.vector_store %arg5[%c0_64, %c1_65, %c0_66], %179 {strides = array<i32>} : memref<2x8x64xf32, #tpu.memory_space<vmem>>, vector<2x1x64xf32>,
    %cst_67 = arith.constant dense<0x7F800000> : vector<2xf32>
    %180 = vector.multi_reduction <minimumf>, %118, %cst_67 [1] : vector<2x50xf32> to vector<2xf32>
    %181 = vector.shape_cast %180 : vector<2xf32> to vector<2x1xf32>
    %182 = vector.broadcast %181 : vector<2x1xf32> to vector<2x50xf32>
    %183 = arith.cmpf oeq, %118, %182 : vector<2x50xf32>
    %c50_i32_68 = arith.constant 50 : i32
    %184 = vector.broadcast %c50_i32_68 : i32 to vector<2x50xi32>
    %185 = arith.select %183, %4, %184 : vector<2x50xi1>, vector<2x50xi32>
    %cst_69 = arith.constant dense<2147483647> : vector<2xi32>
    %186 = vector.multi_reduction <minsi>, %185, %cst_69 [1] : vector<2x50xi32> to vector<2xi32>
    %187 = vector.shape_cast %186 : vector<2xi32> to vector<2x1xi32>
    %188 = vector.broadcast %187 : vector<2x1xi32> to vector<2x50xi32>
    %189 = arith.cmpi eq, %4, %188 : vector<2x50xi32>
    %190 = arith.extui %189 : vector<2x50xi1> to vector<2x50xi32>
    %191 = arith.sitofp %190 : vector<2x50xi32> to vector<2x50xf32>
    %cst_70 = arith.constant 0.598687648 : f32
    %192 = vector.broadcast %cst_70 : f32 to vector<2x50xf32>
    %193 = arith.mulf %192, %191 : vector<2x50xf32>
    %cst_71 = arith.constant 0.401312351 : f32
    %194 = vector.broadcast %cst_71 : f32 to vector<2x50xf32>
    %195 = arith.mulf %194, %74 : vector<2x50xf32>
    %196 = arith.addf %195, %193 : vector<2x50xf32>
    %cst_72 = arith.constant dense<0.000000e+00> : vector<50x32xf32>
    %197 = tpu.matmul %196, %147, %cst_72 {dimension_numbers = #tpu.dot_dimension_numbers<[0], [0], [1], [1], [0, 1, 1, 1], [], []>} : vector<2x50xf32>, vector<2x32xf32>, vector<50x32xf32> -> vector<50x32xf32>
    %198 = arith.addf %106, %197 : vector<50x32xf32>
    %199 = arith.mulf %198, %198 : vector<50x32xf32>
    %cst_73 = arith.constant dense<0.000000e+00> : vector<50xf32>
    %200 = vector.multi_reduction <add>, %199, %cst_73 [1] : vector<50x32xf32> to vector<50xf32>
    %201 = vector.shape_cast %200 : vector<50xf32> to vector<50x1xf32>
    %202 = math.rsqrt %201 : vector<50x1xf32>
    %cst_74 = arith.constant 9.99999995E+11 : f32
    %203 = vector.broadcast %cst_74 : f32 to vector<50x1xf32>
    %204 = arith.minimumf %202, %203 : vector<50x1xf32>
    %205 = vector.broadcast %204 : vector<50x1xf32> to vector<50x32xf32>
    %206 = arith.mulf %198, %205 : vector<50x32xf32>
    %cst_75 = arith.constant 3.000000e-01 : f32
    %207 = vector.broadcast %cst_75 : f32 to vector<2x50xf32>
    %208 = arith.mulf %207, %118 : vector<2x50xf32>
    %209 = arith.addf %208, %174 : vector<2x50xf32>
    %210 = arith.addf %209, %196 : vector<2x50xf32>
    %211 = arith.mulf %210, %210 : vector<2x50xf32>
    %cst_76 = arith.constant dense<0.000000e+00> : vector<2xf32>
    %212 = vector.multi_reduction <add>, %211, %cst_76 [1] : vector<2x50xf32> to vector<2xf32>
    %213 = vector.shape_cast %212 : vector<2xf32> to vector<2x1xf32>
    %214 = math.rsqrt %213 : vector<2x1xf32>
    %cst_77 = arith.constant 9.99999995E+11 : f32
    %215 = vector.broadcast %cst_77 : f32 to vector<2x1xf32>
    %216 = arith.minimumf %214, %215 : vector<2x1xf32>
    %217 = vector.broadcast %216 : vector<2x1xf32> to vector<2x50xf32>
    %218 = arith.mulf %210, %217 : vector<2x50xf32>
    %c0_78 = arith.constant 0 : index
    %c2 = arith.constant 2 : index
    %c0_79 = arith.constant 0 : index
    %219 = vector.load %arg11[%c0_78, %c2, %c0_79] : memref<2x8x128xf32, #tpu.memory_space<vmem>>, vector<2x1x128xf32>
    %220 = vector.shape_cast %219 : vector<2x1x128xf32> to vector<2x128xf32>
    %cst_80 = arith.constant dense<0.000000e+00> : vector<2x128xf32>
    %221 = tpu.matmul %147, %3, %cst_80 {dimension_numbers = #tpu.dot_dimension_numbers<[1], [0], [0], [1], [0, 0, 1, 1], [], []>} : vector<2x32xf32>, vector<32x128xf32>, vector<2x128xf32> -> vector<2x128xf32>
    %222 = arith.addf %220, %221 : vector<2x128xf32>
    %223 = vector.extract_strided_slice %222 {offsets = [0, 0], sizes = [2, 32], strides = [1, 1]} : vector<2x128xf32> to vector<2x32xf32>
    %224 = arith.negf %223 : vector<2x32xf32>
    %225 = math.exp %224 : vector<2x32xf32>
    %cst_81 = arith.constant 1.000000e+00 : f32
    %226 = vector.broadcast %cst_81 : f32 to vector<2x32xf32>
    %227 = arith.addf %226, %225 : vector<2x32xf32>
    %228 = arith.divf %226, %227 : vector<2x32xf32>
    %229 = vector.extract_strided_slice %222 {offsets = [0, 32], sizes = [2, 32], strides = [1, 1]} : vector<2x128xf32> to vector<2x32xf32>
    %230 = arith.negf %229 : vector<2x32xf32>
    %231 = math.exp %230 : vector<2x32xf32>
    %cst_82 = arith.constant 1.000000e+00 : f32
    %232 = vector.broadcast %cst_82 : f32 to vector<2x32xf32>
    %233 = arith.addf %232, %231 : vector<2x32xf32>
    %234 = arith.divf %232, %233 : vector<2x32xf32>
    %235 = vector.extract_strided_slice %222 {offsets = [0, 64], sizes = [2, 32], strides = [1, 1]} : vector<2x128xf32> to vector<2x32xf32>
    %236 = math.tanh %235 : vector<2x32xf32>
    %237 = vector.extract_strided_slice %222 {offsets = [0, 96], sizes = [2, 32], strides = [1, 1]} : vector<2x128xf32> to vector<2x32xf32>
    %238 = arith.negf %237 : vector<2x32xf32>
    %239 = math.exp %238 : vector<2x32xf32>
    %cst_83 = arith.constant 1.000000e+00 : f32
    %240 = vector.broadcast %cst_83 : f32 to vector<2x32xf32>
    %241 = arith.addf %240, %239 : vector<2x32xf32>
    %242 = arith.divf %240, %241 : vector<2x32xf32>
    %243 = arith.mulf %234, %145 : vector<2x32xf32>
    %244 = arith.mulf %228, %236 : vector<2x32xf32>
    %245 = arith.addf %243, %244 : vector<2x32xf32>
    %246 = math.tanh %245 : vector<2x32xf32>
    %247 = arith.mulf %242, %246 : vector<2x32xf32>
    %248 = arith.mulf %247, %247 : vector<2x32xf32>
    %cst_84 = arith.constant dense<0.000000e+00> : vector<2xf32>
    %249 = vector.multi_reduction <add>, %248, %cst_84 [1] : vector<2x32xf32> to vector<2xf32>
    %250 = vector.shape_cast %249 : vector<2xf32> to vector<2x1xf32>
    %cst_85 = arith.constant 1.000000e-16 : f32
    %251 = vector.broadcast %cst_85 : f32 to vector<2x1xf32>
    %252 = arith.addf %250, %251 : vector<2x1xf32>
    %253 = math.rsqrt %252 : vector<2x1xf32>
    %254 = vector.broadcast %253 : vector<2x1xf32> to vector<2x32xf32>
    %255 = arith.mulf %247, %254 : vector<2x32xf32>
    %256 = arith.mulf %206, %206 : vector<50x32xf32>
    %cst_86 = arith.constant dense<0.000000e+00> : vector<50xf32>
    %257 = vector.multi_reduction <add>, %256, %cst_86 [1] : vector<50x32xf32> to vector<50xf32>
    %258 = vector.shape_cast %257 : vector<50xf32> to vector<50x1xf32>
    %cst_87 = arith.constant 1.000000e-16 : f32
    %259 = vector.broadcast %cst_87 : f32 to vector<50x1xf32>
    %260 = arith.addf %258, %259 : vector<50x1xf32>
    %261 = math.rsqrt %260 : vector<50x1xf32>
    %262 = vector.broadcast %261 : vector<50x1xf32> to vector<50x32xf32>
    %263 = arith.mulf %206, %262 : vector<50x32xf32>
    %cst_88 = arith.constant dense<0.000000e+00> : vector<2x50xf32>
    %264 = tpu.matmul %255, %263, %cst_88 {dimension_numbers = #tpu.dot_dimension_numbers<[1], [1], [0], [0], [0, 0, 1, 0], [], []>} : vector<2x32xf32>, vector<50x32xf32>, vector<2x50xf32> -> vector<2x50xf32>
    %cst_89 = arith.constant dense<0xFF800000> : vector<2xf32>
    %265 = vector.multi_reduction <maximumf>, %264, %cst_89 [1] : vector<2x50xf32> to vector<2xf32>
    %266 = vector.shape_cast %265 : vector<2xf32> to vector<2x1xf32>
    %267 = vector.broadcast %266 : vector<2x1xf32> to vector<2x50xf32>
    %268 = arith.subf %264, %267 : vector<2x50xf32>
    %269 = math.exp %268 : vector<2x50xf32>
    %cst_90 = arith.constant dense<0.000000e+00> : vector<2xf32>
    %270 = vector.multi_reduction <add>, %269, %cst_90 [1] : vector<2x50xf32> to vector<2xf32>
    %271 = vector.shape_cast %270 : vector<2xf32> to vector<2x1xf32>
    %272 = tpu.reciprocal %271 {approx = true} : vector<2x1xf32> -> vector<2x1xf32>
    %273 = vector.broadcast %272 : vector<2x1xf32> to vector<2x50xf32>
    %274 = arith.mulf %269, %273 : vector<2x50xf32>
    %cst_91 = arith.constant dense<0.000000e+00> : vector<2x32xf32>
    %275 = tpu.matmul %274, %206, %cst_91 {dimension_numbers = #tpu.dot_dimension_numbers<[1], [0], [0], [1], [0, 0, 1, 1], [], []>} : vector<2x50xf32>, vector<50x32xf32>, vector<2x32xf32> -> vector<2x32xf32>
    %276 = tpu.concatenate %247, %275 in 1 : vector<2x32xf32>, vector<2x32xf32> -> vector<2x64xf32>
    %c0_92 = arith.constant 0 : index
    %c2_93 = arith.constant 2 : index
    %c0_94 = arith.constant 0 : index
    %277 = vector.load %arg5[%c0_92, %c2_93, %c0_94] : memref<2x8x64xf32, #tpu.memory_space<vmem>>, vector<2x1x64xf32>
    %278 = vector.shape_cast %277 : vector<2x1x64xf32> to vector<2x64xf32>
    %279 = vector.shape_cast %276 : vector<2x64xf32> to vector<2x1x64xf32>
    tpu.vector_store %arg5[%c0_92, %c2_93, %c0_94], %279 {strides = array<i32>} : memref<2x8x64xf32, #tpu.memory_space<vmem>>, vector<2x1x64xf32>,
    %cst_95 = arith.constant dense<0x7F800000> : vector<2xf32>
    %280 = vector.multi_reduction <minimumf>, %218, %cst_95 [1] : vector<2x50xf32> to vector<2xf32>
    %281 = vector.shape_cast %280 : vector<2xf32> to vector<2x1xf32>
    %282 = vector.broadcast %281 : vector<2x1xf32> to vector<2x50xf32>
    %283 = arith.cmpf oeq, %218, %282 : vector<2x50xf32>
    %c50_i32_96 = arith.constant 50 : i32
    %284 = vector.broadcast %c50_i32_96 : i32 to vector<2x50xi32>
    %285 = arith.select %283, %4, %284 : vector<2x50xi1>, vector<2x50xi32>
    %cst_97 = arith.constant dense<2147483647> : vector<2xi32>
    %286 = vector.multi_reduction <minsi>, %285, %cst_97 [1] : vector<2x50xi32> to vector<2xi32>
    %287 = vector.shape_cast %286 : vector<2xi32> to vector<2x1xi32>
    %288 = vector.broadcast %287 : vector<2x1xi32> to vector<2x50xi32>
    %289 = arith.cmpi eq, %4, %288 : vector<2x50xi32>
    %290 = arith.extui %289 : vector<2x50xi1> to vector<2x50xi32>
    %291 = arith.sitofp %290 : vector<2x50xi32> to vector<2x50xf32>
    %cst_98 = arith.constant 0.598687648 : f32
    %292 = vector.broadcast %cst_98 : f32 to vector<2x50xf32>
    %293 = arith.mulf %292, %291 : vector<2x50xf32>
    %cst_99 = arith.constant 0.401312351 : f32
    %294 = vector.broadcast %cst_99 : f32 to vector<2x50xf32>
    %295 = arith.mulf %294, %174 : vector<2x50xf32>
    %296 = arith.addf %295, %293 : vector<2x50xf32>
    %cst_100 = arith.constant dense<0.000000e+00> : vector<50x32xf32>
    %297 = tpu.matmul %296, %247, %cst_100 {dimension_numbers = #tpu.dot_dimension_numbers<[0], [0], [1], [1], [0, 1, 1, 1], [], []>} : vector<2x50xf32>, vector<2x32xf32>, vector<50x32xf32> -> vector<50x32xf32>
    %298 = arith.addf %206, %297 : vector<50x32xf32>
    %299 = arith.mulf %298, %298 : vector<50x32xf32>
    %cst_101 = arith.constant dense<0.000000e+00> : vector<50xf32>
    %300 = vector.multi_reduction <add>, %299, %cst_101 [1] : vector<50x32xf32> to vector<50xf32>
    %301 = vector.shape_cast %300 : vector<50xf32> to vector<50x1xf32>
    %302 = math.rsqrt %301 : vector<50x1xf32>
    %cst_102 = arith.constant 9.99999995E+11 : f32
    %303 = vector.broadcast %cst_102 : f32 to vector<50x1xf32>
    %304 = arith.minimumf %302, %303 : vector<50x1xf32>
    %305 = vector.broadcast %304 : vector<50x1xf32> to vector<50x32xf32>
    %306 = arith.mulf %298, %305 : vector<50x32xf32>
    %cst_103 = arith.constant 3.000000e-01 : f32
    %307 = vector.broadcast %cst_103 : f32 to vector<2x50xf32>
    %308 = arith.mulf %307, %218 : vector<2x50xf32>
    %309 = arith.addf %308, %274 : vector<2x50xf32>
    %310 = arith.addf %309, %296 : vector<2x50xf32>
    %311 = arith.mulf %310, %310 : vector<2x50xf32>
    %cst_104 = arith.constant dense<0.000000e+00> : vector<2xf32>
    %312 = vector.multi_reduction <add>, %311, %cst_104 [1] : vector<2x50xf32> to vector<2xf32>
    %313 = vector.shape_cast %312 : vector<2xf32> to vector<2x1xf32>
    %314 = math.rsqrt %313 : vector<2x1xf32>
    %cst_105 = arith.constant 9.99999995E+11 : f32
    %315 = vector.broadcast %cst_105 : f32 to vector<2x1xf32>
    %316 = arith.minimumf %314, %315 : vector<2x1xf32>
    %317 = vector.broadcast %316 : vector<2x1xf32> to vector<2x50xf32>
    %318 = arith.mulf %310, %317 : vector<2x50xf32>
    %c0_106 = arith.constant 0 : index
    %c3 = arith.constant 3 : index
    %c0_107 = arith.constant 0 : index
    %319 = vector.load %arg11[%c0_106, %c3, %c0_107] : memref<2x8x128xf32, #tpu.memory_space<vmem>>, vector<2x1x128xf32>
    %320 = vector.shape_cast %319 : vector<2x1x128xf32> to vector<2x128xf32>
    %cst_108 = arith.constant dense<0.000000e+00> : vector<2x128xf32>
    %321 = tpu.matmul %247, %3, %cst_108 {dimension_numbers = #tpu.dot_dimension_numbers<[1], [0], [0], [1], [0, 0, 1, 1], [], []>} : vector<2x32xf32>, vector<32x128xf32>, vector<2x128xf32> -> vector<2x128xf32>
    %322 = arith.addf %320, %321 : vector<2x128xf32>
    %323 = vector.extract_strided_slice %322 {offsets = [0, 0], sizes = [2, 32], strides = [1, 1]} : vector<2x128xf32> to vector<2x32xf32>
    %324 = arith.negf %323 : vector<2x32xf32>
    %325 = math.exp %324 : vector<2x32xf32>
    %cst_109 = arith.constant 1.000000e+00 : f32
    %326 = vector.broadcast %cst_109 : f32 to vector<2x32xf32>
    %327 = arith.addf %326, %325 : vector<2x32xf32>
    %328 = arith.divf %326, %327 : vector<2x32xf32>
    %329 = vector.extract_strided_slice %322 {offsets = [0, 32], sizes = [2, 32], strides = [1, 1]} : vector<2x128xf32> to vector<2x32xf32>
    %330 = arith.negf %329 : vector<2x32xf32>
    %331 = math.exp %330 : vector<2x32xf32>
    %cst_110 = arith.constant 1.000000e+00 : f32
    %332 = vector.broadcast %cst_110 : f32 to vector<2x32xf32>
    %333 = arith.addf %332, %331 : vector<2x32xf32>
    %334 = arith.divf %332, %333 : vector<2x32xf32>
    %335 = vector.extract_strided_slice %322 {offsets = [0, 64], sizes = [2, 32], strides = [1, 1]} : vector<2x128xf32> to vector<2x32xf32>
    %336 = math.tanh %335 : vector<2x32xf32>
    %337 = vector.extract_strided_slice %322 {offsets = [0, 96], sizes = [2, 32], strides = [1, 1]} : vector<2x128xf32> to vector<2x32xf32>
    %338 = arith.negf %337 : vector<2x32xf32>
    %339 = math.exp %338 : vector<2x32xf32>
    %cst_111 = arith.constant 1.000000e+00 : f32
    %340 = vector.broadcast %cst_111 : f32 to vector<2x32xf32>
    %341 = arith.addf %340, %339 : vector<2x32xf32>
    %342 = arith.divf %340, %341 : vector<2x32xf32>
    %343 = arith.mulf %334, %245 : vector<2x32xf32>
    %344 = arith.mulf %328, %336 : vector<2x32xf32>
    %345 = arith.addf %343, %344 : vector<2x32xf32>
    %346 = math.tanh %345 : vector<2x32xf32>
    %347 = arith.mulf %342, %346 : vector<2x32xf32>
    %348 = arith.mulf %347, %347 : vector<2x32xf32>
    %cst_112 = arith.constant dense<0.000000e+00> : vector<2xf32>
    %349 = vector.multi_reduction <add>, %348, %cst_112 [1] : vector<2x32xf32> to vector<2xf32>
    %350 = vector.shape_cast %349 : vector<2xf32> to vector<2x1xf32>
    %cst_113 = arith.constant 1.000000e-16 : f32
    %351 = vector.broadcast %cst_113 : f32 to vector<2x1xf32>
    %352 = arith.addf %350, %351 : vector<2x1xf32>
    %353 = math.rsqrt %352 : vector<2x1xf32>
    %354 = vector.broadcast %353 : vector<2x1xf32> to vector<2x32xf32>
    %355 = arith.mulf %347, %354 : vector<2x32xf32>
    %356 = arith.mulf %306, %306 : vector<50x32xf32>
    %cst_114 = arith.constant dense<0.000000e+00> : vector<50xf32>
    %357 = vector.multi_reduction <add>, %356, %cst_114 [1] : vector<50x32xf32> to vector<50xf32>
    %358 = vector.shape_cast %357 : vector<50xf32> to vector<50x1xf32>
    %cst_115 = arith.constant 1.000000e-16 : f32
    %359 = vector.broadcast %cst_115 : f32 to vector<50x1xf32>
    %360 = arith.addf %358, %359 : vector<50x1xf32>
    %361 = math.rsqrt %360 : vector<50x1xf32>
    %362 = vector.broadcast %361 : vector<50x1xf32> to vector<50x32xf32>
    %363 = arith.mulf %306, %362 : vector<50x32xf32>
    %cst_116 = arith.constant dense<0.000000e+00> : vector<2x50xf32>
    %364 = tpu.matmul %355, %363, %cst_116 {dimension_numbers = #tpu.dot_dimension_numbers<[1], [1], [0], [0], [0, 0, 1, 0], [], []>} : vector<2x32xf32>, vector<50x32xf32>, vector<2x50xf32> -> vector<2x50xf32>
    %cst_117 = arith.constant dense<0xFF800000> : vector<2xf32>
    %365 = vector.multi_reduction <maximumf>, %364, %cst_117 [1] : vector<2x50xf32> to vector<2xf32>
    %366 = vector.shape_cast %365 : vector<2xf32> to vector<2x1xf32>
    %367 = vector.broadcast %366 : vector<2x1xf32> to vector<2x50xf32>
    %368 = arith.subf %364, %367 : vector<2x50xf32>
    %369 = math.exp %368 : vector<2x50xf32>
    %cst_118 = arith.constant dense<0.000000e+00> : vector<2xf32>
    %370 = vector.multi_reduction <add>, %369, %cst_118 [1] : vector<2x50xf32> to vector<2xf32>
    %371 = vector.shape_cast %370 : vector<2xf32> to vector<2x1xf32>
    %372 = tpu.reciprocal %371 {approx = true} : vector<2x1xf32> -> vector<2x1xf32>
    %373 = vector.broadcast %372 : vector<2x1xf32> to vector<2x50xf32>
    %374 = arith.mulf %369, %373 : vector<2x50xf32>
    %cst_119 = arith.constant dense<0.000000e+00> : vector<2x32xf32>
    %375 = tpu.matmul %374, %306, %cst_119 {dimension_numbers = #tpu.dot_dimension_numbers<[1], [0], [0], [1], [0, 0, 1, 1], [], []>} : vector<2x50xf32>, vector<50x32xf32>, vector<2x32xf32> -> vector<2x32xf32>
    %376 = tpu.concatenate %347, %375 in 1 : vector<2x32xf32>, vector<2x32xf32> -> vector<2x64xf32>
    %c0_120 = arith.constant 0 : index
    %c3_121 = arith.constant 3 : index
    %c0_122 = arith.constant 0 : index
    %377 = vector.load %arg5[%c0_120, %c3_121, %c0_122] : memref<2x8x64xf32, #tpu.memory_space<vmem>>, vector<2x1x64xf32>
    %378 = vector.shape_cast %377 : vector<2x1x64xf32> to vector<2x64xf32>
    %379 = vector.shape_cast %376 : vector<2x64xf32> to vector<2x1x64xf32>
    tpu.vector_store %arg5[%c0_120, %c3_121, %c0_122], %379 {strides = array<i32>} : memref<2x8x64xf32, #tpu.memory_space<vmem>>, vector<2x1x64xf32>,
    %cst_123 = arith.constant dense<0x7F800000> : vector<2xf32>
    %380 = vector.multi_reduction <minimumf>, %318, %cst_123 [1] : vector<2x50xf32> to vector<2xf32>
    %381 = vector.shape_cast %380 : vector<2xf32> to vector<2x1xf32>
    %382 = vector.broadcast %381 : vector<2x1xf32> to vector<2x50xf32>
    %383 = arith.cmpf oeq, %318, %382 : vector<2x50xf32>
    %c50_i32_124 = arith.constant 50 : i32
    %384 = vector.broadcast %c50_i32_124 : i32 to vector<2x50xi32>
    %385 = arith.select %383, %4, %384 : vector<2x50xi1>, vector<2x50xi32>
    %cst_125 = arith.constant dense<2147483647> : vector<2xi32>
    %386 = vector.multi_reduction <minsi>, %385, %cst_125 [1] : vector<2x50xi32> to vector<2xi32>
    %387 = vector.shape_cast %386 : vector<2xi32> to vector<2x1xi32>
    %388 = vector.broadcast %387 : vector<2x1xi32> to vector<2x50xi32>
    %389 = arith.cmpi eq, %4, %388 : vector<2x50xi32>
    %390 = arith.extui %389 : vector<2x50xi1> to vector<2x50xi32>
    %391 = arith.sitofp %390 : vector<2x50xi32> to vector<2x50xf32>
    %cst_126 = arith.constant 0.598687648 : f32
    %392 = vector.broadcast %cst_126 : f32 to vector<2x50xf32>
    %393 = arith.mulf %392, %391 : vector<2x50xf32>
    %cst_127 = arith.constant 0.401312351 : f32
    %394 = vector.broadcast %cst_127 : f32 to vector<2x50xf32>
    %395 = arith.mulf %394, %274 : vector<2x50xf32>
    %396 = arith.addf %395, %393 : vector<2x50xf32>
    %cst_128 = arith.constant dense<0.000000e+00> : vector<50x32xf32>
    %397 = tpu.matmul %396, %347, %cst_128 {dimension_numbers = #tpu.dot_dimension_numbers<[0], [0], [1], [1], [0, 1, 1, 1], [], []>} : vector<2x50xf32>, vector<2x32xf32>, vector<50x32xf32> -> vector<50x32xf32>
    %398 = arith.addf %306, %397 : vector<50x32xf32>
    %399 = arith.mulf %398, %398 : vector<50x32xf32>
    %cst_129 = arith.constant dense<0.000000e+00> : vector<50xf32>
    %400 = vector.multi_reduction <add>, %399, %cst_129 [1] : vector<50x32xf32> to vector<50xf32>
    %401 = vector.shape_cast %400 : vector<50xf32> to vector<50x1xf32>
    %402 = math.rsqrt %401 : vector<50x1xf32>
    %cst_130 = arith.constant 9.99999995E+11 : f32
    %403 = vector.broadcast %cst_130 : f32 to vector<50x1xf32>
    %404 = arith.minimumf %402, %403 : vector<50x1xf32>
    %405 = vector.broadcast %404 : vector<50x1xf32> to vector<50x32xf32>
    %406 = arith.mulf %398, %405 : vector<50x32xf32>
    %cst_131 = arith.constant 3.000000e-01 : f32
    %407 = vector.broadcast %cst_131 : f32 to vector<2x50xf32>
    %408 = arith.mulf %407, %318 : vector<2x50xf32>
    %409 = arith.addf %408, %374 : vector<2x50xf32>
    %410 = arith.addf %409, %396 : vector<2x50xf32>
    %411 = arith.mulf %410, %410 : vector<2x50xf32>
    %cst_132 = arith.constant dense<0.000000e+00> : vector<2xf32>
    %412 = vector.multi_reduction <add>, %411, %cst_132 [1] : vector<2x50xf32> to vector<2xf32>
    %413 = vector.shape_cast %412 : vector<2xf32> to vector<2x1xf32>
    %414 = math.rsqrt %413 : vector<2x1xf32>
    %cst_133 = arith.constant 9.99999995E+11 : f32
    %415 = vector.broadcast %cst_133 : f32 to vector<2x1xf32>
    %416 = arith.minimumf %414, %415 : vector<2x1xf32>
    %417 = vector.broadcast %416 : vector<2x1xf32> to vector<2x50xf32>
    %418 = arith.mulf %410, %417 : vector<2x50xf32>
    %c0_134 = arith.constant 0 : index
    %c4 = arith.constant 4 : index
    %c0_135 = arith.constant 0 : index
    %419 = vector.load %arg11[%c0_134, %c4, %c0_135] : memref<2x8x128xf32, #tpu.memory_space<vmem>>, vector<2x1x128xf32>
    %420 = vector.shape_cast %419 : vector<2x1x128xf32> to vector<2x128xf32>
    %cst_136 = arith.constant dense<0.000000e+00> : vector<2x128xf32>
    %421 = tpu.matmul %347, %3, %cst_136 {dimension_numbers = #tpu.dot_dimension_numbers<[1], [0], [0], [1], [0, 0, 1, 1], [], []>} : vector<2x32xf32>, vector<32x128xf32>, vector<2x128xf32> -> vector<2x128xf32>
    %422 = arith.addf %420, %421 : vector<2x128xf32>
    %423 = vector.extract_strided_slice %422 {offsets = [0, 0], sizes = [2, 32], strides = [1, 1]} : vector<2x128xf32> to vector<2x32xf32>
    %424 = arith.negf %423 : vector<2x32xf32>
    %425 = math.exp %424 : vector<2x32xf32>
    %cst_137 = arith.constant 1.000000e+00 : f32
    %426 = vector.broadcast %cst_137 : f32 to vector<2x32xf32>
    %427 = arith.addf %426, %425 : vector<2x32xf32>
    %428 = arith.divf %426, %427 : vector<2x32xf32>
    %429 = vector.extract_strided_slice %422 {offsets = [0, 32], sizes = [2, 32], strides = [1, 1]} : vector<2x128xf32> to vector<2x32xf32>
    %430 = arith.negf %429 : vector<2x32xf32>
    %431 = math.exp %430 : vector<2x32xf32>
    %cst_138 = arith.constant 1.000000e+00 : f32
    %432 = vector.broadcast %cst_138 : f32 to vector<2x32xf32>
    %433 = arith.addf %432, %431 : vector<2x32xf32>
    %434 = arith.divf %432, %433 : vector<2x32xf32>
    %435 = vector.extract_strided_slice %422 {offsets = [0, 64], sizes = [2, 32], strides = [1, 1]} : vector<2x128xf32> to vector<2x32xf32>
    %436 = math.tanh %435 : vector<2x32xf32>
    %437 = vector.extract_strided_slice %422 {offsets = [0, 96], sizes = [2, 32], strides = [1, 1]} : vector<2x128xf32> to vector<2x32xf32>
    %438 = arith.negf %437 : vector<2x32xf32>
    %439 = math.exp %438 : vector<2x32xf32>
    %cst_139 = arith.constant 1.000000e+00 : f32
    %440 = vector.broadcast %cst_139 : f32 to vector<2x32xf32>
    %441 = arith.addf %440, %439 : vector<2x32xf32>
    %442 = arith.divf %440, %441 : vector<2x32xf32>
    %443 = arith.mulf %434, %345 : vector<2x32xf32>
    %444 = arith.mulf %428, %436 : vector<2x32xf32>
    %445 = arith.addf %443, %444 : vector<2x32xf32>
    %446 = math.tanh %445 : vector<2x32xf32>
    %447 = arith.mulf %442, %446 : vector<2x32xf32>
    %448 = arith.mulf %447, %447 : vector<2x32xf32>
    %cst_140 = arith.constant dense<0.000000e+00> : vector<2xf32>
    %449 = vector.multi_reduction <add>, %448, %cst_140 [1] : vector<2x32xf32> to vector<2xf32>
    %450 = vector.shape_cast %449 : vector<2xf32> to vector<2x1xf32>
    %cst_141 = arith.constant 1.000000e-16 : f32
    %451 = vector.broadcast %cst_141 : f32 to vector<2x1xf32>
    %452 = arith.addf %450, %451 : vector<2x1xf32>
    %453 = math.rsqrt %452 : vector<2x1xf32>
    %454 = vector.broadcast %453 : vector<2x1xf32> to vector<2x32xf32>
    %455 = arith.mulf %447, %454 : vector<2x32xf32>
    %456 = arith.mulf %406, %406 : vector<50x32xf32>
    %cst_142 = arith.constant dense<0.000000e+00> : vector<50xf32>
    %457 = vector.multi_reduction <add>, %456, %cst_142 [1] : vector<50x32xf32> to vector<50xf32>
    %458 = vector.shape_cast %457 : vector<50xf32> to vector<50x1xf32>
    %cst_143 = arith.constant 1.000000e-16 : f32
    %459 = vector.broadcast %cst_143 : f32 to vector<50x1xf32>
    %460 = arith.addf %458, %459 : vector<50x1xf32>
    %461 = math.rsqrt %460 : vector<50x1xf32>
    %462 = vector.broadcast %461 : vector<50x1xf32> to vector<50x32xf32>
    %463 = arith.mulf %406, %462 : vector<50x32xf32>
    %cst_144 = arith.constant dense<0.000000e+00> : vector<2x50xf32>
    %464 = tpu.matmul %455, %463, %cst_144 {dimension_numbers = #tpu.dot_dimension_numbers<[1], [1], [0], [0], [0, 0, 1, 0], [], []>} : vector<2x32xf32>, vector<50x32xf32>, vector<2x50xf32> -> vector<2x50xf32>
    %cst_145 = arith.constant dense<0xFF800000> : vector<2xf32>
    %465 = vector.multi_reduction <maximumf>, %464, %cst_145 [1] : vector<2x50xf32> to vector<2xf32>
    %466 = vector.shape_cast %465 : vector<2xf32> to vector<2x1xf32>
    %467 = vector.broadcast %466 : vector<2x1xf32> to vector<2x50xf32>
    %468 = arith.subf %464, %467 : vector<2x50xf32>
    %469 = math.exp %468 : vector<2x50xf32>
    %cst_146 = arith.constant dense<0.000000e+00> : vector<2xf32>
    %470 = vector.multi_reduction <add>, %469, %cst_146 [1] : vector<2x50xf32> to vector<2xf32>
    %471 = vector.shape_cast %470 : vector<2xf32> to vector<2x1xf32>
    %472 = tpu.reciprocal %471 {approx = true} : vector<2x1xf32> -> vector<2x1xf32>
    %473 = vector.broadcast %472 : vector<2x1xf32> to vector<2x50xf32>
    %474 = arith.mulf %469, %473 : vector<2x50xf32>
    %cst_147 = arith.constant dense<0.000000e+00> : vector<2x32xf32>
    %475 = tpu.matmul %474, %406, %cst_147 {dimension_numbers = #tpu.dot_dimension_numbers<[1], [0], [0], [1], [0, 0, 1, 1], [], []>} : vector<2x50xf32>, vector<50x32xf32>, vector<2x32xf32> -> vector<2x32xf32>
    %476 = tpu.concatenate %447, %475 in 1 : vector<2x32xf32>, vector<2x32xf32> -> vector<2x64xf32>
    %c0_148 = arith.constant 0 : index
    %c4_149 = arith.constant 4 : index
    %c0_150 = arith.constant 0 : index
    %477 = vector.load %arg5[%c0_148, %c4_149, %c0_150] : memref<2x8x64xf32, #tpu.memory_space<vmem>>, vector<2x1x64xf32>
    %478 = vector.shape_cast %477 : vector<2x1x64xf32> to vector<2x64xf32>
    %479 = vector.shape_cast %476 : vector<2x64xf32> to vector<2x1x64xf32>
    tpu.vector_store %arg5[%c0_148, %c4_149, %c0_150], %479 {strides = array<i32>} : memref<2x8x64xf32, #tpu.memory_space<vmem>>, vector<2x1x64xf32>,
    %cst_151 = arith.constant dense<0x7F800000> : vector<2xf32>
    %480 = vector.multi_reduction <minimumf>, %418, %cst_151 [1] : vector<2x50xf32> to vector<2xf32>
    %481 = vector.shape_cast %480 : vector<2xf32> to vector<2x1xf32>
    %482 = vector.broadcast %481 : vector<2x1xf32> to vector<2x50xf32>
    %483 = arith.cmpf oeq, %418, %482 : vector<2x50xf32>
    %c50_i32_152 = arith.constant 50 : i32
    %484 = vector.broadcast %c50_i32_152 : i32 to vector<2x50xi32>
    %485 = arith.select %483, %4, %484 : vector<2x50xi1>, vector<2x50xi32>
    %cst_153 = arith.constant dense<2147483647> : vector<2xi32>
    %486 = vector.multi_reduction <minsi>, %485, %cst_153 [1] : vector<2x50xi32> to vector<2xi32>
    %487 = vector.shape_cast %486 : vector<2xi32> to vector<2x1xi32>
    %488 = vector.broadcast %487 : vector<2x1xi32> to vector<2x50xi32>
    %489 = arith.cmpi eq, %4, %488 : vector<2x50xi32>
    %490 = arith.extui %489 : vector<2x50xi1> to vector<2x50xi32>
    %491 = arith.sitofp %490 : vector<2x50xi32> to vector<2x50xf32>
    %cst_154 = arith.constant 0.598687648 : f32
    %492 = vector.broadcast %cst_154 : f32 to vector<2x50xf32>
    %493 = arith.mulf %492, %491 : vector<2x50xf32>
    %cst_155 = arith.constant 0.401312351 : f32
    %494 = vector.broadcast %cst_155 : f32 to vector<2x50xf32>
    %495 = arith.mulf %494, %374 : vector<2x50xf32>
    %496 = arith.addf %495, %493 : vector<2x50xf32>
    %cst_156 = arith.constant dense<0.000000e+00> : vector<50x32xf32>
    %497 = tpu.matmul %496, %447, %cst_156 {dimension_numbers = #tpu.dot_dimension_numbers<[0], [0], [1], [1], [0, 1, 1, 1], [], []>} : vector<2x50xf32>, vector<2x32xf32>, vector<50x32xf32> -> vector<50x32xf32>
    %498 = arith.addf %406, %497 : vector<50x32xf32>
    %499 = arith.mulf %498, %498 : vector<50x32xf32>
    %cst_157 = arith.constant dense<0.000000e+00> : vector<50xf32>
    %500 = vector.multi_reduction <add>, %499, %cst_157 [1] : vector<50x32xf32> to vector<50xf32>
    %501 = vector.shape_cast %500 : vector<50xf32> to vector<50x1xf32>
    %502 = math.rsqrt %501 : vector<50x1xf32>
    %cst_158 = arith.constant 9.99999995E+11 : f32
    %503 = vector.broadcast %cst_158 : f32 to vector<50x1xf32>
    %504 = arith.minimumf %502, %503 : vector<50x1xf32>
    %505 = vector.broadcast %504 : vector<50x1xf32> to vector<50x32xf32>
    %506 = arith.mulf %498, %505 : vector<50x32xf32>
    %cst_159 = arith.constant 3.000000e-01 : f32
    %507 = vector.broadcast %cst_159 : f32 to vector<2x50xf32>
    %508 = arith.mulf %507, %418 : vector<2x50xf32>
    %509 = arith.addf %508, %474 : vector<2x50xf32>
    %510 = arith.addf %509, %496 : vector<2x50xf32>
    %511 = arith.mulf %510, %510 : vector<2x50xf32>
    %cst_160 = arith.constant dense<0.000000e+00> : vector<2xf32>
    %512 = vector.multi_reduction <add>, %511, %cst_160 [1] : vector<2x50xf32> to vector<2xf32>
    %513 = vector.shape_cast %512 : vector<2xf32> to vector<2x1xf32>
    %514 = math.rsqrt %513 : vector<2x1xf32>
    %cst_161 = arith.constant 9.99999995E+11 : f32
    %515 = vector.broadcast %cst_161 : f32 to vector<2x1xf32>
    %516 = arith.minimumf %514, %515 : vector<2x1xf32>
    %517 = vector.broadcast %516 : vector<2x1xf32> to vector<2x50xf32>
    %518 = arith.mulf %510, %517 : vector<2x50xf32>
    %c0_162 = arith.constant 0 : index
    %c5 = arith.constant 5 : index
    %c0_163 = arith.constant 0 : index
    %519 = vector.load %arg11[%c0_162, %c5, %c0_163] : memref<2x8x128xf32, #tpu.memory_space<vmem>>, vector<2x1x128xf32>
    %520 = vector.shape_cast %519 : vector<2x1x128xf32> to vector<2x128xf32>
    %cst_164 = arith.constant dense<0.000000e+00> : vector<2x128xf32>
    %521 = tpu.matmul %447, %3, %cst_164 {dimension_numbers = #tpu.dot_dimension_numbers<[1], [0], [0], [1], [0, 0, 1, 1], [], []>} : vector<2x32xf32>, vector<32x128xf32>, vector<2x128xf32> -> vector<2x128xf32>
    %522 = arith.addf %520, %521 : vector<2x128xf32>
    %523 = vector.extract_strided_slice %522 {offsets = [0, 0], sizes = [2, 32], strides = [1, 1]} : vector<2x128xf32> to vector<2x32xf32>
    %524 = arith.negf %523 : vector<2x32xf32>
    %525 = math.exp %524 : vector<2x32xf32>
    %cst_165 = arith.constant 1.000000e+00 : f32
    %526 = vector.broadcast %cst_165 : f32 to vector<2x32xf32>
    %527 = arith.addf %526, %525 : vector<2x32xf32>
    %528 = arith.divf %526, %527 : vector<2x32xf32>
    %529 = vector.extract_strided_slice %522 {offsets = [0, 32], sizes = [2, 32], strides = [1, 1]} : vector<2x128xf32> to vector<2x32xf32>
    %530 = arith.negf %529 : vector<2x32xf32>
    %531 = math.exp %530 : vector<2x32xf32>
    %cst_166 = arith.constant 1.000000e+00 : f32
    %532 = vector.broadcast %cst_166 : f32 to vector<2x32xf32>
    %533 = arith.addf %532, %531 : vector<2x32xf32>
    %534 = arith.divf %532, %533 : vector<2x32xf32>
    %535 = vector.extract_strided_slice %522 {offsets = [0, 64], sizes = [2, 32], strides = [1, 1]} : vector<2x128xf32> to vector<2x32xf32>
    %536 = math.tanh %535 : vector<2x32xf32>
    %537 = vector.extract_strided_slice %522 {offsets = [0, 96], sizes = [2, 32], strides = [1, 1]} : vector<2x128xf32> to vector<2x32xf32>
    %538 = arith.negf %537 : vector<2x32xf32>
    %539 = math.exp %538 : vector<2x32xf32>
    %cst_167 = arith.constant 1.000000e+00 : f32
    %540 = vector.broadcast %cst_167 : f32 to vector<2x32xf32>
    %541 = arith.addf %540, %539 : vector<2x32xf32>
    %542 = arith.divf %540, %541 : vector<2x32xf32>
    %543 = arith.mulf %534, %445 : vector<2x32xf32>
    %544 = arith.mulf %528, %536 : vector<2x32xf32>
    %545 = arith.addf %543, %544 : vector<2x32xf32>
    %546 = math.tanh %545 : vector<2x32xf32>
    %547 = arith.mulf %542, %546 : vector<2x32xf32>
    %548 = arith.mulf %547, %547 : vector<2x32xf32>
    %cst_168 = arith.constant dense<0.000000e+00> : vector<2xf32>
    %549 = vector.multi_reduction <add>, %548, %cst_168 [1] : vector<2x32xf32> to vector<2xf32>
    %550 = vector.shape_cast %549 : vector<2xf32> to vector<2x1xf32>
    %cst_169 = arith.constant 1.000000e-16 : f32
    %551 = vector.broadcast %cst_169 : f32 to vector<2x1xf32>
    %552 = arith.addf %550, %551 : vector<2x1xf32>
    %553 = math.rsqrt %552 : vector<2x1xf32>
    %554 = vector.broadcast %553 : vector<2x1xf32> to vector<2x32xf32>
    %555 = arith.mulf %547, %554 : vector<2x32xf32>
    %556 = arith.mulf %506, %506 : vector<50x32xf32>
    %cst_170 = arith.constant dense<0.000000e+00> : vector<50xf32>
    %557 = vector.multi_reduction <add>, %556, %cst_170 [1] : vector<50x32xf32> to vector<50xf32>
    %558 = vector.shape_cast %557 : vector<50xf32> to vector<50x1xf32>
    %cst_171 = arith.constant 1.000000e-16 : f32
    %559 = vector.broadcast %cst_171 : f32 to vector<50x1xf32>
    %560 = arith.addf %558, %559 : vector<50x1xf32>
    %561 = math.rsqrt %560 : vector<50x1xf32>
    %562 = vector.broadcast %561 : vector<50x1xf32> to vector<50x32xf32>
    %563 = arith.mulf %506, %562 : vector<50x32xf32>
    %cst_172 = arith.constant dense<0.000000e+00> : vector<2x50xf32>
    %564 = tpu.matmul %555, %563, %cst_172 {dimension_numbers = #tpu.dot_dimension_numbers<[1], [1], [0], [0], [0, 0, 1, 0], [], []>} : vector<2x32xf32>, vector<50x32xf32>, vector<2x50xf32> -> vector<2x50xf32>
    %cst_173 = arith.constant dense<0xFF800000> : vector<2xf32>
    %565 = vector.multi_reduction <maximumf>, %564, %cst_173 [1] : vector<2x50xf32> to vector<2xf32>
    %566 = vector.shape_cast %565 : vector<2xf32> to vector<2x1xf32>
    %567 = vector.broadcast %566 : vector<2x1xf32> to vector<2x50xf32>
    %568 = arith.subf %564, %567 : vector<2x50xf32>
    %569 = math.exp %568 : vector<2x50xf32>
    %cst_174 = arith.constant dense<0.000000e+00> : vector<2xf32>
    %570 = vector.multi_reduction <add>, %569, %cst_174 [1] : vector<2x50xf32> to vector<2xf32>
    %571 = vector.shape_cast %570 : vector<2xf32> to vector<2x1xf32>
    %572 = tpu.reciprocal %571 {approx = true} : vector<2x1xf32> -> vector<2x1xf32>
    %573 = vector.broadcast %572 : vector<2x1xf32> to vector<2x50xf32>
    %574 = arith.mulf %569, %573 : vector<2x50xf32>
    %cst_175 = arith.constant dense<0.000000e+00> : vector<2x32xf32>
    %575 = tpu.matmul %574, %506, %cst_175 {dimension_numbers = #tpu.dot_dimension_numbers<[1], [0], [0], [1], [0, 0, 1, 1], [], []>} : vector<2x50xf32>, vector<50x32xf32>, vector<2x32xf32> -> vector<2x32xf32>
    %576 = tpu.concatenate %547, %575 in 1 : vector<2x32xf32>, vector<2x32xf32> -> vector<2x64xf32>
    %c0_176 = arith.constant 0 : index
    %c5_177 = arith.constant 5 : index
    %c0_178 = arith.constant 0 : index
    %577 = vector.load %arg5[%c0_176, %c5_177, %c0_178] : memref<2x8x64xf32, #tpu.memory_space<vmem>>, vector<2x1x64xf32>
    %578 = vector.shape_cast %577 : vector<2x1x64xf32> to vector<2x64xf32>
    %579 = vector.shape_cast %576 : vector<2x64xf32> to vector<2x1x64xf32>
    tpu.vector_store %arg5[%c0_176, %c5_177, %c0_178], %579 {strides = array<i32>} : memref<2x8x64xf32, #tpu.memory_space<vmem>>, vector<2x1x64xf32>,
    %cst_179 = arith.constant dense<0x7F800000> : vector<2xf32>
    %580 = vector.multi_reduction <minimumf>, %518, %cst_179 [1] : vector<2x50xf32> to vector<2xf32>
    %581 = vector.shape_cast %580 : vector<2xf32> to vector<2x1xf32>
    %582 = vector.broadcast %581 : vector<2x1xf32> to vector<2x50xf32>
    %583 = arith.cmpf oeq, %518, %582 : vector<2x50xf32>
    %c50_i32_180 = arith.constant 50 : i32
    %584 = vector.broadcast %c50_i32_180 : i32 to vector<2x50xi32>
    %585 = arith.select %583, %4, %584 : vector<2x50xi1>, vector<2x50xi32>
    %cst_181 = arith.constant dense<2147483647> : vector<2xi32>
    %586 = vector.multi_reduction <minsi>, %585, %cst_181 [1] : vector<2x50xi32> to vector<2xi32>
    %587 = vector.shape_cast %586 : vector<2xi32> to vector<2x1xi32>
    %588 = vector.broadcast %587 : vector<2x1xi32> to vector<2x50xi32>
    %589 = arith.cmpi eq, %4, %588 : vector<2x50xi32>
    %590 = arith.extui %589 : vector<2x50xi1> to vector<2x50xi32>
    %591 = arith.sitofp %590 : vector<2x50xi32> to vector<2x50xf32>
    %cst_182 = arith.constant 0.598687648 : f32
    %592 = vector.broadcast %cst_182 : f32 to vector<2x50xf32>
    %593 = arith.mulf %592, %591 : vector<2x50xf32>
    %cst_183 = arith.constant 0.401312351 : f32
    %594 = vector.broadcast %cst_183 : f32 to vector<2x50xf32>
    %595 = arith.mulf %594, %474 : vector<2x50xf32>
    %596 = arith.addf %595, %593 : vector<2x50xf32>
    %cst_184 = arith.constant dense<0.000000e+00> : vector<50x32xf32>
    %597 = tpu.matmul %596, %547, %cst_184 {dimension_numbers = #tpu.dot_dimension_numbers<[0], [0], [1], [1], [0, 1, 1, 1], [], []>} : vector<2x50xf32>, vector<2x32xf32>, vector<50x32xf32> -> vector<50x32xf32>
    %598 = arith.addf %506, %597 : vector<50x32xf32>
    %599 = arith.mulf %598, %598 : vector<50x32xf32>
    %cst_185 = arith.constant dense<0.000000e+00> : vector<50xf32>
    %600 = vector.multi_reduction <add>, %599, %cst_185 [1] : vector<50x32xf32> to vector<50xf32>
    %601 = vector.shape_cast %600 : vector<50xf32> to vector<50x1xf32>
    %602 = math.rsqrt %601 : vector<50x1xf32>
    %cst_186 = arith.constant 9.99999995E+11 : f32
    %603 = vector.broadcast %cst_186 : f32 to vector<50x1xf32>
    %604 = arith.minimumf %602, %603 : vector<50x1xf32>
    %605 = vector.broadcast %604 : vector<50x1xf32> to vector<50x32xf32>
    %606 = arith.mulf %598, %605 : vector<50x32xf32>
    %cst_187 = arith.constant 3.000000e-01 : f32
    %607 = vector.broadcast %cst_187 : f32 to vector<2x50xf32>
    %608 = arith.mulf %607, %518 : vector<2x50xf32>
    %609 = arith.addf %608, %574 : vector<2x50xf32>
    %610 = arith.addf %609, %596 : vector<2x50xf32>
    %611 = arith.mulf %610, %610 : vector<2x50xf32>
    %cst_188 = arith.constant dense<0.000000e+00> : vector<2xf32>
    %612 = vector.multi_reduction <add>, %611, %cst_188 [1] : vector<2x50xf32> to vector<2xf32>
    %613 = vector.shape_cast %612 : vector<2xf32> to vector<2x1xf32>
    %614 = math.rsqrt %613 : vector<2x1xf32>
    %cst_189 = arith.constant 9.99999995E+11 : f32
    %615 = vector.broadcast %cst_189 : f32 to vector<2x1xf32>
    %616 = arith.minimumf %614, %615 : vector<2x1xf32>
    %617 = vector.broadcast %616 : vector<2x1xf32> to vector<2x50xf32>
    %618 = arith.mulf %610, %617 : vector<2x50xf32>
    %c0_190 = arith.constant 0 : index
    %c6 = arith.constant 6 : index
    %c0_191 = arith.constant 0 : index
    %619 = vector.load %arg11[%c0_190, %c6, %c0_191] : memref<2x8x128xf32, #tpu.memory_space<vmem>>, vector<2x1x128xf32>
    %620 = vector.shape_cast %619 : vector<2x1x128xf32> to vector<2x128xf32>
    %cst_192 = arith.constant dense<0.000000e+00> : vector<2x128xf32>
    %621 = tpu.matmul %547, %3, %cst_192 {dimension_numbers = #tpu.dot_dimension_numbers<[1], [0], [0], [1], [0, 0, 1, 1], [], []>} : vector<2x32xf32>, vector<32x128xf32>, vector<2x128xf32> -> vector<2x128xf32>
    %622 = arith.addf %620, %621 : vector<2x128xf32>
    %623 = vector.extract_strided_slice %622 {offsets = [0, 0], sizes = [2, 32], strides = [1, 1]} : vector<2x128xf32> to vector<2x32xf32>
    %624 = arith.negf %623 : vector<2x32xf32>
    %625 = math.exp %624 : vector<2x32xf32>
    %cst_193 = arith.constant 1.000000e+00 : f32
    %626 = vector.broadcast %cst_193 : f32 to vector<2x32xf32>
    %627 = arith.addf %626, %625 : vector<2x32xf32>
    %628 = arith.divf %626, %627 : vector<2x32xf32>
    %629 = vector.extract_strided_slice %622 {offsets = [0, 32], sizes = [2, 32], strides = [1, 1]} : vector<2x128xf32> to vector<2x32xf32>
    %630 = arith.negf %629 : vector<2x32xf32>
    %631 = math.exp %630 : vector<2x32xf32>
    %cst_194 = arith.constant 1.000000e+00 : f32
    %632 = vector.broadcast %cst_194 : f32 to vector<2x32xf32>
    %633 = arith.addf %632, %631 : vector<2x32xf32>
    %634 = arith.divf %632, %633 : vector<2x32xf32>
    %635 = vector.extract_strided_slice %622 {offsets = [0, 64], sizes = [2, 32], strides = [1, 1]} : vector<2x128xf32> to vector<2x32xf32>
    %636 = math.tanh %635 : vector<2x32xf32>
    %637 = vector.extract_strided_slice %622 {offsets = [0, 96], sizes = [2, 32], strides = [1, 1]} : vector<2x128xf32> to vector<2x32xf32>
    %638 = arith.negf %637 : vector<2x32xf32>
    %639 = math.exp %638 : vector<2x32xf32>
    %cst_195 = arith.constant 1.000000e+00 : f32
    %640 = vector.broadcast %cst_195 : f32 to vector<2x32xf32>
    %641 = arith.addf %640, %639 : vector<2x32xf32>
    %642 = arith.divf %640, %641 : vector<2x32xf32>
    %643 = arith.mulf %634, %545 : vector<2x32xf32>
    %644 = arith.mulf %628, %636 : vector<2x32xf32>
    %645 = arith.addf %643, %644 : vector<2x32xf32>
    %646 = math.tanh %645 : vector<2x32xf32>
    %647 = arith.mulf %642, %646 : vector<2x32xf32>
    %648 = arith.mulf %647, %647 : vector<2x32xf32>
    %cst_196 = arith.constant dense<0.000000e+00> : vector<2xf32>
    %649 = vector.multi_reduction <add>, %648, %cst_196 [1] : vector<2x32xf32> to vector<2xf32>
    %650 = vector.shape_cast %649 : vector<2xf32> to vector<2x1xf32>
    %cst_197 = arith.constant 1.000000e-16 : f32
    %651 = vector.broadcast %cst_197 : f32 to vector<2x1xf32>
    %652 = arith.addf %650, %651 : vector<2x1xf32>
    %653 = math.rsqrt %652 : vector<2x1xf32>
    %654 = vector.broadcast %653 : vector<2x1xf32> to vector<2x32xf32>
    %655 = arith.mulf %647, %654 : vector<2x32xf32>
    %656 = arith.mulf %606, %606 : vector<50x32xf32>
    %cst_198 = arith.constant dense<0.000000e+00> : vector<50xf32>
    %657 = vector.multi_reduction <add>, %656, %cst_198 [1] : vector<50x32xf32> to vector<50xf32>
    %658 = vector.shape_cast %657 : vector<50xf32> to vector<50x1xf32>
    %cst_199 = arith.constant 1.000000e-16 : f32
    %659 = vector.broadcast %cst_199 : f32 to vector<50x1xf32>
    %660 = arith.addf %658, %659 : vector<50x1xf32>
    %661 = math.rsqrt %660 : vector<50x1xf32>
    %662 = vector.broadcast %661 : vector<50x1xf32> to vector<50x32xf32>
    %663 = arith.mulf %606, %662 : vector<50x32xf32>
    %cst_200 = arith.constant dense<0.000000e+00> : vector<2x50xf32>
    %664 = tpu.matmul %655, %663, %cst_200 {dimension_numbers = #tpu.dot_dimension_numbers<[1], [1], [0], [0], [0, 0, 1, 0], [], []>} : vector<2x32xf32>, vector<50x32xf32>, vector<2x50xf32> -> vector<2x50xf32>
    %cst_201 = arith.constant dense<0xFF800000> : vector<2xf32>
    %665 = vector.multi_reduction <maximumf>, %664, %cst_201 [1] : vector<2x50xf32> to vector<2xf32>
    %666 = vector.shape_cast %665 : vector<2xf32> to vector<2x1xf32>
    %667 = vector.broadcast %666 : vector<2x1xf32> to vector<2x50xf32>
    %668 = arith.subf %664, %667 : vector<2x50xf32>
    %669 = math.exp %668 : vector<2x50xf32>
    %cst_202 = arith.constant dense<0.000000e+00> : vector<2xf32>
    %670 = vector.multi_reduction <add>, %669, %cst_202 [1] : vector<2x50xf32> to vector<2xf32>
    %671 = vector.shape_cast %670 : vector<2xf32> to vector<2x1xf32>
    %672 = tpu.reciprocal %671 {approx = true} : vector<2x1xf32> -> vector<2x1xf32>
    %673 = vector.broadcast %672 : vector<2x1xf32> to vector<2x50xf32>
    %674 = arith.mulf %669, %673 : vector<2x50xf32>
    %cst_203 = arith.constant dense<0.000000e+00> : vector<2x32xf32>
    %675 = tpu.matmul %674, %606, %cst_203 {dimension_numbers = #tpu.dot_dimension_numbers<[1], [0], [0], [1], [0, 0, 1, 1], [], []>} : vector<2x50xf32>, vector<50x32xf32>, vector<2x32xf32> -> vector<2x32xf32>
    %676 = tpu.concatenate %647, %675 in 1 : vector<2x32xf32>, vector<2x32xf32> -> vector<2x64xf32>
    %c0_204 = arith.constant 0 : index
    %c6_205 = arith.constant 6 : index
    %c0_206 = arith.constant 0 : index
    %677 = vector.load %arg5[%c0_204, %c6_205, %c0_206] : memref<2x8x64xf32, #tpu.memory_space<vmem>>, vector<2x1x64xf32>
    %678 = vector.shape_cast %677 : vector<2x1x64xf32> to vector<2x64xf32>
    %679 = vector.shape_cast %676 : vector<2x64xf32> to vector<2x1x64xf32>
    tpu.vector_store %arg5[%c0_204, %c6_205, %c0_206], %679 {strides = array<i32>} : memref<2x8x64xf32, #tpu.memory_space<vmem>>, vector<2x1x64xf32>,
    %cst_207 = arith.constant dense<0x7F800000> : vector<2xf32>
    %680 = vector.multi_reduction <minimumf>, %618, %cst_207 [1] : vector<2x50xf32> to vector<2xf32>
    %681 = vector.shape_cast %680 : vector<2xf32> to vector<2x1xf32>
    %682 = vector.broadcast %681 : vector<2x1xf32> to vector<2x50xf32>
    %683 = arith.cmpf oeq, %618, %682 : vector<2x50xf32>
    %c50_i32_208 = arith.constant 50 : i32
    %684 = vector.broadcast %c50_i32_208 : i32 to vector<2x50xi32>
    %685 = arith.select %683, %4, %684 : vector<2x50xi1>, vector<2x50xi32>
    %cst_209 = arith.constant dense<2147483647> : vector<2xi32>
    %686 = vector.multi_reduction <minsi>, %685, %cst_209 [1] : vector<2x50xi32> to vector<2xi32>
    %687 = vector.shape_cast %686 : vector<2xi32> to vector<2x1xi32>
    %688 = vector.broadcast %687 : vector<2x1xi32> to vector<2x50xi32>
    %689 = arith.cmpi eq, %4, %688 : vector<2x50xi32>
    %690 = arith.extui %689 : vector<2x50xi1> to vector<2x50xi32>
    %691 = arith.sitofp %690 : vector<2x50xi32> to vector<2x50xf32>
    %cst_210 = arith.constant 0.598687648 : f32
    %692 = vector.broadcast %cst_210 : f32 to vector<2x50xf32>
    %693 = arith.mulf %692, %691 : vector<2x50xf32>
    %cst_211 = arith.constant 0.401312351 : f32
    %694 = vector.broadcast %cst_211 : f32 to vector<2x50xf32>
    %695 = arith.mulf %694, %574 : vector<2x50xf32>
    %696 = arith.addf %695, %693 : vector<2x50xf32>
    %cst_212 = arith.constant dense<0.000000e+00> : vector<50x32xf32>
    %697 = tpu.matmul %696, %647, %cst_212 {dimension_numbers = #tpu.dot_dimension_numbers<[0], [0], [1], [1], [0, 1, 1, 1], [], []>} : vector<2x50xf32>, vector<2x32xf32>, vector<50x32xf32> -> vector<50x32xf32>
    %698 = arith.addf %606, %697 : vector<50x32xf32>
    %699 = arith.mulf %698, %698 : vector<50x32xf32>
    %cst_213 = arith.constant dense<0.000000e+00> : vector<50xf32>
    %700 = vector.multi_reduction <add>, %699, %cst_213 [1] : vector<50x32xf32> to vector<50xf32>
    %701 = vector.shape_cast %700 : vector<50xf32> to vector<50x1xf32>
    %702 = math.rsqrt %701 : vector<50x1xf32>
    %cst_214 = arith.constant 9.99999995E+11 : f32
    %703 = vector.broadcast %cst_214 : f32 to vector<50x1xf32>
    %704 = arith.minimumf %702, %703 : vector<50x1xf32>
    %705 = vector.broadcast %704 : vector<50x1xf32> to vector<50x32xf32>
    %706 = arith.mulf %698, %705 : vector<50x32xf32>
    %cst_215 = arith.constant 3.000000e-01 : f32
    %707 = vector.broadcast %cst_215 : f32 to vector<2x50xf32>
    %708 = arith.mulf %707, %618 : vector<2x50xf32>
    %709 = arith.addf %708, %674 : vector<2x50xf32>
    %710 = arith.addf %709, %696 : vector<2x50xf32>
    %711 = arith.mulf %710, %710 : vector<2x50xf32>
    %cst_216 = arith.constant dense<0.000000e+00> : vector<2xf32>
    %712 = vector.multi_reduction <add>, %711, %cst_216 [1] : vector<2x50xf32> to vector<2xf32>
    %713 = vector.shape_cast %712 : vector<2xf32> to vector<2x1xf32>
    %714 = math.rsqrt %713 : vector<2x1xf32>
    %cst_217 = arith.constant 9.99999995E+11 : f32
    %715 = vector.broadcast %cst_217 : f32 to vector<2x1xf32>
    %716 = arith.minimumf %714, %715 : vector<2x1xf32>
    %717 = vector.broadcast %716 : vector<2x1xf32> to vector<2x50xf32>
    %718 = arith.mulf %710, %717 : vector<2x50xf32>
    %c0_218 = arith.constant 0 : index
    %c7 = arith.constant 7 : index
    %c0_219 = arith.constant 0 : index
    %719 = vector.load %arg11[%c0_218, %c7, %c0_219] : memref<2x8x128xf32, #tpu.memory_space<vmem>>, vector<2x1x128xf32>
    %720 = vector.shape_cast %719 : vector<2x1x128xf32> to vector<2x128xf32>
    %cst_220 = arith.constant dense<0.000000e+00> : vector<2x128xf32>
    %721 = tpu.matmul %647, %3, %cst_220 {dimension_numbers = #tpu.dot_dimension_numbers<[1], [0], [0], [1], [0, 0, 1, 1], [], []>} : vector<2x32xf32>, vector<32x128xf32>, vector<2x128xf32> -> vector<2x128xf32>
    %722 = arith.addf %720, %721 : vector<2x128xf32>
    %723 = vector.extract_strided_slice %722 {offsets = [0, 0], sizes = [2, 32], strides = [1, 1]} : vector<2x128xf32> to vector<2x32xf32>
    %724 = arith.negf %723 : vector<2x32xf32>
    %725 = math.exp %724 : vector<2x32xf32>
    %cst_221 = arith.constant 1.000000e+00 : f32
    %726 = vector.broadcast %cst_221 : f32 to vector<2x32xf32>
    %727 = arith.addf %726, %725 : vector<2x32xf32>
    %728 = arith.divf %726, %727 : vector<2x32xf32>
    %729 = vector.extract_strided_slice %722 {offsets = [0, 32], sizes = [2, 32], strides = [1, 1]} : vector<2x128xf32> to vector<2x32xf32>
    %730 = arith.negf %729 : vector<2x32xf32>
    %731 = math.exp %730 : vector<2x32xf32>
    %cst_222 = arith.constant 1.000000e+00 : f32
    %732 = vector.broadcast %cst_222 : f32 to vector<2x32xf32>
    %733 = arith.addf %732, %731 : vector<2x32xf32>
    %734 = arith.divf %732, %733 : vector<2x32xf32>
    %735 = vector.extract_strided_slice %722 {offsets = [0, 64], sizes = [2, 32], strides = [1, 1]} : vector<2x128xf32> to vector<2x32xf32>
    %736 = math.tanh %735 : vector<2x32xf32>
    %737 = vector.extract_strided_slice %722 {offsets = [0, 96], sizes = [2, 32], strides = [1, 1]} : vector<2x128xf32> to vector<2x32xf32>
    %738 = arith.negf %737 : vector<2x32xf32>
    %739 = math.exp %738 : vector<2x32xf32>
    %cst_223 = arith.constant 1.000000e+00 : f32
    %740 = vector.broadcast %cst_223 : f32 to vector<2x32xf32>
    %741 = arith.addf %740, %739 : vector<2x32xf32>
    %742 = arith.divf %740, %741 : vector<2x32xf32>
    %743 = arith.mulf %734, %645 : vector<2x32xf32>
    %744 = arith.mulf %728, %736 : vector<2x32xf32>
    %745 = arith.addf %743, %744 : vector<2x32xf32>
    %746 = math.tanh %745 : vector<2x32xf32>
    %747 = arith.mulf %742, %746 : vector<2x32xf32>
    %748 = arith.mulf %747, %747 : vector<2x32xf32>
    %cst_224 = arith.constant dense<0.000000e+00> : vector<2xf32>
    %749 = vector.multi_reduction <add>, %748, %cst_224 [1] : vector<2x32xf32> to vector<2xf32>
    %750 = vector.shape_cast %749 : vector<2xf32> to vector<2x1xf32>
    %cst_225 = arith.constant 1.000000e-16 : f32
    %751 = vector.broadcast %cst_225 : f32 to vector<2x1xf32>
    %752 = arith.addf %750, %751 : vector<2x1xf32>
    %753 = math.rsqrt %752 : vector<2x1xf32>
    %754 = vector.broadcast %753 : vector<2x1xf32> to vector<2x32xf32>
    %755 = arith.mulf %747, %754 : vector<2x32xf32>
    %756 = arith.mulf %706, %706 : vector<50x32xf32>
    %cst_226 = arith.constant dense<0.000000e+00> : vector<50xf32>
    %757 = vector.multi_reduction <add>, %756, %cst_226 [1] : vector<50x32xf32> to vector<50xf32>
    %758 = vector.shape_cast %757 : vector<50xf32> to vector<50x1xf32>
    %cst_227 = arith.constant 1.000000e-16 : f32
    %759 = vector.broadcast %cst_227 : f32 to vector<50x1xf32>
    %760 = arith.addf %758, %759 : vector<50x1xf32>
    %761 = math.rsqrt %760 : vector<50x1xf32>
    %762 = vector.broadcast %761 : vector<50x1xf32> to vector<50x32xf32>
    %763 = arith.mulf %706, %762 : vector<50x32xf32>
    %cst_228 = arith.constant dense<0.000000e+00> : vector<2x50xf32>
    %764 = tpu.matmul %755, %763, %cst_228 {dimension_numbers = #tpu.dot_dimension_numbers<[1], [1], [0], [0], [0, 0, 1, 0], [], []>} : vector<2x32xf32>, vector<50x32xf32>, vector<2x50xf32> -> vector<2x50xf32>
    %cst_229 = arith.constant dense<0xFF800000> : vector<2xf32>
    %765 = vector.multi_reduction <maximumf>, %764, %cst_229 [1] : vector<2x50xf32> to vector<2xf32>
    %766 = vector.shape_cast %765 : vector<2xf32> to vector<2x1xf32>
    %767 = vector.broadcast %766 : vector<2x1xf32> to vector<2x50xf32>
    %768 = arith.subf %764, %767 : vector<2x50xf32>
    %769 = math.exp %768 : vector<2x50xf32>
    %cst_230 = arith.constant dense<0.000000e+00> : vector<2xf32>
    %770 = vector.multi_reduction <add>, %769, %cst_230 [1] : vector<2x50xf32> to vector<2xf32>
    %771 = vector.shape_cast %770 : vector<2xf32> to vector<2x1xf32>
    %772 = tpu.reciprocal %771 {approx = true} : vector<2x1xf32> -> vector<2x1xf32>
    %773 = vector.broadcast %772 : vector<2x1xf32> to vector<2x50xf32>
    %774 = arith.mulf %769, %773 : vector<2x50xf32>
    %cst_231 = arith.constant dense<0.000000e+00> : vector<2x32xf32>
    %775 = tpu.matmul %774, %706, %cst_231 {dimension_numbers = #tpu.dot_dimension_numbers<[1], [0], [0], [1], [0, 0, 1, 1], [], []>} : vector<2x50xf32>, vector<50x32xf32>, vector<2x32xf32> -> vector<2x32xf32>
    %776 = tpu.concatenate %747, %775 in 1 : vector<2x32xf32>, vector<2x32xf32> -> vector<2x64xf32>
    %c0_232 = arith.constant 0 : index
    %c7_233 = arith.constant 7 : index
    %c0_234 = arith.constant 0 : index
    %777 = vector.load %arg5[%c0_232, %c7_233, %c0_234] : memref<2x8x64xf32, #tpu.memory_space<vmem>>, vector<2x1x64xf32>
    %778 = vector.shape_cast %777 : vector<2x1x64xf32> to vector<2x64xf32>
    %779 = vector.shape_cast %776 : vector<2x64xf32> to vector<2x1x64xf32>
    tpu.vector_store %arg5[%c0_232, %c7_233, %c0_234], %779 {strides = array<i32>} : memref<2x8x64xf32, #tpu.memory_space<vmem>>, vector<2x1x64xf32>,
    %cst_235 = arith.constant dense<0x7F800000> : vector<2xf32>
    %780 = vector.multi_reduction <minimumf>, %718, %cst_235 [1] : vector<2x50xf32> to vector<2xf32>
    %781 = vector.shape_cast %780 : vector<2xf32> to vector<2x1xf32>
    %782 = vector.broadcast %781 : vector<2x1xf32> to vector<2x50xf32>
    %783 = arith.cmpf oeq, %718, %782 : vector<2x50xf32>
    %c50_i32_236 = arith.constant 50 : i32
    %784 = vector.broadcast %c50_i32_236 : i32 to vector<2x50xi32>
    %785 = arith.select %783, %4, %784 : vector<2x50xi1>, vector<2x50xi32>
    %cst_237 = arith.constant dense<2147483647> : vector<2xi32>
    %786 = vector.multi_reduction <minsi>, %785, %cst_237 [1] : vector<2x50xi32> to vector<2xi32>
    %787 = vector.shape_cast %786 : vector<2xi32> to vector<2x1xi32>
    %788 = vector.broadcast %787 : vector<2x1xi32> to vector<2x50xi32>
    %789 = arith.cmpi eq, %4, %788 : vector<2x50xi32>
    %790 = arith.extui %789 : vector<2x50xi1> to vector<2x50xi32>
    %791 = arith.sitofp %790 : vector<2x50xi32> to vector<2x50xf32>
    %cst_238 = arith.constant 0.598687648 : f32
    %792 = vector.broadcast %cst_238 : f32 to vector<2x50xf32>
    %793 = arith.mulf %792, %791 : vector<2x50xf32>
    %cst_239 = arith.constant 0.401312351 : f32
    %794 = vector.broadcast %cst_239 : f32 to vector<2x50xf32>
    %795 = arith.mulf %794, %674 : vector<2x50xf32>
    %796 = arith.addf %795, %793 : vector<2x50xf32>
    %cst_240 = arith.constant dense<0.000000e+00> : vector<50x32xf32>
    %797 = tpu.matmul %796, %747, %cst_240 {dimension_numbers = #tpu.dot_dimension_numbers<[0], [0], [1], [1], [0, 1, 1, 1], [], []>} : vector<2x50xf32>, vector<2x32xf32>, vector<50x32xf32> -> vector<50x32xf32>
    %798 = arith.addf %706, %797 : vector<50x32xf32>
    %799 = arith.mulf %798, %798 : vector<50x32xf32>
    %cst_241 = arith.constant dense<0.000000e+00> : vector<50xf32>
    %800 = vector.multi_reduction <add>, %799, %cst_241 [1] : vector<50x32xf32> to vector<50xf32>
    %801 = vector.shape_cast %800 : vector<50xf32> to vector<50x1xf32>
    %802 = math.rsqrt %801 : vector<50x1xf32>
    %cst_242 = arith.constant 9.99999995E+11 : f32
    %803 = vector.broadcast %cst_242 : f32 to vector<50x1xf32>
    %804 = arith.minimumf %802, %803 : vector<50x1xf32>
    %805 = vector.broadcast %804 : vector<50x1xf32> to vector<50x32xf32>
    %806 = arith.mulf %798, %805 : vector<50x32xf32>
    %cst_243 = arith.constant 3.000000e-01 : f32
    %807 = vector.broadcast %cst_243 : f32 to vector<2x50xf32>
    %808 = arith.mulf %807, %718 : vector<2x50xf32>
    %809 = arith.addf %808, %774 : vector<2x50xf32>
    %810 = arith.addf %809, %796 : vector<2x50xf32>
    %811 = arith.mulf %810, %810 : vector<2x50xf32>
    %cst_244 = arith.constant dense<0.000000e+00> : vector<2xf32>
    %812 = vector.multi_reduction <add>, %811, %cst_244 [1] : vector<2x50xf32> to vector<2xf32>
    %813 = vector.shape_cast %812 : vector<2xf32> to vector<2x1xf32>
    %814 = math.rsqrt %813 : vector<2x1xf32>
    %cst_245 = arith.constant 9.99999995E+11 : f32
    %815 = vector.broadcast %cst_245 : f32 to vector<2x1xf32>
    %816 = arith.minimumf %814, %815 : vector<2x1xf32>
    %817 = vector.broadcast %816 : vector<2x1xf32> to vector<2x50xf32>
    %818 = arith.mulf %810, %817 : vector<2x50xf32>
    %c0_246 = arith.constant 0 : index
    %c0_247 = arith.constant 0 : index
    %819 = vector.load %arg6[%c0_246, %c0_247] : memref<2x32xf32, #tpu.memory_space<vmem>>, vector<2x32xf32>
    tpu.vector_store %arg6[%c0_246, %c0_247], %747 {strides = array<i32>} : memref<2x32xf32, #tpu.memory_space<vmem>>, vector<2x32xf32>,
    %c0_248 = arith.constant 0 : index
    %c0_249 = arith.constant 0 : index
    %820 = vector.load %arg7[%c0_248, %c0_249] : memref<2x32xf32, #tpu.memory_space<vmem>>, vector<2x32xf32>
    tpu.vector_store %arg7[%c0_248, %c0_249], %745 {strides = array<i32>} : memref<2x32xf32, #tpu.memory_space<vmem>>, vector<2x32xf32>,
    %c0_250 = arith.constant 0 : index
    %c0_251 = arith.constant 0 : index
    %821 = vector.load %arg8[%c0_250, %c0_251] : memref<50x32xf32, #tpu.memory_space<vmem>>, vector<50x32xf32>
    tpu.vector_store %arg8[%c0_250, %c0_251], %806 {strides = array<i32>} : memref<50x32xf32, #tpu.memory_space<vmem>>, vector<50x32xf32>,
    %c0_252 = arith.constant 0 : index
    %c0_253 = arith.constant 0 : index
    %822 = vector.load %arg9[%c0_252, %c0_253] : memref<2x50xf32, #tpu.memory_space<vmem>>, vector<2x50xf32>
    tpu.vector_store %arg9[%c0_252, %c0_253], %818 {strides = array<i32>} : memref<2x50xf32, #tpu.memory_space<vmem>>, vector<2x50xf32>,
    %c0_254 = arith.constant 0 : index
    %c0_255 = arith.constant 0 : index
    %823 = vector.load %arg10[%c0_254, %c0_255] : memref<2x50xf32, #tpu.memory_space<vmem>>, vector<2x50xf32>
    tpu.vector_store %arg10[%c0_254, %c0_255], %774 {strides = array<i32>} : memref<2x50xf32, #tpu.memory_space<vmem>>, vector<2x50xf32>,
    return
  }
  func.func @transform_0(%arg0: i32) -> (i32, i32, i32) {
    %c0_i32 = arith.constant 0 : i32
    %c0_i32_0 = arith.constant 0 : i32
    %c0_i32_1 = arith.constant 0 : i32
    return %c0_i32, %arg0, %c0_i32_0 : i32, i32, i32
  }
  func.func @transform_1(%arg0: i32) -> (i32, i32) {
    %c0_i32 = arith.constant 0 : i32
    %c0_i32_0 = arith.constant 0 : i32
    %c0_i32_1 = arith.constant 0 : i32
    return %c0_i32, %c0_i32_0 : i32, i32
  }
  func.func @transform_2(%arg0: i32) -> (i32, i32) {
    %c0_i32 = arith.constant 0 : i32
    %c0_i32_0 = arith.constant 0 : i32
    %c0_i32_1 = arith.constant 0 : i32
    return %c0_i32, %c0_i32_0 : i32, i32
  }
  func.func @transform_3(%arg0: i32) -> (i32, i32) {
    %c0_i32 = arith.constant 0 : i32
    %c0_i32_0 = arith.constant 0 : i32
    %c0_i32_1 = arith.constant 0 : i32
    return %c0_i32, %c0_i32_0 : i32, i32
  }
  func.func @transform_4(%arg0: i32) -> (i32, i32, i32) {
    %c0_i32 = arith.constant 0 : i32
    %c0_i32_0 = arith.constant 0 : i32
    %c0_i32_1 = arith.constant 0 : i32
    return %c0_i32, %arg0, %c0_i32_0 : i32, i32, i32
  }
}

</mosaic_0001>

<llo_original>
// kernel: tpu_custom_call.1
$region0: #{tpu_custom_call.1}
  #allocation0 [shape = 'u32[]', space=smem, size = 0x4, offset = 0x4, fixed_abs, tag = 'smem constant byte address 0x4 - core index']
  #allocation1 [shape = 'u32[144,128]{1,0:T(1,128)}', space=vmem, size = 0x12000, scoped, tag = 'internal scratch']
  #allocation2 [shape = 'f32[2,32]{1,0:T(2,128)}', space=vmem, size = 0x400, scoped, tag = 'scratch operand']
  #allocation3 [shape = 'f32[2,32]{1,0:T(2,128)}', space=vmem, size = 0x400, scoped, tag = 'scratch operand']
  #allocation4 [shape = 'f32[50,32]{1,0:T(8,128)}', space=vmem, size = 0x7000, scoped, tag = 'scratch operand']
  #allocation5 [shape = 'f32[2,50]{1,0:T(2,128)}', space=vmem, size = 0x400, scoped, tag = 'scratch operand']
  #allocation6 [shape = 'f32[2,50]{1,0:T(2,128)}', space=vmem, size = 0x400, scoped, tag = 'scratch operand']
  #allocation7 [shape = 'f32[2,8,128]{2,1,0:T(8,128)}', space=vmem, size = 0x2000, scoped, tag = 'scratch operand']
  %s0 = inlined_call_operand.hbm [shape: f32[2,8,16], index: 0, kind: input, shape index: {}]
  %s1 = inlined_call_operand.hbm [shape: f32[16,128], index: 1, kind: input, shape index: {}]
  %s2 = inlined_call_operand.hbm [shape: f32[32,128], index: 2, kind: input, shape index: {}]
  %s3 = inlined_call_operand.vmem [shape: f32[1,128], index: 3, kind: input, shape index: {}]
  %s4 = inlined_call_operand.hbm [shape: f32[2,8,64], index: 4, kind: output, shape index: {}]
  %s5 = sld [smem:[#allocation0]]
  $region42: #{tpu_custom_call.1} parent=0
    _
  %s7 = ssub.s32 1, %s5
  %s8 = scalar_select 0, %s7, %s5
  $region1: #{tpu_custom_call.1} parent=0
    #allocation8 [shape = 'u8[8192]{0}', space=vmem, size = 0x2000, scoped, tag = 'input window, operand 0, single buffered']
    #allocation9 [shape = 's32[1]{0}', space=sflag, size = 0x4, scoped, tag = 'scoped memory for tpu_custom_call.1']
    #allocation10 [shape = 's32[1]{0}', space=sflag, size = 0x4, scoped, tag = 'scoped memory for tpu_custom_call.1']
    #allocation11 [shape = 'u8[8192]{0}', space=vmem, size = 0x2000, scoped, tag = 'input window, operand 1, single buffered']
    #allocation12 [shape = 's32[1]{0}', space=sflag, size = 0x4, scoped, tag = 'scoped memory for tpu_custom_call.1']
    #allocation13 [shape = 'u8[16384]{0}', space=vmem, size = 0x4000, scoped, tag = 'input window, operand 2, single buffered']
    #allocation14 [shape = 'u8[8192]{0}', space=vmem, size = 0x2000, scoped, tag = 'output window, operand 0, single buffered']
    %9 = vsyncpa [#allocation9], 0
    %10 = vsyncpa [#allocation12], 0
    %11 = vsyncpa [#allocation10], 0
    // Predicated region
    $region2: #{tpu_custom_call.1} parent=1 // pred_check
      _
    $region3: #{tpu_custom_call.1} parent=1 // pred_check_branch
      %13 = sbr.rel (0) target = $region5
    $region4: #{tpu_custom_call.1} parent=1 // pred_region
      %s15 = ssub.s32 256, 256
      %16 = vsyncadd [#allocation9], %s15
      %s17 = sshll.u32 [#allocation8], 4
      %s18 = int_to_ptr.vmem [resolvable:$true] %s17
      %23 = dma.hbm_to_vmem [thread:$0]  %s0, 256, %s18, [#allocation9], 128, 128, 8
    $region5: #{tpu_custom_call.1} parent=1 // pred_fallthru
      _
    // Predicated region
    $region6: #{tpu_custom_call.1} parent=1 // pred_check
      _
    $region7: #{tpu_custom_call.1} parent=1 // pred_check_branch
      %25 = sbr.rel (0) target = $region9
    $region8: #{tpu_custom_call.1} parent=1 // pred_region
      %s27 = ssub.s32 256, 256
      %28 = vsyncadd [#allocation12], %s27
      %s29 = sshll.u32 [#allocation11], 4
      %s30 = int_to_ptr.vmem [resolvable:$true] %s29
      %35 = dma.hbm_to_vmem [thread:$0]  %s1, 256, %s30, [#allocation12], 128, 128, 8
    $region9: #{tpu_custom_call.1} parent=1 // pred_fallthru
      _
    // Predicated region
    $region10: #{tpu_custom_call.1} parent=1 // pred_check
      _
    $region11: #{tpu_custom_call.1} parent=1 // pred_check_branch
      %37 = sbr.rel (0) target = $region13
    $region12: #{tpu_custom_call.1} parent=1 // pred_region
      %s39 = ssub.s32 512, 512
      %40 = vsyncadd [#allocation12], %s39
      %s41 = sshll.u32 [#allocation13], 4
      %s42 = int_to_ptr.vmem [resolvable:$true] %s41
      %47 = dma.hbm_to_vmem [thread:$0]  %s2, 512, %s42, [#allocation12], 128, 128, 8
    $region13: #{tpu_custom_call.1} parent=1 // pred_fallthru
      _
    // Predicated region
    $region14: #{tpu_custom_call.1} parent=1 // pred_check
      _
    $region15: #{tpu_custom_call.1} parent=1 // pred_check_branch
      %49 = sbr.rel (0) target = $region17
    $region16: #{tpu_custom_call.1} parent=1 // pred_region
      _
    $region17: #{tpu_custom_call.1} parent=1 // pred_fallthru
      _
    // Predicated region
    $region18: #{tpu_custom_call.1} parent=1 // pred_check
      _
    $region19: #{tpu_custom_call.1} parent=1 // pred_check_branch
      %51 = sbr.rel (0) target = $region21
    $region20: #{tpu_custom_call.1} parent=1 // pred_region
      %52 = dma.done [#allocation9], 256
    $region21: #{tpu_custom_call.1} parent=1 // pred_fallthru
      _
    // Predicated region
    $region22: #{tpu_custom_call.1} parent=1 // pred_check
      _
    $region23: #{tpu_custom_call.1} parent=1 // pred_check_branch
      %54 = sbr.rel (0) target = $region25
    $region24: #{tpu_custom_call.1} parent=1 // pred_region
      %55 = dma.done [#allocation12], 256
    $region25: #{tpu_custom_call.1} parent=1 // pred_fallthru
      _
    // Predicated region
    $region26: #{tpu_custom_call.1} parent=1 // pred_check
      _
    $region27: #{tpu_custom_call.1} parent=1 // pred_check_branch
      %57 = sbr.rel (0) target = $region29
    $region28: #{tpu_custom_call.1} parent=1 // pred_region
      %58 = dma.done [#allocation12], 512
    $region29: #{tpu_custom_call.1} parent=1 // pred_fallthru
      _
    %p59 = scmp.eq.s32.totalorder 0, 0
    // Predicated region
    $region30: #{tpu_custom_call.1} parent=1 // pred_check
      %p60 = pneg %p59
    $region31: #{tpu_custom_call.1} parent=1 // pred_check_branch
      %62 = sbr.rel (%p60) target = $region33
    $region32: #{tpu_custom_call.1} parent=1 // pred_region
      %vm63 = vcmask 254976
      %64 = vst.msk [vmem:[#allocation2] sm:$0x3] %vm63, 0.0
      %65 = vst.msk [vmem:[#allocation3] sm:$0x3] %vm63, 0.0
      %vm66 = vcmask 261120
      %67 = vst.msk [vmem:[#allocation4] sm:$0xff] %vm66, 0.0
      %68 = vst.msk [vmem:[#allocation4 + $0x8] sm:$0xff] %vm66, 0.0
      %69 = vst.msk [vmem:[#allocation4 + $0x10] sm:$0xff] %vm66, 0.0
      %70 = vst.msk [vmem:[#allocation4 + $0x18] sm:$0xff] %vm66, 0.0
      %71 = vst.msk [vmem:[#allocation4 + $0x20] sm:$0xff] %vm66, 0.0
      %72 = vst.msk [vmem:[#allocation4 + $0x28] sm:$0xff] %vm66, 0.0
      %73 = vst.msk [vmem:[#allocation4 + $0x30] sm:$0x3] %vm63, 0.0
      %vm74 = vcmask 402432
      %75 = vst.msk [vmem:[#allocation5] sm:$0x3] %vm74, 0.0
      %76 = vst.msk [vmem:[#allocation6] sm:$0x3] %vm74, 0.0
    $region33: #{tpu_custom_call.1} parent=1 // pred_fallthru
      _
    %v77 = vld [vmem:[#allocation13] sm:$0xff]
    %v78 = vld [vmem:[#allocation13 + $0x8] sm:$0xff]
    %v79 = vld [vmem:[#allocation13 + $0x10] sm:$0xff]
    %v80 = vld [vmem:[#allocation13 + $0x18] sm:$0xff]
    %v81 = vlaneseq
    %v82 = vand.u32 %v81, 127
    %v83 = vld [vmem:[#allocation8] sm:$0xff]
    %v84 = vld [vmem:[#allocation8 + $0x8] sm:$0xff]
    %v85 = vld [vmem:[#allocation11] sm:$0xff]
    %v86 = vld [vmem:[#allocation11 + $0x8] sm:$0xff]
    %v87 = vld [vmem:[%s3] sm:$0x1]
    %v89 = vlaneseq
    %v90 = vshrl.u32 %v89, 7
    %v91 = vsub.s32 0, %v90
    %v92 = vrot.slane %v87, %v91
    %vm94 = vcmask 130048
    %v96 = vsel %vm94, %v83, 0
    %v99 = vsel %vm94, %v84, 0
    %101 = vmatprep.subr.mxu0 0.0
    %102 = vmatpush1.msra.mxu0 %v85
    %103 = vmatprep.subr.mxu0 0.0
    %104 = vmatpush1.msra.mxu0 %v86
    %105 = vmatprep.subr.mxu0 0.0
    %106 = vmatpush1.msra.mxu0 0.0
    %107 = vmatprep.subr.mxu0 0.0
    %108 = vmatpush1.msra.mxu0 0.0
    %109 = vmatprep.subr.mxu0 0.0
    %110 = vmatpush1.msra.mxu0 0.0
    %111 = vmatprep.subr.mxu0 0.0
    %112 = vmatpush1.msra.mxu0 0.0
    %113 = vmatprep.subr.mxu0 0.0
    %114 = vmatpush1.msra.mxu0 0.0
    %115 = vmatprep.subr.mxu0 0.0
    %116 = vmatpush1.msra.mxu0 0.0
    %117 = vmatprep.subr.mxu0 0.0
    %118 = vmatpush1.msra.mxu0 0.0
    %119 = vmatprep.subr.mxu0 0.0
    %120 = vmatpush1.msra.mxu0 0.0
    %121 = vmatprep.subr.mxu0 0.0
    %122 = vmatpush1.msra.mxu0 0.0
    %123 = vmatprep.subr.mxu0 0.0
    %124 = vmatpush1.msra.mxu0 0.0
    %125 = vmatprep.subr.mxu0 0.0
    %126 = vmatpush1.msra.mxu0 0.0
    %127 = vmatprep.subr.mxu0 0.0
    %128 = vmatpush1.msra.mxu0 0.0
    %129 = vmatprep.subr.mxu0 0.0
    %130 = vmatpush1.msra.mxu0 0.0
    %131 = vmatprep.subr.mxu0 0.0
    %132 = vmatpush1.msra.mxu0 0.0
    %133 = vmatprep.subr.mxu0 0.0
    %134 = vmatpush1.msra.mxu0 0.0
    %135 = vmatprep.subr.mxu0 0.0
    %136 = vmatpush1.msra.mxu0 0.0
    %137 = vmatprep.subr.mxu0 0.0
    %138 = vmatpush1.msra.mxu0 0.0
    %139 = vmatprep.subr.mxu0 0.0
    %140 = vmatpush1.msra.mxu0 0.0
    %141 = vmatprep.subr.mxu0 0.0
    %142 = vmatpush1.msra.mxu0 0.0
    %143 = vmatprep.subr.mxu0 0.0
    %144 = vmatpush1.msra.mxu0 0.0
    %145 = vmatprep.subr.mxu0 0.0
    %146 = vmatpush1.msra.mxu0 0.0
    %147 = vmatprep.subr.mxu0 0.0
    %148 = vmatpush1.msra.mxu0 0.0
    %149 = vmatprep.subr.mxu0 0.0
    %150 = vmatpush1.msra.mxu0 0.0
    %151 = vmatprep.subr.mxu0 0.0
    %152 = vmatpush1.msra.mxu0 0.0
    %153 = vmatprep.subr.mxu0 0.0
    %154 = vmatpush1.msra.mxu0 0.0
    %155 = vmatprep.subr.mxu0 0.0
    %156 = vmatpush1.msra.mxu0 0.0
    %157 = vmatprep.subr.mxu0 0.0
    %158 = vmatpush1.msra.mxu0 0.0
    %159 = vmatprep.subr.mxu0 0.0
    %160 = vmatpush1.msra.mxu0 0.0
    %161 = vmatprep.subr.mxu0 0.0
    %162 = vmatpush1.msra.mxu0 0.0
    %163 = vmatprep.subr.mxu0 0.0
    %164 = vmatpush1.msra.mxu0 0.0
    %165 = vmatprep.mubr.f32.mxu0 0.0
    %166 = vmatmul.mubr.f32.gmra.mrb[0].mxu0 %v96
    %v167 = vpop.f32.mrb[0].mxu0
    %v168 = vadd.f32 %v92, %v167
    %v169 = vpop.f32.mrb[0].mxu0
    %170 = vmatprep.mubr.f32.mxu0 0.0
    %171 = vmatmul.mubr.f32.gmra.mrb[0].mxu0 %v99
    %v172 = vpop.f32.mrb[0].mxu0
    %v173 = vadd.f32 %v92, %v172
    %v174 = vpop.f32.mrb[0].mxu0
    %175 = vdwg.mxu0
    %176 = vst [vmem:[#allocation7] sm:$0xff] %v168
    %177 = vst [vmem:[#allocation7 + $0x8] sm:$0xff] %v173
    %v178 = vld [vmem:[#allocation2] sm:$0x3]
    %v179 = vld [vmem:[#allocation3] sm:$0x3]
    %v180 = vld [vmem:[#allocation4] sm:$0xff]
    %v181 = vld [vmem:[#allocation4 + $0x8] sm:$0xff]
    %v182 = vld [vmem:[#allocation4 + $0x10] sm:$0xff]
    %v183 = vld [vmem:[#allocation4 + $0x18] sm:$0xff]
    %v184 = vld [vmem:[#allocation4 + $0x20] sm:$0xff]
    %v185 = vld [vmem:[#allocation4 + $0x28] sm:$0xff]
    %v186 = vld [vmem:[#allocation4 + $0x30] sm:$0x3]
    %v187 = vld [vmem:[#allocation5] sm:$0x3]
    %v188 = vld [vmem:[#allocation6] sm:$0x3]
    %v189 = vld [vmem:[#allocation7] sm:$0x1]
    %v190 = vld [vmem:[#allocation7 + $0x8] sm:$0x1]
    %vm191 = vcmask 261120
    %v193 = vsel %vm191, %v178, 0
    %195 = vmatprep.subr.mxu0 0.0
    %196 = vmatpush1.msra.mxu0 %v77
    %197 = vmatprep.subr.mxu0 0.0
    %198 = vmatpush1.msra.mxu0 %v78
    %199 = vmatprep.subr.mxu0 0.0
    %200 = vmatpush1.msra.mxu0 %v79
    %201 = vmatprep.subr.mxu0 0.0
    %202 = vmatpush1.msra.mxu0 %v80
    %203 = vmatprep.subr.mxu0 0.0
    %204 = vmatpush1.msra.mxu0 0.0
    %205 = vmatprep.subr.mxu0 0.0
    %206 = vmatpush1.msra.mxu0 0.0
    %207 = vmatprep.subr.mxu0 0.0
    %208 = vmatpush1.msra.mxu0 0.0
    %209 = vmatprep.subr.mxu0 0.0
    %210 = vmatpush1.msra.mxu0 0.0
    %211 = vmatprep.subr.mxu0 0.0
    %212 = vmatpush1.msra.mxu0 0.0
    %213 = vmatprep.subr.mxu0 0.0
    %214 = vmatpush1.msra.mxu0 0.0
    %215 = vmatprep.subr.mxu0 0.0
    %216 = vmatpush1.msra.mxu0 0.0
    %217 = vmatprep.subr.mxu0 0.0
    %218 = vmatpush1.msra.mxu0 0.0
    %219 = vmatprep.subr.mxu0 0.0
    %220 = vmatpush1.msra.mxu0 0.0
    %221 = vmatprep.subr.mxu0 0.0
    %222 = vmatpush1.msra.mxu0 0.0
    %223 = vmatprep.subr.mxu0 0.0
    %224 = vmatpush1.msra.mxu0 0.0
    %225 = vmatprep.subr.mxu0 0.0
    %226 = vmatpush1.msra.mxu0 0.0
    %227 = vmatprep.subr.mxu0 0.0
    %228 = vmatpush1.msra.mxu0 0.0
    %229 = vmatprep.subr.mxu0 0.0
    %230 = vmatpush1.msra.mxu0 0.0
    %231 = vmatprep.subr.mxu0 0.0
    %232 = vmatpush1.msra.mxu0 0.0
    %233 = vmatprep.subr.mxu0 0.0
    %234 = vmatpush1.msra.mxu0 0.0
    %235 = vmatprep.subr.mxu0 0.0
    %236 = vmatpush1.msra.mxu0 0.0
    %237 = vmatprep.subr.mxu0 0.0
    %238 = vmatpush1.msra.mxu0 0.0
    %239 = vmatprep.subr.mxu0 0.0
    %240 = vmatpush1.msra.mxu0 0.0
    %241 = vmatprep.subr.mxu0 0.0
    %242 = vmatpush1.msra.mxu0 0.0
    %243 = vmatprep.subr.mxu0 0.0
    %244 = vmatpush1.msra.mxu0 0.0
    %245 = vmatprep.subr.mxu0 0.0
    %246 = vmatpush1.msra.mxu0 0.0
    %247 = vmatprep.subr.mxu0 0.0
    %248 = vmatpush1.msra.mxu0 0.0
    %249 = vmatprep.subr.mxu0 0.0
    %250 = vmatpush1.msra.mxu0 0.0
    %251 = vmatprep.subr.mxu0 0.0
    %252 = vmatpush1.msra.mxu0 0.0
    %253 = vmatprep.subr.mxu0 0.0
    %254 = vmatpush1.msra.mxu0 0.0
    %255 = vmatprep.subr.mxu0 0.0
    %256 = vmatpush1.msra.mxu0 0.0
    %257 = vmatprep.subr.mxu0 0.0
    %258 = vmatpush1.msra.mxu0 0.0
    %259 = vmatprep.mubr.f32.mxu0 0.0
    %260 = vmatmul.mubr.f32.gmra.mrb[0].mxu0 %v193
    %v261 = vpop.f32.mrb[0].mxu0
    %v262 = vadd.f32 0.0, %v261
    %v263 = vpop.f32.mrb[0].mxu0
    %264 = vdwg.mxu0
    %v266 = vrot.slane %v262, 1
    %v269 = vadd.f32 %v189, %v262
    %v270 = vadd.f32 %v190, %v266
    %v271 = vxor.u32 %v269, 2147483648
    %v272 = vxor.u32 %v270, 2147483648
    %v273 = vmul.f32 %v271, 1.442695
    %v274 = vpow.pop %v273
    %v275 = vmul.f32 %v272, 1.442695
    %v276 = vpow.pop %v275
    %v277 = vadd.f32 %v274, 1.0
    %v278 = vadd.f32 %v276, 1.0
    %v279 = vrcp.pop %v277
    %v280 = vmul.f32 1.0, %v279
    %v281 = vrcp.pop %v278
    %v282 = vmul.f32 1.0, %v281
    %v283 = vtanh.pop %v269
    %v284 = vtanh.pop %v270
    %v286 = vrot.slane %v179, 1
    %287 = vrot.lane.b32.xlu0 %v179, 32
    %v288 = vpop.permute.xlu0 %287
    %289 = vrot.lane.b32.xlu0 %v286, 32
    %v290 = vpop.permute.xlu0 %289
    %v293 = vmul.f32 %v280, %v288
    %v294 = vmul.f32 %v282, %v290
    %297 = vrot.lane.b32.xlu0 %v283, 64
    %v298 = vpop.permute.xlu0 %297
    %299 = vrot.lane.b32.xlu0 %v284, 64
    %v300 = vpop.permute.xlu0 %299
    %v303 = vmul.f32 %v280, %v298
    %v304 = vmul.f32 %v282, %v300
    %307 = vrot.lane.b32.xlu0 %v303, 32
    %v308 = vpop.permute.xlu0 %307
    %309 = vrot.lane.b32.xlu0 %v304, 32
    %v310 = vpop.permute.xlu0 %309
    %v313 = vadd.f32 %v293, %v308
    %v314 = vadd.f32 %v294, %v310
    %v315 = vtanh.pop %v313
    %v316 = vtanh.pop %v314
    %319 = vrot.lane.b32.xlu0 %v315, 64
    %v320 = vpop.permute.xlu0 %319
    %321 = vrot.lane.b32.xlu0 %v316, 64
    %v322 = vpop.permute.xlu0 %321
    %v325 = vmul.f32 %v280, %v320
    %v326 = vmul.f32 %v282, %v322
    %v327 = vmul.f32 %v325, %v325
    %v328 = vmul.f32 %v326, %v326
    %v331 = vrot.slane %v328, 7
    %vm332 = vcmask 1041409
    %v333 = vsel %vm332, %v331, %v327
    %334 = vrot.lane.b32.xlu0 %v333, 32
    %v335 = vpop.permute.xlu0 %334
    %vm337 = vcmask 254976
    %v338 = vsel %vm337, %v335, 0.0
    %339 = vadd.xlane.f32.xlu0 %v338
    %v340 = vpop.xlane.xlu0 %339
    %v341 = vadd.f32 %v340, 1e-16
    %v342 = vrsqrt.pop %v341
    %v344 = vrot.slane %v342, 1
    %v347 = vmul.f32 %v325, %v342
    %v348 = vmul.f32 %v326, %v344
    %v349 = vmul.f32 %v180, %v180
    %v350 = vmul.f32 %v181, %v181
    %v351 = vmul.f32 %v182, %v182
    %v352 = vmul.f32 %v183, %v183
    %v353 = vmul.f32 %v184, %v184
    %v354 = vmul.f32 %v185, %v185
    %v355 = vmul.f32 %v186, %v186
    %v356 = vsel %vm191, %v349, 0.0
    %357 = vadd.xlane.f32.xlu0 %v356
    %v358 = vpop.xlane.xlu0 %357
    %v359 = vsel %vm191, %v350, 0.0
    %360 = vadd.xlane.f32.xlu0 %v359
    %v361 = vpop.xlane.xlu0 %360
    %v362 = vsel %vm191, %v351, 0.0
    %363 = vadd.xlane.f32.xlu0 %v362
    %v364 = vpop.xlane.xlu0 %363
    %v365 = vsel %vm191, %v352, 0.0
    %366 = vadd.xlane.f32.xlu0 %v365
    %v367 = vpop.xlane.xlu0 %366
    %v368 = vsel %vm191, %v353, 0.0
    %369 = vadd.xlane.f32.xlu0 %v368
    %v370 = vpop.xlane.xlu0 %369
    %v371 = vsel %vm191, %v354, 0.0
    %372 = vadd.xlane.f32.xlu0 %v371
    %v373 = vpop.xlane.xlu0 %372
    %v374 = vsel %vm337, %v355, 0.0
    %375 = vadd.xlane.f32.xlu0 %v374
    %v376 = vpop.xlane.xlu0 %375
    %v377 = vadd.f32 %v358, 1e-16
    %v378 = vadd.f32 %v361, 1e-16
    %v379 = vadd.f32 %v364, 1e-16
    %v380 = vadd.f32 %v367, 1e-16
    %v381 = vadd.f32 %v370, 1e-16
    %v382 = vadd.f32 %v373, 1e-16
    %v383 = vadd.f32 %v376, 1e-16
    %v384 = vrsqrt.pop %v377
    %v385 = vrsqrt.pop %v378
    %v386 = vrsqrt.pop %v379
    %v387 = vrsqrt.pop %v380
    %v388 = vrsqrt.pop %v381
    %v389 = vrsqrt.pop %v382
    %v390 = vrsqrt.pop %v383
    %v391 = vmul.f32 %v180, %v384
    %v392 = vmul.f32 %v181, %v385
    %v393 = vmul.f32 %v182, %v386
    %v394 = vmul.f32 %v183, %v387
    %v395 = vmul.f32 %v184, %v388
    %v396 = vmul.f32 %v185, %v389
    %v397 = vmul.f32 %v186, %v390
    %v400 = vrot.slane %v348, 7
    %v401 = vsel %vm332, %v400, %v347
    %402 = vrot.lane.b32.xlu0 %v401, 32
    %v403 = vpop.permute.xlu0 %402
    %v404 = vsel %vm191, %v403, 0
    %v407 = vsel %vm191, %v391, 0
    %v410 = vsel %vm191, %v392, 0
    %v413 = vsel %vm191, %v393, 0
    %v416 = vsel %vm191, %v394, 0
    %v419 = vsel %vm191, %v395, 0
    %v422 = vsel %vm191, %v396, 0
    %v425 = vsel %vm191, %v397, 0
    %427 = vmatprep.subr.mxu0 0.0
    %428 = vmatpush1.xpose.msra.mxu0 %v407
    %429 = vmatprep.subr.mxu0 0.0
    %430 = vmatpush1.xpose.msra.mxu0 %v410
    %431 = vmatprep.subr.mxu0 0.0
    %432 = vmatpush1.xpose.msra.mxu0 %v413
    %433 = vmatprep.subr.mxu0 0.0
    %434 = vmatpush1.xpose.msra.mxu0 %v416
    %435 = vmatprep.subr.mxu0 0.0
    %436 = vmatpush1.xpose.msra.mxu0 %v419
    %437 = vmatprep.subr.mxu0 0.0
    %438 = vmatpush1.xpose.msra.mxu0 %v422
    %439 = vmatprep.subr.mxu0 0.0
    %440 = vmatpush1.xpose.msra.mxu0 %v425
    %441 = vmatprep.subr.mxu0 0.0
    %442 = vmatpush1.xpose.msra.mxu0 0.0
    %443 = vmatprep.subr.mxu0 0.0
    %444 = vmatpush1.xpose.msra.mxu0 0.0
    %445 = vmatprep.subr.mxu0 0.0
    %446 = vmatpush1.xpose.msra.mxu0 0.0
    %447 = vmatprep.subr.mxu0 0.0
    %448 = vmatpush1.xpose.msra.mxu0 0.0
    %449 = vmatprep.subr.mxu0 0.0
    %450 = vmatpush1.xpose.msra.mxu0 0.0
    %451 = vmatprep.subr.mxu0 0.0
    %452 = vmatpush1.xpose.msra.mxu0 0.0
    %453 = vmatprep.subr.mxu0 0.0
    %454 = vmatpush1.xpose.msra.mxu0 0.0
    %455 = vmatprep.subr.mxu0 0.0
    %456 = vmatpush1.xpose.msra.mxu0 0.0
    %457 = vmatprep.subr.mxu0 0.0
    %458 = vmatpush1.xpose.msra.mxu0 0.0
    %459 = vmatprep.subr.mxu0 0.0
    %460 = vmatpush1.xpose.msra.mxu0 0.0
    %461 = vmatprep.subr.mxu0 0.0
    %462 = vmatpush1.xpose.msra.mxu0 0.0
    %463 = vmatprep.subr.mxu0 0.0
    %464 = vmatpush1.xpose.msra.mxu0 0.0
    %465 = vmatprep.subr.mxu0 0.0
    %466 = vmatpush1.xpose.msra.mxu0 0.0
    %467 = vmatprep.subr.mxu0 0.0
    %468 = vmatpush1.xpose.msra.mxu0 0.0
    %469 = vmatprep.subr.mxu0 0.0
    %470 = vmatpush1.xpose.msra.mxu0 0.0
    %471 = vmatprep.subr.mxu0 0.0
    %472 = vmatpush1.xpose.msra.mxu0 0.0
    %473 = vmatprep.subr.mxu0 0.0
    %474 = vmatpush1.xpose.msra.mxu0 0.0
    %475 = vmatprep.subr.mxu0 0.0
    %476 = vmatpush1.xpose.msra.mxu0 0.0
    %477 = vmatprep.subr.mxu0 0.0
    %478 = vmatpush1.xpose.msra.mxu0 0.0
    %479 = vmatprep.subr.mxu0 0.0
    %480 = vmatpush1.xpose.msra.mxu0 0.0
    %481 = vmatprep.subr.mxu0 0.0
    %482 = vmatpush1.xpose.msra.mxu0 0.0
    %483 = vmatprep.subr.mxu0 0.0
    %484 = vmatpush1.xpose.msra.mxu0 0.0
    %485 = vmatprep.subr.mxu0 0.0
    %486 = vmatpush1.xpose.msra.mxu0 0.0
    %487 = vmatprep.subr.mxu0 0.0
    %488 = vmatpush1.xpose.msra.mxu0 0.0
    %489 = vmatprep.subr.mxu0 0.0
    %490 = vmatpush1.xpose.msra.mxu0 0.0
    %491 = vmatprep.mubr.f32.mxu0 0.0
    %492 = vmatmul.mubr.f32.gmra.mrb[0].mxu0 %v404
    %v493 = vpop.f32.mrb[0].mxu0
    %v494 = vadd.f32 0.0, %v493
    %v495 = vpop.f32.mrb[0].mxu0
    %496 = vdwg.mxu0
    %vm497 = vcmask 402432
    %v498 = vsel %vm497, %v494, -inf
    %499 = vmax.xlane.f32.xlu0 %v498
    %v500 = vpop.xlane.xlu0 %499
    %v501 = vsub.f32 %v494, %v500
    %v502 = vmul.f32 %v501, 1.442695
    %v503 = vpow.pop %v502
    %v504 = vsel %vm497, %v503, 0.0
    %505 = vadd.xlane.f32.xlu0 %v504
    %v506 = vpop.xlane.xlu0 %505
    %v507 = vrcp.pop %v506
    %v508 = vmul.f32 %v503, %v507
    %vm509 = vcmask 408576
    %v511 = vsel %vm509, %v508, 0
    %vm513 = vcmask 1041408
    %v515 = vsel %vm513, %v186, 0
    %517 = vmatprep.subr.mxu0 0.0
    %518 = vmatpush1.msra.mxu0 %v180
    %519 = vmatprep.subr.mxu0 0.0
    %520 = vmatpush1.msra.mxu0 %v181
    %521 = vmatprep.subr.mxu0 0.0
    %522 = vmatpush1.msra.mxu0 %v182
    %523 = vmatprep.subr.mxu0 0.0
    %524 = vmatpush1.msra.mxu0 %v183
    %525 = vmatprep.subr.mxu0 0.0
    %526 = vmatpush1.msra.mxu0 %v184
    %527 = vmatprep.subr.mxu0 0.0
    %528 = vmatpush1.msra.mxu0 %v185
    %529 = vmatprep.subr.mxu0 0.0
    %530 = vmatpush1.msra.mxu0 %v515
    %531 = vmatprep.subr.mxu0 0.0
    %532 = vmatpush1.msra.mxu0 0.0
    %533 = vmatprep.subr.mxu0 0.0
    %534 = vmatpush1.msra.mxu0 0.0
    %535 = vmatprep.subr.mxu0 0.0
    %536 = vmatpush1.msra.mxu0 0.0
    %537 = vmatprep.subr.mxu0 0.0
    %538 = vmatpush1.msra.mxu0 0.0
    %539 = vmatprep.subr.mxu0 0.0
    %540 = vmatpush1.msra.mxu0 0.0
    %541 = vmatprep.subr.mxu0 0.0
    %542 = vmatpush1.msra.mxu0 0.0
    %543 = vmatprep.subr.mxu0 0.0
    %544 = vmatpush1.msra.mxu0 0.0
    %545 = vmatprep.subr.mxu0 0.0
    %546 = vmatpush1.msra.mxu0 0.0
    %547 = vmatprep.subr.mxu0 0.0
    %548 = vmatpush1.msra.mxu0 0.0
    %549 = vmatprep.subr.mxu0 0.0
    %550 = vmatpush1.msra.mxu0 0.0
    %551 = vmatprep.subr.mxu0 0.0
    %552 = vmatpush1.msra.mxu0 0.0
    %553 = vmatprep.subr.mxu0 0.0
    %554 = vmatpush1.msra.mxu0 0.0
    %555 = vmatprep.subr.mxu0 0.0
    %556 = vmatpush1.msra.mxu0 0.0
    %557 = vmatprep.subr.mxu0 0.0
    %558 = vmatpush1.msra.mxu0 0.0
    %559 = vmatprep.subr.mxu0 0.0
    %560 = vmatpush1.msra.mxu0 0.0
    %561 = vmatprep.subr.mxu0 0.0
    %562 = vmatpush1.msra.mxu0 0.0
    %563 = vmatprep.subr.mxu0 0.0
    %564 = vmatpush1.msra.mxu0 0.0
    %565 = vmatprep.subr.mxu0 0.0
    %566 = vmatpush1.msra.mxu0 0.0
    %567 = vmatprep.subr.mxu0 0.0
    %568 = vmatpush1.msra.mxu0 0.0
    %569 = vmatprep.subr.mxu0 0.0
    %570 = vmatpush1.msra.mxu0 0.0
    %571 = vmatprep.subr.mxu0 0.0
    %572 = vmatpush1.msra.mxu0 0.0
    %573 = vmatprep.subr.mxu0 0.0
    %574 = vmatpush1.msra.mxu0 0.0
    %575 = vmatprep.subr.mxu0 0.0
    %576 = vmatpush1.msra.mxu0 0.0
    %577 = vmatprep.subr.mxu0 0.0
    %578 = vmatpush1.msra.mxu0 0.0
    %579 = vmatprep.subr.mxu0 0.0
    %580 = vmatpush1.msra.mxu0 0.0
    %581 = vmatprep.mubr.f32.mxu0 0.0
    %582 = vmatmul.mubr.f32.gmra.mrb[0].mxu0 %v511
    %v583 = vpop.f32.mrb[0].mxu0
    %v584 = vadd.f32 0.0, %v583
    %v585 = vpop.f32.mrb[0].mxu0
    %586 = vdwg.mxu0
    %v589 = vrot.slane %v326, 7
    %v590 = vsel %vm332, %v589, %v325
    %591 = vrot.lane.b32.xlu0 %v590, 32
    %v592 = vpop.permute.xlu0 %591
    %595 = vrot.lane.b32.xlu0 %v584, 32
    %v596 = vpop.permute.xlu0 %595
    %v598 = vsel %vm191, %v592, %v596
    %v601 = vunpack.c.l.s4 1966171168
    %v602 = vunpack.c.0.s8 %v601
    %v603 = vlaneseq
    %v604 = vshrl.u32 %v603, 7
    %v605 = vsub.s32 %v602, %v604
    %v606 = vrot.slane %v598, %v605
    %v607 = vcombine.high %v606, %v606
    %v609 = vunpack.c.l.s4 1966171168
    %v610 = vunpack.c.0.s8 %v609
    %v611 = vlaneseq
    %v612 = vshrl.u32 %v611, 7
    %v613 = vsub.s32 %v610, %v612
    %v614 = vrot.slane %v606, %v613
    %v616 = vunpack.c.l.s4 1966171168
    %v617 = vunpack.c.0.s8 %v616
    %v618 = vlaneseq
    %v619 = vshrl.u32 %v618, 7
    %v620 = vsub.s32 %v617, %v619
    %v621 = vrot.slane %v607, %v620
    %vm624 = vcmask 516096
    %625 = vst.msk [vmem:[#allocation14] sm:$0x1] %vm624, %v614
    %626 = vst.msk [vmem:[#allocation14 + $0x8] sm:$0x1] %vm624, %v621
    %v627 = vsel %vm497, %v187, inf
    %628 = vmin.xlane.f32.xlu0 %v627
    %v629 = vpop.xlane.xlu0 %628
    %vm630 = vcmp.eq.f32.partialorder %v187, %v629
    %v631 = vsel %vm630, %v82, 50
    %v632 = vsel %vm497, %v631, 2147483647
    %v633 = vand.u32 %v632, 65535
    %v634 = vshra.s32 %v632, 16
    %v635 = vcvt.s32.f32 %v633
    %v636 = vcvt.s32.f32 %v634
    %637 = vmin.xlane.f32.xlu0 %v636
    %v638 = vpop.xlane.xlu0 %637
    %vm639 = vcmp.eq.f32.partialorder %v636, %v638
    %v640 = vsel %vm639, %v635, inf
    %641 = vmin.xlane.f32.xlu0 %v640
    %v642 = vpop.xlane.xlu0 %641
    %v643 = vcvt.f32.s32 %v642
    %v644 = vcvt.f32.s32 %v638
    %v645 = vshll.u32 %v644, 16
    %v646 = vadd.s32 %v645, %v643
    %vm647 = vcmp.eq.s32.totalorder %v82, %v646
    %v648 = vsel %vm647, 1, 0
    %v649 = vcvt.s32.f32 %v648
    %v650 = vmul.f32 %v649, 0.59868765
    %v651 = vmul.f32 %v188, 0.40131235
    %v652 = vadd.f32 %v651, %v650
    %653 = vxpose.xlu0.b32.start [1/16] %v652, 128
    %654 = vxpose.xlu0.b32.cont [2/16] 0.0, 128
    %655 = vxpose.xlu0.b32.cont [3/16] 0.0, 128
    %656 = vxpose.xlu0.b32.cont [4/16] 0.0, 128
    %657 = vxpose.xlu0.b32.cont [5/16] 0.0, 128
    %658 = vxpose.xlu0.b32.cont [6/16] 0.0, 128
    %659 = vxpose.xlu0.b32.cont [7/16] 0.0, 128
    %660 = vxpose.xlu0.b32.cont [8/16] 0.0, 128
    %661 = vxpose.xlu0.b32.cont [9/16] 0.0, 128
    %662 = vxpose.xlu0.b32.cont [10/16] 0.0, 128
    %663 = vxpose.xlu0.b32.cont [11/16] 0.0, 128
    %664 = vxpose.xlu0.b32.cont [12/16] 0.0, 128
    %665 = vxpose.xlu0.b32.cont [13/16] 0.0, 128
    %666 = vxpose.xlu0.b32.cont [14/16] 0.0, 128
    %667 = vxpose.xlu0.b32.cont [15/16] 0.0, 128
    %668 = vxpose.xlu0.b32.end [16/16] 0.0, 128
    %v669 = vpop.trf.xlu0
    %v670 = vpop.trf.xlu0
    %v671 = vpop.trf.xlu0
    %v672 = vpop.trf.xlu0
    %v673 = vpop.trf.xlu0
    %v674 = vpop.trf.xlu0
    %v675 = vpop.trf.xlu0
    %v676 = vpop.trf.xlu0
    %v677 = vpop.trf.xlu0
    %v678 = vpop.trf.xlu0
    %v679 = vpop.trf.xlu0
    %v680 = vpop.trf.xlu0
    %v681 = vpop.trf.xlu0
    %v682 = vpop.trf.xlu0
    %v683 = vpop.trf.xlu0
    %v684 = vpop.trf.xlu0
    %vm685 = vcmask 15360
    %v687 = vsel %vm685, %v669, 0
    %v690 = vsel %vm685, %v670, 0
    %v693 = vsel %vm685, %v671, 0
    %v696 = vsel %vm685, %v672, 0
    %v699 = vsel %vm685, %v673, 0
    %v702 = vsel %vm685, %v674, 0
    %v705 = vsel %vm685, %v675, 0
    %v707 = vsel %vm513, %v592, 0
    %709 = vmatprep.subr.mxu0 0.0
    %710 = vmatpush1.msra.mxu0 %v707
    %711 = vmatprep.subr.mxu0 0.0
    %712 = vmatpush1.msra.mxu0 0.0
    %713 = vmatprep.subr.mxu0 0.0
    %714 = vmatpush1.msra.mxu0 0.0
    %715 = vmatprep.subr.mxu0 0.0
    %716 = vmatpush1.msra.mxu0 0.0
    %717 = vmatprep.subr.mxu0 0.0
    %718 = vmatpush1.msra.mxu0 0.0
    %719 = vmatprep.subr.mxu0 0.0
    %720 = vmatpush1.msra.mxu0 0.0
    %721 = vmatprep.subr.mxu0 0.0
    %722 = vmatpush1.msra.mxu0 0.0
    %723 = vmatprep.subr.mxu0 0.0
    %724 = vmatpush1.msra.mxu0 0.0
    %725 = vmatprep.subr.mxu0 0.0
    %726 = vmatpush1.msra.mxu0 0.0
    %727 = vmatprep.subr.mxu0 0.0
    %728 = vmatpush1.msra.mxu0 0.0
    %729 = vmatprep.subr.mxu0 0.0
    %730 = vmatpush1.msra.mxu0 0.0
    %731 = vmatprep.subr.mxu0 0.0
    %732 = vmatpush1.msra.mxu0 0.0
    %733 = vmatprep.subr.mxu0 0.0
    %734 = vmatpush1.msra.mxu0 0.0
    %735 = vmatprep.subr.mxu0 0.0
    %736 = vmatpush1.msra.mxu0 0.0
    %737 = vmatprep.subr.mxu0 0.0
    %738 = vmatpush1.msra.mxu0 0.0
    %739 = vmatprep.subr.mxu0 0.0
    %740 = vmatpush1.msra.mxu0 0.0
    %741 = vmatprep.subr.mxu0 0.0
    %742 = vmatpush1.msra.mxu0 0.0
    %743 = vmatprep.subr.mxu0 0.0
    %744 = vmatpush1.msra.mxu0 0.0
    %745 = vmatprep.subr.mxu0 0.0
    %746 = vmatpush1.msra.mxu0 0.0
    %747 = vmatprep.subr.mxu0 0.0
    %748 = vmatpush1.msra.mxu0 0.0
    %749 = vmatprep.subr.mxu0 0.0
    %750 = vmatpush1.msra.mxu0 0.0
    %751 = vmatprep.subr.mxu0 0.0
    %752 = vmatpush1.msra.mxu0 0.0
    %753 = vmatprep.subr.mxu0 0.0
    %754 = vmatpush1.msra.mxu0 0.0
    %755 = vmatprep.subr.mxu0 0.0
    %756 = vmatpush1.msra.mxu0 0.0
    %757 = vmatprep.subr.mxu0 0.0
    %758 = vmatpush1.msra.mxu0 0.0
    %759 = vmatprep.subr.mxu0 0.0
    %760 = vmatpush1.msra.mxu0 0.0
    %761 = vmatprep.subr.mxu0 0.0
    %762 = vmatpush1.msra.mxu0 0.0
    %763 = vmatprep.subr.mxu0 0.0
    %764 = vmatpush1.msra.mxu0 0.0
    %765 = vmatprep.subr.mxu0 0.0
    %766 = vmatpush1.msra.mxu0 0.0
    %767 = vmatprep.subr.mxu0 0.0
    %768 = vmatpush1.msra.mxu0 0.0
    %769 = vmatprep.subr.mxu0 0.0
    %770 = vmatpush1.msra.mxu0 0.0
    %771 = vmatprep.subr.mxu0 0.0
    %772 = vmatpush1.msra.mxu0 0.0
    %773 = vmatprep.mubr.f32.mxu0 0.0
    %774 = vmatmul.mubr.f32.gmra.mrb[0].mxu0 %v687
    %v775 = vpop.f32.mrb[0].mxu0
    %v776 = vadd.f32 0.0, %v775
    %v777 = vpop.f32.mrb[0].mxu0
    %778 = vmatprep.mubr.f32.mxu0 0.0
    %779 = vmatmul.mubr.f32.gmra.mrb[0].mxu0 %v690
    %v780 = vpop.f32.mrb[0].mxu0
    %v781 = vadd.f32 0.0, %v780
    %v782 = vpop.f32.mrb[0].mxu0
    %783 = vmatprep.mubr.f32.mxu0 0.0
    %784 = vmatmul.mubr.f32.gmra.mrb[0].mxu0 %v693
    %v785 = vpop.f32.mrb[0].mxu0
    %v786 = vadd.f32 0.0, %v785
    %v787 = vpop.f32.mrb[0].mxu0
    %788 = vmatprep.mubr.f32.mxu0 0.0
    %789 = vmatmul.mubr.f32.gmra.mrb[0].mxu0 %v696
    %v790 = vpop.f32.mrb[0].mxu0
    %v791 = vadd.f32 0.0, %v790
    %v792 = vpop.f32.mrb[0].mxu0
    %793 = vmatprep.mubr.f32.mxu0 0.0
    %794 = vmatmul.mubr.f32.gmra.mrb[0].mxu0 %v699
    %v795 = vpop.f32.mrb[0].mxu0
    %v796 = vadd.f32 0.0, %v795
    %v797 = vpop.f32.mrb[0].mxu0
    %798 = vmatprep.mubr.f32.mxu0 0.0
    %799 = vmatmul.mubr.f32.gmra.mrb[0].mxu0 %v702
    %v800 = vpop.f32.mrb[0].mxu0
    %v801 = vadd.f32 0.0, %v800
    %v802 = vpop.f32.mrb[0].mxu0
    %803 = vmatprep.mubr.f32.mxu0 0.0
    %804 = vmatmul.mubr.f32.gmra.mrb[0].mxu0 %v705
    %v805 = vpop.f32.mrb[0].mxu0
    %v806 = vadd.f32 0.0, %v805
    %v807 = vpop.f32.mrb[0].mxu0
    %808 = vdwg.mxu0
    %v809 = vadd.f32 %v180, %v776
    %v810 = vadd.f32 %v181, %v781
    %v811 = vadd.f32 %v182, %v786
    %v812 = vadd.f32 %v183, %v791
    %v813 = vadd.f32 %v184, %v796
    %v814 = vadd.f32 %v185, %v801
    %v815 = vadd.f32 %v186, %v806
    %v816 = vmul.f32 %v809, %v809
    %v817 = vmul.f32 %v810, %v810
    %v818 = vmul.f32 %v811, %v811
    %v819 = vmul.f32 %v812, %v812
    %v820 = vmul.f32 %v813, %v813
    %v821 = vmul.f32 %v814, %v814
    %v822 = vmul.f32 %v815, %v815
    %v823 = vsel %vm191, %v816, 0.0
    %824 = vadd.xlane.f32.xlu0 %v823
    %v825 = vpop.xlane.xlu0 %824
    %v826 = vsel %vm191, %v817, 0.0
    %827 = vadd.xlane.f32.xlu0 %v826
    %v828 = vpop.xlane.xlu0 %827
    %v829 = vsel %vm191, %v818, 0.0
    %830 = vadd.xlane.f32.xlu0 %v829
    %v831 = vpop.xlane.xlu0 %830
    %v832 = vsel %vm191, %v819, 0.0
    %833 = vadd.xlane.f32.xlu0 %v832
    %v834 = vpop.xlane.xlu0 %833
    %v835 = vsel %vm191, %v820, 0.0
    %836 = vadd.xlane.f32.xlu0 %v835
    %v837 = vpop.xlane.xlu0 %836
    %v838 = vsel %vm191, %v821, 0.0
    %839 = vadd.xlane.f32.xlu0 %v838
    %v840 = vpop.xlane.xlu0 %839
    %v841 = vsel %vm337, %v822, 0.0
    %842 = vadd.xlane.f32.xlu0 %v841
    %v843 = vpop.xlane.xlu0 %842
    %v844 = vrsqrt.pop %v825
    %v845 = vrsqrt.pop %v828
    %v846 = vrsqrt.pop %v831
    %v847 = vrsqrt.pop %v834
    %v848 = vrsqrt.pop %v837
    %v849 = vrsqrt.pop %v840
    %v850 = vrsqrt.pop %v843
    %v851 = vmin.f32 %v844, 1e+12
    %v852 = vmin.f32 %v845, 1e+12
    %v853 = vmin.f32 %v846, 1e+12
    %v854 = vmin.f32 %v847, 1e+12
    %v855 = vmin.f32 %v848, 1e+12
    %v856 = vmin.f32 %v849, 1e+12
    %v857 = vmin.f32 %v850, 1e+12
    %v858 = vmul.f32 %v809, %v851
    %v859 = vmul.f32 %v810, %v852
    %v860 = vmul.f32 %v811, %v853
    %v861 = vmul.f32 %v812, %v854
    %v862 = vmul.f32 %v813, %v855
    %v863 = vmul.f32 %v814, %v856
    %v864 = vmul.f32 %v815, %v857
    %v865 = vmul.f32 %v187, 0.3
    %v866 = vadd.f32 %v865, %v508
    %v867 = vadd.f32 %v866, %v652
    %v868 = vmul.f32 %v867, %v867
    %v869 = vsel %vm497, %v868, 0.0
    %870 = vadd.xlane.f32.xlu0 %v869
    %v871 = vpop.xlane.xlu0 %870
    %v872 = vrsqrt.pop %v871
    %v873 = vmin.f32 %v872, 1e+12
    %v874 = vmul.f32 %v867, %v873
    %v875 = vld [vmem:[#allocation7 + $0x1] sm:$0x1]
    %v876 = vld [vmem:[#allocation7 + $0x9] sm:$0x1]
    %v877 = vsel %vm191, %v592, 0
    %879 = vmatprep.subr.mxu0 0.0
    %880 = vmatpush1.msra.mxu0 %v77
    %881 = vmatprep.subr.mxu0 0.0
    %882 = vmatpush1.msra.mxu0 %v78
    %883 = vmatprep.subr.mxu0 0.0
    %884 = vmatpush1.msra.mxu0 %v79
    %885 = vmatprep.subr.mxu0 0.0
    %886 = vmatpush1.msra.mxu0 %v80
    %887 = vmatprep.subr.mxu0 0.0
    %888 = vmatpush1.msra.mxu0 0.0
    %889 = vmatprep.subr.mxu0 0.0
    %890 = vmatpush1.msra.mxu0 0.0
    %891 = vmatprep.subr.mxu0 0.0
    %892 = vmatpush1.msra.mxu0 0.0
    %893 = vmatprep.subr.mxu0 0.0
    %894 = vmatpush1.msra.mxu0 0.0
    %895 = vmatprep.subr.mxu0 0.0
    %896 = vmatpush1.msra.mxu0 0.0
    %897 = vmatprep.subr.mxu0 0.0
    %898 = vmatpush1.msra.mxu0 0.0
    %899 = vmatprep.subr.mxu0 0.0
    %900 = vmatpush1.msra.mxu0 0.0
    %901 = vmatprep.subr.mxu0 0.0
    %902 = vmatpush1.msra.mxu0 0.0
    %903 = vmatprep.subr.mxu0 0.0
    %904 = vmatpush1.msra.mxu0 0.0
    %905 = vmatprep.subr.mxu0 0.0
    %906 = vmatpush1.msra.mxu0 0.0
    %907 = vmatprep.subr.mxu0 0.0
    %908 = vmatpush1.msra.mxu0 0.0
    %909 = vmatprep.subr.mxu0 0.0
    %910 = vmatpush1.msra.mxu0 0.0
    %911 = vmatprep.subr.mxu0 0.0
    %912 = vmatpush1.msra.mxu0 0.0
    %913 = vmatprep.subr.mxu0 0.0
    %914 = vmatpush1.msra.mxu0 0.0
    %915 = vmatprep.subr.mxu0 0.0
    %916 = vmatpush1.msra.mxu0 0.0
    %917 = vmatprep.subr.mxu0 0.0
    %918 = vmatpush1.msra.mxu0 0.0
    %919 = vmatprep.subr.mxu0 0.0
    %920 = vmatpush1.msra.mxu0 0.0
    %921 = vmatprep.subr.mxu0 0.0
    %922 = vmatpush1.msra.mxu0 0.0
    %923 = vmatprep.subr.mxu0 0.0
    %924 = vmatpush1.msra.mxu0 0.0
    %925 = vmatprep.subr.mxu0 0.0
    %926 = vmatpush1.msra.mxu0 0.0
    %927 = vmatprep.subr.mxu0 0.0
    %928 = vmatpush1.msra.mxu0 0.0
    %929 = vmatprep.subr.mxu0 0.0
    %930 = vmatpush1.msra.mxu0 0.0
    %931 = vmatprep.subr.mxu0 0.0
    %932 = vmatpush1.msra.mxu0 0.0
    %933 = vmatprep.subr.mxu0 0.0
    %934 = vmatpush1.msra.mxu0 0.0
    %935 = vmatprep.subr.mxu0 0.0
    %936 = vmatpush1.msra.mxu0 0.0
    %937 = vmatprep.subr.mxu0 0.0
    %938 = vmatpush1.msra.mxu0 0.0
    %939 = vmatprep.subr.mxu0 0.0
    %940 = vmatpush1.msra.mxu0 0.0
    %941 = vmatprep.subr.mxu0 0.0
    %942 = vmatpush1.msra.mxu0 0.0
    %943 = vmatprep.mubr.f32.mxu0 0.0
    %944 = vmatmul.mubr.f32.gmra.mrb[0].mxu0 %v877
    %v945 = vpop.f32.mrb[0].mxu0
    %v946 = vadd.f32 0.0, %v945
    %v947 = vpop.f32.mrb[0].mxu0
    %948 = vdwg.mxu0
    %v950 = vrot.slane %v946, 1
    %v953 = vadd.f32 %v875, %v946
    %v954 = vadd.f32 %v876, %v950
    %v955 = vxor.u32 %v953, 2147483648
    %v956 = vxor.u32 %v954, 2147483648
    %v957 = vmul.f32 %v955, 1.442695
    %v958 = vpow.pop %v957
    %v959 = vmul.f32 %v956, 1.442695
    %v960 = vpow.pop %v959
    %v961 = vadd.f32 %v958, 1.0
    %v962 = vadd.f32 %v960, 1.0
    %v963 = vrcp.pop %v961
    %v964 = vmul.f32 1.0, %v963
    %v965 = vrcp.pop %v962
    %v966 = vmul.f32 1.0, %v965
    %v967 = vtanh.pop %v953
    %v968 = vtanh.pop %v954
    %v969 = vmul.f32 %v964, %v313
    %v970 = vmul.f32 %v966, %v314
    %973 = vrot.lane.b32.xlu0 %v967, 64
    %v974 = vpop.permute.xlu0 %973
    %975 = vrot.lane.b32.xlu0 %v968, 64
    %v976 = vpop.permute.xlu0 %975
    %v979 = vmul.f32 %v964, %v974
    %v980 = vmul.f32 %v966, %v976
    %983 = vrot.lane.b32.xlu0 %v979, 32
    %v984 = vpop.permute.xlu0 %983
    %985 = vrot.lane.b32.xlu0 %v980, 32
    %v986 = vpop.permute.xlu0 %985
    %v989 = vadd.f32 %v969, %v984
    %v990 = vadd.f32 %v970, %v986
    %v991 = vtanh.pop %v989
    %v992 = vtanh.pop %v990
    %995 = vrot.lane.b32.xlu0 %v991, 64
    %v996 = vpop.permute.xlu0 %995
    %997 = vrot.lane.b32.xlu0 %v992, 64
    %v998 = vpop.permute.xlu0 %997
    %v1001 = vmul.f32 %v964, %v996
    %v1002 = vmul.f32 %v966, %v998
    %v1003 = vmul.f32 %v1001, %v1001
    %v1004 = vmul.f32 %v1002, %v1002
    %v1007 = vrot.slane %v1004, 7
    %v1008 = vsel %vm332, %v1007, %v1003
    %1009 = vrot.lane.b32.xlu0 %v1008, 32
    %v1010 = vpop.permute.xlu0 %1009
    %v1012 = vsel %vm337, %v1010, 0.0
    %1013 = vadd.xlane.f32.xlu0 %v1012
    %v1014 = vpop.xlane.xlu0 %1013
    %v1015 = vadd.f32 %v1014, 1e-16
    %v1016 = vrsqrt.pop %v1015
    %v1018 = vrot.slane %v1016, 1
    %v1021 = vmul.f32 %v1001, %v1016
    %v1022 = vmul.f32 %v1002, %v1018
    %v1023 = vmul.f32 %v858, %v858
    %v1024 = vmul.f32 %v859, %v859
    %v1025 = vmul.f32 %v860, %v860
    %v1026 = vmul.f32 %v861, %v861
    %v1027 = vmul.f32 %v862, %v862
    %v1028 = vmul.f32 %v863, %v863
    %v1029 = vmul.f32 %v864, %v864
    %v1030 = vsel %vm191, %v1023, 0.0
    %1031 = vadd.xlane.f32.xlu0 %v1030
    %v1032 = vpop.xlane.xlu0 %1031
    %v1033 = vsel %vm191, %v1024, 0.0
    %1034 = vadd.xlane.f32.xlu0 %v1033
    %v1035 = vpop.xlane.xlu0 %1034
    %v1036 = vsel %vm191, %v1025, 0.0
    %1037 = vadd.xlane.f32.xlu0 %v1036
    %v1038 = vpop.xlane.xlu0 %1037
    %v1039 = vsel %vm191, %v1026, 0.0
    %1040 = vadd.xlane.f32.xlu0 %v1039
    %v1041 = vpop.xlane.xlu0 %1040
    %v1042 = vsel %vm191, %v1027, 0.0
    %1043 = vadd.xlane.f32.xlu0 %v1042
    %v1044 = vpop.xlane.xlu0 %1043
    %v1045 = vsel %vm191, %v1028, 0.0
    %1046 = vadd.xlane.f32.xlu0 %v1045
    %v1047 = vpop.xlane.xlu0 %1046
    %v1048 = vsel %vm337, %v1029, 0.0
    %1049 = vadd.xlane.f32.xlu0 %v1048
    %v1050 = vpop.xlane.xlu0 %1049
    %v1051 = vadd.f32 %v1032, 1e-16
    %v1052 = vadd.f32 %v1035, 1e-16
    %v1053 = vadd.f32 %v1038, 1e-16
    %v1054 = vadd.f32 %v1041, 1e-16
    %v1055 = vadd.f32 %v1044, 1e-16
    %v1056 = vadd.f32 %v1047, 1e-16
    %v1057 = vadd.f32 %v1050, 1e-16
    %v1058 = vrsqrt.pop %v1051
    %v1059 = vrsqrt.pop %v1052
    %v1060 = vrsqrt.pop %v1053
    %v1061 = vrsqrt.pop %v1054
    %v1062 = vrsqrt.pop %v1055
    %v1063 = vrsqrt.pop %v1056
    %v1064 = vrsqrt.pop %v1057
    %v1065 = vmul.f32 %v858, %v1058
    %v1066 = vmul.f32 %v859, %v1059
    %v1067 = vmul.f32 %v860, %v1060
    %v1068 = vmul.f32 %v861, %v1061
    %v1069 = vmul.f32 %v862, %v1062
    %v1070 = vmul.f32 %v863, %v1063
    %v1071 = vmul.f32 %v864, %v1064
    %v1074 = vrot.slane %v1022, 7
    %v1075 = vsel %vm332, %v1074, %v1021
    %1076 = vrot.lane.b32.xlu0 %v1075, 32
    %v1077 = vpop.permute.xlu0 %1076
    %v1078 = vsel %vm191, %v1077, 0
    %v1081 = vsel %vm191, %v1065, 0
    %v1084 = vsel %vm191, %v1066, 0
    %v1087 = vsel %vm191, %v1067, 0
    %v1090 = vsel %vm191, %v1068, 0
    %v1093 = vsel %vm191, %v1069, 0
    %v1096 = vsel %vm191, %v1070, 0
    %v1099 = vsel %vm191, %v1071, 0
    %1101 = vmatprep.subr.mxu0 0.0
    %1102 = vmatpush1.xpose.msra.mxu0 %v1081
    %1103 = vmatprep.subr.mxu0 0.0
    %1104 = vmatpush1.xpose.msra.mxu0 %v1084
    %1105 = vmatprep.subr.mxu0 0.0
    %1106 = vmatpush1.xpose.msra.mxu0 %v1087
    %1107 = vmatprep.subr.mxu0 0.0
    %1108 = vmatpush1.xpose.msra.mxu0 %v1090
    %1109 = vmatprep.subr.mxu0 0.0
    %1110 = vmatpush1.xpose.msra.mxu0 %v1093
    %1111 = vmatprep.subr.mxu0 0.0
    %1112 = vmatpush1.xpose.msra.mxu0 %v1096
    %1113 = vmatprep.subr.mxu0 0.0
    %1114 = vmatpush1.xpose.msra.mxu0 %v1099
    %1115 = vmatprep.subr.mxu0 0.0
    %1116 = vmatpush1.xpose.msra.mxu0 0.0
    %1117 = vmatprep.subr.mxu0 0.0
    %1118 = vmatpush1.xpose.msra.mxu0 0.0
    %1119 = vmatprep.subr.mxu0 0.0
    %1120 = vmatpush1.xpose.msra.mxu0 0.0
    %1121 = vmatprep.subr.mxu0 0.0
    %1122 = vmatpush1.xpose.msra.mxu0 0.0
    %1123 = vmatprep.subr.mxu0 0.0
    %1124 = vmatpush1.xpose.msra.mxu0 0.0
    %1125 = vmatprep.subr.mxu0 0.0
    %1126 = vmatpush1.xpose.msra.mxu0 0.0
    %1127 = vmatprep.subr.mxu0 0.0
    %1128 = vmatpush1.xpose.msra.mxu0 0.0
    %1129 = vmatprep.subr.mxu0 0.0
    %1130 = vmatpush1.xpose.msra.mxu0 0.0
    %1131 = vmatprep.subr.mxu0 0.0
    %1132 = vmatpush1.xpose.msra.mxu0 0.0
    %1133 = vmatprep.subr.mxu0 0.0
    %1134 = vmatpush1.xpose.msra.mxu0 0.0
    %1135 = vmatprep.subr.mxu0 0.0
    %1136 = vmatpush1.xpose.msra.mxu0 0.0
    %1137 = vmatprep.subr.mxu0 0.0
    %1138 = vmatpush1.xpose.msra.mxu0 0.0
    %1139 = vmatprep.subr.mxu0 0.0
    %1140 = vmatpush1.xpose.msra.mxu0 0.0
    %1141 = vmatprep.subr.mxu0 0.0
    %1142 = vmatpush1.xpose.msra.mxu0 0.0
    %1143 = vmatprep.subr.mxu0 0.0
    %1144 = vmatpush1.xpose.msra.mxu0 0.0
    %1145 = vmatprep.subr.mxu0 0.0
    %1146 = vmatpush1.xpose.msra.mxu0 0.0
    %1147 = vmatprep.subr.mxu0 0.0
    %1148 = vmatpush1.xpose.msra.mxu0 0.0
    %1149 = vmatprep.subr.mxu0 0.0
    %1150 = vmatpush1.xpose.msra.mxu0 0.0
    %1151 = vmatprep.subr.mxu0 0.0
    %1152 = vmatpush1.xpose.msra.mxu0 0.0
    %1153 = vmatprep.subr.mxu0 0.0
    %1154 = vmatpush1.xpose.msra.mxu0 0.0
    %1155 = vmatprep.subr.mxu0 0.0
    %1156 = vmatpush1.xpose.msra.mxu0 0.0
    %1157 = vmatprep.subr.mxu0 0.0
    %1158 = vmatpush1.xpose.msra.mxu0 0.0
    %1159 = vmatprep.subr.mxu0 0.0
    %1160 = vmatpush1.xpose.msra.mxu0 0.0
    %1161 = vmatprep.subr.mxu0 0.0
    %1162 = vmatpush1.xpose.msra.mxu0 0.0
    %1163 = vmatprep.subr.mxu0 0.0
    %1164 = vmatpush1.xpose.msra.mxu0 0.0
    %1165 = vmatprep.mubr.f32.mxu0 0.0
    %1166 = vmatmul.mubr.f32.gmra.mrb[0].mxu0 %v1078
    %v1167 = vpop.f32.mrb[0].mxu0
    %v1168 = vadd.f32 0.0, %v1167
    %v1169 = vpop.f32.mrb[0].mxu0
    %1170 = vdwg.mxu0
    %v1171 = vsel %vm497, %v1168, -inf
    %1172 = vmax.xlane.f32.xlu0 %v1171
    %v1173 = vpop.xlane.xlu0 %1172
    %v1174 = vsub.f32 %v1168, %v1173
    %v1175 = vmul.f32 %v1174, 1.442695
    %v1176 = vpow.pop %v1175
    %v1177 = vsel %vm497, %v1176, 0.0
    %1178 = vadd.xlane.f32.xlu0 %v1177
    %v1179 = vpop.xlane.xlu0 %1178
    %v1180 = vrcp.pop %v1179
    %v1181 = vmul.f32 %v1176, %v1180
    %v1183 = vsel %vm509, %v1181, 0
    %v1186 = vsel %vm513, %v864, 0
    %1188 = vmatprep.subr.mxu0 0.0
    %1189 = vmatpush1.msra.mxu0 %v858
    %1190 = vmatprep.subr.mxu0 0.0
    %1191 = vmatpush1.msra.mxu0 %v859
    %1192 = vmatprep.subr.mxu0 0.0
    %1193 = vmatpush1.msra.mxu0 %v860
    %1194 = vmatprep.subr.mxu0 0.0
    %1195 = vmatpush1.msra.mxu0 %v861
    %1196 = vmatprep.subr.mxu0 0.0
    %1197 = vmatpush1.msra.mxu0 %v862
    %1198 = vmatprep.subr.mxu0 0.0
    %1199 = vmatpush1.msra.mxu0 %v863
    %1200 = vmatprep.subr.mxu0 0.0
    %1201 = vmatpush1.msra.mxu0 %v1186
    %1202 = vmatprep.subr.mxu0 0.0
    %1203 = vmatpush1.msra.mxu0 0.0
    %1204 = vmatprep.subr.mxu0 0.0
    %1205 = vmatpush1.msra.mxu0 0.0
    %1206 = vmatprep.subr.mxu0 0.0
    %1207 = vmatpush1.msra.mxu0 0.0
    %1208 = vmatprep.subr.mxu0 0.0
    %1209 = vmatpush1.msra.mxu0 0.0
    %1210 = vmatprep.subr.mxu0 0.0
    %1211 = vmatpush1.msra.mxu0 0.0
    %1212 = vmatprep.subr.mxu0 0.0
    %1213 = vmatpush1.msra.mxu0 0.0
    %1214 = vmatprep.subr.mxu0 0.0
    %1215 = vmatpush1.msra.mxu0 0.0
    %1216 = vmatprep.subr.mxu0 0.0
    %1217 = vmatpush1.msra.mxu0 0.0
    %1218 = vmatprep.subr.mxu0 0.0
    %1219 = vmatpush1.msra.mxu0 0.0
    %1220 = vmatprep.subr.mxu0 0.0
    %1221 = vmatpush1.msra.mxu0 0.0
    %1222 = vmatprep.subr.mxu0 0.0
    %1223 = vmatpush1.msra.mxu0 0.0
    %1224 = vmatprep.subr.mxu0 0.0
    %1225 = vmatpush1.msra.mxu0 0.0
    %1226 = vmatprep.subr.mxu0 0.0
    %1227 = vmatpush1.msra.mxu0 0.0
    %1228 = vmatprep.subr.mxu0 0.0
    %1229 = vmatpush1.msra.mxu0 0.0
    %1230 = vmatprep.subr.mxu0 0.0
    %1231 = vmatpush1.msra.mxu0 0.0
    %1232 = vmatprep.subr.mxu0 0.0
    %1233 = vmatpush1.msra.mxu0 0.0
    %1234 = vmatprep.subr.mxu0 0.0
    %1235 = vmatpush1.msra.mxu0 0.0
    %1236 = vmatprep.subr.mxu0 0.0
    %1237 = vmatpush1.msra.mxu0 0.0
    %1238 = vmatprep.subr.mxu0 0.0
    %1239 = vmatpush1.msra.mxu0 0.0
    %1240 = vmatprep.subr.mxu0 0.0
    %1241 = vmatpush1.msra.mxu0 0.0
    %1242 = vmatprep.subr.mxu0 0.0
    %1243 = vmatpush1.msra.mxu0 0.0
    %1244 = vmatprep.subr.mxu0 0.0
    %1245 = vmatpush1.msra.mxu0 0.0
    %1246 = vmatprep.subr.mxu0 0.0
    %1247 = vmatpush1.msra.mxu0 0.0
    %1248 = vmatprep.subr.mxu0 0.0
    %1249 = vmatpush1.msra.mxu0 0.0
    %1250 = vmatprep.subr.mxu0 0.0
    %1251 = vmatpush1.msra.mxu0 0.0
    %1252 = vmatprep.mubr.f32.mxu0 0.0
    %1253 = vmatmul.mubr.f32.gmra.mrb[0].mxu0 %v1183
    %v1254 = vpop.f32.mrb[0].mxu0
    %v1255 = vadd.f32 0.0, %v1254
    %v1256 = vpop.f32.mrb[0].mxu0
    %1257 = vdwg.mxu0
    %v1260 = vrot.slane %v1002, 7
    %v1261 = vsel %vm332, %v1260, %v1001
    %1262 = vrot.lane.b32.xlu0 %v1261, 32
    %v1263 = vpop.permute.xlu0 %1262
    %1266 = vrot.lane.b32.xlu0 %v1255, 32
    %v1267 = vpop.permute.xlu0 %1266
    %v1269 = vsel %vm191, %v1263, %v1267
    %v1272 = vunpack.c.l.s4 1966171168
    %v1273 = vunpack.c.0.s8 %v1272
    %v1274 = vlaneseq
    %v1275 = vshrl.u32 %v1274, 7
    %v1276 = vsub.s32 %v1273, %v1275
    %v1277 = vrot.slane %v1269, %v1276
    %v1278 = vcombine.high %v1277, %v1277
    %v1280 = vunpack.c.l.s4 1966171168
    %v1281 = vunpack.c.0.s8 %v1280
    %v1282 = vlaneseq
    %v1283 = vshrl.u32 %v1282, 7
    %v1284 = vsub.s32 %v1281, %v1283
    %v1285 = vrot.slane %v1277, %v1284
    %v1287 = vunpack.c.l.s4 1966171168
    %v1288 = vunpack.c.0.s8 %v1287
    %v1289 = vlaneseq
    %v1290 = vshrl.u32 %v1289, 7
    %v1291 = vsub.s32 %v1288, %v1290
    %v1292 = vrot.slane %v1278, %v1291
    %1295 = vst.msk [vmem:[#allocation14 + $0x1] sm:$0x1] %vm624, %v1285
    %1296 = vst.msk [vmem:[#allocation14 + $0x9] sm:$0x1] %vm624, %v1292
    %v1297 = vsel %vm497, %v874, inf
    %1298 = vmin.xlane.f32.xlu0 %v1297
    %v1299 = vpop.xlane.xlu0 %1298
    %vm1300 = vcmp.eq.f32.partialorder %v874, %v1299
    %v1301 = vsel %vm1300, %v82, 50
    %v1302 = vsel %vm497, %v1301, 2147483647
    %v1303 = vand.u32 %v1302, 65535
    %v1304 = vshra.s32 %v1302, 16
    %v1305 = vcvt.s32.f32 %v1303
    %v1306 = vcvt.s32.f32 %v1304
    %1307 = vmin.xlane.f32.xlu0 %v1306
    %v1308 = vpop.xlane.xlu0 %1307
    %vm1309 = vcmp.eq.f32.partialorder %v1306, %v1308
    %v1310 = vsel %vm1309, %v1305, inf
    %1311 = vmin.xlane.f32.xlu0 %v1310
    %v1312 = vpop.xlane.xlu0 %1311
    %v1313 = vcvt.f32.s32 %v1312
    %v1314 = vcvt.f32.s32 %v1308
    %v1315 = vshll.u32 %v1314, 16
    %v1316 = vadd.s32 %v1315, %v1313
    %vm1317 = vcmp.eq.s32.totalorder %v82, %v1316
    %v1318 = vsel %vm1317, 1, 0
    %v1319 = vcvt.s32.f32 %v1318
    %v1320 = vmul.f32 %v1319, 0.59868765
    %v1321 = vmul.f32 %v508, 0.40131235
    %v1322 = vadd.f32 %v1321, %v1320
    %1323 = vxpose.xlu0.b32.start [1/16] %v1322, 128
    %1324 = vxpose.xlu0.b32.cont [2/16] 0.0, 128
    %1325 = vxpose.xlu0.b32.cont [3/16] 0.0, 128
    %1326 = vxpose.xlu0.b32.cont [4/16] 0.0, 128
    %1327 = vxpose.xlu0.b32.cont [5/16] 0.0, 128
    %1328 = vxpose.xlu0.b32.cont [6/16] 0.0, 128
    %1329 = vxpose.xlu0.b32.cont [7/16] 0.0, 128
    %1330 = vxpose.xlu0.b32.cont [8/16] 0.0, 128
    %1331 = vxpose.xlu0.b32.cont [9/16] 0.0, 128
    %1332 = vxpose.xlu0.b32.cont [10/16] 0.0, 128
    %1333 = vxpose.xlu0.b32.cont [11/16] 0.0, 128
    %1334 = vxpose.xlu0.b32.cont [12/16] 0.0, 128
    %1335 = vxpose.xlu0.b32.cont [13/16] 0.0, 128
    %1336 = vxpose.xlu0.b32.cont [14/16] 0.0, 128
    %1337 = vxpose.xlu0.b32.cont [15/16] 0.0, 128
    %1338 = vxpose.xlu0.b32.end [16/16] 0.0, 128
    %v1339 = vpop.trf.xlu0
    %v1340 = vpop.trf.xlu0
    %v1341 = vpop.trf.xlu0
    %v1342 = vpop.trf.xlu0
    %v1343 = vpop.trf.xlu0
    %v1344 = vpop.trf.xlu0
    %v1345 = vpop.trf.xlu0
    %v1346 = vpop.trf.xlu0
    %v1347 = vpop.trf.xlu0
    %v1348 = vpop.trf.xlu0
    %v1349 = vpop.trf.xlu0
    %v1350 = vpop.trf.xlu0
    %v1351 = vpop.trf.xlu0
    %v1352 = vpop.trf.xlu0
    %v1353 = vpop.trf.xlu0
    %v1354 = vpop.trf.xlu0
    %v1356 = vsel %vm685, %v1339, 0
    %v1359 = vsel %vm685, %v1340, 0
    %v1362 = vsel %vm685, %v1341, 0
    %v1365 = vsel %vm685, %v1342, 0
    %v1368 = vsel %vm685, %v1343, 0
    %v1371 = vsel %vm685, %v1344, 0
    %v1374 = vsel %vm685, %v1345, 0
    %v1376 = vsel %vm513, %v1263, 0
    %1378 = vmatprep.subr.mxu0 0.0
    %1379 = vmatpush1.msra.mxu0 %v1376
    %1380 = vmatprep.subr.mxu0 0.0
    %1381 = vmatpush1.msra.mxu0 0.0
    %1382 = vmatprep.subr.mxu0 0.0
    %1383 = vmatpush1.msra.mxu0 0.0
    %1384 = vmatprep.subr.mxu0 0.0
    %1385 = vmatpush1.msra.mxu0 0.0
    %1386 = vmatprep.subr.mxu0 0.0
    %1387 = vmatpush1.msra.mxu0 0.0
    %1388 = vmatprep.subr.mxu0 0.0
    %1389 = vmatpush1.msra.mxu0 0.0
    %1390 = vmatprep.subr.mxu0 0.0
    %1391 = vmatpush1.msra.mxu0 0.0
    %1392 = vmatprep.subr.mxu0 0.0
    %1393 = vmatpush1.msra.mxu0 0.0
    %1394 = vmatprep.subr.mxu0 0.0
    %1395 = vmatpush1.msra.mxu0 0.0
    %1396 = vmatprep.subr.mxu0 0.0
    %1397 = vmatpush1.msra.mxu0 0.0
    %1398 = vmatprep.subr.mxu0 0.0
    %1399 = vmatpush1.msra.mxu0 0.0
    %1400 = vmatprep.subr.mxu0 0.0
    %1401 = vmatpush1.msra.mxu0 0.0
    %1402 = vmatprep.subr.mxu0 0.0
    %1403 = vmatpush1.msra.mxu0 0.0
    %1404 = vmatprep.subr.mxu0 0.0
    %1405 = vmatpush1.msra.mxu0 0.0
    %1406 = vmatprep.subr.mxu0 0.0
    %1407 = vmatpush1.msra.mxu0 0.0
    %1408 = vmatprep.subr.mxu0 0.0
    %1409 = vmatpush1.msra.mxu0 0.0
    %1410 = vmatprep.subr.mxu0 0.0
    %1411 = vmatpush1.msra.mxu0 0.0
    %1412 = vmatprep.subr.mxu0 0.0
    %1413 = vmatpush1.msra.mxu0 0.0
    %1414 = vmatprep.subr.mxu0 0.0
    %1415 = vmatpush1.msra.mxu0 0.0
    %1416 = vmatprep.subr.mxu0 0.0
    %1417 = vmatpush1.msra.mxu0 0.0
    %1418 = vmatprep.subr.mxu0 0.0
    %1419 = vmatpush1.msra.mxu0 0.0
    %1420 = vmatprep.subr.mxu0 0.0
    %1421 = vmatpush1.msra.mxu0 0.0
    %1422 = vmatprep.subr.mxu0 0.0
    %1423 = vmatpush1.msra.mxu0 0.0
    %1424 = vmatprep.subr.mxu0 0.0
    %1425 = vmatpush1.msra.mxu0 0.0
    %1426 = vmatprep.subr.mxu0 0.0
    %1427 = vmatpush1.msra.mxu0 0.0
    %1428 = vmatprep.subr.mxu0 0.0
    %1429 = vmatpush1.msra.mxu0 0.0
    %1430 = vmatprep.subr.mxu0 0.0
    %1431 = vmatpush1.msra.mxu0 0.0
    %1432 = vmatprep.subr.mxu0 0.0
    %1433 = vmatpush1.msra.mxu0 0.0
    %1434 = vmatprep.subr.mxu0 0.0
    %1435 = vmatpush1.msra.mxu0 0.0
    %1436 = vmatprep.subr.mxu0 0.0
    %1437 = vmatpush1.msra.mxu0 0.0
    %1438 = vmatprep.subr.mxu0 0.0
    %1439 = vmatpush1.msra.mxu0 0.0
    %1440 = vmatprep.subr.mxu0 0.0
    %1441 = vmatpush1.msra.mxu0 0.0
    %1442 = vmatprep.mubr.f32.mxu0 0.0
    %1443 = vmatmul.mubr.f32.gmra.mrb[0].mxu0 %v1356
    %v1444 = vpop.f32.mrb[0].mxu0
    %v1445 = vadd.f32 0.0, %v1444
    %v1446 = vpop.f32.mrb[0].mxu0
    %1447 = vmatprep.mubr.f32.mxu0 0.0
    %1448 = vmatmul.mubr.f32.gmra.mrb[0].mxu0 %v1359
    %v1449 = vpop.f32.mrb[0].mxu0
    %v1450 = vadd.f32 0.0, %v1449
    %v1451 = vpop.f32.mrb[0].mxu0
    %1452 = vmatprep.mubr.f32.mxu0 0.0
    %1453 = vmatmul.mubr.f32.gmra.mrb[0].mxu0 %v1362
    %v1454 = vpop.f32.mrb[0].mxu0
    %v1455 = vadd.f32 0.0, %v1454
    %v1456 = vpop.f32.mrb[0].mxu0
    %1457 = vmatprep.mubr.f32.mxu0 0.0
    %1458 = vmatmul.mubr.f32.gmra.mrb[0].mxu0 %v1365
    %v1459 = vpop.f32.mrb[0].mxu0
    %v1460 = vadd.f32 0.0, %v1459
    %v1461 = vpop.f32.mrb[0].mxu0
    %1462 = vmatprep.mubr.f32.mxu0 0.0
    %1463 = vmatmul.mubr.f32.gmra.mrb[0].mxu0 %v1368
    %v1464 = vpop.f32.mrb[0].mxu0
    %v1465 = vadd.f32 0.0, %v1464
    %v1466 = vpop.f32.mrb[0].mxu0
    %1467 = vmatprep.mubr.f32.mxu0 0.0
    %1468 = vmatmul.mubr.f32.gmra.mrb[0].mxu0 %v1371
    %v1469 = vpop.f32.mrb[0].mxu0
    %v1470 = vadd.f32 0.0, %v1469
    %v1471 = vpop.f32.mrb[0].mxu0
    %1472 = vmatprep.mubr.f32.mxu0 0.0
    %1473 = vmatmul.mubr.f32.gmra.mrb[0].mxu0 %v1374
    %v1474 = vpop.f32.mrb[0].mxu0
    %v1475 = vadd.f32 0.0, %v1474
    %v1476 = vpop.f32.mrb[0].mxu0
    %1477 = vdwg.mxu0
    %v1478 = vadd.f32 %v858, %v1445
    %v1479 = vadd.f32 %v859, %v1450
    %v1480 = vadd.f32 %v860, %v1455
    %v1481 = vadd.f32 %v861, %v1460
    %v1482 = vadd.f32 %v862, %v1465
    %v1483 = vadd.f32 %v863, %v1470
    %v1484 = vadd.f32 %v864, %v1475
    %v1485 = vmul.f32 %v1478, %v1478
    %v1486 = vmul.f32 %v1479, %v1479
    %v1487 = vmul.f32 %v1480, %v1480
    %v1488 = vmul.f32 %v1481, %v1481
    %v1489 = vmul.f32 %v1482, %v1482
    %v1490 = vmul.f32 %v1483, %v1483
    %v1491 = vmul.f32 %v1484, %v1484
    %v1492 = vsel %vm191, %v1485, 0.0
    %1493 = vadd.xlane.f32.xlu0 %v1492
    %v1494 = vpop.xlane.xlu0 %1493
    %v1495 = vsel %vm191, %v1486, 0.0
    %1496 = vadd.xlane.f32.xlu0 %v1495
    %v1497 = vpop.xlane.xlu0 %1496
    %v1498 = vsel %vm191, %v1487, 0.0
    %1499 = vadd.xlane.f32.xlu0 %v1498
    %v1500 = vpop.xlane.xlu0 %1499
    %v1501 = vsel %vm191, %v1488, 0.0
    %1502 = vadd.xlane.f32.xlu0 %v1501
    %v1503 = vpop.xlane.xlu0 %1502
    %v1504 = vsel %vm191, %v1489, 0.0
    %1505 = vadd.xlane.f32.xlu0 %v1504
    %v1506 = vpop.xlane.xlu0 %1505
    %v1507 = vsel %vm191, %v1490, 0.0
    %1508 = vadd.xlane.f32.xlu0 %v1507
    %v1509 = vpop.xlane.xlu0 %1508
    %v1510 = vsel %vm337, %v1491, 0.0
    %1511 = vadd.xlane.f32.xlu0 %v1510
    %v1512 = vpop.xlane.xlu0 %1511
    %v1513 = vrsqrt.pop %v1494
    %v1514 = vrsqrt.pop %v1497
    %v1515 = vrsqrt.pop %v1500
    %v1516 = vrsqrt.pop %v1503
    %v1517 = vrsqrt.pop %v1506
    %v1518 = vrsqrt.pop %v1509
    %v1519 = vrsqrt.pop %v1512
    %v1520 = vmin.f32 %v1513, 1e+12
    %v1521 = vmin.f32 %v1514, 1e+12
    %v1522 = vmin.f32 %v1515, 1e+12
    %v1523 = vmin.f32 %v1516, 1e+12
    %v1524 = vmin.f32 %v1517, 1e+12
    %v1525 = vmin.f32 %v1518, 1e+12
    %v1526 = vmin.f32 %v1519, 1e+12
    %v1527 = vmul.f32 %v1478, %v1520
    %v1528 = vmul.f32 %v1479, %v1521
    %v1529 = vmul.f32 %v1480, %v1522
    %v1530 = vmul.f32 %v1481, %v1523
    %v1531 = vmul.f32 %v1482, %v1524
    %v1532 = vmul.f32 %v1483, %v1525
    %v1533 = vmul.f32 %v1484, %v1526
    %v1534 = vmul.f32 %v874, 0.3
    %v1535 = vadd.f32 %v1534, %v1181
    %v1536 = vadd.f32 %v1535, %v1322
    %v1537 = vmul.f32 %v1536, %v1536
    %v1538 = vsel %vm497, %v1537, 0.0
    %1539 = vadd.xlane.f32.xlu0 %v1538
    %v1540 = vpop.xlane.xlu0 %1539
    %v1541 = vrsqrt.pop %v1540
    %v1542 = vmin.f32 %v1541, 1e+12
    %v1543 = vmul.f32 %v1536, %v1542
    %v1544 = vld [vmem:[#allocation7 + $0x2] sm:$0x1]
    %v1545 = vld [vmem:[#allocation7 + $0xa] sm:$0x1]
    %v1546 = vsel %vm191, %v1263, 0
    %1548 = vmatprep.subr.mxu0 0.0
    %1549 = vmatpush1.msra.mxu0 %v77
    %1550 = vmatprep.subr.mxu0 0.0
    %1551 = vmatpush1.msra.mxu0 %v78
    %1552 = vmatprep.subr.mxu0 0.0
    %1553 = vmatpush1.msra.mxu0 %v79
    %1554 = vmatprep.subr.mxu0 0.0
    %1555 = vmatpush1.msra.mxu0 %v80
    %1556 = vmatprep.subr.mxu0 0.0
    %1557 = vmatpush1.msra.mxu0 0.0
    %1558 = vmatprep.subr.mxu0 0.0
    %1559 = vmatpush1.msra.mxu0 0.0
    %1560 = vmatprep.subr.mxu0 0.0
    %1561 = vmatpush1.msra.mxu0 0.0
    %1562 = vmatprep.subr.mxu0 0.0
    %1563 = vmatpush1.msra.mxu0 0.0
    %1564 = vmatprep.subr.mxu0 0.0
    %1565 = vmatpush1.msra.mxu0 0.0
    %1566 = vmatprep.subr.mxu0 0.0
    %1567 = vmatpush1.msra.mxu0 0.0
    %1568 = vmatprep.subr.mxu0 0.0
    %1569 = vmatpush1.msra.mxu0 0.0
    %1570 = vmatprep.subr.mxu0 0.0
    %1571 = vmatpush1.msra.mxu0 0.0
    %1572 = vmatprep.subr.mxu0 0.0
    %1573 = vmatpush1.msra.mxu0 0.0
    %1574 = vmatprep.subr.mxu0 0.0
    %1575 = vmatpush1.msra.mxu0 0.0
    %1576 = vmatprep.subr.mxu0 0.0
    %1577 = vmatpush1.msra.mxu0 0.0
    %1578 = vmatprep.subr.mxu0 0.0
    %1579 = vmatpush1.msra.mxu0 0.0
    %1580 = vmatprep.subr.mxu0 0.0
    %1581 = vmatpush1.msra.mxu0 0.0
    %1582 = vmatprep.subr.mxu0 0.0
    %1583 = vmatpush1.msra.mxu0 0.0
    %1584 = vmatprep.subr.mxu0 0.0
    %1585 = vmatpush1.msra.mxu0 0.0
    %1586 = vmatprep.subr.mxu0 0.0
    %1587 = vmatpush1.msra.mxu0 0.0
    %1588 = vmatprep.subr.mxu0 0.0
    %1589 = vmatpush1.msra.mxu0 0.0
    %1590 = vmatprep.subr.mxu0 0.0
    %1591 = vmatpush1.msra.mxu0 0.0
    %1592 = vmatprep.subr.mxu0 0.0
    %1593 = vmatpush1.msra.mxu0 0.0
    %1594 = vmatprep.subr.mxu0 0.0
    %1595 = vmatpush1.msra.mxu0 0.0
    %1596 = vmatprep.subr.mxu0 0.0
    %1597 = vmatpush1.msra.mxu0 0.0
    %1598 = vmatprep.subr.mxu0 0.0
    %1599 = vmatpush1.msra.mxu0 0.0
    %1600 = vmatprep.subr.mxu0 0.0
    %1601 = vmatpush1.msra.mxu0 0.0
    %1602 = vmatprep.subr.mxu0 0.0
    %1603 = vmatpush1.msra.mxu0 0.0
    %1604 = vmatprep.subr.mxu0 0.0
    %1605 = vmatpush1.msra.mxu0 0.0
    %1606 = vmatprep.subr.mxu0 0.0
    %1607 = vmatpush1.msra.mxu0 0.0
    %1608 = vmatprep.subr.mxu0 0.0
    %1609 = vmatpush1.msra.mxu0 0.0
    %1610 = vmatprep.subr.mxu0 0.0
    %1611 = vmatpush1.msra.mxu0 0.0
    %1612 = vmatprep.mubr.f32.mxu0 0.0
    %1613 = vmatmul.mubr.f32.gmra.mrb[0].mxu0 %v1546
    %v1614 = vpop.f32.mrb[0].mxu0
    %v1615 = vadd.f32 0.0, %v1614
    %v1616 = vpop.f32.mrb[0].mxu0
    %1617 = vdwg.mxu0
    %v1619 = vrot.slane %v1615, 1
    %v1622 = vadd.f32 %v1544, %v1615
    %v1623 = vadd.f32 %v1545, %v1619
    %v1624 = vxor.u32 %v1622, 2147483648
    %v1625 = vxor.u32 %v1623, 2147483648
    %v1626 = vmul.f32 %v1624, 1.442695
    %v1627 = vpow.pop %v1626
    %v1628 = vmul.f32 %v1625, 1.442695
    %v1629 = vpow.pop %v1628
    %v1630 = vadd.f32 %v1627, 1.0
    %v1631 = vadd.f32 %v1629, 1.0
    %v1632 = vrcp.pop %v1630
    %v1633 = vmul.f32 1.0, %v1632
    %v1634 = vrcp.pop %v1631
    %v1635 = vmul.f32 1.0, %v1634
    %v1636 = vtanh.pop %v1622
    %v1637 = vtanh.pop %v1623
    %v1638 = vmul.f32 %v1633, %v989
    %v1639 = vmul.f32 %v1635, %v990
    %1642 = vrot.lane.b32.xlu0 %v1636, 64
    %v1643 = vpop.permute.xlu0 %1642
    %1644 = vrot.lane.b32.xlu0 %v1637, 64
    %v1645 = vpop.permute.xlu0 %1644
    %v1648 = vmul.f32 %v1633, %v1643
    %v1649 = vmul.f32 %v1635, %v1645
    %1652 = vrot.lane.b32.xlu0 %v1648, 32
    %v1653 = vpop.permute.xlu0 %1652
    %1654 = vrot.lane.b32.xlu0 %v1649, 32
    %v1655 = vpop.permute.xlu0 %1654
    %v1658 = vadd.f32 %v1638, %v1653
    %v1659 = vadd.f32 %v1639, %v1655
    %v1660 = vtanh.pop %v1658
    %v1661 = vtanh.pop %v1659
    %1664 = vrot.lane.b32.xlu0 %v1660, 64
    %v1665 = vpop.permute.xlu0 %1664
    %1666 = vrot.lane.b32.xlu0 %v1661, 64
    %v1667 = vpop.permute.xlu0 %1666
    %v1670 = vmul.f32 %v1633, %v1665
    %v1671 = vmul.f32 %v1635, %v1667
    %v1672 = vmul.f32 %v1670, %v1670
    %v1673 = vmul.f32 %v1671, %v1671
    %v1676 = vrot.slane %v1673, 7
    %v1677 = vsel %vm332, %v1676, %v1672
    %1678 = vrot.lane.b32.xlu0 %v1677, 32
    %v1679 = vpop.permute.xlu0 %1678
    %v1681 = vsel %vm337, %v1679, 0.0
    %1682 = vadd.xlane.f32.xlu0 %v1681
    %v1683 = vpop.xlane.xlu0 %1682
    %v1684 = vadd.f32 %v1683, 1e-16
    %v1685 = vrsqrt.pop %v1684
    %v1687 = vrot.slane %v1685, 1
    %v1690 = vmul.f32 %v1670, %v1685
    %v1691 = vmul.f32 %v1671, %v1687
    %v1692 = vmul.f32 %v1527, %v1527
    %v1693 = vmul.f32 %v1528, %v1528
    %v1694 = vmul.f32 %v1529, %v1529
    %v1695 = vmul.f32 %v1530, %v1530
    %v1696 = vmul.f32 %v1531, %v1531
    %v1697 = vmul.f32 %v1532, %v1532
    %v1698 = vmul.f32 %v1533, %v1533
    %v1699 = vsel %vm191, %v1692, 0.0
    %1700 = vadd.xlane.f32.xlu0 %v1699
    %v1701 = vpop.xlane.xlu0 %1700
    %v1702 = vsel %vm191, %v1693, 0.0
    %1703 = vadd.xlane.f32.xlu0 %v1702
    %v1704 = vpop.xlane.xlu0 %1703
    %v1705 = vsel %vm191, %v1694, 0.0
    %1706 = vadd.xlane.f32.xlu0 %v1705
    %v1707 = vpop.xlane.xlu0 %1706
    %v1708 = vsel %vm191, %v1695, 0.0
    %1709 = vadd.xlane.f32.xlu0 %v1708
    %v1710 = vpop.xlane.xlu0 %1709
    %v1711 = vsel %vm191, %v1696, 0.0
    %1712 = vadd.xlane.f32.xlu0 %v1711
    %v1713 = vpop.xlane.xlu0 %1712
    %v1714 = vsel %vm191, %v1697, 0.0
    %1715 = vadd.xlane.f32.xlu0 %v1714
    %v1716 = vpop.xlane.xlu0 %1715
    %v1717 = vsel %vm337, %v1698, 0.0
    %1718 = vadd.xlane.f32.xlu0 %v1717
    %v1719 = vpop.xlane.xlu0 %1718
    %v1720 = vadd.f32 %v1701, 1e-16
    %v1721 = vadd.f32 %v1704, 1e-16
    %v1722 = vadd.f32 %v1707, 1e-16
    %v1723 = vadd.f32 %v1710, 1e-16
    %v1724 = vadd.f32 %v1713, 1e-16
    %v1725 = vadd.f32 %v1716, 1e-16
    %v1726 = vadd.f32 %v1719, 1e-16
    %v1727 = vrsqrt.pop %v1720
    %v1728 = vrsqrt.pop %v1721
    %v1729 = vrsqrt.pop %v1722
    %v1730 = vrsqrt.pop %v1723
    %v1731 = vrsqrt.pop %v1724
    %v1732 = vrsqrt.pop %v1725
    %v1733 = vrsqrt.pop %v1726
    %v1734 = vmul.f32 %v1527, %v1727
    %v1735 = vmul.f32 %v1528, %v1728
    %v1736 = vmul.f32 %v1529, %v1729
    %v1737 = vmul.f32 %v1530, %v1730
    %v1738 = vmul.f32 %v1531, %v1731
    %v1739 = vmul.f32 %v1532, %v1732
    %v1740 = vmul.f32 %v1533, %v1733
    %v1743 = vrot.slane %v1691, 7
    %v1744 = vsel %vm332, %v1743, %v1690
    %1745 = vrot.lane.b32.xlu0 %v1744, 32
    %v1746 = vpop.permute.xlu0 %1745
    %v1747 = vsel %vm191, %v1746, 0
    %v1750 = vsel %vm191, %v1734, 0
    %v1753 = vsel %vm191, %v1735, 0
    %v1756 = vsel %vm191, %v1736, 0
    %v1759 = vsel %vm191, %v1737, 0
    %v1762 = vsel %vm191, %v1738, 0
    %v1765 = vsel %vm191, %v1739, 0
    %v1768 = vsel %vm191, %v1740, 0
    %1770 = vmatprep.subr.mxu0 0.0
    %1771 = vmatpush1.xpose.msra.mxu0 %v1750
    %1772 = vmatprep.subr.mxu0 0.0
    %1773 = vmatpush1.xpose.msra.mxu0 %v1753
    %1774 = vmatprep.subr.mxu0 0.0
    %1775 = vmatpush1.xpose.msra.mxu0 %v1756
    %1776 = vmatprep.subr.mxu0 0.0
    %1777 = vmatpush1.xpose.msra.mxu0 %v1759
    %1778 = vmatprep.subr.mxu0 0.0
    %1779 = vmatpush1.xpose.msra.mxu0 %v1762
    %1780 = vmatprep.subr.mxu0 0.0
    %1781 = vmatpush1.xpose.msra.mxu0 %v1765
    %1782 = vmatprep.subr.mxu0 0.0
    %1783 = vmatpush1.xpose.msra.mxu0 %v1768
    %1784 = vmatprep.subr.mxu0 0.0
    %1785 = vmatpush1.xpose.msra.mxu0 0.0
    %1786 = vmatprep.subr.mxu0 0.0
    %1787 = vmatpush1.xpose.msra.mxu0 0.0
    %1788 = vmatprep.subr.mxu0 0.0
    %1789 = vmatpush1.xpose.msra.mxu0 0.0
    %1790 = vmatprep.subr.mxu0 0.0
    %1791 = vmatpush1.xpose.msra.mxu0 0.0
    %1792 = vmatprep.subr.mxu0 0.0
    %1793 = vmatpush1.xpose.msra.mxu0 0.0
    %1794 = vmatprep.subr.mxu0 0.0
    %1795 = vmatpush1.xpose.msra.mxu0 0.0
    %1796 = vmatprep.subr.mxu0 0.0
    %1797 = vmatpush1.xpose.msra.mxu0 0.0
    %1798 = vmatprep.subr.mxu0 0.0
    %1799 = vmatpush1.xpose.msra.mxu0 0.0
    %1800 = vmatprep.subr.mxu0 0.0
    %1801 = vmatpush1.xpose.msra.mxu0 0.0
    %1802 = vmatprep.subr.mxu0 0.0
    %1803 = vmatpush1.xpose.msra.mxu0 0.0
    %1804 = vmatprep.subr.mxu0 0.0
    %1805 = vmatpush1.xpose.msra.mxu0 0.0
    %1806 = vmatprep.subr.mxu0 0.0
    %1807 = vmatpush1.xpose.msra.mxu0 0.0
    %1808 = vmatprep.subr.mxu0 0.0
    %1809 = vmatpush1.xpose.msra.mxu0 0.0
    %1810 = vmatprep.subr.mxu0 0.0
    %1811 = vmatpush1.xpose.msra.mxu0 0.0
    %1812 = vmatprep.subr.mxu0 0.0
    %1813 = vmatpush1.xpose.msra.mxu0 0.0
    %1814 = vmatprep.subr.mxu0 0.0
    %1815 = vmatpush1.xpose.msra.mxu0 0.0
    %1816 = vmatprep.subr.mxu0 0.0
    %1817 = vmatpush1.xpose.msra.mxu0 0.0
    %1818 = vmatprep.subr.mxu0 0.0
    %1819 = vmatpush1.xpose.msra.mxu0 0.0
    %1820 = vmatprep.subr.mxu0 0.0
    %1821 = vmatpush1.xpose.msra.mxu0 0.0
    %1822 = vmatprep.subr.mxu0 0.0
    %1823 = vmatpush1.xpose.msra.mxu0 0.0
    %1824 = vmatprep.subr.mxu0 0.0
    %1825 = vmatpush1.xpose.msra.mxu0 0.0
    %1826 = vmatprep.subr.mxu0 0.0
    %1827 = vmatpush1.xpose.msra.mxu0 0.0
    %1828 = vmatprep.subr.mxu0 0.0
    %1829 = vmatpush1.xpose.msra.mxu0 0.0
    %1830 = vmatprep.subr.mxu0 0.0
    %1831 = vmatpush1.xpose.msra.mxu0 0.0
    %1832 = vmatprep.subr.mxu0 0.0
    %1833 = vmatpush1.xpose.msra.mxu0 0.0
    %1834 = vmatprep.mubr.f32.mxu0 0.0
    %1835 = vmatmul.mubr.f32.gmra.mrb[0].mxu0 %v1747
    %v1836 = vpop.f32.mrb[0].mxu0
    %v1837 = vadd.f32 0.0, %v1836
    %v1838 = vpop.f32.mrb[0].mxu0
    %1839 = vdwg.mxu0
    %v1840 = vsel %vm497, %v1837, -inf
    %1841 = vmax.xlane.f32.xlu0 %v1840
    %v1842 = vpop.xlane.xlu0 %1841
    %v1843 = vsub.f32 %v1837, %v1842
    %v1844 = vmul.f32 %v1843, 1.442695
    %v1845 = vpow.pop %v1844
    %v1846 = vsel %vm497, %v1845, 0.0
    %1847 = vadd.xlane.f32.xlu0 %v1846
    %v1848 = vpop.xlane.xlu0 %1847
    %v1849 = vrcp.pop %v1848
    %v1850 = vmul.f32 %v1845, %v1849
    %v1852 = vsel %vm509, %v1850, 0
    %v1855 = vsel %vm513, %v1533, 0
    %1857 = vmatprep.subr.mxu0 0.0
    %1858 = vmatpush1.msra.mxu0 %v1527
    %1859 = vmatprep.subr.mxu0 0.0
    %1860 = vmatpush1.msra.mxu0 %v1528
    %1861 = vmatprep.subr.mxu0 0.0
    %1862 = vmatpush1.msra.mxu0 %v1529
    %1863 = vmatprep.subr.mxu0 0.0
    %1864 = vmatpush1.msra.mxu0 %v1530
    %1865 = vmatprep.subr.mxu0 0.0
    %1866 = vmatpush1.msra.mxu0 %v1531
    %1867 = vmatprep.subr.mxu0 0.0
    %1868 = vmatpush1.msra.mxu0 %v1532
    %1869 = vmatprep.subr.mxu0 0.0
    %1870 = vmatpush1.msra.mxu0 %v1855
    %1871 = vmatprep.subr.mxu0 0.0
    %1872 = vmatpush1.msra.mxu0 0.0
    %1873 = vmatprep.subr.mxu0 0.0
    %1874 = vmatpush1.msra.mxu0 0.0
    %1875 = vmatprep.subr.mxu0 0.0
    %1876 = vmatpush1.msra.mxu0 0.0
    %1877 = vmatprep.subr.mxu0 0.0
    %1878 = vmatpush1.msra.mxu0 0.0
    %1879 = vmatprep.subr.mxu0 0.0
    %1880 = vmatpush1.msra.mxu0 0.0
    %1881 = vmatprep.subr.mxu0 0.0
    %1882 = vmatpush1.msra.mxu0 0.0
    %1883 = vmatprep.subr.mxu0 0.0
    %1884 = vmatpush1.msra.mxu0 0.0
    %1885 = vmatprep.subr.mxu0 0.0
    %1886 = vmatpush1.msra.mxu0 0.0
    %1887 = vmatprep.subr.mxu0 0.0
    %1888 = vmatpush1.msra.mxu0 0.0
    %1889 = vmatprep.subr.mxu0 0.0
    %1890 = vmatpush1.msra.mxu0 0.0
    %1891 = vmatprep.subr.mxu0 0.0
    %1892 = vmatpush1.msra.mxu0 0.0
    %1893 = vmatprep.subr.mxu0 0.0
    %1894 = vmatpush1.msra.mxu0 0.0
    %1895 = vmatprep.subr.mxu0 0.0
    %1896 = vmatpush1.msra.mxu0 0.0
    %1897 = vmatprep.subr.mxu0 0.0
    %1898 = vmatpush1.msra.mxu0 0.0
    %1899 = vmatprep.subr.mxu0 0.0
    %1900 = vmatpush1.msra.mxu0 0.0
    %1901 = vmatprep.subr.mxu0 0.0
    %1902 = vmatpush1.msra.mxu0 0.0
    %1903 = vmatprep.subr.mxu0 0.0
    %1904 = vmatpush1.msra.mxu0 0.0
    %1905 = vmatprep.subr.mxu0 0.0
    %1906 = vmatpush1.msra.mxu0 0.0
    %1907 = vmatprep.subr.mxu0 0.0
    %1908 = vmatpush1.msra.mxu0 0.0
    %1909 = vmatprep.subr.mxu0 0.0
    %1910 = vmatpush1.msra.mxu0 0.0
    %1911 = vmatprep.subr.mxu0 0.0
    %1912 = vmatpush1.msra.mxu0 0.0
    %1913 = vmatprep.subr.mxu0 0.0
    %1914 = vmatpush1.msra.mxu0 0.0
    %1915 = vmatprep.subr.mxu0 0.0
    %1916 = vmatpush1.msra.mxu0 0.0
    %1917 = vmatprep.subr.mxu0 0.0
    %1918 = vmatpush1.msra.mxu0 0.0
    %1919 = vmatprep.subr.mxu0 0.0
    %1920 = vmatpush1.msra.mxu0 0.0
    %1921 = vmatprep.mubr.f32.mxu0 0.0
    %1922 = vmatmul.mubr.f32.gmra.mrb[0].mxu0 %v1852
    %v1923 = vpop.f32.mrb[0].mxu0
    %v1924 = vadd.f32 0.0, %v1923
    %v1925 = vpop.f32.mrb[0].mxu0
    %1926 = vdwg.mxu0
    %v1929 = vrot.slane %v1671, 7
    %v1930 = vsel %vm332, %v1929, %v1670
    %1931 = vrot.lane.b32.xlu0 %v1930, 32
    %v1932 = vpop.permute.xlu0 %1931
    %1935 = vrot.lane.b32.xlu0 %v1924, 32
    %v1936 = vpop.permute.xlu0 %1935
    %v1938 = vsel %vm191, %v1932, %v1936
    %v1941 = vunpack.c.l.s4 1966171168
    %v1942 = vunpack.c.0.s8 %v1941
    %v1943 = vlaneseq
    %v1944 = vshrl.u32 %v1943, 7
    %v1945 = vsub.s32 %v1942, %v1944
    %v1946 = vrot.slane %v1938, %v1945
    %v1947 = vcombine.high %v1946, %v1946
    %v1949 = vunpack.c.l.s4 1966171168
    %v1950 = vunpack.c.0.s8 %v1949
    %v1951 = vlaneseq
    %v1952 = vshrl.u32 %v1951, 7
    %v1953 = vsub.s32 %v1950, %v1952
    %v1954 = vrot.slane %v1946, %v1953
    %v1956 = vunpack.c.l.s4 1966171168
    %v1957 = vunpack.c.0.s8 %v1956
    %v1958 = vlaneseq
    %v1959 = vshrl.u32 %v1958, 7
    %v1960 = vsub.s32 %v1957, %v1959
    %v1961 = vrot.slane %v1947, %v1960
    %1964 = vst.msk [vmem:[#allocation14 + $0x2] sm:$0x1] %vm624, %v1954
    %1965 = vst.msk [vmem:[#allocation14 + $0xa] sm:$0x1] %vm624, %v1961
    %v1966 = vsel %vm497, %v1543, inf
    %1967 = vmin.xlane.f32.xlu0 %v1966
    %v1968 = vpop.xlane.xlu0 %1967
    %vm1969 = vcmp.eq.f32.partialorder %v1543, %v1968
    %v1970 = vsel %vm1969, %v82, 50
    %v1971 = vsel %vm497, %v1970, 2147483647
    %v1972 = vand.u32 %v1971, 65535
    %v1973 = vshra.s32 %v1971, 16
    %v1974 = vcvt.s32.f32 %v1972
    %v1975 = vcvt.s32.f32 %v1973
    %1976 = vmin.xlane.f32.xlu0 %v1975
    %v1977 = vpop.xlane.xlu0 %1976
    %vm1978 = vcmp.eq.f32.partialorder %v1975, %v1977
    %v1979 = vsel %vm1978, %v1974, inf
    %1980 = vmin.xlane.f32.xlu0 %v1979
    %v1981 = vpop.xlane.xlu0 %1980
    %v1982 = vcvt.f32.s32 %v1981
    %v1983 = vcvt.f32.s32 %v1977
    %v1984 = vshll.u32 %v1983, 16
    %v1985 = vadd.s32 %v1984, %v1982
    %vm1986 = vcmp.eq.s32.totalorder %v82, %v1985
    %v1987 = vsel %vm1986, 1, 0
    %v1988 = vcvt.s32.f32 %v1987
    %v1989 = vmul.f32 %v1988, 0.59868765
    %v1990 = vmul.f32 %v1181, 0.40131235
    %v1991 = vadd.f32 %v1990, %v1989
    %1992 = vxpose.xlu0.b32.start [1/16] %v1991, 128
    %1993 = vxpose.xlu0.b32.cont [2/16] 0.0, 128
    %1994 = vxpose.xlu0.b32.cont [3/16] 0.0, 128
    %1995 = vxpose.xlu0.b32.cont [4/16] 0.0, 128
    %1996 = vxpose.xlu0.b32.cont [5/16] 0.0, 128
    %1997 = vxpose.xlu0.b32.cont [6/16] 0.0, 128
    %1998 = vxpose.xlu0.b32.cont [7/16] 0.0, 128
    %1999 = vxpose.xlu0.b32.cont [8/16] 0.0, 128
    %2000 = vxpose.xlu0.b32.cont [9/16] 0.0, 128
    %2001 = vxpose.xlu0.b32.cont [10/16] 0.0, 128
    %2002 = vxpose.xlu0.b32.cont [11/16] 0.0, 128
    %2003 = vxpose.xlu0.b32.cont [12/16] 0.0, 128
    %2004 = vxpose.xlu0.b32.cont [13/16] 0.0, 128
    %2005 = vxpose.xlu0.b32.cont [14/16] 0.0, 128
    %2006 = vxpose.xlu0.b32.cont [15/16] 0.0, 128
    %2007 = vxpose.xlu0.b32.end [16/16] 0.0, 128
    %v2008 = vpop.trf.xlu0
    %v2009 = vpop.trf.xlu0
    %v2010 = vpop.trf.xlu0
    %v2011 = vpop.trf.xlu0
    %v2012 = vpop.trf.xlu0
    %v2013 = vpop.trf.xlu0
    %v2014 = vpop.trf.xlu0
    %v2015 = vpop.trf.xlu0
    %v2016 = vpop.trf.xlu0
    %v2017 = vpop.trf.xlu0
    %v2018 = vpop.trf.xlu0
    %v2019 = vpop.trf.xlu0
    %v2020 = vpop.trf.xlu0
    %v2021 = vpop.trf.xlu0
    %v2022 = vpop.trf.xlu0
    %v2023 = vpop.trf.xlu0
    %v2025 = vsel %vm685, %v2008, 0
    %v2028 = vsel %vm685, %v2009, 0
    %v2031 = vsel %vm685, %v2010, 0
    %v2034 = vsel %vm685, %v2011, 0
    %v2037 = vsel %vm685, %v2012, 0
    %v2040 = vsel %vm685, %v2013, 0
    %v2043 = vsel %vm685, %v2014, 0
    %v2045 = vsel %vm513, %v1932, 0
    %2047 = vmatprep.subr.mxu0 0.0
    %2048 = vmatpush1.msra.mxu0 %v2045
    %2049 = vmatprep.subr.mxu0 0.0
    %2050 = vmatpush1.msra.mxu0 0.0
    %2051 = vmatprep.subr.mxu0 0.0
    %2052 = vmatpush1.msra.mxu0 0.0
    %2053 = vmatprep.subr.mxu0 0.0
    %2054 = vmatpush1.msra.mxu0 0.0
    %2055 = vmatprep.subr.mxu0 0.0
    %2056 = vmatpush1.msra.mxu0 0.0
    %2057 = vmatprep.subr.mxu0 0.0
    %2058 = vmatpush1.msra.mxu0 0.0
    %2059 = vmatprep.subr.mxu0 0.0
    %2060 = vmatpush1.msra.mxu0 0.0
    %2061 = vmatprep.subr.mxu0 0.0
    %2062 = vmatpush1.msra.mxu0 0.0
    %2063 = vmatprep.subr.mxu0 0.0
    %2064 = vmatpush1.msra.mxu0 0.0
    %2065 = vmatprep.subr.mxu0 0.0
    %2066 = vmatpush1.msra.mxu0 0.0
    %2067 = vmatprep.subr.mxu0 0.0
    %2068 = vmatpush1.msra.mxu0 0.0
    %2069 = vmatprep.subr.mxu0 0.0
    %2070 = vmatpush1.msra.mxu0 0.0
    %2071 = vmatprep.subr.mxu0 0.0
    %2072 = vmatpush1.msra.mxu0 0.0
    %2073 = vmatprep.subr.mxu0 0.0
    %2074 = vmatpush1.msra.mxu0 0.0
    %2075 = vmatprep.subr.mxu0 0.0
    %2076 = vmatpush1.msra.mxu0 0.0
    %2077 = vmatprep.subr.mxu0 0.0
    %2078 = vmatpush1.msra.mxu0 0.0
    %2079 = vmatprep.subr.mxu0 0.0
    %2080 = vmatpush1.msra.mxu0 0.0
    %2081 = vmatprep.subr.mxu0 0.0
    %2082 = vmatpush1.msra.mxu0 0.0
    %2083 = vmatprep.subr.mxu0 0.0
    %2084 = vmatpush1.msra.mxu0 0.0
    %2085 = vmatprep.subr.mxu0 0.0
    %2086 = vmatpush1.msra.mxu0 0.0
    %2087 = vmatprep.subr.mxu0 0.0
    %2088 = vmatpush1.msra.mxu0 0.0
    %2089 = vmatprep.subr.mxu0 0.0
    %2090 = vmatpush1.msra.mxu0 0.0
    %2091 = vmatprep.subr.mxu0 0.0
    %2092 = vmatpush1.msra.mxu0 0.0
    %2093 = vmatprep.subr.mxu0 0.0
    %2094 = vmatpush1.msra.mxu0 0.0
    %2095 = vmatprep.subr.mxu0 0.0
    %2096 = vmatpush1.msra.mxu0 0.0
    %2097 = vmatprep.subr.mxu0 0.0
    %2098 = vmatpush1.msra.mxu0 0.0
    %2099 = vmatprep.subr.mxu0 0.0
    %2100 = vmatpush1.msra.mxu0 0.0
    %2101 = vmatprep.subr.mxu0 0.0
    %2102 = vmatpush1.msra.mxu0 0.0
    %2103 = vmatprep.subr.mxu0 0.0
    %2104 = vmatpush1.msra.mxu0 0.0
    %2105 = vmatprep.subr.mxu0 0.0
    %2106 = vmatpush1.msra.mxu0 0.0
    %2107 = vmatprep.subr.mxu0 0.0
    %2108 = vmatpush1.msra.mxu0 0.0
    %2109 = vmatprep.subr.mxu0 0.0
    %2110 = vmatpush1.msra.mxu0 0.0
    %2111 = vmatprep.mubr.f32.mxu0 0.0
    %2112 = vmatmul.mubr.f32.gmra.mrb[0].mxu0 %v2025
    %v2113 = vpop.f32.mrb[0].mxu0
    %v2114 = vadd.f32 0.0, %v2113
    %v2115 = vpop.f32.mrb[0].mxu0
    %2116 = vmatprep.mubr.f32.mxu0 0.0
    %2117 = vmatmul.mubr.f32.gmra.mrb[0].mxu0 %v2028
    %v2118 = vpop.f32.mrb[0].mxu0
    %v2119 = vadd.f32 0.0, %v2118
    %v2120 = vpop.f32.mrb[0].mxu0
    %2121 = vmatprep.mubr.f32.mxu0 0.0
    %2122 = vmatmul.mubr.f32.gmra.mrb[0].mxu0 %v2031
    %v2123 = vpop.f32.mrb[0].mxu0
    %v2124 = vadd.f32 0.0, %v2123
    %v2125 = vpop.f32.mrb[0].mxu0
    %2126 = vmatprep.mubr.f32.mxu0 0.0
    %2127 = vmatmul.mubr.f32.gmra.mrb[0].mxu0 %v2034
    %v2128 = vpop.f32.mrb[0].mxu0
    %v2129 = vadd.f32 0.0, %v2128
    %v2130 = vpop.f32.mrb[0].mxu0
    %2131 = vmatprep.mubr.f32.mxu0 0.0
    %2132 = vmatmul.mubr.f32.gmra.mrb[0].mxu0 %v2037
    %v2133 = vpop.f32.mrb[0].mxu0
    %v2134 = vadd.f32 0.0, %v2133
    %v2135 = vpop.f32.mrb[0].mxu0
    %2136 = vmatprep.mubr.f32.mxu0 0.0
    %2137 = vmatmul.mubr.f32.gmra.mrb[0].mxu0 %v2040
    %v2138 = vpop.f32.mrb[0].mxu0
    %v2139 = vadd.f32 0.0, %v2138
    %v2140 = vpop.f32.mrb[0].mxu0
    %2141 = vmatprep.mubr.f32.mxu0 0.0
    %2142 = vmatmul.mubr.f32.gmra.mrb[0].mxu0 %v2043
    %v2143 = vpop.f32.mrb[0].mxu0
    %v2144 = vadd.f32 0.0, %v2143
    %v2145 = vpop.f32.mrb[0].mxu0
    %2146 = vdwg.mxu0
    %v2147 = vadd.f32 %v1527, %v2114
    %v2148 = vadd.f32 %v1528, %v2119
    %v2149 = vadd.f32 %v1529, %v2124
    %v2150 = vadd.f32 %v1530, %v2129
    %v2151 = vadd.f32 %v1531, %v2134
    %v2152 = vadd.f32 %v1532, %v2139
    %v2153 = vadd.f32 %v1533, %v2144
    %v2154 = vmul.f32 %v2147, %v2147
    %v2155 = vmul.f32 %v2148, %v2148
    %v2156 = vmul.f32 %v2149, %v2149
    %v2157 = vmul.f32 %v2150, %v2150
    %v2158 = vmul.f32 %v2151, %v2151
    %v2159 = vmul.f32 %v2152, %v2152
    %v2160 = vmul.f32 %v2153, %v2153
    %v2161 = vsel %vm191, %v2154, 0.0
    %2162 = vadd.xlane.f32.xlu0 %v2161
    %v2163 = vpop.xlane.xlu0 %2162
    %v2164 = vsel %vm191, %v2155, 0.0
    %2165 = vadd.xlane.f32.xlu0 %v2164
    %v2166 = vpop.xlane.xlu0 %2165
    %v2167 = vsel %vm191, %v2156, 0.0
    %2168 = vadd.xlane.f32.xlu0 %v2167
    %v2169 = vpop.xlane.xlu0 %2168
    %v2170 = vsel %vm191, %v2157, 0.0
    %2171 = vadd.xlane.f32.xlu0 %v2170
    %v2172 = vpop.xlane.xlu0 %2171
    %v2173 = vsel %vm191, %v2158, 0.0
    %2174 = vadd.xlane.f32.xlu0 %v2173
    %v2175 = vpop.xlane.xlu0 %2174
    %v2176 = vsel %vm191, %v2159, 0.0
    %2177 = vadd.xlane.f32.xlu0 %v2176
    %v2178 = vpop.xlane.xlu0 %2177
    %v2179 = vsel %vm337, %v2160, 0.0
    %2180 = vadd.xlane.f32.xlu0 %v2179
    %v2181 = vpop.xlane.xlu0 %2180
    %v2182 = vrsqrt.pop %v2163
    %v2183 = vrsqrt.pop %v2166
    %v2184 = vrsqrt.pop %v2169
    %v2185 = vrsqrt.pop %v2172
    %v2186 = vrsqrt.pop %v2175
    %v2187 = vrsqrt.pop %v2178
    %v2188 = vrsqrt.pop %v2181
    %v2189 = vmin.f32 %v2182, 1e+12
    %v2190 = vmin.f32 %v2183, 1e+12
    %v2191 = vmin.f32 %v2184, 1e+12
    %v2192 = vmin.f32 %v2185, 1e+12
    %v2193 = vmin.f32 %v2186, 1e+12
    %v2194 = vmin.f32 %v2187, 1e+12
    %v2195 = vmin.f32 %v2188, 1e+12
    %v2196 = vmul.f32 %v2147, %v2189
    %v2197 = vmul.f32 %v2148, %v2190
    %v2198 = vmul.f32 %v2149, %v2191
    %v2199 = vmul.f32 %v2150, %v2192
    %v2200 = vmul.f32 %v2151, %v2193
    %v2201 = vmul.f32 %v2152, %v2194
    %v2202 = vmul.f32 %v2153, %v2195
    %v2203 = vmul.f32 %v1543, 0.3
    %v2204 = vadd.f32 %v2203, %v1850
    %v2205 = vadd.f32 %v2204, %v1991
    %v2206 = vmul.f32 %v2205, %v2205
    %v2207 = vsel %vm497, %v2206, 0.0
    %2208 = vadd.xlane.f32.xlu0 %v2207
    %v2209 = vpop.xlane.xlu0 %2208
    %v2210 = vrsqrt.pop %v2209
    %v2211 = vmin.f32 %v2210, 1e+12
    %v2212 = vmul.f32 %v2205, %v2211
    %v2213 = vld [vmem:[#allocation7 + $0x3] sm:$0x1]
    %v2214 = vld [vmem:[#allocation7 + $0xb] sm:$0x1]
    %v2215 = vsel %vm191, %v1932, 0
    %2217 = vmatprep.subr.mxu0 0.0
    %2218 = vmatpush1.msra.mxu0 %v77
    %2219 = vmatprep.subr.mxu0 0.0
    %2220 = vmatpush1.msra.mxu0 %v78
    %2221 = vmatprep.subr.mxu0 0.0
    %2222 = vmatpush1.msra.mxu0 %v79
    %2223 = vmatprep.subr.mxu0 0.0
    %2224 = vmatpush1.msra.mxu0 %v80
    %2225 = vmatprep.subr.mxu0 0.0
    %2226 = vmatpush1.msra.mxu0 0.0
    %2227 = vmatprep.subr.mxu0 0.0
    %2228 = vmatpush1.msra.mxu0 0.0
    %2229 = vmatprep.subr.mxu0 0.0
    %2230 = vmatpush1.msra.mxu0 0.0
    %2231 = vmatprep.subr.mxu0 0.0
    %2232 = vmatpush1.msra.mxu0 0.0
    %2233 = vmatprep.subr.mxu0 0.0
    %2234 = vmatpush1.msra.mxu0 0.0
    %2235 = vmatprep.subr.mxu0 0.0
    %2236 = vmatpush1.msra.mxu0 0.0
    %2237 = vmatprep.subr.mxu0 0.0
    %2238 = vmatpush1.msra.mxu0 0.0
    %2239 = vmatprep.subr.mxu0 0.0
    %2240 = vmatpush1.msra.mxu0 0.0
    %2241 = vmatprep.subr.mxu0 0.0
    %2242 = vmatpush1.msra.mxu0 0.0
    %2243 = vmatprep.subr.mxu0 0.0
    %2244 = vmatpush1.msra.mxu0 0.0
    %2245 = vmatprep.subr.mxu0 0.0
    %2246 = vmatpush1.msra.mxu0 0.0
    %2247 = vmatprep.subr.mxu0 0.0
    %2248 = vmatpush1.msra.mxu0 0.0
    %2249 = vmatprep.subr.mxu0 0.0
    %2250 = vmatpush1.msra.mxu0 0.0
    %2251 = vmatprep.subr.mxu0 0.0
    %2252 = vmatpush1.msra.mxu0 0.0
    %2253 = vmatprep.subr.mxu0 0.0
    %2254 = vmatpush1.msra.mxu0 0.0
    %2255 = vmatprep.subr.mxu0 0.0
    %2256 = vmatpush1.msra.mxu0 0.0
    %2257 = vmatprep.subr.mxu0 0.0
    %2258 = vmatpush1.msra.mxu0 0.0
    %2259 = vmatprep.subr.mxu0 0.0
    %2260 = vmatpush1.msra.mxu0 0.0
    %2261 = vmatprep.subr.mxu0 0.0
    %2262 = vmatpush1.msra.mxu0 0.0
    %2263 = vmatprep.subr.mxu0 0.0
    %2264 = vmatpush1.msra.mxu0 0.0
    %2265 = vmatprep.subr.mxu0 0.0
    %2266 = vmatpush1.msra.mxu0 0.0
    %2267 = vmatprep.subr.mxu0 0.0
    %2268 = vmatpush1.msra.mxu0 0.0
    %2269 = vmatprep.subr.mxu0 0.0
    %2270 = vmatpush1.msra.mxu0 0.0
    %2271 = vmatprep.subr.mxu0 0.0
    %2272 = vmatpush1.msra.mxu0 0.0
    %2273 = vmatprep.subr.mxu0 0.0
    %2274 = vmatpush1.msra.mxu0 0.0
    %2275 = vmatprep.subr.mxu0 0.0
    %2276 = vmatpush1.msra.mxu0 0.0
    %2277 = vmatprep.subr.mxu0 0.0
    %2278 = vmatpush1.msra.mxu0 0.0
    %2279 = vmatprep.subr.mxu0 0.0
    %2280 = vmatpush1.msra.mxu0 0.0
    %2281 = vmatprep.mubr.f32.mxu0 0.0
    %2282 = vmatmul.mubr.f32.gmra.mrb[0].mxu0 %v2215
    %v2283 = vpop.f32.mrb[0].mxu0
    %v2284 = vadd.f32 0.0, %v2283
    %v2285 = vpop.f32.mrb[0].mxu0
    %2286 = vdwg.mxu0
    %v2288 = vrot.slane %v2284, 1
    %v2291 = vadd.f32 %v2213, %v2284
    %v2292 = vadd.f32 %v2214, %v2288
    %v2293 = vxor.u32 %v2291, 2147483648
    %v2294 = vxor.u32 %v2292, 2147483648
    %v2295 = vmul.f32 %v2293, 1.442695
    %v2296 = vpow.pop %v2295
    %v2297 = vmul.f32 %v2294, 1.442695
    %v2298 = vpow.pop %v2297
    %v2299 = vadd.f32 %v2296, 1.0
    %v2300 = vadd.f32 %v2298, 1.0
    %v2301 = vrcp.pop %v2299
    %v2302 = vmul.f32 1.0, %v2301
    %v2303 = vrcp.pop %v2300
    %v2304 = vmul.f32 1.0, %v2303
    %v2305 = vtanh.pop %v2291
    %v2306 = vtanh.pop %v2292
    %v2307 = vmul.f32 %v2302, %v1658
    %v2308 = vmul.f32 %v2304, %v1659
    %2311 = vrot.lane.b32.xlu0 %v2305, 64
    %v2312 = vpop.permute.xlu0 %2311
    %2313 = vrot.lane.b32.xlu0 %v2306, 64
    %v2314 = vpop.permute.xlu0 %2313
    %v2317 = vmul.f32 %v2302, %v2312
    %v2318 = vmul.f32 %v2304, %v2314
    %2321 = vrot.lane.b32.xlu0 %v2317, 32
    %v2322 = vpop.permute.xlu0 %2321
    %2323 = vrot.lane.b32.xlu0 %v2318, 32
    %v2324 = vpop.permute.xlu0 %2323
    %v2327 = vadd.f32 %v2307, %v2322
    %v2328 = vadd.f32 %v2308, %v2324
    %v2329 = vtanh.pop %v2327
    %v2330 = vtanh.pop %v2328
    %2333 = vrot.lane.b32.xlu0 %v2329, 64
    %v2334 = vpop.permute.xlu0 %2333
    %2335 = vrot.lane.b32.xlu0 %v2330, 64
    %v2336 = vpop.permute.xlu0 %2335
    %v2339 = vmul.f32 %v2302, %v2334
    %v2340 = vmul.f32 %v2304, %v2336
    %v2341 = vmul.f32 %v2339, %v2339
    %v2342 = vmul.f32 %v2340, %v2340
    %v2345 = vrot.slane %v2342, 7
    %v2346 = vsel %vm332, %v2345, %v2341
    %2347 = vrot.lane.b32.xlu0 %v2346, 32
    %v2348 = vpop.permute.xlu0 %2347
    %v2350 = vsel %vm337, %v2348, 0.0
    %2351 = vadd.xlane.f32.xlu0 %v2350
    %v2352 = vpop.xlane.xlu0 %2351
    %v2353 = vadd.f32 %v2352, 1e-16
    %v2354 = vrsqrt.pop %v2353
    %v2356 = vrot.slane %v2354, 1
    %v2359 = vmul.f32 %v2339, %v2354
    %v2360 = vmul.f32 %v2340, %v2356
    %v2361 = vmul.f32 %v2196, %v2196
    %v2362 = vmul.f32 %v2197, %v2197
    %v2363 = vmul.f32 %v2198, %v2198
    %v2364 = vmul.f32 %v2199, %v2199
    %v2365 = vmul.f32 %v2200, %v2200
    %v2366 = vmul.f32 %v2201, %v2201
    %v2367 = vmul.f32 %v2202, %v2202
    %v2368 = vsel %vm191, %v2361, 0.0
    %2369 = vadd.xlane.f32.xlu0 %v2368
    %v2370 = vpop.xlane.xlu0 %2369
    %v2371 = vsel %vm191, %v2362, 0.0
    %2372 = vadd.xlane.f32.xlu0 %v2371
    %v2373 = vpop.xlane.xlu0 %2372
    %v2374 = vsel %vm191, %v2363, 0.0
    %2375 = vadd.xlane.f32.xlu0 %v2374
    %v2376 = vpop.xlane.xlu0 %2375
    %v2377 = vsel %vm191, %v2364, 0.0
    %2378 = vadd.xlane.f32.xlu0 %v2377
    %v2379 = vpop.xlane.xlu0 %2378
    %v2380 = vsel %vm191, %v2365, 0.0
    %2381 = vadd.xlane.f32.xlu0 %v2380
    %v2382 = vpop.xlane.xlu0 %2381
    %v2383 = vsel %vm191, %v2366, 0.0
    %2384 = vadd.xlane.f32.xlu0 %v2383
    %v2385 = vpop.xlane.xlu0 %2384
    %v2386 = vsel %vm337, %v2367, 0.0
    %2387 = vadd.xlane.f32.xlu0 %v2386
    %v2388 = vpop.xlane.xlu0 %2387
    %v2389 = vadd.f32 %v2370, 1e-16
    %v2390 = vadd.f32 %v2373, 1e-16
    %v2391 = vadd.f32 %v2376, 1e-16
    %v2392 = vadd.f32 %v2379, 1e-16
    %v2393 = vadd.f32 %v2382, 1e-16
    %v2394 = vadd.f32 %v2385, 1e-16
    %v2395 = vadd.f32 %v2388, 1e-16
    %v2396 = vrsqrt.pop %v2389
    %v2397 = vrsqrt.pop %v2390
    %v2398 = vrsqrt.pop %v2391
    %v2399 = vrsqrt.pop %v2392
    %v2400 = vrsqrt.pop %v2393
    %v2401 = vrsqrt.pop %v2394
    %v2402 = vrsqrt.pop %v2395
    %v2403 = vmul.f32 %v2196, %v2396
    %v2404 = vmul.f32 %v2197, %v2397
    %v2405 = vmul.f32 %v2198, %v2398
    %v2406 = vmul.f32 %v2199, %v2399
    %v2407 = vmul.f32 %v2200, %v2400
    %v2408 = vmul.f32 %v2201, %v2401
    %v2409 = vmul.f32 %v2202, %v2402
    %v2412 = vrot.slane %v2360, 7
    %v2413 = vsel %vm332, %v2412, %v2359
    %2414 = vrot.lane.b32.xlu0 %v2413, 32
    %v2415 = vpop.permute.xlu0 %2414
    %v2416 = vsel %vm191, %v2415, 0
    %v2419 = vsel %vm191, %v2403, 0
    %v2422 = vsel %vm191, %v2404, 0
    %v2425 = vsel %vm191, %v2405, 0
    %v2428 = vsel %vm191, %v2406, 0
    %v2431 = vsel %vm191, %v2407, 0
    %v2434 = vsel %vm191, %v2408, 0
    %v2437 = vsel %vm191, %v2409, 0
    %2439 = vmatprep.subr.mxu0 0.0
    %2440 = vmatpush1.xpose.msra.mxu0 %v2419
    %2441 = vmatprep.subr.mxu0 0.0
    %2442 = vmatpush1.xpose.msra.mxu0 %v2422
    %2443 = vmatprep.subr.mxu0 0.0
    %2444 = vmatpush1.xpose.msra.mxu0 %v2425
    %2445 = vmatprep.subr.mxu0 0.0
    %2446 = vmatpush1.xpose.msra.mxu0 %v2428
    %2447 = vmatprep.subr.mxu0 0.0
    %2448 = vmatpush1.xpose.msra.mxu0 %v2431
    %2449 = vmatprep.subr.mxu0 0.0
    %2450 = vmatpush1.xpose.msra.mxu0 %v2434
    %2451 = vmatprep.subr.mxu0 0.0
    %2452 = vmatpush1.xpose.msra.mxu0 %v2437
    %2453 = vmatprep.subr.mxu0 0.0
    %2454 = vmatpush1.xpose.msra.mxu0 0.0
    %2455 = vmatprep.subr.mxu0 0.0
    %2456 = vmatpush1.xpose.msra.mxu0 0.0
    %2457 = vmatprep.subr.mxu0 0.0
    %2458 = vmatpush1.xpose.msra.mxu0 0.0
    %2459 = vmatprep.subr.mxu0 0.0
    %2460 = vmatpush1.xpose.msra.mxu0 0.0
    %2461 = vmatprep.subr.mxu0 0.0
    %2462 = vmatpush1.xpose.msra.mxu0 0.0
    %2463 = vmatprep.subr.mxu0 0.0
    %2464 = vmatpush1.xpose.msra.mxu0 0.0
    %2465 = vmatprep.subr.mxu0 0.0
    %2466 = vmatpush1.xpose.msra.mxu0 0.0
    %2467 = vmatprep.subr.mxu0 0.0
    %2468 = vmatpush1.xpose.msra.mxu0 0.0
    %2469 = vmatprep.subr.mxu0 0.0
    %2470 = vmatpush1.xpose.msra.mxu0 0.0
    %2471 = vmatprep.subr.mxu0 0.0
    %2472 = vmatpush1.xpose.msra.mxu0 0.0
    %2473 = vmatprep.subr.mxu0 0.0
    %2474 = vmatpush1.xpose.msra.mxu0 0.0
    %2475 = vmatprep.subr.mxu0 0.0
    %2476 = vmatpush1.xpose.msra.mxu0 0.0
    %2477 = vmatprep.subr.mxu0 0.0
    %2478 = vmatpush1.xpose.msra.mxu0 0.0
    %2479 = vmatprep.subr.mxu0 0.0
    %2480 = vmatpush1.xpose.msra.mxu0 0.0
    %2481 = vmatprep.subr.mxu0 0.0
    %2482 = vmatpush1.xpose.msra.mxu0 0.0
    %2483 = vmatprep.subr.mxu0 0.0
    %2484 = vmatpush1.xpose.msra.mxu0 0.0
    %2485 = vmatprep.subr.mxu0 0.0
    %2486 = vmatpush1.xpose.msra.mxu0 0.0
    %2487 = vmatprep.subr.mxu0 0.0
    %2488 = vmatpush1.xpose.msra.mxu0 0.0
    %2489 = vmatprep.subr.mxu0 0.0
    %2490 = vmatpush1.xpose.msra.mxu0 0.0
    %2491 = vmatprep.subr.mxu0 0.0
    %2492 = vmatpush1.xpose.msra.mxu0 0.0
    %2493 = vmatprep.subr.mxu0 0.0
    %2494 = vmatpush1.xpose.msra.mxu0 0.0
    %2495 = vmatprep.subr.mxu0 0.0
    %2496 = vmatpush1.xpose.msra.mxu0 0.0
    %2497 = vmatprep.subr.mxu0 0.0
    %2498 = vmatpush1.xpose.msra.mxu0 0.0
    %2499 = vmatprep.subr.mxu0 0.0
    %2500 = vmatpush1.xpose.msra.mxu0 0.0
    %2501 = vmatprep.subr.mxu0 0.0
    %2502 = vmatpush1.xpose.msra.mxu0 0.0
    %2503 = vmatprep.mubr.f32.mxu0 0.0
    %2504 = vmatmul.mubr.f32.gmra.mrb[0].mxu0 %v2416
    %v2505 = vpop.f32.mrb[0].mxu0
    %v2506 = vadd.f32 0.0, %v2505
    %v2507 = vpop.f32.mrb[0].mxu0
    %2508 = vdwg.mxu0
    %v2509 = vsel %vm497, %v2506, -inf
    %2510 = vmax.xlane.f32.xlu0 %v2509
    %v2511 = vpop.xlane.xlu0 %2510
    %v2512 = vsub.f32 %v2506, %v2511
    %v2513 = vmul.f32 %v2512, 1.442695
    %v2514 = vpow.pop %v2513
    %v2515 = vsel %vm497, %v2514, 0.0
    %2516 = vadd.xlane.f32.xlu0 %v2515
    %v2517 = vpop.xlane.xlu0 %2516
    %v2518 = vrcp.pop %v2517
    %v2519 = vmul.f32 %v2514, %v2518
    %v2521 = vsel %vm509, %v2519, 0
    %v2524 = vsel %vm513, %v2202, 0
    %2526 = vmatprep.subr.mxu0 0.0
    %2527 = vmatpush1.msra.mxu0 %v2196
    %2528 = vmatprep.subr.mxu0 0.0
    %2529 = vmatpush1.msra.mxu0 %v2197
    %2530 = vmatprep.subr.mxu0 0.0
    %2531 = vmatpush1.msra.mxu0 %v2198
    %2532 = vmatprep.subr.mxu0 0.0
    %2533 = vmatpush1.msra.mxu0 %v2199
    %2534 = vmatprep.subr.mxu0 0.0
    %2535 = vmatpush1.msra.mxu0 %v2200
    %2536 = vmatprep.subr.mxu0 0.0
    %2537 = vmatpush1.msra.mxu0 %v2201
    %2538 = vmatprep.subr.mxu0 0.0
    %2539 = vmatpush1.msra.mxu0 %v2524
    %2540 = vmatprep.subr.mxu0 0.0
    %2541 = vmatpush1.msra.mxu0 0.0
    %2542 = vmatprep.subr.mxu0 0.0
    %2543 = vmatpush1.msra.mxu0 0.0
    %2544 = vmatprep.subr.mxu0 0.0
    %2545 = vmatpush1.msra.mxu0 0.0
    %2546 = vmatprep.subr.mxu0 0.0
    %2547 = vmatpush1.msra.mxu0 0.0
    %2548 = vmatprep.subr.mxu0 0.0
    %2549 = vmatpush1.msra.mxu0 0.0
    %2550 = vmatprep.subr.mxu0 0.0
    %2551 = vmatpush1.msra.mxu0 0.0
    %2552 = vmatprep.subr.mxu0 0.0
    %2553 = vmatpush1.msra.mxu0 0.0
    %2554 = vmatprep.subr.mxu0 0.0
    %2555 = vmatpush1.msra.mxu0 0.0
    %2556 = vmatprep.subr.mxu0 0.0
    %2557 = vmatpush1.msra.mxu0 0.0
    %2558 = vmatprep.subr.mxu0 0.0
    %2559 = vmatpush1.msra.mxu0 0.0
    %2560 = vmatprep.subr.mxu0 0.0
    %2561 = vmatpush1.msra.mxu0 0.0
    %2562 = vmatprep.subr.mxu0 0.0
    %2563 = vmatpush1.msra.mxu0 0.0
    %2564 = vmatprep.subr.mxu0 0.0
    %2565 = vmatpush1.msra.mxu0 0.0
    %2566 = vmatprep.subr.mxu0 0.0
    %2567 = vmatpush1.msra.mxu0 0.0
    %2568 = vmatprep.subr.mxu0 0.0
    %2569 = vmatpush1.msra.mxu0 0.0
    %2570 = vmatprep.subr.mxu0 0.0
    %2571 = vmatpush1.msra.mxu0 0.0
    %2572 = vmatprep.subr.mxu0 0.0
    %2573 = vmatpush1.msra.mxu0 0.0
    %2574 = vmatprep.subr.mxu0 0.0
    %2575 = vmatpush1.msra.mxu0 0.0
    %2576 = vmatprep.subr.mxu0 0.0
    %2577 = vmatpush1.msra.mxu0 0.0
    %2578 = vmatprep.subr.mxu0 0.0
    %2579 = vmatpush1.msra.mxu0 0.0
    %2580 = vmatprep.subr.mxu0 0.0
    %2581 = vmatpush1.msra.mxu0 0.0
    %2582 = vmatprep.subr.mxu0 0.0
    %2583 = vmatpush1.msra.mxu0 0.0
    %2584 = vmatprep.subr.mxu0 0.0
    %2585 = vmatpush1.msra.mxu0 0.0
    %2586 = vmatprep.subr.mxu0 0.0
    %2587 = vmatpush1.msra.mxu0 0.0
    %2588 = vmatprep.subr.mxu0 0.0
    %2589 = vmatpush1.msra.mxu0 0.0
    %2590 = vmatprep.mubr.f32.mxu0 0.0
    %2591 = vmatmul.mubr.f32.gmra.mrb[0].mxu0 %v2521
    %v2592 = vpop.f32.mrb[0].mxu0
    %v2593 = vadd.f32 0.0, %v2592
    %v2594 = vpop.f32.mrb[0].mxu0
    %2595 = vdwg.mxu0
    %v2598 = vrot.slane %v2340, 7
    %v2599 = vsel %vm332, %v2598, %v2339
    %2600 = vrot.lane.b32.xlu0 %v2599, 32
    %v2601 = vpop.permute.xlu0 %2600
    %2604 = vrot.lane.b32.xlu0 %v2593, 32
    %v2605 = vpop.permute.xlu0 %2604
    %v2607 = vsel %vm191, %v2601, %v2605
    %v2610 = vunpack.c.l.s4 1966171168
    %v2611 = vunpack.c.0.s8 %v2610
    %v2612 = vlaneseq
    %v2613 = vshrl.u32 %v2612, 7
    %v2614 = vsub.s32 %v2611, %v2613
    %v2615 = vrot.slane %v2607, %v2614
    %v2616 = vcombine.high %v2615, %v2615
    %v2618 = vunpack.c.l.s4 1966171168
    %v2619 = vunpack.c.0.s8 %v2618
    %v2620 = vlaneseq
    %v2621 = vshrl.u32 %v2620, 7
    %v2622 = vsub.s32 %v2619, %v2621
    %v2623 = vrot.slane %v2615, %v2622
    %v2625 = vunpack.c.l.s4 1966171168
    %v2626 = vunpack.c.0.s8 %v2625
    %v2627 = vlaneseq
    %v2628 = vshrl.u32 %v2627, 7
    %v2629 = vsub.s32 %v2626, %v2628
    %v2630 = vrot.slane %v2616, %v2629
    %2633 = vst.msk [vmem:[#allocation14 + $0x3] sm:$0x1] %vm624, %v2623
    %2634 = vst.msk [vmem:[#allocation14 + $0xb] sm:$0x1] %vm624, %v2630
    %v2635 = vsel %vm497, %v2212, inf
    %2636 = vmin.xlane.f32.xlu0 %v2635
    %v2637 = vpop.xlane.xlu0 %2636
    %vm2638 = vcmp.eq.f32.partialorder %v2212, %v2637
    %v2639 = vsel %vm2638, %v82, 50
    %v2640 = vsel %vm497, %v2639, 2147483647
    %v2641 = vand.u32 %v2640, 65535
    %v2642 = vshra.s32 %v2640, 16
    %v2643 = vcvt.s32.f32 %v2641
    %v2644 = vcvt.s32.f32 %v2642
    %2645 = vmin.xlane.f32.xlu0 %v2644
    %v2646 = vpop.xlane.xlu0 %2645
    %vm2647 = vcmp.eq.f32.partialorder %v2644, %v2646
    %v2648 = vsel %vm2647, %v2643, inf
    %2649 = vmin.xlane.f32.xlu0 %v2648
    %v2650 = vpop.xlane.xlu0 %2649
    %v2651 = vcvt.f32.s32 %v2650
    %v2652 = vcvt.f32.s32 %v2646
    %v2653 = vshll.u32 %v2652, 16
    %v2654 = vadd.s32 %v2653, %v2651
    %vm2655 = vcmp.eq.s32.totalorder %v82, %v2654
    %v2656 = vsel %vm2655, 1, 0
    %v2657 = vcvt.s32.f32 %v2656
    %v2658 = vmul.f32 %v2657, 0.59868765
    %v2659 = vmul.f32 %v1850, 0.40131235
    %v2660 = vadd.f32 %v2659, %v2658
    %2661 = vxpose.xlu0.b32.start [1/16] %v2660, 128
    %2662 = vxpose.xlu0.b32.cont [2/16] 0.0, 128
    %2663 = vxpose.xlu0.b32.cont [3/16] 0.0, 128
    %2664 = vxpose.xlu0.b32.cont [4/16] 0.0, 128
    %2665 = vxpose.xlu0.b32.cont [5/16] 0.0, 128
    %2666 = vxpose.xlu0.b32.cont [6/16] 0.0, 128
    %2667 = vxpose.xlu0.b32.cont [7/16] 0.0, 128
    %2668 = vxpose.xlu0.b32.cont [8/16] 0.0, 128
    %2669 = vxpose.xlu0.b32.cont [9/16] 0.0, 128
    %2670 = vxpose.xlu0.b32.cont [10/16] 0.0, 128
    %2671 = vxpose.xlu0.b32.cont [11/16] 0.0, 128
    %2672 = vxpose.xlu0.b32.cont [12/16] 0.0, 128
    %2673 = vxpose.xlu0.b32.cont [13/16] 0.0, 128
    %2674 = vxpose.xlu0.b32.cont [14/16] 0.0, 128
    %2675 = vxpose.xlu0.b32.cont [15/16] 0.0, 128
    %2676 = vxpose.xlu0.b32.end [16/16] 0.0, 128
    %v2677 = vpop.trf.xlu0
    %v2678 = vpop.trf.xlu0
    %v2679 = vpop.trf.xlu0
    %v2680 = vpop.trf.xlu0
    %v2681 = vpop.trf.xlu0
    %v2682 = vpop.trf.xlu0
    %v2683 = vpop.trf.xlu0
    %v2684 = vpop.trf.xlu0
    %v2685 = vpop.trf.xlu0
    %v2686 = vpop.trf.xlu0
    %v2687 = vpop.trf.xlu0
    %v2688 = vpop.trf.xlu0
    %v2689 = vpop.trf.xlu0
    %v2690 = vpop.trf.xlu0
    %v2691 = vpop.trf.xlu0
    %v2692 = vpop.trf.xlu0
    %v2694 = vsel %vm685, %v2677, 0
    %v2697 = vsel %vm685, %v2678, 0
    %v2700 = vsel %vm685, %v2679, 0
    %v2703 = vsel %vm685, %v2680, 0
    %v2706 = vsel %vm685, %v2681, 0
    %v2709 = vsel %vm685, %v2682, 0
    %v2712 = vsel %vm685, %v2683, 0
    %v2714 = vsel %vm513, %v2601, 0
    %2716 = vmatprep.subr.mxu0 0.0
    %2717 = vmatpush1.msra.mxu0 %v2714
    %2718 = vmatprep.subr.mxu0 0.0
    %2719 = vmatpush1.msra.mxu0 0.0
    %2720 = vmatprep.subr.mxu0 0.0
    %2721 = vmatpush1.msra.mxu0 0.0
    %2722 = vmatprep.subr.mxu0 0.0
    %2723 = vmatpush1.msra.mxu0 0.0
    %2724 = vmatprep.subr.mxu0 0.0
    %2725 = vmatpush1.msra.mxu0 0.0
    %2726 = vmatprep.subr.mxu0 0.0
    %2727 = vmatpush1.msra.mxu0 0.0
    %2728 = vmatprep.subr.mxu0 0.0
    %2729 = vmatpush1.msra.mxu0 0.0
    %2730 = vmatprep.subr.mxu0 0.0
    %2731 = vmatpush1.msra.mxu0 0.0
    %2732 = vmatprep.subr.mxu0 0.0
    %2733 = vmatpush1.msra.mxu0 0.0
    %2734 = vmatprep.subr.mxu0 0.0
    %2735 = vmatpush1.msra.mxu0 0.0
    %2736 = vmatprep.subr.mxu0 0.0
    %2737 = vmatpush1.msra.mxu0 0.0
    %2738 = vmatprep.subr.mxu0 0.0
    %2739 = vmatpush1.msra.mxu0 0.0
    %2740 = vmatprep.subr.mxu0 0.0
    %2741 = vmatpush1.msra.mxu0 0.0
    %2742 = vmatprep.subr.mxu0 0.0
    %2743 = vmatpush1.msra.mxu0 0.0
    %2744 = vmatprep.subr.mxu0 0.0
    %2745 = vmatpush1.msra.mxu0 0.0
    %2746 = vmatprep.subr.mxu0 0.0
    %2747 = vmatpush1.msra.mxu0 0.0
    %2748 = vmatprep.subr.mxu0 0.0
    %2749 = vmatpush1.msra.mxu0 0.0
    %2750 = vmatprep.subr.mxu0 0.0
    %2751 = vmatpush1.msra.mxu0 0.0
    %2752 = vmatprep.subr.mxu0 0.0
    %2753 = vmatpush1.msra.mxu0 0.0
    %2754 = vmatprep.subr.mxu0 0.0
    %2755 = vmatpush1.msra.mxu0 0.0
    %2756 = vmatprep.subr.mxu0 0.0
    %2757 = vmatpush1.msra.mxu0 0.0
    %2758 = vmatprep.subr.mxu0 0.0
    %2759 = vmatpush1.msra.mxu0 0.0
    %2760 = vmatprep.subr.mxu0 0.0
    %2761 = vmatpush1.msra.mxu0 0.0
    %2762 = vmatprep.subr.mxu0 0.0
    %2763 = vmatpush1.msra.mxu0 0.0
    %2764 = vmatprep.subr.mxu0 0.0
    %2765 = vmatpush1.msra.mxu0 0.0
    %2766 = vmatprep.subr.mxu0 0.0
    %2767 = vmatpush1.msra.mxu0 0.0
    %2768 = vmatprep.subr.mxu0 0.0
    %2769 = vmatpush1.msra.mxu0 0.0
    %2770 = vmatprep.subr.mxu0 0.0
    %2771 = vmatpush1.msra.mxu0 0.0
    %2772 = vmatprep.subr.mxu0 0.0
    %2773 = vmatpush1.msra.mxu0 0.0
    %2774 = vmatprep.subr.mxu0 0.0
    %2775 = vmatpush1.msra.mxu0 0.0
    %2776 = vmatprep.subr.mxu0 0.0
    %2777 = vmatpush1.msra.mxu0 0.0
    %2778 = vmatprep.subr.mxu0 0.0
    %2779 = vmatpush1.msra.mxu0 0.0
    %2780 = vmatprep.mubr.f32.mxu0 0.0
    %2781 = vmatmul.mubr.f32.gmra.mrb[0].mxu0 %v2694
    %v2782 = vpop.f32.mrb[0].mxu0
    %v2783 = vadd.f32 0.0, %v2782
    %v2784 = vpop.f32.mrb[0].mxu0
    %2785 = vmatprep.mubr.f32.mxu0 0.0
    %2786 = vmatmul.mubr.f32.gmra.mrb[0].mxu0 %v2697
    %v2787 = vpop.f32.mrb[0].mxu0
    %v2788 = vadd.f32 0.0, %v2787
    %v2789 = vpop.f32.mrb[0].mxu0
    %2790 = vmatprep.mubr.f32.mxu0 0.0
    %2791 = vmatmul.mubr.f32.gmra.mrb[0].mxu0 %v2700
    %v2792 = vpop.f32.mrb[0].mxu0
    %v2793 = vadd.f32 0.0, %v2792
    %v2794 = vpop.f32.mrb[0].mxu0
    %2795 = vmatprep.mubr.f32.mxu0 0.0
    %2796 = vmatmul.mubr.f32.gmra.mrb[0].mxu0 %v2703
    %v2797 = vpop.f32.mrb[0].mxu0
    %v2798 = vadd.f32 0.0, %v2797
    %v2799 = vpop.f32.mrb[0].mxu0
    %2800 = vmatprep.mubr.f32.mxu0 0.0
    %2801 = vmatmul.mubr.f32.gmra.mrb[0].mxu0 %v2706
    %v2802 = vpop.f32.mrb[0].mxu0
    %v2803 = vadd.f32 0.0, %v2802
    %v2804 = vpop.f32.mrb[0].mxu0
    %2805 = vmatprep.mubr.f32.mxu0 0.0
    %2806 = vmatmul.mubr.f32.gmra.mrb[0].mxu0 %v2709
    %v2807 = vpop.f32.mrb[0].mxu0
    %v2808 = vadd.f32 0.0, %v2807
    %v2809 = vpop.f32.mrb[0].mxu0
    %2810 = vmatprep.mubr.f32.mxu0 0.0
    %2811 = vmatmul.mubr.f32.gmra.mrb[0].mxu0 %v2712
    %v2812 = vpop.f32.mrb[0].mxu0
    %v2813 = vadd.f32 0.0, %v2812
    %v2814 = vpop.f32.mrb[0].mxu0
    %2815 = vdwg.mxu0
    %v2816 = vadd.f32 %v2196, %v2783
    %v2817 = vadd.f32 %v2197, %v2788
    %v2818 = vadd.f32 %v2198, %v2793
    %v2819 = vadd.f32 %v2199, %v2798
    %v2820 = vadd.f32 %v2200, %v2803
    %v2821 = vadd.f32 %v2201, %v2808
    %v2822 = vadd.f32 %v2202, %v2813
    %v2823 = vmul.f32 %v2816, %v2816
    %v2824 = vmul.f32 %v2817, %v2817
    %v2825 = vmul.f32 %v2818, %v2818
    %v2826 = vmul.f32 %v2819, %v2819
    %v2827 = vmul.f32 %v2820, %v2820
    %v2828 = vmul.f32 %v2821, %v2821
    %v2829 = vmul.f32 %v2822, %v2822
    %v2830 = vsel %vm191, %v2823, 0.0
    %2831 = vadd.xlane.f32.xlu0 %v2830
    %v2832 = vpop.xlane.xlu0 %2831
    %v2833 = vsel %vm191, %v2824, 0.0
    %2834 = vadd.xlane.f32.xlu0 %v2833
    %v2835 = vpop.xlane.xlu0 %2834
    %v2836 = vsel %vm191, %v2825, 0.0
    %2837 = vadd.xlane.f32.xlu0 %v2836
    %v2838 = vpop.xlane.xlu0 %2837
    %v2839 = vsel %vm191, %v2826, 0.0
    %2840 = vadd.xlane.f32.xlu0 %v2839
    %v2841 = vpop.xlane.xlu0 %2840
    %v2842 = vsel %vm191, %v2827, 0.0
    %2843 = vadd.xlane.f32.xlu0 %v2842
    %v2844 = vpop.xlane.xlu0 %2843
    %v2845 = vsel %vm191, %v2828, 0.0
    %2846 = vadd.xlane.f32.xlu0 %v2845
    %v2847 = vpop.xlane.xlu0 %2846
    %v2848 = vsel %vm337, %v2829, 0.0
    %2849 = vadd.xlane.f32.xlu0 %v2848
    %v2850 = vpop.xlane.xlu0 %2849
    %v2851 = vrsqrt.pop %v2832
    %v2852 = vrsqrt.pop %v2835
    %v2853 = vrsqrt.pop %v2838
    %v2854 = vrsqrt.pop %v2841
    %v2855 = vrsqrt.pop %v2844
    %v2856 = vrsqrt.pop %v2847
    %v2857 = vrsqrt.pop %v2850
    %v2858 = vmin.f32 %v2851, 1e+12
    %v2859 = vmin.f32 %v2852, 1e+12
    %v2860 = vmin.f32 %v2853, 1e+12
    %v2861 = vmin.f32 %v2854, 1e+12
    %v2862 = vmin.f32 %v2855, 1e+12
    %v2863 = vmin.f32 %v2856, 1e+12
    %v2864 = vmin.f32 %v2857, 1e+12
    %v2865 = vmul.f32 %v2816, %v2858
    %v2866 = vmul.f32 %v2817, %v2859
    %v2867 = vmul.f32 %v2818, %v2860
    %v2868 = vmul.f32 %v2819, %v2861
    %v2869 = vmul.f32 %v2820, %v2862
    %v2870 = vmul.f32 %v2821, %v2863
    %v2871 = vmul.f32 %v2822, %v2864
    %v2872 = vmul.f32 %v2212, 0.3
    %v2873 = vadd.f32 %v2872, %v2519
    %v2874 = vadd.f32 %v2873, %v2660
    %v2875 = vmul.f32 %v2874, %v2874
    %v2876 = vsel %vm497, %v2875, 0.0
    %2877 = vadd.xlane.f32.xlu0 %v2876
    %v2878 = vpop.xlane.xlu0 %2877
    %v2879 = vrsqrt.pop %v2878
    %v2880 = vmin.f32 %v2879, 1e+12
    %v2881 = vmul.f32 %v2874, %v2880
    %v2882 = vld [vmem:[#allocation7 + $0x4] sm:$0x1]
    %v2883 = vld [vmem:[#allocation7 + $0xc] sm:$0x1]
    %v2884 = vsel %vm191, %v2601, 0
    %2886 = vmatprep.subr.mxu0 0.0
    %2887 = vmatpush1.msra.mxu0 %v77
    %2888 = vmatprep.subr.mxu0 0.0
    %2889 = vmatpush1.msra.mxu0 %v78
    %2890 = vmatprep.subr.mxu0 0.0
    %2891 = vmatpush1.msra.mxu0 %v79
    %2892 = vmatprep.subr.mxu0 0.0
    %2893 = vmatpush1.msra.mxu0 %v80
    %2894 = vmatprep.subr.mxu0 0.0
    %2895 = vmatpush1.msra.mxu0 0.0
    %2896 = vmatprep.subr.mxu0 0.0
    %2897 = vmatpush1.msra.mxu0 0.0
    %2898 = vmatprep.subr.mxu0 0.0
    %2899 = vmatpush1.msra.mxu0 0.0
    %2900 = vmatprep.subr.mxu0 0.0
    %2901 = vmatpush1.msra.mxu0 0.0
    %2902 = vmatprep.subr.mxu0 0.0
    %2903 = vmatpush1.msra.mxu0 0.0
    %2904 = vmatprep.subr.mxu0 0.0
    %2905 = vmatpush1.msra.mxu0 0.0
    %2906 = vmatprep.subr.mxu0 0.0
    %2907 = vmatpush1.msra.mxu0 0.0
    %2908 = vmatprep.subr.mxu0 0.0
    %2909 = vmatpush1.msra.mxu0 0.0
    %2910 = vmatprep.subr.mxu0 0.0
    %2911 = vmatpush1.msra.mxu0 0.0
    %2912 = vmatprep.subr.mxu0 0.0
    %2913 = vmatpush1.msra.mxu0 0.0
    %2914 = vmatprep.subr.mxu0 0.0
    %2915 = vmatpush1.msra.mxu0 0.0
    %2916 = vmatprep.subr.mxu0 0.0
    %2917 = vmatpush1.msra.mxu0 0.0
    %2918 = vmatprep.subr.mxu0 0.0
    %2919 = vmatpush1.msra.mxu0 0.0
    %2920 = vmatprep.subr.mxu0 0.0
    %2921 = vmatpush1.msra.mxu0 0.0
    %2922 = vmatprep.subr.mxu0 0.0
    %2923 = vmatpush1.msra.mxu0 0.0
    %2924 = vmatprep.subr.mxu0 0.0
    %2925 = vmatpush1.msra.mxu0 0.0
    %2926 = vmatprep.subr.mxu0 0.0
    %2927 = vmatpush1.msra.mxu0 0.0
    %2928 = vmatprep.subr.mxu0 0.0
    %2929 = vmatpush1.msra.mxu0 0.0
    %2930 = vmatprep.subr.mxu0 0.0
    %2931 = vmatpush1.msra.mxu0 0.0
    %2932 = vmatprep.subr.mxu0 0.0
    %2933 = vmatpush1.msra.mxu0 0.0
    %2934 = vmatprep.subr.mxu0 0.0
    %2935 = vmatpush1.msra.mxu0 0.0
    %2936 = vmatprep.subr.mxu0 0.0
    %2937 = vmatpush1.msra.mxu0 0.0
    %2938 = vmatprep.subr.mxu0 0.0
    %2939 = vmatpush1.msra.mxu0 0.0
    %2940 = vmatprep.subr.mxu0 0.0
    %2941 = vmatpush1.msra.mxu0 0.0
    %2942 = vmatprep.subr.mxu0 0.0
    %2943 = vmatpush1.msra.mxu0 0.0
    %2944 = vmatprep.subr.mxu0 0.0
    %2945 = vmatpush1.msra.mxu0 0.0
    %2946 = vmatprep.subr.mxu0 0.0
    %2947 = vmatpush1.msra.mxu0 0.0
    %2948 = vmatprep.subr.mxu0 0.0
    %2949 = vmatpush1.msra.mxu0 0.0
    %2950 = vmatprep.mubr.f32.mxu0 0.0
    %2951 = vmatmul.mubr.f32.gmra.mrb[0].mxu0 %v2884
    %v2952 = vpop.f32.mrb[0].mxu0
    %v2953 = vadd.f32 0.0, %v2952
    %v2954 = vpop.f32.mrb[0].mxu0
    %2955 = vdwg.mxu0
    %v2957 = vrot.slane %v2953, 1
    %v2960 = vadd.f32 %v2882, %v2953
    %v2961 = vadd.f32 %v2883, %v2957
    %v2962 = vxor.u32 %v2960, 2147483648
    %v2963 = vxor.u32 %v2961, 2147483648
    %v2964 = vmul.f32 %v2962, 1.442695
    %v2965 = vpow.pop %v2964
    %v2966 = vmul.f32 %v2963, 1.442695
    %v2967 = vpow.pop %v2966
    %v2968 = vadd.f32 %v2965, 1.0
    %v2969 = vadd.f32 %v2967, 1.0
    %v2970 = vrcp.pop %v2968
    %v2971 = vmul.f32 1.0, %v2970
    %v2972 = vrcp.pop %v2969
    %v2973 = vmul.f32 1.0, %v2972
    %v2974 = vtanh.pop %v2960
    %v2975 = vtanh.pop %v2961
    %v2976 = vmul.f32 %v2971, %v2327
    %v2977 = vmul.f32 %v2973, %v2328
    %2980 = vrot.lane.b32.xlu0 %v2974, 64
    %v2981 = vpop.permute.xlu0 %2980
    %2982 = vrot.lane.b32.xlu0 %v2975, 64
    %v2983 = vpop.permute.xlu0 %2982
    %v2986 = vmul.f32 %v2971, %v2981
    %v2987 = vmul.f32 %v2973, %v2983
    %2990 = vrot.lane.b32.xlu0 %v2986, 32
    %v2991 = vpop.permute.xlu0 %2990
    %2992 = vrot.lane.b32.xlu0 %v2987, 32
    %v2993 = vpop.permute.xlu0 %2992
    %v2996 = vadd.f32 %v2976, %v2991
    %v2997 = vadd.f32 %v2977, %v2993
    %v2998 = vtanh.pop %v2996
    %v2999 = vtanh.pop %v2997
    %3002 = vrot.lane.b32.xlu0 %v2998, 64
    %v3003 = vpop.permute.xlu0 %3002
    %3004 = vrot.lane.b32.xlu0 %v2999, 64
    %v3005 = vpop.permute.xlu0 %3004
    %v3008 = vmul.f32 %v2971, %v3003
    %v3009 = vmul.f32 %v2973, %v3005
    %v3010 = vmul.f32 %v3008, %v3008
    %v3011 = vmul.f32 %v3009, %v3009
    %v3014 = vrot.slane %v3011, 7
    %v3015 = vsel %vm332, %v3014, %v3010
    %3016 = vrot.lane.b32.xlu0 %v3015, 32
    %v3017 = vpop.permute.xlu0 %3016
    %v3019 = vsel %vm337, %v3017, 0.0
    %3020 = vadd.xlane.f32.xlu0 %v3019
    %v3021 = vpop.xlane.xlu0 %3020
    %v3022 = vadd.f32 %v3021, 1e-16
    %v3023 = vrsqrt.pop %v3022
    %v3025 = vrot.slane %v3023, 1
    %v3028 = vmul.f32 %v3008, %v3023
    %v3029 = vmul.f32 %v3009, %v3025
    %v3030 = vmul.f32 %v2865, %v2865
    %v3031 = vmul.f32 %v2866, %v2866
    %v3032 = vmul.f32 %v2867, %v2867
    %v3033 = vmul.f32 %v2868, %v2868
    %v3034 = vmul.f32 %v2869, %v2869
    %v3035 = vmul.f32 %v2870, %v2870
    %v3036 = vmul.f32 %v2871, %v2871
    %v3037 = vsel %vm191, %v3030, 0.0
    %3038 = vadd.xlane.f32.xlu0 %v3037
    %v3039 = vpop.xlane.xlu0 %3038
    %v3040 = vsel %vm191, %v3031, 0.0
    %3041 = vadd.xlane.f32.xlu0 %v3040
    %v3042 = vpop.xlane.xlu0 %3041
    %v3043 = vsel %vm191, %v3032, 0.0
    %3044 = vadd.xlane.f32.xlu0 %v3043
    %v3045 = vpop.xlane.xlu0 %3044
    %v3046 = vsel %vm191, %v3033, 0.0
    %3047 = vadd.xlane.f32.xlu0 %v3046
    %v3048 = vpop.xlane.xlu0 %3047
    %v3049 = vsel %vm191, %v3034, 0.0
    %3050 = vadd.xlane.f32.xlu0 %v3049
    %v3051 = vpop.xlane.xlu0 %3050
    %v3052 = vsel %vm191, %v3035, 0.0
    %3053 = vadd.xlane.f32.xlu0 %v3052
    %v3054 = vpop.xlane.xlu0 %3053
    %v3055 = vsel %vm337, %v3036, 0.0
    %3056 = vadd.xlane.f32.xlu0 %v3055
    %v3057 = vpop.xlane.xlu0 %3056
    %v3058 = vadd.f32 %v3039, 1e-16
    %v3059 = vadd.f32 %v3042, 1e-16
    %v3060 = vadd.f32 %v3045, 1e-16
    %v3061 = vadd.f32 %v3048, 1e-16
    %v3062 = vadd.f32 %v3051, 1e-16
    %v3063 = vadd.f32 %v3054, 1e-16
    %v3064 = vadd.f32 %v3057, 1e-16
    %v3065 = vrsqrt.pop %v3058
    %v3066 = vrsqrt.pop %v3059
    %v3067 = vrsqrt.pop %v3060
    %v3068 = vrsqrt.pop %v3061
    %v3069 = vrsqrt.pop %v3062
    %v3070 = vrsqrt.pop %v3063
    %v3071 = vrsqrt.pop %v3064
    %v3072 = vmul.f32 %v2865, %v3065
    %v3073 = vmul.f32 %v2866, %v3066
    %v3074 = vmul.f32 %v2867, %v3067
    %v3075 = vmul.f32 %v2868, %v3068
    %v3076 = vmul.f32 %v2869, %v3069
    %v3077 = vmul.f32 %v2870, %v3070
    %v3078 = vmul.f32 %v2871, %v3071
    %v3081 = vrot.slane %v3029, 7
    %v3082 = vsel %vm332, %v3081, %v3028
    %3083 = vrot.lane.b32.xlu0 %v3082, 32
    %v3084 = vpop.permute.xlu0 %3083
    %v3085 = vsel %vm191, %v3084, 0
    %v3088 = vsel %vm191, %v3072, 0
    %v3091 = vsel %vm191, %v3073, 0
    %v3094 = vsel %vm191, %v3074, 0
    %v3097 = vsel %vm191, %v3075, 0
    %v3100 = vsel %vm191, %v3076, 0
    %v3103 = vsel %vm191, %v3077, 0
    %v3106 = vsel %vm191, %v3078, 0
    %3108 = vmatprep.subr.mxu0 0.0
    %3109 = vmatpush1.xpose.msra.mxu0 %v3088
    %3110 = vmatprep.subr.mxu0 0.0
    %3111 = vmatpush1.xpose.msra.mxu0 %v3091
    %3112 = vmatprep.subr.mxu0 0.0
    %3113 = vmatpush1.xpose.msra.mxu0 %v3094
    %3114 = vmatprep.subr.mxu0 0.0
    %3115 = vmatpush1.xpose.msra.mxu0 %v3097
    %3116 = vmatprep.subr.mxu0 0.0
    %3117 = vmatpush1.xpose.msra.mxu0 %v3100
    %3118 = vmatprep.subr.mxu0 0.0
    %3119 = vmatpush1.xpose.msra.mxu0 %v3103
    %3120 = vmatprep.subr.mxu0 0.0
    %3121 = vmatpush1.xpose.msra.mxu0 %v3106
    %3122 = vmatprep.subr.mxu0 0.0
    %3123 = vmatpush1.xpose.msra.mxu0 0.0
    %3124 = vmatprep.subr.mxu0 0.0
    %3125 = vmatpush1.xpose.msra.mxu0 0.0
    %3126 = vmatprep.subr.mxu0 0.0
    %3127 = vmatpush1.xpose.msra.mxu0 0.0
    %3128 = vmatprep.subr.mxu0 0.0
    %3129 = vmatpush1.xpose.msra.mxu0 0.0
    %3130 = vmatprep.subr.mxu0 0.0
    %3131 = vmatpush1.xpose.msra.mxu0 0.0
    %3132 = vmatprep.subr.mxu0 0.0
    %3133 = vmatpush1.xpose.msra.mxu0 0.0
    %3134 = vmatprep.subr.mxu0 0.0
    %3135 = vmatpush1.xpose.msra.mxu0 0.0
    %3136 = vmatprep.subr.mxu0 0.0
    %3137 = vmatpush1.xpose.msra.mxu0 0.0
    %3138 = vmatprep.subr.mxu0 0.0
    %3139 = vmatpush1.xpose.msra.mxu0 0.0
    %3140 = vmatprep.subr.mxu0 0.0
    %3141 = vmatpush1.xpose.msra.mxu0 0.0
    %3142 = vmatprep.subr.mxu0 0.0
    %3143 = vmatpush1.xpose.msra.mxu0 0.0
    %3144 = vmatprep.subr.mxu0 0.0
    %3145 = vmatpush1.xpose.msra.mxu0 0.0
    %3146 = vmatprep.subr.mxu0 0.0
    %3147 = vmatpush1.xpose.msra.mxu0 0.0
    %3148 = vmatprep.subr.mxu0 0.0
    %3149 = vmatpush1.xpose.msra.mxu0 0.0
    %3150 = vmatprep.subr.mxu0 0.0
    %3151 = vmatpush1.xpose.msra.mxu0 0.0
    %3152 = vmatprep.subr.mxu0 0.0
    %3153 = vmatpush1.xpose.msra.mxu0 0.0
    %3154 = vmatprep.subr.mxu0 0.0
    %3155 = vmatpush1.xpose.msra.mxu0 0.0
    %3156 = vmatprep.subr.mxu0 0.0
    %3157 = vmatpush1.xpose.msra.mxu0 0.0
    %3158 = vmatprep.subr.mxu0 0.0
    %3159 = vmatpush1.xpose.msra.mxu0 0.0
    %3160 = vmatprep.subr.mxu0 0.0
    %3161 = vmatpush1.xpose.msra.mxu0 0.0
    %3162 = vmatprep.subr.mxu0 0.0
    %3163 = vmatpush1.xpose.msra.mxu0 0.0
    %3164 = vmatprep.subr.mxu0 0.0
    %3165 = vmatpush1.xpose.msra.mxu0 0.0
    %3166 = vmatprep.subr.mxu0 0.0
    %3167 = vmatpush1.xpose.msra.mxu0 0.0
    %3168 = vmatprep.subr.mxu0 0.0
    %3169 = vmatpush1.xpose.msra.mxu0 0.0
    %3170 = vmatprep.subr.mxu0 0.0
    %3171 = vmatpush1.xpose.msra.mxu0 0.0
    %3172 = vmatprep.mubr.f32.mxu0 0.0
    %3173 = vmatmul.mubr.f32.gmra.mrb[0].mxu0 %v3085
    %v3174 = vpop.f32.mrb[0].mxu0
    %v3175 = vadd.f32 0.0, %v3174
    %v3176 = vpop.f32.mrb[0].mxu0
    %3177 = vdwg.mxu0
    %v3178 = vsel %vm497, %v3175, -inf
    %3179 = vmax.xlane.f32.xlu0 %v3178
    %v3180 = vpop.xlane.xlu0 %3179
    %v3181 = vsub.f32 %v3175, %v3180
    %v3182 = vmul.f32 %v3181, 1.442695
    %v3183 = vpow.pop %v3182
    %v3184 = vsel %vm497, %v3183, 0.0
    %3185 = vadd.xlane.f32.xlu0 %v3184
    %v3186 = vpop.xlane.xlu0 %3185
    %v3187 = vrcp.pop %v3186
    %v3188 = vmul.f32 %v3183, %v3187
    %v3190 = vsel %vm509, %v3188, 0
    %v3193 = vsel %vm513, %v2871, 0
    %3195 = vmatprep.subr.mxu0 0.0
    %3196 = vmatpush1.msra.mxu0 %v2865
    %3197 = vmatprep.subr.mxu0 0.0
    %3198 = vmatpush1.msra.mxu0 %v2866
    %3199 = vmatprep.subr.mxu0 0.0
    %3200 = vmatpush1.msra.mxu0 %v2867
    %3201 = vmatprep.subr.mxu0 0.0
    %3202 = vmatpush1.msra.mxu0 %v2868
    %3203 = vmatprep.subr.mxu0 0.0
    %3204 = vmatpush1.msra.mxu0 %v2869
    %3205 = vmatprep.subr.mxu0 0.0
    %3206 = vmatpush1.msra.mxu0 %v2870
    %3207 = vmatprep.subr.mxu0 0.0
    %3208 = vmatpush1.msra.mxu0 %v3193
    %3209 = vmatprep.subr.mxu0 0.0
    %3210 = vmatpush1.msra.mxu0 0.0
    %3211 = vmatprep.subr.mxu0 0.0
    %3212 = vmatpush1.msra.mxu0 0.0
    %3213 = vmatprep.subr.mxu0 0.0
    %3214 = vmatpush1.msra.mxu0 0.0
    %3215 = vmatprep.subr.mxu0 0.0
    %3216 = vmatpush1.msra.mxu0 0.0
    %3217 = vmatprep.subr.mxu0 0.0
    %3218 = vmatpush1.msra.mxu0 0.0
    %3219 = vmatprep.subr.mxu0 0.0
    %3220 = vmatpush1.msra.mxu0 0.0
    %3221 = vmatprep.subr.mxu0 0.0
    %3222 = vmatpush1.msra.mxu0 0.0
    %3223 = vmatprep.subr.mxu0 0.0
    %3224 = vmatpush1.msra.mxu0 0.0
    %3225 = vmatprep.subr.mxu0 0.0
    %3226 = vmatpush1.msra.mxu0 0.0
    %3227 = vmatprep.subr.mxu0 0.0
    %3228 = vmatpush1.msra.mxu0 0.0
    %3229 = vmatprep.subr.mxu0 0.0
    %3230 = vmatpush1.msra.mxu0 0.0
    %3231 = vmatprep.subr.mxu0 0.0
    %3232 = vmatpush1.msra.mxu0 0.0
    %3233 = vmatprep.subr.mxu0 0.0
    %3234 = vmatpush1.msra.mxu0 0.0
    %3235 = vmatprep.subr.mxu0 0.0
    %3236 = vmatpush1.msra.mxu0 0.0
    %3237 = vmatprep.subr.mxu0 0.0
    %3238 = vmatpush1.msra.mxu0 0.0
    %3239 = vmatprep.subr.mxu0 0.0
    %3240 = vmatpush1.msra.mxu0 0.0
    %3241 = vmatprep.subr.mxu0 0.0
    %3242 = vmatpush1.msra.mxu0 0.0
    %3243 = vmatprep.subr.mxu0 0.0
    %3244 = vmatpush1.msra.mxu0 0.0
    %3245 = vmatprep.subr.mxu0 0.0
    %3246 = vmatpush1.msra.mxu0 0.0
    %3247 = vmatprep.subr.mxu0 0.0
    %3248 = vmatpush1.msra.mxu0 0.0
    %3249 = vmatprep.subr.mxu0 0.0
    %3250 = vmatpush1.msra.mxu0 0.0
    %3251 = vmatprep.subr.mxu0 0.0
    %3252 = vmatpush1.msra.mxu0 0.0
    %3253 = vmatprep.subr.mxu0 0.0
    %3254 = vmatpush1.msra.mxu0 0.0
    %3255 = vmatprep.subr.mxu0 0.0
    %3256 = vmatpush1.msra.mxu0 0.0
    %3257 = vmatprep.subr.mxu0 0.0
    %3258 = vmatpush1.msra.mxu0 0.0
    %3259 = vmatprep.mubr.f32.mxu0 0.0
    %3260 = vmatmul.mubr.f32.gmra.mrb[0].mxu0 %v3190
    %v3261 = vpop.f32.mrb[0].mxu0
    %v3262 = vadd.f32 0.0, %v3261
    %v3263 = vpop.f32.mrb[0].mxu0
    %3264 = vdwg.mxu0
    %v3267 = vrot.slane %v3009, 7
    %v3268 = vsel %vm332, %v3267, %v3008
    %3269 = vrot.lane.b32.xlu0 %v3268, 32
    %v3270 = vpop.permute.xlu0 %3269
    %3273 = vrot.lane.b32.xlu0 %v3262, 32
    %v3274 = vpop.permute.xlu0 %3273
    %v3276 = vsel %vm191, %v3270, %v3274
    %v3279 = vunpack.c.l.s4 1966171168
    %v3280 = vunpack.c.0.s8 %v3279
    %v3281 = vlaneseq
    %v3282 = vshrl.u32 %v3281, 7
    %v3283 = vsub.s32 %v3280, %v3282
    %v3284 = vrot.slane %v3276, %v3283
    %v3285 = vcombine.high %v3284, %v3284
    %v3287 = vunpack.c.l.s4 1966171168
    %v3288 = vunpack.c.0.s8 %v3287
    %v3289 = vlaneseq
    %v3290 = vshrl.u32 %v3289, 7
    %v3291 = vsub.s32 %v3288, %v3290
    %v3292 = vrot.slane %v3284, %v3291
    %v3294 = vunpack.c.l.s4 1966171168
    %v3295 = vunpack.c.0.s8 %v3294
    %v3296 = vlaneseq
    %v3297 = vshrl.u32 %v3296, 7
    %v3298 = vsub.s32 %v3295, %v3297
    %v3299 = vrot.slane %v3285, %v3298
    %3302 = vst.msk [vmem:[#allocation14 + $0x4] sm:$0x1] %vm624, %v3292
    %3303 = vst.msk [vmem:[#allocation14 + $0xc] sm:$0x1] %vm624, %v3299
    %v3304 = vsel %vm497, %v2881, inf
    %3305 = vmin.xlane.f32.xlu0 %v3304
    %v3306 = vpop.xlane.xlu0 %3305
    %vm3307 = vcmp.eq.f32.partialorder %v2881, %v3306
    %v3308 = vsel %vm3307, %v82, 50
    %v3309 = vsel %vm497, %v3308, 2147483647
    %v3310 = vand.u32 %v3309, 65535
    %v3311 = vshra.s32 %v3309, 16
    %v3312 = vcvt.s32.f32 %v3310
    %v3313 = vcvt.s32.f32 %v3311
    %3314 = vmin.xlane.f32.xlu0 %v3313
    %v3315 = vpop.xlane.xlu0 %3314
    %vm3316 = vcmp.eq.f32.partialorder %v3313, %v3315
    %v3317 = vsel %vm3316, %v3312, inf
    %3318 = vmin.xlane.f32.xlu0 %v3317
    %v3319 = vpop.xlane.xlu0 %3318
    %v3320 = vcvt.f32.s32 %v3319
    %v3321 = vcvt.f32.s32 %v3315
    %v3322 = vshll.u32 %v3321, 16
    %v3323 = vadd.s32 %v3322, %v3320
    %vm3324 = vcmp.eq.s32.totalorder %v82, %v3323
    %v3325 = vsel %vm3324, 1, 0
    %v3326 = vcvt.s32.f32 %v3325
    %v3327 = vmul.f32 %v3326, 0.59868765
    %v3328 = vmul.f32 %v2519, 0.40131235
    %v3329 = vadd.f32 %v3328, %v3327
    %3330 = vxpose.xlu0.b32.start [1/16] %v3329, 128
    %3331 = vxpose.xlu0.b32.cont [2/16] 0.0, 128
    %3332 = vxpose.xlu0.b32.cont [3/16] 0.0, 128
    %3333 = vxpose.xlu0.b32.cont [4/16] 0.0, 128
    %3334 = vxpose.xlu0.b32.cont [5/16] 0.0, 128
    %3335 = vxpose.xlu0.b32.cont [6/16] 0.0, 128
    %3336 = vxpose.xlu0.b32.cont [7/16] 0.0, 128
    %3337 = vxpose.xlu0.b32.cont [8/16] 0.0, 128
    %3338 = vxpose.xlu0.b32.cont [9/16] 0.0, 128
    %3339 = vxpose.xlu0.b32.cont [10/16] 0.0, 128
    %3340 = vxpose.xlu0.b32.cont [11/16] 0.0, 128
    %3341 = vxpose.xlu0.b32.cont [12/16] 0.0, 128
    %3342 = vxpose.xlu0.b32.cont [13/16] 0.0, 128
    %3343 = vxpose.xlu0.b32.cont [14/16] 0.0, 128
    %3344 = vxpose.xlu0.b32.cont [15/16] 0.0, 128
    %3345 = vxpose.xlu0.b32.end [16/16] 0.0, 128
    %v3346 = vpop.trf.xlu0
    %v3347 = vpop.trf.xlu0
    %v3348 = vpop.trf.xlu0
    %v3349 = vpop.trf.xlu0
    %v3350 = vpop.trf.xlu0
    %v3351 = vpop.trf.xlu0
    %v3352 = vpop.trf.xlu0
    %v3353 = vpop.trf.xlu0
    %v3354 = vpop.trf.xlu0
    %v3355 = vpop.trf.xlu0
    %v3356 = vpop.trf.xlu0
    %v3357 = vpop.trf.xlu0
    %v3358 = vpop.trf.xlu0
    %v3359 = vpop.trf.xlu0
    %v3360 = vpop.trf.xlu0
    %v3361 = vpop.trf.xlu0
    %v3363 = vsel %vm685, %v3346, 0
    %v3366 = vsel %vm685, %v3347, 0
    %v3369 = vsel %vm685, %v3348, 0
    %v3372 = vsel %vm685, %v3349, 0
    %v3375 = vsel %vm685, %v3350, 0
    %v3378 = vsel %vm685, %v3351, 0
    %v3381 = vsel %vm685, %v3352, 0
    %v3383 = vsel %vm513, %v3270, 0
    %3385 = vmatprep.subr.mxu0 0.0
    %3386 = vmatpush1.msra.mxu0 %v3383
    %3387 = vmatprep.subr.mxu0 0.0
    %3388 = vmatpush1.msra.mxu0 0.0
    %3389 = vmatprep.subr.mxu0 0.0
    %3390 = vmatpush1.msra.mxu0 0.0
    %3391 = vmatprep.subr.mxu0 0.0
    %3392 = vmatpush1.msra.mxu0 0.0
    %3393 = vmatprep.subr.mxu0 0.0
    %3394 = vmatpush1.msra.mxu0 0.0
    %3395 = vmatprep.subr.mxu0 0.0
    %3396 = vmatpush1.msra.mxu0 0.0
    %3397 = vmatprep.subr.mxu0 0.0
    %3398 = vmatpush1.msra.mxu0 0.0
    %3399 = vmatprep.subr.mxu0 0.0
    %3400 = vmatpush1.msra.mxu0 0.0
    %3401 = vmatprep.subr.mxu0 0.0
    %3402 = vmatpush1.msra.mxu0 0.0
    %3403 = vmatprep.subr.mxu0 0.0
    %3404 = vmatpush1.msra.mxu0 0.0
    %3405 = vmatprep.subr.mxu0 0.0
    %3406 = vmatpush1.msra.mxu0 0.0
    %3407 = vmatprep.subr.mxu0 0.0
    %3408 = vmatpush1.msra.mxu0 0.0
    %3409 = vmatprep.subr.mxu0 0.0
    %3410 = vmatpush1.msra.mxu0 0.0
    %3411 = vmatprep.subr.mxu0 0.0
    %3412 = vmatpush1.msra.mxu0 0.0
    %3413 = vmatprep.subr.mxu0 0.0
    %3414 = vmatpush1.msra.mxu0 0.0
    %3415 = vmatprep.subr.mxu0 0.0
    %3416 = vmatpush1.msra.mxu0 0.0
    %3417 = vmatprep.subr.mxu0 0.0
    %3418 = vmatpush1.msra.mxu0 0.0
    %3419 = vmatprep.subr.mxu0 0.0
    %3420 = vmatpush1.msra.mxu0 0.0
    %3421 = vmatprep.subr.mxu0 0.0
    %3422 = vmatpush1.msra.mxu0 0.0
    %3423 = vmatprep.subr.mxu0 0.0
    %3424 = vmatpush1.msra.mxu0 0.0
    %3425 = vmatprep.subr.mxu0 0.0
    %3426 = vmatpush1.msra.mxu0 0.0
    %3427 = vmatprep.subr.mxu0 0.0
    %3428 = vmatpush1.msra.mxu0 0.0
    %3429 = vmatprep.subr.mxu0 0.0
    %3430 = vmatpush1.msra.mxu0 0.0
    %3431 = vmatprep.subr.mxu0 0.0
    %3432 = vmatpush1.msra.mxu0 0.0
    %3433 = vmatprep.subr.mxu0 0.0
    %3434 = vmatpush1.msra.mxu0 0.0
    %3435 = vmatprep.subr.mxu0 0.0
    %3436 = vmatpush1.msra.mxu0 0.0
    %3437 = vmatprep.subr.mxu0 0.0
    %3438 = vmatpush1.msra.mxu0 0.0
    %3439 = vmatprep.subr.mxu0 0.0
    %3440 = vmatpush1.msra.mxu0 0.0
    %3441 = vmatprep.subr.mxu0 0.0
    %3442 = vmatpush1.msra.mxu0 0.0
    %3443 = vmatprep.subr.mxu0 0.0
    %3444 = vmatpush1.msra.mxu0 0.0
    %3445 = vmatprep.subr.mxu0 0.0
    %3446 = vmatpush1.msra.mxu0 0.0
    %3447 = vmatprep.subr.mxu0 0.0
    %3448 = vmatpush1.msra.mxu0 0.0
    %3449 = vmatprep.mubr.f32.mxu0 0.0
    %3450 = vmatmul.mubr.f32.gmra.mrb[0].mxu0 %v3363
    %v3451 = vpop.f32.mrb[0].mxu0
    %v3452 = vadd.f32 0.0, %v3451
    %v3453 = vpop.f32.mrb[0].mxu0
    %3454 = vmatprep.mubr.f32.mxu0 0.0
    %3455 = vmatmul.mubr.f32.gmra.mrb[0].mxu0 %v3366
    %v3456 = vpop.f32.mrb[0].mxu0
    %v3457 = vadd.f32 0.0, %v3456
    %v3458 = vpop.f32.mrb[0].mxu0
    %3459 = vmatprep.mubr.f32.mxu0 0.0
    %3460 = vmatmul.mubr.f32.gmra.mrb[0].mxu0 %v3369
    %v3461 = vpop.f32.mrb[0].mxu0
    %v3462 = vadd.f32 0.0, %v3461
    %v3463 = vpop.f32.mrb[0].mxu0
    %3464 = vmatprep.mubr.f32.mxu0 0.0
    %3465 = vmatmul.mubr.f32.gmra.mrb[0].mxu0 %v3372
    %v3466 = vpop.f32.mrb[0].mxu0
    %v3467 = vadd.f32 0.0, %v3466
    %v3468 = vpop.f32.mrb[0].mxu0
    %3469 = vmatprep.mubr.f32.mxu0 0.0
    %3470 = vmatmul.mubr.f32.gmra.mrb[0].mxu0 %v3375
    %v3471 = vpop.f32.mrb[0].mxu0
    %v3472 = vadd.f32 0.0, %v3471
    %v3473 = vpop.f32.mrb[0].mxu0
    %3474 = vmatprep.mubr.f32.mxu0 0.0
    %3475 = vmatmul.mubr.f32.gmra.mrb[0].mxu0 %v3378
    %v3476 = vpop.f32.mrb[0].mxu0
    %v3477 = vadd.f32 0.0, %v3476
    %v3478 = vpop.f32.mrb[0].mxu0
    %3479 = vmatprep.mubr.f32.mxu0 0.0
    %3480 = vmatmul.mubr.f32.gmra.mrb[0].mxu0 %v3381
    %v3481 = vpop.f32.mrb[0].mxu0
    %v3482 = vadd.f32 0.0, %v3481
    %v3483 = vpop.f32.mrb[0].mxu0
    %3484 = vdwg.mxu0
    %v3485 = vadd.f32 %v2865, %v3452
    %v3486 = vadd.f32 %v2866, %v3457
    %v3487 = vadd.f32 %v2867, %v3462
    %v3488 = vadd.f32 %v2868, %v3467
    %v3489 = vadd.f32 %v2869, %v3472
    %v3490 = vadd.f32 %v2870, %v3477
    %v3491 = vadd.f32 %v2871, %v3482
    %v3492 = vmul.f32 %v3485, %v3485
    %v3493 = vmul.f32 %v3486, %v3486
    %v3494 = vmul.f32 %v3487, %v3487
    %v3495 = vmul.f32 %v3488, %v3488
    %v3496 = vmul.f32 %v3489, %v3489
    %v3497 = vmul.f32 %v3490, %v3490
    %v3498 = vmul.f32 %v3491, %v3491
    %v3499 = vsel %vm191, %v3492, 0.0
    %3500 = vadd.xlane.f32.xlu0 %v3499
    %v3501 = vpop.xlane.xlu0 %3500
    %v3502 = vsel %vm191, %v3493, 0.0
    %3503 = vadd.xlane.f32.xlu0 %v3502
    %v3504 = vpop.xlane.xlu0 %3503
    %v3505 = vsel %vm191, %v3494, 0.0
    %3506 = vadd.xlane.f32.xlu0 %v3505
    %v3507 = vpop.xlane.xlu0 %3506
    %v3508 = vsel %vm191, %v3495, 0.0
    %3509 = vadd.xlane.f32.xlu0 %v3508
    %v3510 = vpop.xlane.xlu0 %3509
    %v3511 = vsel %vm191, %v3496, 0.0
    %3512 = vadd.xlane.f32.xlu0 %v3511
    %v3513 = vpop.xlane.xlu0 %3512
    %v3514 = vsel %vm191, %v3497, 0.0
    %3515 = vadd.xlane.f32.xlu0 %v3514
    %v3516 = vpop.xlane.xlu0 %3515
    %v3517 = vsel %vm337, %v3498, 0.0
    %3518 = vadd.xlane.f32.xlu0 %v3517
    %v3519 = vpop.xlane.xlu0 %3518
    %v3520 = vrsqrt.pop %v3501
    %v3521 = vrsqrt.pop %v3504
    %v3522 = vrsqrt.pop %v3507
    %v3523 = vrsqrt.pop %v3510
    %v3524 = vrsqrt.pop %v3513
    %v3525 = vrsqrt.pop %v3516
    %v3526 = vrsqrt.pop %v3519
    %v3527 = vmin.f32 %v3520, 1e+12
    %v3528 = vmin.f32 %v3521, 1e+12
    %v3529 = vmin.f32 %v3522, 1e+12
    %v3530 = vmin.f32 %v3523, 1e+12
    %v3531 = vmin.f32 %v3524, 1e+12
    %v3532 = vmin.f32 %v3525, 1e+12
    %v3533 = vmin.f32 %v3526, 1e+12
    %v3534 = vmul.f32 %v3485, %v3527
    %v3535 = vmul.f32 %v3486, %v3528
    %v3536 = vmul.f32 %v3487, %v3529
    %v3537 = vmul.f32 %v3488, %v3530
    %v3538 = vmul.f32 %v3489, %v3531
    %v3539 = vmul.f32 %v3490, %v3532
    %v3540 = vmul.f32 %v3491, %v3533
    %v3541 = vmul.f32 %v2881, 0.3
    %v3542 = vadd.f32 %v3541, %v3188
    %v3543 = vadd.f32 %v3542, %v3329
    %v3544 = vmul.f32 %v3543, %v3543
    %v3545 = vsel %vm497, %v3544, 0.0
    %3546 = vadd.xlane.f32.xlu0 %v3545
    %v3547 = vpop.xlane.xlu0 %3546
    %v3548 = vrsqrt.pop %v3547
    %v3549 = vmin.f32 %v3548, 1e+12
    %v3550 = vmul.f32 %v3543, %v3549
    %v3551 = vld [vmem:[#allocation7 + $0x5] sm:$0x1]
    %v3552 = vld [vmem:[#allocation7 + $0xd] sm:$0x1]
    %v3553 = vsel %vm191, %v3270, 0
    %3555 = vmatprep.subr.mxu0 0.0
    %3556 = vmatpush1.msra.mxu0 %v77
    %3557 = vmatprep.subr.mxu0 0.0
    %3558 = vmatpush1.msra.mxu0 %v78
    %3559 = vmatprep.subr.mxu0 0.0
    %3560 = vmatpush1.msra.mxu0 %v79
    %3561 = vmatprep.subr.mxu0 0.0
    %3562 = vmatpush1.msra.mxu0 %v80
    %3563 = vmatprep.subr.mxu0 0.0
    %3564 = vmatpush1.msra.mxu0 0.0
    %3565 = vmatprep.subr.mxu0 0.0
    %3566 = vmatpush1.msra.mxu0 0.0
    %3567 = vmatprep.subr.mxu0 0.0
    %3568 = vmatpush1.msra.mxu0 0.0
    %3569 = vmatprep.subr.mxu0 0.0
    %3570 = vmatpush1.msra.mxu0 0.0
    %3571 = vmatprep.subr.mxu0 0.0
    %3572 = vmatpush1.msra.mxu0 0.0
    %3573 = vmatprep.subr.mxu0 0.0
    %3574 = vmatpush1.msra.mxu0 0.0
    %3575 = vmatprep.subr.mxu0 0.0
    %3576 = vmatpush1.msra.mxu0 0.0
    %3577 = vmatprep.subr.mxu0 0.0
    %3578 = vmatpush1.msra.mxu0 0.0
    %3579 = vmatprep.subr.mxu0 0.0
    %3580 = vmatpush1.msra.mxu0 0.0
    %3581 = vmatprep.subr.mxu0 0.0
    %3582 = vmatpush1.msra.mxu0 0.0
    %3583 = vmatprep.subr.mxu0 0.0
    %3584 = vmatpush1.msra.mxu0 0.0
    %3585 = vmatprep.subr.mxu0 0.0
    %3586 = vmatpush1.msra.mxu0 0.0
    %3587 = vmatprep.subr.mxu0 0.0
    %3588 = vmatpush1.msra.mxu0 0.0
    %3589 = vmatprep.subr.mxu0 0.0
    %3590 = vmatpush1.msra.mxu0 0.0
    %3591 = vmatprep.subr.mxu0 0.0
    %3592 = vmatpush1.msra.mxu0 0.0
    %3593 = vmatprep.subr.mxu0 0.0
    %3594 = vmatpush1.msra.mxu0 0.0
    %3595 = vmatprep.subr.mxu0 0.0
    %3596 = vmatpush1.msra.mxu0 0.0
    %3597 = vmatprep.subr.mxu0 0.0
    %3598 = vmatpush1.msra.mxu0 0.0
    %3599 = vmatprep.subr.mxu0 0.0
    %3600 = vmatpush1.msra.mxu0 0.0
    %3601 = vmatprep.subr.mxu0 0.0
    %3602 = vmatpush1.msra.mxu0 0.0
    %3603 = vmatprep.subr.mxu0 0.0
    %3604 = vmatpush1.msra.mxu0 0.0
    %3605 = vmatprep.subr.mxu0 0.0
    %3606 = vmatpush1.msra.mxu0 0.0
    %3607 = vmatprep.subr.mxu0 0.0
    %3608 = vmatpush1.msra.mxu0 0.0
    %3609 = vmatprep.subr.mxu0 0.0
    %3610 = vmatpush1.msra.mxu0 0.0
    %3611 = vmatprep.subr.mxu0 0.0
    %3612 = vmatpush1.msra.mxu0 0.0
    %3613 = vmatprep.subr.mxu0 0.0
    %3614 = vmatpush1.msra.mxu0 0.0
    %3615 = vmatprep.subr.mxu0 0.0
    %3616 = vmatpush1.msra.mxu0 0.0
    %3617 = vmatprep.subr.mxu0 0.0
    %3618 = vmatpush1.msra.mxu0 0.0
    %3619 = vmatprep.mubr.f32.mxu0 0.0
    %3620 = vmatmul.mubr.f32.gmra.mrb[0].mxu0 %v3553
    %v3621 = vpop.f32.mrb[0].mxu0
    %v3622 = vadd.f32 0.0, %v3621
    %v3623 = vpop.f32.mrb[0].mxu0
    %3624 = vdwg.mxu0
    %v3626 = vrot.slane %v3622, 1
    %v3629 = vadd.f32 %v3551, %v3622
    %v3630 = vadd.f32 %v3552, %v3626
    %v3631 = vxor.u32 %v3629, 2147483648
    %v3632 = vxor.u32 %v3630, 2147483648
    %v3633 = vmul.f32 %v3631, 1.442695
    %v3634 = vpow.pop %v3633
    %v3635 = vmul.f32 %v3632, 1.442695
    %v3636 = vpow.pop %v3635
    %v3637 = vadd.f32 %v3634, 1.0
    %v3638 = vadd.f32 %v3636, 1.0
    %v3639 = vrcp.pop %v3637
    %v3640 = vmul.f32 1.0, %v3639
    %v3641 = vrcp.pop %v3638
    %v3642 = vmul.f32 1.0, %v3641
    %v3643 = vtanh.pop %v3629
    %v3644 = vtanh.pop %v3630
    %v3645 = vmul.f32 %v3640, %v2996
    %v3646 = vmul.f32 %v3642, %v2997
    %3649 = vrot.lane.b32.xlu0 %v3643, 64
    %v3650 = vpop.permute.xlu0 %3649
    %3651 = vrot.lane.b32.xlu0 %v3644, 64
    %v3652 = vpop.permute.xlu0 %3651
    %v3655 = vmul.f32 %v3640, %v3650
    %v3656 = vmul.f32 %v3642, %v3652
    %3659 = vrot.lane.b32.xlu0 %v3655, 32
    %v3660 = vpop.permute.xlu0 %3659
    %3661 = vrot.lane.b32.xlu0 %v3656, 32
    %v3662 = vpop.permute.xlu0 %3661
    %v3665 = vadd.f32 %v3645, %v3660
    %v3666 = vadd.f32 %v3646, %v3662
    %v3667 = vtanh.pop %v3665
    %v3668 = vtanh.pop %v3666
    %3671 = vrot.lane.b32.xlu0 %v3667, 64
    %v3672 = vpop.permute.xlu0 %3671
    %3673 = vrot.lane.b32.xlu0 %v3668, 64
    %v3674 = vpop.permute.xlu0 %3673
    %v3677 = vmul.f32 %v3640, %v3672
    %v3678 = vmul.f32 %v3642, %v3674
    %v3679 = vmul.f32 %v3677, %v3677
    %v3680 = vmul.f32 %v3678, %v3678
    %v3683 = vrot.slane %v3680, 7
    %v3684 = vsel %vm332, %v3683, %v3679
    %3685 = vrot.lane.b32.xlu0 %v3684, 32
    %v3686 = vpop.permute.xlu0 %3685
    %v3688 = vsel %vm337, %v3686, 0.0
    %3689 = vadd.xlane.f32.xlu0 %v3688
    %v3690 = vpop.xlane.xlu0 %3689
    %v3691 = vadd.f32 %v3690, 1e-16
    %v3692 = vrsqrt.pop %v3691
    %v3694 = vrot.slane %v3692, 1
    %v3697 = vmul.f32 %v3677, %v3692
    %v3698 = vmul.f32 %v3678, %v3694
    %v3699 = vmul.f32 %v3534, %v3534
    %v3700 = vmul.f32 %v3535, %v3535
    %v3701 = vmul.f32 %v3536, %v3536
    %v3702 = vmul.f32 %v3537, %v3537
    %v3703 = vmul.f32 %v3538, %v3538
    %v3704 = vmul.f32 %v3539, %v3539
    %v3705 = vmul.f32 %v3540, %v3540
    %v3706 = vsel %vm191, %v3699, 0.0
    %3707 = vadd.xlane.f32.xlu0 %v3706
    %v3708 = vpop.xlane.xlu0 %3707
    %v3709 = vsel %vm191, %v3700, 0.0
    %3710 = vadd.xlane.f32.xlu0 %v3709
    %v3711 = vpop.xlane.xlu0 %3710
    %v3712 = vsel %vm191, %v3701, 0.0
    %3713 = vadd.xlane.f32.xlu0 %v3712
    %v3714 = vpop.xlane.xlu0 %3713
    %v3715 = vsel %vm191, %v3702, 0.0
    %3716 = vadd.xlane.f32.xlu0 %v3715
    %v3717 = vpop.xlane.xlu0 %3716
    %v3718 = vsel %vm191, %v3703, 0.0
    %3719 = vadd.xlane.f32.xlu0 %v3718
    %v3720 = vpop.xlane.xlu0 %3719
    %v3721 = vsel %vm191, %v3704, 0.0
    %3722 = vadd.xlane.f32.xlu0 %v3721
    %v3723 = vpop.xlane.xlu0 %3722
    %v3724 = vsel %vm337, %v3705, 0.0
    %3725 = vadd.xlane.f32.xlu0 %v3724
    %v3726 = vpop.xlane.xlu0 %3725
    %v3727 = vadd.f32 %v3708, 1e-16
    %v3728 = vadd.f32 %v3711, 1e-16
    %v3729 = vadd.f32 %v3714, 1e-16
    %v3730 = vadd.f32 %v3717, 1e-16
    %v3731 = vadd.f32 %v3720, 1e-16
    %v3732 = vadd.f32 %v3723, 1e-16
    %v3733 = vadd.f32 %v3726, 1e-16
    %v3734 = vrsqrt.pop %v3727
    %v3735 = vrsqrt.pop %v3728
    %v3736 = vrsqrt.pop %v3729
    %v3737 = vrsqrt.pop %v3730
    %v3738 = vrsqrt.pop %v3731
    %v3739 = vrsqrt.pop %v3732
    %v3740 = vrsqrt.pop %v3733
    %v3741 = vmul.f32 %v3534, %v3734
    %v3742 = vmul.f32 %v3535, %v3735
    %v3743 = vmul.f32 %v3536, %v3736
    %v3744 = vmul.f32 %v3537, %v3737
    %v3745 = vmul.f32 %v3538, %v3738
    %v3746 = vmul.f32 %v3539, %v3739
    %v3747 = vmul.f32 %v3540, %v3740
    %v3750 = vrot.slane %v3698, 7
    %v3751 = vsel %vm332, %v3750, %v3697
    %3752 = vrot.lane.b32.xlu0 %v3751, 32
    %v3753 = vpop.permute.xlu0 %3752
    %v3754 = vsel %vm191, %v3753, 0
    %v3757 = vsel %vm191, %v3741, 0
    %v3760 = vsel %vm191, %v3742, 0
    %v3763 = vsel %vm191, %v3743, 0
    %v3766 = vsel %vm191, %v3744, 0
    %v3769 = vsel %vm191, %v3745, 0
    %v3772 = vsel %vm191, %v3746, 0
    %v3775 = vsel %vm191, %v3747, 0
    %3777 = vmatprep.subr.mxu0 0.0
    %3778 = vmatpush1.xpose.msra.mxu0 %v3757
    %3779 = vmatprep.subr.mxu0 0.0
    %3780 = vmatpush1.xpose.msra.mxu0 %v3760
    %3781 = vmatprep.subr.mxu0 0.0
    %3782 = vmatpush1.xpose.msra.mxu0 %v3763
    %3783 = vmatprep.subr.mxu0 0.0
    %3784 = vmatpush1.xpose.msra.mxu0 %v3766
    %3785 = vmatprep.subr.mxu0 0.0
    %3786 = vmatpush1.xpose.msra.mxu0 %v3769
    %3787 = vmatprep.subr.mxu0 0.0
    %3788 = vmatpush1.xpose.msra.mxu0 %v3772
    %3789 = vmatprep.subr.mxu0 0.0
    %3790 = vmatpush1.xpose.msra.mxu0 %v3775
    %3791 = vmatprep.subr.mxu0 0.0
    %3792 = vmatpush1.xpose.msra.mxu0 0.0
    %3793 = vmatprep.subr.mxu0 0.0
    %3794 = vmatpush1.xpose.msra.mxu0 0.0
    %3795 = vmatprep.subr.mxu0 0.0
    %3796 = vmatpush1.xpose.msra.mxu0 0.0
    %3797 = vmatprep.subr.mxu0 0.0
    %3798 = vmatpush1.xpose.msra.mxu0 0.0
    %3799 = vmatprep.subr.mxu0 0.0
    %3800 = vmatpush1.xpose.msra.mxu0 0.0
    %3801 = vmatprep.subr.mxu0 0.0
    %3802 = vmatpush1.xpose.msra.mxu0 0.0
    %3803 = vmatprep.subr.mxu0 0.0
    %3804 = vmatpush1.xpose.msra.mxu0 0.0
    %3805 = vmatprep.subr.mxu0 0.0
    %3806 = vmatpush1.xpose.msra.mxu0 0.0
    %3807 = vmatprep.subr.mxu0 0.0
    %3808 = vmatpush1.xpose.msra.mxu0 0.0
    %3809 = vmatprep.subr.mxu0 0.0
    %3810 = vmatpush1.xpose.msra.mxu0 0.0
    %3811 = vmatprep.subr.mxu0 0.0
    %3812 = vmatpush1.xpose.msra.mxu0 0.0
    %3813 = vmatprep.subr.mxu0 0.0
    %3814 = vmatpush1.xpose.msra.mxu0 0.0
    %3815 = vmatprep.subr.mxu0 0.0
    %3816 = vmatpush1.xpose.msra.mxu0 0.0
    %3817 = vmatprep.subr.mxu0 0.0
    %3818 = vmatpush1.xpose.msra.mxu0 0.0
    %3819 = vmatprep.subr.mxu0 0.0
    %3820 = vmatpush1.xpose.msra.mxu0 0.0
    %3821 = vmatprep.subr.mxu0 0.0
    %3822 = vmatpush1.xpose.msra.mxu0 0.0
    %3823 = vmatprep.subr.mxu0 0.0
    %3824 = vmatpush1.xpose.msra.mxu0 0.0
    %3825 = vmatprep.subr.mxu0 0.0
    %3826 = vmatpush1.xpose.msra.mxu0 0.0
    %3827 = vmatprep.subr.mxu0 0.0
    %3828 = vmatpush1.xpose.msra.mxu0 0.0
    %3829 = vmatprep.subr.mxu0 0.0
    %3830 = vmatpush1.xpose.msra.mxu0 0.0
    %3831 = vmatprep.subr.mxu0 0.0
    %3832 = vmatpush1.xpose.msra.mxu0 0.0
    %3833 = vmatprep.subr.mxu0 0.0
    %3834 = vmatpush1.xpose.msra.mxu0 0.0
    %3835 = vmatprep.subr.mxu0 0.0
    %3836 = vmatpush1.xpose.msra.mxu0 0.0
    %3837 = vmatprep.subr.mxu0 0.0
    %3838 = vmatpush1.xpose.msra.mxu0 0.0
    %3839 = vmatprep.subr.mxu0 0.0
    %3840 = vmatpush1.xpose.msra.mxu0 0.0
    %3841 = vmatprep.mubr.f32.mxu0 0.0
    %3842 = vmatmul.mubr.f32.gmra.mrb[0].mxu0 %v3754
    %v3843 = vpop.f32.mrb[0].mxu0
    %v3844 = vadd.f32 0.0, %v3843
    %v3845 = vpop.f32.mrb[0].mxu0
    %3846 = vdwg.mxu0
    %v3847 = vsel %vm497, %v3844, -inf
    %3848 = vmax.xlane.f32.xlu0 %v3847
    %v3849 = vpop.xlane.xlu0 %3848
    %v3850 = vsub.f32 %v3844, %v3849
    %v3851 = vmul.f32 %v3850, 1.442695
    %v3852 = vpow.pop %v3851
    %v3853 = vsel %vm497, %v3852, 0.0
    %3854 = vadd.xlane.f32.xlu0 %v3853
    %v3855 = vpop.xlane.xlu0 %3854
    %v3856 = vrcp.pop %v3855
    %v3857 = vmul.f32 %v3852, %v3856
    %v3859 = vsel %vm509, %v3857, 0
    %v3862 = vsel %vm513, %v3540, 0
    %3864 = vmatprep.subr.mxu0 0.0
    %3865 = vmatpush1.msra.mxu0 %v3534
    %3866 = vmatprep.subr.mxu0 0.0
    %3867 = vmatpush1.msra.mxu0 %v3535
    %3868 = vmatprep.subr.mxu0 0.0
    %3869 = vmatpush1.msra.mxu0 %v3536
    %3870 = vmatprep.subr.mxu0 0.0
    %3871 = vmatpush1.msra.mxu0 %v3537
    %3872 = vmatprep.subr.mxu0 0.0
    %3873 = vmatpush1.msra.mxu0 %v3538
    %3874 = vmatprep.subr.mxu0 0.0
    %3875 = vmatpush1.msra.mxu0 %v3539
    %3876 = vmatprep.subr.mxu0 0.0
    %3877 = vmatpush1.msra.mxu0 %v3862
    %3878 = vmatprep.subr.mxu0 0.0
    %3879 = vmatpush1.msra.mxu0 0.0
    %3880 = vmatprep.subr.mxu0 0.0
    %3881 = vmatpush1.msra.mxu0 0.0
    %3882 = vmatprep.subr.mxu0 0.0
    %3883 = vmatpush1.msra.mxu0 0.0
    %3884 = vmatprep.subr.mxu0 0.0
    %3885 = vmatpush1.msra.mxu0 0.0
    %3886 = vmatprep.subr.mxu0 0.0
    %3887 = vmatpush1.msra.mxu0 0.0
    %3888 = vmatprep.subr.mxu0 0.0
    %3889 = vmatpush1.msra.mxu0 0.0
    %3890 = vmatprep.subr.mxu0 0.0
    %3891 = vmatpush1.msra.mxu0 0.0
    %3892 = vmatprep.subr.mxu0 0.0
    %3893 = vmatpush1.msra.mxu0 0.0
    %3894 = vmatprep.subr.mxu0 0.0
    %3895 = vmatpush1.msra.mxu0 0.0
    %3896 = vmatprep.subr.mxu0 0.0
    %3897 = vmatpush1.msra.mxu0 0.0
    %3898 = vmatprep.subr.mxu0 0.0
    %3899 = vmatpush1.msra.mxu0 0.0
    %3900 = vmatprep.subr.mxu0 0.0
    %3901 = vmatpush1.msra.mxu0 0.0
    %3902 = vmatprep.subr.mxu0 0.0
    %3903 = vmatpush1.msra.mxu0 0.0
    %3904 = vmatprep.subr.mxu0 0.0
    %3905 = vmatpush1.msra.mxu0 0.0
    %3906 = vmatprep.subr.mxu0 0.0
    %3907 = vmatpush1.msra.mxu0 0.0
    %3908 = vmatprep.subr.mxu0 0.0
    %3909 = vmatpush1.msra.mxu0 0.0
    %3910 = vmatprep.subr.mxu0 0.0
    %3911 = vmatpush1.msra.mxu0 0.0
    %3912 = vmatprep.subr.mxu0 0.0
    %3913 = vmatpush1.msra.mxu0 0.0
    %3914 = vmatprep.subr.mxu0 0.0
    %3915 = vmatpush1.msra.mxu0 0.0
    %3916 = vmatprep.subr.mxu0 0.0
    %3917 = vmatpush1.msra.mxu0 0.0
    %3918 = vmatprep.subr.mxu0 0.0
    %3919 = vmatpush1.msra.mxu0 0.0
    %3920 = vmatprep.subr.mxu0 0.0
    %3921 = vmatpush1.msra.mxu0 0.0
    %3922 = vmatprep.subr.mxu0 0.0
    %3923 = vmatpush1.msra.mxu0 0.0
    %3924 = vmatprep.subr.mxu0 0.0
    %3925 = vmatpush1.msra.mxu0 0.0
    %3926 = vmatprep.subr.mxu0 0.0
    %3927 = vmatpush1.msra.mxu0 0.0
    %3928 = vmatprep.mubr.f32.mxu0 0.0
    %3929 = vmatmul.mubr.f32.gmra.mrb[0].mxu0 %v3859
    %v3930 = vpop.f32.mrb[0].mxu0
    %v3931 = vadd.f32 0.0, %v3930
    %v3932 = vpop.f32.mrb[0].mxu0
    %3933 = vdwg.mxu0
    %v3936 = vrot.slane %v3678, 7
    %v3937 = vsel %vm332, %v3936, %v3677
    %3938 = vrot.lane.b32.xlu0 %v3937, 32
    %v3939 = vpop.permute.xlu0 %3938
    %3942 = vrot.lane.b32.xlu0 %v3931, 32
    %v3943 = vpop.permute.xlu0 %3942
    %v3945 = vsel %vm191, %v3939, %v3943
    %v3948 = vunpack.c.l.s4 1966171168
    %v3949 = vunpack.c.0.s8 %v3948
    %v3950 = vlaneseq
    %v3951 = vshrl.u32 %v3950, 7
    %v3952 = vsub.s32 %v3949, %v3951
    %v3953 = vrot.slane %v3945, %v3952
    %v3954 = vcombine.high %v3953, %v3953
    %v3956 = vunpack.c.l.s4 1966171168
    %v3957 = vunpack.c.0.s8 %v3956
    %v3958 = vlaneseq
    %v3959 = vshrl.u32 %v3958, 7
    %v3960 = vsub.s32 %v3957, %v3959
    %v3961 = vrot.slane %v3953, %v3960
    %v3963 = vunpack.c.l.s4 1966171168
    %v3964 = vunpack.c.0.s8 %v3963
    %v3965 = vlaneseq
    %v3966 = vshrl.u32 %v3965, 7
    %v3967 = vsub.s32 %v3964, %v3966
    %v3968 = vrot.slane %v3954, %v3967
    %3971 = vst.msk [vmem:[#allocation14 + $0x5] sm:$0x1] %vm624, %v3961
    %3972 = vst.msk [vmem:[#allocation14 + $0xd] sm:$0x1] %vm624, %v3968
    %v3973 = vsel %vm497, %v3550, inf
    %3974 = vmin.xlane.f32.xlu0 %v3973
    %v3975 = vpop.xlane.xlu0 %3974
    %vm3976 = vcmp.eq.f32.partialorder %v3550, %v3975
    %v3977 = vsel %vm3976, %v82, 50
    %v3978 = vsel %vm497, %v3977, 2147483647
    %v3979 = vand.u32 %v3978, 65535
    %v3980 = vshra.s32 %v3978, 16
    %v3981 = vcvt.s32.f32 %v3979
    %v3982 = vcvt.s32.f32 %v3980
    %3983 = vmin.xlane.f32.xlu0 %v3982
    %v3984 = vpop.xlane.xlu0 %3983
    %vm3985 = vcmp.eq.f32.partialorder %v3982, %v3984
    %v3986 = vsel %vm3985, %v3981, inf
    %3987 = vmin.xlane.f32.xlu0 %v3986
    %v3988 = vpop.xlane.xlu0 %3987
    %v3989 = vcvt.f32.s32 %v3988
    %v3990 = vcvt.f32.s32 %v3984
    %v3991 = vshll.u32 %v3990, 16
    %v3992 = vadd.s32 %v3991, %v3989
    %vm3993 = vcmp.eq.s32.totalorder %v82, %v3992
    %v3994 = vsel %vm3993, 1, 0
    %v3995 = vcvt.s32.f32 %v3994
    %v3996 = vmul.f32 %v3995, 0.59868765
    %v3997 = vmul.f32 %v3188, 0.40131235
    %v3998 = vadd.f32 %v3997, %v3996
    %3999 = vxpose.xlu0.b32.start [1/16] %v3998, 128
    %4000 = vxpose.xlu0.b32.cont [2/16] 0.0, 128
    %4001 = vxpose.xlu0.b32.cont [3/16] 0.0, 128
    %4002 = vxpose.xlu0.b32.cont [4/16] 0.0, 128
    %4003 = vxpose.xlu0.b32.cont [5/16] 0.0, 128
    %4004 = vxpose.xlu0.b32.cont [6/16] 0.0, 128
    %4005 = vxpose.xlu0.b32.cont [7/16] 0.0, 128
    %4006 = vxpose.xlu0.b32.cont [8/16] 0.0, 128
    %4007 = vxpose.xlu0.b32.cont [9/16] 0.0, 128
    %4008 = vxpose.xlu0.b32.cont [10/16] 0.0, 128
    %4009 = vxpose.xlu0.b32.cont [11/16] 0.0, 128
    %4010 = vxpose.xlu0.b32.cont [12/16] 0.0, 128
    %4011 = vxpose.xlu0.b32.cont [13/16] 0.0, 128
    %4012 = vxpose.xlu0.b32.cont [14/16] 0.0, 128
    %4013 = vxpose.xlu0.b32.cont [15/16] 0.0, 128
    %4014 = vxpose.xlu0.b32.end [16/16] 0.0, 128
    %v4015 = vpop.trf.xlu0
    %v4016 = vpop.trf.xlu0
    %v4017 = vpop.trf.xlu0
    %v4018 = vpop.trf.xlu0
    %v4019 = vpop.trf.xlu0
    %v4020 = vpop.trf.xlu0
    %v4021 = vpop.trf.xlu0
    %v4022 = vpop.trf.xlu0
    %v4023 = vpop.trf.xlu0
    %v4024 = vpop.trf.xlu0
    %v4025 = vpop.trf.xlu0
    %v4026 = vpop.trf.xlu0
    %v4027 = vpop.trf.xlu0
    %v4028 = vpop.trf.xlu0
    %v4029 = vpop.trf.xlu0
    %v4030 = vpop.trf.xlu0
    %v4032 = vsel %vm685, %v4015, 0
    %v4035 = vsel %vm685, %v4016, 0
    %v4038 = vsel %vm685, %v4017, 0
    %v4041 = vsel %vm685, %v4018, 0
    %v4044 = vsel %vm685, %v4019, 0
    %v4047 = vsel %vm685, %v4020, 0
    %v4050 = vsel %vm685, %v4021, 0
    %v4052 = vsel %vm513, %v3939, 0
    %4054 = vmatprep.subr.mxu0 0.0
    %4055 = vmatpush1.msra.mxu0 %v4052
    %4056 = vmatprep.subr.mxu0 0.0
    %4057 = vmatpush1.msra.mxu0 0.0
    %4058 = vmatprep.subr.mxu0 0.0
    %4059 = vmatpush1.msra.mxu0 0.0
    %4060 = vmatprep.subr.mxu0 0.0
    %4061 = vmatpush1.msra.mxu0 0.0
    %4062 = vmatprep.subr.mxu0 0.0
    %4063 = vmatpush1.msra.mxu0 0.0
    %4064 = vmatprep.subr.mxu0 0.0
    %4065 = vmatpush1.msra.mxu0 0.0
    %4066 = vmatprep.subr.mxu0 0.0
    %4067 = vmatpush1.msra.mxu0 0.0
    %4068 = vmatprep.subr.mxu0 0.0
    %4069 = vmatpush1.msra.mxu0 0.0
    %4070 = vmatprep.subr.mxu0 0.0
    %4071 = vmatpush1.msra.mxu0 0.0
    %4072 = vmatprep.subr.mxu0 0.0
    %4073 = vmatpush1.msra.mxu0 0.0
    %4074 = vmatprep.subr.mxu0 0.0
    %4075 = vmatpush1.msra.mxu0 0.0
    %4076 = vmatprep.subr.mxu0 0.0
    %4077 = vmatpush1.msra.mxu0 0.0
    %4078 = vmatprep.subr.mxu0 0.0
    %4079 = vmatpush1.msra.mxu0 0.0
    %4080 = vmatprep.subr.mxu0 0.0
    %4081 = vmatpush1.msra.mxu0 0.0
    %4082 = vmatprep.subr.mxu0 0.0
    %4083 = vmatpush1.msra.mxu0 0.0
    %4084 = vmatprep.subr.mxu0 0.0
    %4085 = vmatpush1.msra.mxu0 0.0
    %4086 = vmatprep.subr.mxu0 0.0
    %4087 = vmatpush1.msra.mxu0 0.0
    %4088 = vmatprep.subr.mxu0 0.0
    %4089 = vmatpush1.msra.mxu0 0.0
    %4090 = vmatprep.subr.mxu0 0.0
    %4091 = vmatpush1.msra.mxu0 0.0
    %4092 = vmatprep.subr.mxu0 0.0
    %4093 = vmatpush1.msra.mxu0 0.0
    %4094 = vmatprep.subr.mxu0 0.0
    %4095 = vmatpush1.msra.mxu0 0.0
    %4096 = vmatprep.subr.mxu0 0.0
    %4097 = vmatpush1.msra.mxu0 0.0
    %4098 = vmatprep.subr.mxu0 0.0
    %4099 = vmatpush1.msra.mxu0 0.0
    %4100 = vmatprep.subr.mxu0 0.0
    %4101 = vmatpush1.msra.mxu0 0.0
    %4102 = vmatprep.subr.mxu0 0.0
    %4103 = vmatpush1.msra.mxu0 0.0
    %4104 = vmatprep.subr.mxu0 0.0
    %4105 = vmatpush1.msra.mxu0 0.0
    %4106 = vmatprep.subr.mxu0 0.0
    %4107 = vmatpush1.msra.mxu0 0.0
    %4108 = vmatprep.subr.mxu0 0.0
    %4109 = vmatpush1.msra.mxu0 0.0
    %4110 = vmatprep.subr.mxu0 0.0
    %4111 = vmatpush1.msra.mxu0 0.0
    %4112 = vmatprep.subr.mxu0 0.0
    %4113 = vmatpush1.msra.mxu0 0.0
    %4114 = vmatprep.subr.mxu0 0.0
    %4115 = vmatpush1.msra.mxu0 0.0
    %4116 = vmatprep.subr.mxu0 0.0
    %4117 = vmatpush1.msra.mxu0 0.0
    %4118 = vmatprep.mubr.f32.mxu0 0.0
    %4119 = vmatmul.mubr.f32.gmra.mrb[0].mxu0 %v4032
    %v4120 = vpop.f32.mrb[0].mxu0
    %v4121 = vadd.f32 0.0, %v4120
    %v4122 = vpop.f32.mrb[0].mxu0
    %4123 = vmatprep.mubr.f32.mxu0 0.0
    %4124 = vmatmul.mubr.f32.gmra.mrb[0].mxu0 %v4035
    %v4125 = vpop.f32.mrb[0].mxu0
    %v4126 = vadd.f32 0.0, %v4125
    %v4127 = vpop.f32.mrb[0].mxu0
    %4128 = vmatprep.mubr.f32.mxu0 0.0
    %4129 = vmatmul.mubr.f32.gmra.mrb[0].mxu0 %v4038
    %v4130 = vpop.f32.mrb[0].mxu0
    %v4131 = vadd.f32 0.0, %v4130
    %v4132 = vpop.f32.mrb[0].mxu0
    %4133 = vmatprep.mubr.f32.mxu0 0.0
    %4134 = vmatmul.mubr.f32.gmra.mrb[0].mxu0 %v4041
    %v4135 = vpop.f32.mrb[0].mxu0
    %v4136 = vadd.f32 0.0, %v4135
    %v4137 = vpop.f32.mrb[0].mxu0
    %4138 = vmatprep.mubr.f32.mxu0 0.0
    %4139 = vmatmul.mubr.f32.gmra.mrb[0].mxu0 %v4044
    %v4140 = vpop.f32.mrb[0].mxu0
    %v4141 = vadd.f32 0.0, %v4140
    %v4142 = vpop.f32.mrb[0].mxu0
    %4143 = vmatprep.mubr.f32.mxu0 0.0
    %4144 = vmatmul.mubr.f32.gmra.mrb[0].mxu0 %v4047
    %v4145 = vpop.f32.mrb[0].mxu0
    %v4146 = vadd.f32 0.0, %v4145
    %v4147 = vpop.f32.mrb[0].mxu0
    %4148 = vmatprep.mubr.f32.mxu0 0.0
    %4149 = vmatmul.mubr.f32.gmra.mrb[0].mxu0 %v4050
    %v4150 = vpop.f32.mrb[0].mxu0
    %v4151 = vadd.f32 0.0, %v4150
    %v4152 = vpop.f32.mrb[0].mxu0
    %4153 = vdwg.mxu0
    %v4154 = vadd.f32 %v3534, %v4121
    %v4155 = vadd.f32 %v3535, %v4126
    %v4156 = vadd.f32 %v3536, %v4131
    %v4157 = vadd.f32 %v3537, %v4136
    %v4158 = vadd.f32 %v3538, %v4141
    %v4159 = vadd.f32 %v3539, %v4146
    %v4160 = vadd.f32 %v3540, %v4151
    %v4161 = vmul.f32 %v4154, %v4154
    %v4162 = vmul.f32 %v4155, %v4155
    %v4163 = vmul.f32 %v4156, %v4156
    %v4164 = vmul.f32 %v4157, %v4157
    %v4165 = vmul.f32 %v4158, %v4158
    %v4166 = vmul.f32 %v4159, %v4159
    %v4167 = vmul.f32 %v4160, %v4160
    %v4168 = vsel %vm191, %v4161, 0.0
    %4169 = vadd.xlane.f32.xlu0 %v4168
    %v4170 = vpop.xlane.xlu0 %4169
    %v4171 = vsel %vm191, %v4162, 0.0
    %4172 = vadd.xlane.f32.xlu0 %v4171
    %v4173 = vpop.xlane.xlu0 %4172
    %v4174 = vsel %vm191, %v4163, 0.0
    %4175 = vadd.xlane.f32.xlu0 %v4174
    %v4176 = vpop.xlane.xlu0 %4175
    %v4177 = vsel %vm191, %v4164, 0.0
    %4178 = vadd.xlane.f32.xlu0 %v4177
    %v4179 = vpop.xlane.xlu0 %4178
    %v4180 = vsel %vm191, %v4165, 0.0
    %4181 = vadd.xlane.f32.xlu0 %v4180
    %v4182 = vpop.xlane.xlu0 %4181
    %v4183 = vsel %vm191, %v4166, 0.0
    %4184 = vadd.xlane.f32.xlu0 %v4183
    %v4185 = vpop.xlane.xlu0 %4184
    %v4186 = vsel %vm337, %v4167, 0.0
    %4187 = vadd.xlane.f32.xlu0 %v4186
    %v4188 = vpop.xlane.xlu0 %4187
    %v4189 = vrsqrt.pop %v4170
    %v4190 = vrsqrt.pop %v4173
    %v4191 = vrsqrt.pop %v4176
    %v4192 = vrsqrt.pop %v4179
    %v4193 = vrsqrt.pop %v4182
    %v4194 = vrsqrt.pop %v4185
    %v4195 = vrsqrt.pop %v4188
    %v4196 = vmin.f32 %v4189, 1e+12
    %v4197 = vmin.f32 %v4190, 1e+12
    %v4198 = vmin.f32 %v4191, 1e+12
    %v4199 = vmin.f32 %v4192, 1e+12
    %v4200 = vmin.f32 %v4193, 1e+12
    %v4201 = vmin.f32 %v4194, 1e+12
    %v4202 = vmin.f32 %v4195, 1e+12
    %v4203 = vmul.f32 %v4154, %v4196
    %v4204 = vmul.f32 %v4155, %v4197
    %v4205 = vmul.f32 %v4156, %v4198
    %v4206 = vmul.f32 %v4157, %v4199
    %v4207 = vmul.f32 %v4158, %v4200
    %v4208 = vmul.f32 %v4159, %v4201
    %v4209 = vmul.f32 %v4160, %v4202
    %v4210 = vmul.f32 %v3550, 0.3
    %v4211 = vadd.f32 %v4210, %v3857
    %v4212 = vadd.f32 %v4211, %v3998
    %v4213 = vmul.f32 %v4212, %v4212
    %v4214 = vsel %vm497, %v4213, 0.0
    %4215 = vadd.xlane.f32.xlu0 %v4214
    %v4216 = vpop.xlane.xlu0 %4215
    %v4217 = vrsqrt.pop %v4216
    %v4218 = vmin.f32 %v4217, 1e+12
    %v4219 = vmul.f32 %v4212, %v4218
    %v4220 = vld [vmem:[#allocation7 + $0x6] sm:$0x1]
    %v4221 = vld [vmem:[#allocation7 + $0xe] sm:$0x1]
    %v4222 = vsel %vm191, %v3939, 0
    %4224 = vmatprep.subr.mxu0 0.0
    %4225 = vmatpush1.msra.mxu0 %v77
    %4226 = vmatprep.subr.mxu0 0.0
    %4227 = vmatpush1.msra.mxu0 %v78
    %4228 = vmatprep.subr.mxu0 0.0
    %4229 = vmatpush1.msra.mxu0 %v79
    %4230 = vmatprep.subr.mxu0 0.0
    %4231 = vmatpush1.msra.mxu0 %v80
    %4232 = vmatprep.subr.mxu0 0.0
    %4233 = vmatpush1.msra.mxu0 0.0
    %4234 = vmatprep.subr.mxu0 0.0
    %4235 = vmatpush1.msra.mxu0 0.0
    %4236 = vmatprep.subr.mxu0 0.0
    %4237 = vmatpush1.msra.mxu0 0.0
    %4238 = vmatprep.subr.mxu0 0.0
    %4239 = vmatpush1.msra.mxu0 0.0
    %4240 = vmatprep.subr.mxu0 0.0
    %4241 = vmatpush1.msra.mxu0 0.0
    %4242 = vmatprep.subr.mxu0 0.0
    %4243 = vmatpush1.msra.mxu0 0.0
    %4244 = vmatprep.subr.mxu0 0.0
    %4245 = vmatpush1.msra.mxu0 0.0
    %4246 = vmatprep.subr.mxu0 0.0
    %4247 = vmatpush1.msra.mxu0 0.0
    %4248 = vmatprep.subr.mxu0 0.0
    %4249 = vmatpush1.msra.mxu0 0.0
    %4250 = vmatprep.subr.mxu0 0.0
    %4251 = vmatpush1.msra.mxu0 0.0
    %4252 = vmatprep.subr.mxu0 0.0
    %4253 = vmatpush1.msra.mxu0 0.0
    %4254 = vmatprep.subr.mxu0 0.0
    %4255 = vmatpush1.msra.mxu0 0.0
    %4256 = vmatprep.subr.mxu0 0.0
    %4257 = vmatpush1.msra.mxu0 0.0
    %4258 = vmatprep.subr.mxu0 0.0
    %4259 = vmatpush1.msra.mxu0 0.0
    %4260 = vmatprep.subr.mxu0 0.0
    %4261 = vmatpush1.msra.mxu0 0.0
    %4262 = vmatprep.subr.mxu0 0.0
    %4263 = vmatpush1.msra.mxu0 0.0
    %4264 = vmatprep.subr.mxu0 0.0
    %4265 = vmatpush1.msra.mxu0 0.0
    %4266 = vmatprep.subr.mxu0 0.0
    %4267 = vmatpush1.msra.mxu0 0.0
    %4268 = vmatprep.subr.mxu0 0.0
    %4269 = vmatpush1.msra.mxu0 0.0
    %4270 = vmatprep.subr.mxu0 0.0
    %4271 = vmatpush1.msra.mxu0 0.0
    %4272 = vmatprep.subr.mxu0 0.0
    %4273 = vmatpush1.msra.mxu0 0.0
    %4274 = vmatprep.subr.mxu0 0.0
    %4275 = vmatpush1.msra.mxu0 0.0
    %4276 = vmatprep.subr.mxu0 0.0
    %4277 = vmatpush1.msra.mxu0 0.0
    %4278 = vmatprep.subr.mxu0 0.0
    %4279 = vmatpush1.msra.mxu0 0.0
    %4280 = vmatprep.subr.mxu0 0.0
    %4281 = vmatpush1.msra.mxu0 0.0
    %4282 = vmatprep.subr.mxu0 0.0
    %4283 = vmatpush1.msra.mxu0 0.0
    %4284 = vmatprep.subr.mxu0 0.0
    %4285 = vmatpush1.msra.mxu0 0.0
    %4286 = vmatprep.subr.mxu0 0.0
    %4287 = vmatpush1.msra.mxu0 0.0
    %4288 = vmatprep.mubr.f32.mxu0 0.0
    %4289 = vmatmul.mubr.f32.gmra.mrb[0].mxu0 %v4222
    %v4290 = vpop.f32.mrb[0].mxu0
    %v4291 = vadd.f32 0.0, %v4290
    %v4292 = vpop.f32.mrb[0].mxu0
    %4293 = vdwg.mxu0
    %v4295 = vrot.slane %v4291, 1
    %v4298 = vadd.f32 %v4220, %v4291
    %v4299 = vadd.f32 %v4221, %v4295
    %v4300 = vxor.u32 %v4298, 2147483648
    %v4301 = vxor.u32 %v4299, 2147483648
    %v4302 = vmul.f32 %v4300, 1.442695
    %v4303 = vpow.pop %v4302
    %v4304 = vmul.f32 %v4301, 1.442695
    %v4305 = vpow.pop %v4304
    %v4306 = vadd.f32 %v4303, 1.0
    %v4307 = vadd.f32 %v4305, 1.0
    %v4308 = vrcp.pop %v4306
    %v4309 = vmul.f32 1.0, %v4308
    %v4310 = vrcp.pop %v4307
    %v4311 = vmul.f32 1.0, %v4310
    %v4312 = vtanh.pop %v4298
    %v4313 = vtanh.pop %v4299
    %v4314 = vmul.f32 %v4309, %v3665
    %v4315 = vmul.f32 %v4311, %v3666
    %4318 = vrot.lane.b32.xlu0 %v4312, 64
    %v4319 = vpop.permute.xlu0 %4318
    %4320 = vrot.lane.b32.xlu0 %v4313, 64
    %v4321 = vpop.permute.xlu0 %4320
    %v4324 = vmul.f32 %v4309, %v4319
    %v4325 = vmul.f32 %v4311, %v4321
    %4328 = vrot.lane.b32.xlu0 %v4324, 32
    %v4329 = vpop.permute.xlu0 %4328
    %4330 = vrot.lane.b32.xlu0 %v4325, 32
    %v4331 = vpop.permute.xlu0 %4330
    %v4334 = vadd.f32 %v4314, %v4329
    %v4335 = vadd.f32 %v4315, %v4331
    %v4336 = vtanh.pop %v4334
    %v4337 = vtanh.pop %v4335
    %4340 = vrot.lane.b32.xlu0 %v4336, 64
    %v4341 = vpop.permute.xlu0 %4340
    %4342 = vrot.lane.b32.xlu0 %v4337, 64
    %v4343 = vpop.permute.xlu0 %4342
    %v4346 = vmul.f32 %v4309, %v4341
    %v4347 = vmul.f32 %v4311, %v4343
    %v4348 = vmul.f32 %v4346, %v4346
    %v4349 = vmul.f32 %v4347, %v4347
    %v4352 = vrot.slane %v4349, 7
    %v4353 = vsel %vm332, %v4352, %v4348
    %4354 = vrot.lane.b32.xlu0 %v4353, 32
    %v4355 = vpop.permute.xlu0 %4354
    %v4357 = vsel %vm337, %v4355, 0.0
    %4358 = vadd.xlane.f32.xlu0 %v4357
    %v4359 = vpop.xlane.xlu0 %4358
    %v4360 = vadd.f32 %v4359, 1e-16
    %v4361 = vrsqrt.pop %v4360
    %v4363 = vrot.slane %v4361, 1
    %v4366 = vmul.f32 %v4346, %v4361
    %v4367 = vmul.f32 %v4347, %v4363
    %v4368 = vmul.f32 %v4203, %v4203
    %v4369 = vmul.f32 %v4204, %v4204
    %v4370 = vmul.f32 %v4205, %v4205
    %v4371 = vmul.f32 %v4206, %v4206
    %v4372 = vmul.f32 %v4207, %v4207
    %v4373 = vmul.f32 %v4208, %v4208
    %v4374 = vmul.f32 %v4209, %v4209
    %v4375 = vsel %vm191, %v4368, 0.0
    %4376 = vadd.xlane.f32.xlu0 %v4375
    %v4377 = vpop.xlane.xlu0 %4376
    %v4378 = vsel %vm191, %v4369, 0.0
    %4379 = vadd.xlane.f32.xlu0 %v4378
    %v4380 = vpop.xlane.xlu0 %4379
    %v4381 = vsel %vm191, %v4370, 0.0
    %4382 = vadd.xlane.f32.xlu0 %v4381
    %v4383 = vpop.xlane.xlu0 %4382
    %v4384 = vsel %vm191, %v4371, 0.0
    %4385 = vadd.xlane.f32.xlu0 %v4384
    %v4386 = vpop.xlane.xlu0 %4385
    %v4387 = vsel %vm191, %v4372, 0.0
    %4388 = vadd.xlane.f32.xlu0 %v4387
    %v4389 = vpop.xlane.xlu0 %4388
    %v4390 = vsel %vm191, %v4373, 0.0
    %4391 = vadd.xlane.f32.xlu0 %v4390
    %v4392 = vpop.xlane.xlu0 %4391
    %v4393 = vsel %vm337, %v4374, 0.0
    %4394 = vadd.xlane.f32.xlu0 %v4393
    %v4395 = vpop.xlane.xlu0 %4394
    %v4396 = vadd.f32 %v4377, 1e-16
    %v4397 = vadd.f32 %v4380, 1e-16
    %v4398 = vadd.f32 %v4383, 1e-16
    %v4399 = vadd.f32 %v4386, 1e-16
    %v4400 = vadd.f32 %v4389, 1e-16
    %v4401 = vadd.f32 %v4392, 1e-16
    %v4402 = vadd.f32 %v4395, 1e-16
    %v4403 = vrsqrt.pop %v4396
    %v4404 = vrsqrt.pop %v4397
    %v4405 = vrsqrt.pop %v4398
    %v4406 = vrsqrt.pop %v4399
    %v4407 = vrsqrt.pop %v4400
    %v4408 = vrsqrt.pop %v4401
    %v4409 = vrsqrt.pop %v4402
    %v4410 = vmul.f32 %v4203, %v4403
    %v4411 = vmul.f32 %v4204, %v4404
    %v4412 = vmul.f32 %v4205, %v4405
    %v4413 = vmul.f32 %v4206, %v4406
    %v4414 = vmul.f32 %v4207, %v4407
    %v4415 = vmul.f32 %v4208, %v4408
    %v4416 = vmul.f32 %v4209, %v4409
    %v4419 = vrot.slane %v4367, 7
    %v4420 = vsel %vm332, %v4419, %v4366
    %4421 = vrot.lane.b32.xlu0 %v4420, 32
    %v4422 = vpop.permute.xlu0 %4421
    %v4423 = vsel %vm191, %v4422, 0
    %v4426 = vsel %vm191, %v4410, 0
    %v4429 = vsel %vm191, %v4411, 0
    %v4432 = vsel %vm191, %v4412, 0
    %v4435 = vsel %vm191, %v4413, 0
    %v4438 = vsel %vm191, %v4414, 0
    %v4441 = vsel %vm191, %v4415, 0
    %v4444 = vsel %vm191, %v4416, 0
    %4446 = vmatprep.subr.mxu0 0.0
    %4447 = vmatpush1.xpose.msra.mxu0 %v4426
    %4448 = vmatprep.subr.mxu0 0.0
    %4449 = vmatpush1.xpose.msra.mxu0 %v4429
    %4450 = vmatprep.subr.mxu0 0.0
    %4451 = vmatpush1.xpose.msra.mxu0 %v4432
    %4452 = vmatprep.subr.mxu0 0.0
    %4453 = vmatpush1.xpose.msra.mxu0 %v4435
    %4454 = vmatprep.subr.mxu0 0.0
    %4455 = vmatpush1.xpose.msra.mxu0 %v4438
    %4456 = vmatprep.subr.mxu0 0.0
    %4457 = vmatpush1.xpose.msra.mxu0 %v4441
    %4458 = vmatprep.subr.mxu0 0.0
    %4459 = vmatpush1.xpose.msra.mxu0 %v4444
    %4460 = vmatprep.subr.mxu0 0.0
    %4461 = vmatpush1.xpose.msra.mxu0 0.0
    %4462 = vmatprep.subr.mxu0 0.0
    %4463 = vmatpush1.xpose.msra.mxu0 0.0
    %4464 = vmatprep.subr.mxu0 0.0
    %4465 = vmatpush1.xpose.msra.mxu0 0.0
    %4466 = vmatprep.subr.mxu0 0.0
    %4467 = vmatpush1.xpose.msra.mxu0 0.0
    %4468 = vmatprep.subr.mxu0 0.0
    %4469 = vmatpush1.xpose.msra.mxu0 0.0
    %4470 = vmatprep.subr.mxu0 0.0
    %4471 = vmatpush1.xpose.msra.mxu0 0.0
    %4472 = vmatprep.subr.mxu0 0.0
    %4473 = vmatpush1.xpose.msra.mxu0 0.0
    %4474 = vmatprep.subr.mxu0 0.0
    %4475 = vmatpush1.xpose.msra.mxu0 0.0
    %4476 = vmatprep.subr.mxu0 0.0
    %4477 = vmatpush1.xpose.msra.mxu0 0.0
    %4478 = vmatprep.subr.mxu0 0.0
    %4479 = vmatpush1.xpose.msra.mxu0 0.0
    %4480 = vmatprep.subr.mxu0 0.0
    %4481 = vmatpush1.xpose.msra.mxu0 0.0
    %4482 = vmatprep.subr.mxu0 0.0
    %4483 = vmatpush1.xpose.msra.mxu0 0.0
    %4484 = vmatprep.subr.mxu0 0.0
    %4485 = vmatpush1.xpose.msra.mxu0 0.0
    %4486 = vmatprep.subr.mxu0 0.0
    %4487 = vmatpush1.xpose.msra.mxu0 0.0
    %4488 = vmatprep.subr.mxu0 0.0
    %4489 = vmatpush1.xpose.msra.mxu0 0.0
    %4490 = vmatprep.subr.mxu0 0.0
    %4491 = vmatpush1.xpose.msra.mxu0 0.0
    %4492 = vmatprep.subr.mxu0 0.0
    %4493 = vmatpush1.xpose.msra.mxu0 0.0
    %4494 = vmatprep.subr.mxu0 0.0
    %4495 = vmatpush1.xpose.msra.mxu0 0.0
    %4496 = vmatprep.subr.mxu0 0.0
    %4497 = vmatpush1.xpose.msra.mxu0 0.0
    %4498 = vmatprep.subr.mxu0 0.0
    %4499 = vmatpush1.xpose.msra.mxu0 0.0
    %4500 = vmatprep.subr.mxu0 0.0
    %4501 = vmatpush1.xpose.msra.mxu0 0.0
    %4502 = vmatprep.subr.mxu0 0.0
    %4503 = vmatpush1.xpose.msra.mxu0 0.0
    %4504 = vmatprep.subr.mxu0 0.0
    %4505 = vmatpush1.xpose.msra.mxu0 0.0
    %4506 = vmatprep.subr.mxu0 0.0
    %4507 = vmatpush1.xpose.msra.mxu0 0.0
    %4508 = vmatprep.subr.mxu0 0.0
    %4509 = vmatpush1.xpose.msra.mxu0 0.0
    %4510 = vmatprep.mubr.f32.mxu0 0.0
    %4511 = vmatmul.mubr.f32.gmra.mrb[0].mxu0 %v4423
    %v4512 = vpop.f32.mrb[0].mxu0
    %v4513 = vadd.f32 0.0, %v4512
    %v4514 = vpop.f32.mrb[0].mxu0
    %4515 = vdwg.mxu0
    %v4516 = vsel %vm497, %v4513, -inf
    %4517 = vmax.xlane.f32.xlu0 %v4516
    %v4518 = vpop.xlane.xlu0 %4517
    %v4519 = vsub.f32 %v4513, %v4518
    %v4520 = vmul.f32 %v4519, 1.442695
    %v4521 = vpow.pop %v4520
    %v4522 = vsel %vm497, %v4521, 0.0
    %4523 = vadd.xlane.f32.xlu0 %v4522
    %v4524 = vpop.xlane.xlu0 %4523
    %v4525 = vrcp.pop %v4524
    %v4526 = vmul.f32 %v4521, %v4525
    %v4528 = vsel %vm509, %v4526, 0
    %v4531 = vsel %vm513, %v4209, 0
    %4533 = vmatprep.subr.mxu0 0.0
    %4534 = vmatpush1.msra.mxu0 %v4203
    %4535 = vmatprep.subr.mxu0 0.0
    %4536 = vmatpush1.msra.mxu0 %v4204
    %4537 = vmatprep.subr.mxu0 0.0
    %4538 = vmatpush1.msra.mxu0 %v4205
    %4539 = vmatprep.subr.mxu0 0.0
    %4540 = vmatpush1.msra.mxu0 %v4206
    %4541 = vmatprep.subr.mxu0 0.0
    %4542 = vmatpush1.msra.mxu0 %v4207
    %4543 = vmatprep.subr.mxu0 0.0
    %4544 = vmatpush1.msra.mxu0 %v4208
    %4545 = vmatprep.subr.mxu0 0.0
    %4546 = vmatpush1.msra.mxu0 %v4531
    %4547 = vmatprep.subr.mxu0 0.0
    %4548 = vmatpush1.msra.mxu0 0.0
    %4549 = vmatprep.subr.mxu0 0.0
    %4550 = vmatpush1.msra.mxu0 0.0
    %4551 = vmatprep.subr.mxu0 0.0
    %4552 = vmatpush1.msra.mxu0 0.0
    %4553 = vmatprep.subr.mxu0 0.0
    %4554 = vmatpush1.msra.mxu0 0.0
    %4555 = vmatprep.subr.mxu0 0.0
    %4556 = vmatpush1.msra.mxu0 0.0
    %4557 = vmatprep.subr.mxu0 0.0
    %4558 = vmatpush1.msra.mxu0 0.0
    %4559 = vmatprep.subr.mxu0 0.0
    %4560 = vmatpush1.msra.mxu0 0.0
    %4561 = vmatprep.subr.mxu0 0.0
    %4562 = vmatpush1.msra.mxu0 0.0
    %4563 = vmatprep.subr.mxu0 0.0
    %4564 = vmatpush1.msra.mxu0 0.0
    %4565 = vmatprep.subr.mxu0 0.0
    %4566 = vmatpush1.msra.mxu0 0.0
    %4567 = vmatprep.subr.mxu0 0.0
    %4568 = vmatpush1.msra.mxu0 0.0
    %4569 = vmatprep.subr.mxu0 0.0
    %4570 = vmatpush1.msra.mxu0 0.0
    %4571 = vmatprep.subr.mxu0 0.0
    %4572 = vmatpush1.msra.mxu0 0.0
    %4573 = vmatprep.subr.mxu0 0.0
    %4574 = vmatpush1.msra.mxu0 0.0
    %4575 = vmatprep.subr.mxu0 0.0
    %4576 = vmatpush1.msra.mxu0 0.0
    %4577 = vmatprep.subr.mxu0 0.0
    %4578 = vmatpush1.msra.mxu0 0.0
    %4579 = vmatprep.subr.mxu0 0.0
    %4580 = vmatpush1.msra.mxu0 0.0
    %4581 = vmatprep.subr.mxu0 0.0
    %4582 = vmatpush1.msra.mxu0 0.0
    %4583 = vmatprep.subr.mxu0 0.0
    %4584 = vmatpush1.msra.mxu0 0.0
    %4585 = vmatprep.subr.mxu0 0.0
    %4586 = vmatpush1.msra.mxu0 0.0
    %4587 = vmatprep.subr.mxu0 0.0
    %4588 = vmatpush1.msra.mxu0 0.0
    %4589 = vmatprep.subr.mxu0 0.0
    %4590 = vmatpush1.msra.mxu0 0.0
    %4591 = vmatprep.subr.mxu0 0.0
    %4592 = vmatpush1.msra.mxu0 0.0
    %4593 = vmatprep.subr.mxu0 0.0
    %4594 = vmatpush1.msra.mxu0 0.0
    %4595 = vmatprep.subr.mxu0 0.0
    %4596 = vmatpush1.msra.mxu0 0.0
    %4597 = vmatprep.mubr.f32.mxu0 0.0
    %4598 = vmatmul.mubr.f32.gmra.mrb[0].mxu0 %v4528
    %v4599 = vpop.f32.mrb[0].mxu0
    %v4600 = vadd.f32 0.0, %v4599
    %v4601 = vpop.f32.mrb[0].mxu0
    %4602 = vdwg.mxu0
    %v4605 = vrot.slane %v4347, 7
    %v4606 = vsel %vm332, %v4605, %v4346
    %4607 = vrot.lane.b32.xlu0 %v4606, 32
    %v4608 = vpop.permute.xlu0 %4607
    %4611 = vrot.lane.b32.xlu0 %v4600, 32
    %v4612 = vpop.permute.xlu0 %4611
    %v4614 = vsel %vm191, %v4608, %v4612
    %v4617 = vunpack.c.l.s4 1966171168
    %v4618 = vunpack.c.0.s8 %v4617
    %v4619 = vlaneseq
    %v4620 = vshrl.u32 %v4619, 7
    %v4621 = vsub.s32 %v4618, %v4620
    %v4622 = vrot.slane %v4614, %v4621
    %v4623 = vcombine.high %v4622, %v4622
    %v4625 = vunpack.c.l.s4 1966171168
    %v4626 = vunpack.c.0.s8 %v4625
    %v4627 = vlaneseq
    %v4628 = vshrl.u32 %v4627, 7
    %v4629 = vsub.s32 %v4626, %v4628
    %v4630 = vrot.slane %v4622, %v4629
    %v4632 = vunpack.c.l.s4 1966171168
    %v4633 = vunpack.c.0.s8 %v4632
    %v4634 = vlaneseq
    %v4635 = vshrl.u32 %v4634, 7
    %v4636 = vsub.s32 %v4633, %v4635
    %v4637 = vrot.slane %v4623, %v4636
    %4640 = vst.msk [vmem:[#allocation14 + $0x6] sm:$0x1] %vm624, %v4630
    %4641 = vst.msk [vmem:[#allocation14 + $0xe] sm:$0x1] %vm624, %v4637
    %v4642 = vsel %vm497, %v4219, inf
    %4643 = vmin.xlane.f32.xlu0 %v4642
    %v4644 = vpop.xlane.xlu0 %4643
    %vm4645 = vcmp.eq.f32.partialorder %v4219, %v4644
    %v4646 = vsel %vm4645, %v82, 50
    %v4647 = vsel %vm497, %v4646, 2147483647
    %v4648 = vand.u32 %v4647, 65535
    %v4649 = vshra.s32 %v4647, 16
    %v4650 = vcvt.s32.f32 %v4648
    %v4651 = vcvt.s32.f32 %v4649
    %4652 = vmin.xlane.f32.xlu0 %v4651
    %v4653 = vpop.xlane.xlu0 %4652
    %vm4654 = vcmp.eq.f32.partialorder %v4651, %v4653
    %v4655 = vsel %vm4654, %v4650, inf
    %4656 = vmin.xlane.f32.xlu0 %v4655
    %v4657 = vpop.xlane.xlu0 %4656
    %v4658 = vcvt.f32.s32 %v4657
    %v4659 = vcvt.f32.s32 %v4653
    %v4660 = vshll.u32 %v4659, 16
    %v4661 = vadd.s32 %v4660, %v4658
    %vm4662 = vcmp.eq.s32.totalorder %v82, %v4661
    %v4663 = vsel %vm4662, 1, 0
    %v4664 = vcvt.s32.f32 %v4663
    %v4665 = vmul.f32 %v4664, 0.59868765
    %v4666 = vmul.f32 %v3857, 0.40131235
    %v4667 = vadd.f32 %v4666, %v4665
    %4668 = vxpose.xlu0.b32.start [1/16] %v4667, 128
    %4669 = vxpose.xlu0.b32.cont [2/16] 0.0, 128
    %4670 = vxpose.xlu0.b32.cont [3/16] 0.0, 128
    %4671 = vxpose.xlu0.b32.cont [4/16] 0.0, 128
    %4672 = vxpose.xlu0.b32.cont [5/16] 0.0, 128
    %4673 = vxpose.xlu0.b32.cont [6/16] 0.0, 128
    %4674 = vxpose.xlu0.b32.cont [7/16] 0.0, 128
    %4675 = vxpose.xlu0.b32.cont [8/16] 0.0, 128
    %4676 = vxpose.xlu0.b32.cont [9/16] 0.0, 128
    %4677 = vxpose.xlu0.b32.cont [10/16] 0.0, 128
    %4678 = vxpose.xlu0.b32.cont [11/16] 0.0, 128
    %4679 = vxpose.xlu0.b32.cont [12/16] 0.0, 128
    %4680 = vxpose.xlu0.b32.cont [13/16] 0.0, 128
    %4681 = vxpose.xlu0.b32.cont [14/16] 0.0, 128
    %4682 = vxpose.xlu0.b32.cont [15/16] 0.0, 128
    %4683 = vxpose.xlu0.b32.end [16/16] 0.0, 128
    %v4684 = vpop.trf.xlu0
    %v4685 = vpop.trf.xlu0
    %v4686 = vpop.trf.xlu0
    %v4687 = vpop.trf.xlu0
    %v4688 = vpop.trf.xlu0
    %v4689 = vpop.trf.xlu0
    %v4690 = vpop.trf.xlu0
    %v4691 = vpop.trf.xlu0
    %v4692 = vpop.trf.xlu0
    %v4693 = vpop.trf.xlu0
    %v4694 = vpop.trf.xlu0
    %v4695 = vpop.trf.xlu0
    %v4696 = vpop.trf.xlu0
    %v4697 = vpop.trf.xlu0
    %v4698 = vpop.trf.xlu0
    %v4699 = vpop.trf.xlu0
    %v4701 = vsel %vm685, %v4684, 0
    %v4704 = vsel %vm685, %v4685, 0
    %v4707 = vsel %vm685, %v4686, 0
    %v4710 = vsel %vm685, %v4687, 0
    %v4713 = vsel %vm685, %v4688, 0
    %v4716 = vsel %vm685, %v4689, 0
    %v4719 = vsel %vm685, %v4690, 0
    %v4721 = vsel %vm513, %v4608, 0
    %4723 = vmatprep.subr.mxu0 0.0
    %4724 = vmatpush1.msra.mxu0 %v4721
    %4725 = vmatprep.subr.mxu0 0.0
    %4726 = vmatpush1.msra.mxu0 0.0
    %4727 = vmatprep.subr.mxu0 0.0
    %4728 = vmatpush1.msra.mxu0 0.0
    %4729 = vmatprep.subr.mxu0 0.0
    %4730 = vmatpush1.msra.mxu0 0.0
    %4731 = vmatprep.subr.mxu0 0.0
    %4732 = vmatpush1.msra.mxu0 0.0
    %4733 = vmatprep.subr.mxu0 0.0
    %4734 = vmatpush1.msra.mxu0 0.0
    %4735 = vmatprep.subr.mxu0 0.0
    %4736 = vmatpush1.msra.mxu0 0.0
    %4737 = vmatprep.subr.mxu0 0.0
    %4738 = vmatpush1.msra.mxu0 0.0
    %4739 = vmatprep.subr.mxu0 0.0
    %4740 = vmatpush1.msra.mxu0 0.0
    %4741 = vmatprep.subr.mxu0 0.0
    %4742 = vmatpush1.msra.mxu0 0.0
    %4743 = vmatprep.subr.mxu0 0.0
    %4744 = vmatpush1.msra.mxu0 0.0
    %4745 = vmatprep.subr.mxu0 0.0
    %4746 = vmatpush1.msra.mxu0 0.0
    %4747 = vmatprep.subr.mxu0 0.0
    %4748 = vmatpush1.msra.mxu0 0.0
    %4749 = vmatprep.subr.mxu0 0.0
    %4750 = vmatpush1.msra.mxu0 0.0
    %4751 = vmatprep.subr.mxu0 0.0
    %4752 = vmatpush1.msra.mxu0 0.0
    %4753 = vmatprep.subr.mxu0 0.0
    %4754 = vmatpush1.msra.mxu0 0.0
    %4755 = vmatprep.subr.mxu0 0.0
    %4756 = vmatpush1.msra.mxu0 0.0
    %4757 = vmatprep.subr.mxu0 0.0
    %4758 = vmatpush1.msra.mxu0 0.0
    %4759 = vmatprep.subr.mxu0 0.0
    %4760 = vmatpush1.msra.mxu0 0.0
    %4761 = vmatprep.subr.mxu0 0.0
    %4762 = vmatpush1.msra.mxu0 0.0
    %4763 = vmatprep.subr.mxu0 0.0
    %4764 = vmatpush1.msra.mxu0 0.0
    %4765 = vmatprep.subr.mxu0 0.0
    %4766 = vmatpush1.msra.mxu0 0.0
    %4767 = vmatprep.subr.mxu0 0.0
    %4768 = vmatpush1.msra.mxu0 0.0
    %4769 = vmatprep.subr.mxu0 0.0
    %4770 = vmatpush1.msra.mxu0 0.0
    %4771 = vmatprep.subr.mxu0 0.0
    %4772 = vmatpush1.msra.mxu0 0.0
    %4773 = vmatprep.subr.mxu0 0.0
    %4774 = vmatpush1.msra.mxu0 0.0
    %4775 = vmatprep.subr.mxu0 0.0
    %4776 = vmatpush1.msra.mxu0 0.0
    %4777 = vmatprep.subr.mxu0 0.0
    %4778 = vmatpush1.msra.mxu0 0.0
    %4779 = vmatprep.subr.mxu0 0.0
    %4780 = vmatpush1.msra.mxu0 0.0
    %4781 = vmatprep.subr.mxu0 0.0
    %4782 = vmatpush1.msra.mxu0 0.0
    %4783 = vmatprep.subr.mxu0 0.0
    %4784 = vmatpush1.msra.mxu0 0.0
    %4785 = vmatprep.subr.mxu0 0.0
    %4786 = vmatpush1.msra.mxu0 0.0
    %4787 = vmatprep.mubr.f32.mxu0 0.0
    %4788 = vmatmul.mubr.f32.gmra.mrb[0].mxu0 %v4701
    %v4789 = vpop.f32.mrb[0].mxu0
    %v4790 = vadd.f32 0.0, %v4789
    %v4791 = vpop.f32.mrb[0].mxu0
    %4792 = vmatprep.mubr.f32.mxu0 0.0
    %4793 = vmatmul.mubr.f32.gmra.mrb[0].mxu0 %v4704
    %v4794 = vpop.f32.mrb[0].mxu0
    %v4795 = vadd.f32 0.0, %v4794
    %v4796 = vpop.f32.mrb[0].mxu0
    %4797 = vmatprep.mubr.f32.mxu0 0.0
    %4798 = vmatmul.mubr.f32.gmra.mrb[0].mxu0 %v4707
    %v4799 = vpop.f32.mrb[0].mxu0
    %v4800 = vadd.f32 0.0, %v4799
    %v4801 = vpop.f32.mrb[0].mxu0
    %4802 = vmatprep.mubr.f32.mxu0 0.0
    %4803 = vmatmul.mubr.f32.gmra.mrb[0].mxu0 %v4710
    %v4804 = vpop.f32.mrb[0].mxu0
    %v4805 = vadd.f32 0.0, %v4804
    %v4806 = vpop.f32.mrb[0].mxu0
    %4807 = vmatprep.mubr.f32.mxu0 0.0
    %4808 = vmatmul.mubr.f32.gmra.mrb[0].mxu0 %v4713
    %v4809 = vpop.f32.mrb[0].mxu0
    %v4810 = vadd.f32 0.0, %v4809
    %v4811 = vpop.f32.mrb[0].mxu0
    %4812 = vmatprep.mubr.f32.mxu0 0.0
    %4813 = vmatmul.mubr.f32.gmra.mrb[0].mxu0 %v4716
    %v4814 = vpop.f32.mrb[0].mxu0
    %v4815 = vadd.f32 0.0, %v4814
    %v4816 = vpop.f32.mrb[0].mxu0
    %4817 = vmatprep.mubr.f32.mxu0 0.0
    %4818 = vmatmul.mubr.f32.gmra.mrb[0].mxu0 %v4719
    %v4819 = vpop.f32.mrb[0].mxu0
    %v4820 = vadd.f32 0.0, %v4819
    %v4821 = vpop.f32.mrb[0].mxu0
    %4822 = vdwg.mxu0
    %v4823 = vadd.f32 %v4203, %v4790
    %v4824 = vadd.f32 %v4204, %v4795
    %v4825 = vadd.f32 %v4205, %v4800
    %v4826 = vadd.f32 %v4206, %v4805
    %v4827 = vadd.f32 %v4207, %v4810
    %v4828 = vadd.f32 %v4208, %v4815
    %v4829 = vadd.f32 %v4209, %v4820
    %v4830 = vmul.f32 %v4823, %v4823
    %v4831 = vmul.f32 %v4824, %v4824
    %v4832 = vmul.f32 %v4825, %v4825
    %v4833 = vmul.f32 %v4826, %v4826
    %v4834 = vmul.f32 %v4827, %v4827
    %v4835 = vmul.f32 %v4828, %v4828
    %v4836 = vmul.f32 %v4829, %v4829
    %v4837 = vsel %vm191, %v4830, 0.0
    %4838 = vadd.xlane.f32.xlu0 %v4837
    %v4839 = vpop.xlane.xlu0 %4838
    %v4840 = vsel %vm191, %v4831, 0.0
    %4841 = vadd.xlane.f32.xlu0 %v4840
    %v4842 = vpop.xlane.xlu0 %4841
    %v4843 = vsel %vm191, %v4832, 0.0
    %4844 = vadd.xlane.f32.xlu0 %v4843
    %v4845 = vpop.xlane.xlu0 %4844
    %v4846 = vsel %vm191, %v4833, 0.0
    %4847 = vadd.xlane.f32.xlu0 %v4846
    %v4848 = vpop.xlane.xlu0 %4847
    %v4849 = vsel %vm191, %v4834, 0.0
    %4850 = vadd.xlane.f32.xlu0 %v4849
    %v4851 = vpop.xlane.xlu0 %4850
    %v4852 = vsel %vm191, %v4835, 0.0
    %4853 = vadd.xlane.f32.xlu0 %v4852
    %v4854 = vpop.xlane.xlu0 %4853
    %v4855 = vsel %vm337, %v4836, 0.0
    %4856 = vadd.xlane.f32.xlu0 %v4855
    %v4857 = vpop.xlane.xlu0 %4856
    %v4858 = vrsqrt.pop %v4839
    %v4859 = vrsqrt.pop %v4842
    %v4860 = vrsqrt.pop %v4845
    %v4861 = vrsqrt.pop %v4848
    %v4862 = vrsqrt.pop %v4851
    %v4863 = vrsqrt.pop %v4854
    %v4864 = vrsqrt.pop %v4857
    %v4865 = vmin.f32 %v4858, 1e+12
    %v4866 = vmin.f32 %v4859, 1e+12
    %v4867 = vmin.f32 %v4860, 1e+12
    %v4868 = vmin.f32 %v4861, 1e+12
    %v4869 = vmin.f32 %v4862, 1e+12
    %v4870 = vmin.f32 %v4863, 1e+12
    %v4871 = vmin.f32 %v4864, 1e+12
    %v4872 = vmul.f32 %v4823, %v4865
    %v4873 = vmul.f32 %v4824, %v4866
    %v4874 = vmul.f32 %v4825, %v4867
    %v4875 = vmul.f32 %v4826, %v4868
    %v4876 = vmul.f32 %v4827, %v4869
    %v4877 = vmul.f32 %v4828, %v4870
    %v4878 = vmul.f32 %v4829, %v4871
    %v4879 = vmul.f32 %v4219, 0.3
    %v4880 = vadd.f32 %v4879, %v4526
    %v4881 = vadd.f32 %v4880, %v4667
    %v4882 = vmul.f32 %v4881, %v4881
    %v4883 = vsel %vm497, %v4882, 0.0
    %4884 = vadd.xlane.f32.xlu0 %v4883
    %v4885 = vpop.xlane.xlu0 %4884
    %v4886 = vrsqrt.pop %v4885
    %v4887 = vmin.f32 %v4886, 1e+12
    %v4888 = vmul.f32 %v4881, %v4887
    %v4889 = vld [vmem:[#allocation7 + $0x7] sm:$0x1]
    %v4890 = vld [vmem:[#allocation7 + $0xf] sm:$0x1]
    %v4891 = vsel %vm191, %v4608, 0
    %4893 = vmatprep.subr.mxu0 0.0
    %4894 = vmatpush1.msra.mxu0 %v77
    %4895 = vmatprep.subr.mxu0 0.0
    %4896 = vmatpush1.msra.mxu0 %v78
    %4897 = vmatprep.subr.mxu0 0.0
    %4898 = vmatpush1.msra.mxu0 %v79
    %4899 = vmatprep.subr.mxu0 0.0
    %4900 = vmatpush1.msra.mxu0 %v80
    %4901 = vmatprep.subr.mxu0 0.0
    %4902 = vmatpush1.msra.mxu0 0.0
    %4903 = vmatprep.subr.mxu0 0.0
    %4904 = vmatpush1.msra.mxu0 0.0
    %4905 = vmatprep.subr.mxu0 0.0
    %4906 = vmatpush1.msra.mxu0 0.0
    %4907 = vmatprep.subr.mxu0 0.0
    %4908 = vmatpush1.msra.mxu0 0.0
    %4909 = vmatprep.subr.mxu0 0.0
    %4910 = vmatpush1.msra.mxu0 0.0
    %4911 = vmatprep.subr.mxu0 0.0
    %4912 = vmatpush1.msra.mxu0 0.0
    %4913 = vmatprep.subr.mxu0 0.0
    %4914 = vmatpush1.msra.mxu0 0.0
    %4915 = vmatprep.subr.mxu0 0.0
    %4916 = vmatpush1.msra.mxu0 0.0
    %4917 = vmatprep.subr.mxu0 0.0
    %4918 = vmatpush1.msra.mxu0 0.0
    %4919 = vmatprep.subr.mxu0 0.0
    %4920 = vmatpush1.msra.mxu0 0.0
    %4921 = vmatprep.subr.mxu0 0.0
    %4922 = vmatpush1.msra.mxu0 0.0
    %4923 = vmatprep.subr.mxu0 0.0
    %4924 = vmatpush1.msra.mxu0 0.0
    %4925 = vmatprep.subr.mxu0 0.0
    %4926 = vmatpush1.msra.mxu0 0.0
    %4927 = vmatprep.subr.mxu0 0.0
    %4928 = vmatpush1.msra.mxu0 0.0
    %4929 = vmatprep.subr.mxu0 0.0
    %4930 = vmatpush1.msra.mxu0 0.0
    %4931 = vmatprep.subr.mxu0 0.0
    %4932 = vmatpush1.msra.mxu0 0.0
    %4933 = vmatprep.subr.mxu0 0.0
    %4934 = vmatpush1.msra.mxu0 0.0
    %4935 = vmatprep.subr.mxu0 0.0
    %4936 = vmatpush1.msra.mxu0 0.0
    %4937 = vmatprep.subr.mxu0 0.0
    %4938 = vmatpush1.msra.mxu0 0.0
    %4939 = vmatprep.subr.mxu0 0.0
    %4940 = vmatpush1.msra.mxu0 0.0
    %4941 = vmatprep.subr.mxu0 0.0
    %4942 = vmatpush1.msra.mxu0 0.0
    %4943 = vmatprep.subr.mxu0 0.0
    %4944 = vmatpush1.msra.mxu0 0.0
    %4945 = vmatprep.subr.mxu0 0.0
    %4946 = vmatpush1.msra.mxu0 0.0
    %4947 = vmatprep.subr.mxu0 0.0
    %4948 = vmatpush1.msra.mxu0 0.0
    %4949 = vmatprep.subr.mxu0 0.0
    %4950 = vmatpush1.msra.mxu0 0.0
    %4951 = vmatprep.subr.mxu0 0.0
    %4952 = vmatpush1.msra.mxu0 0.0
    %4953 = vmatprep.subr.mxu0 0.0
    %4954 = vmatpush1.msra.mxu0 0.0
    %4955 = vmatprep.subr.mxu0 0.0
    %4956 = vmatpush1.msra.mxu0 0.0
    %4957 = vmatprep.mubr.f32.mxu0 0.0
    %4958 = vmatmul.mubr.f32.gmra.mrb[0].mxu0 %v4891
    %v4959 = vpop.f32.mrb[0].mxu0
    %v4960 = vadd.f32 0.0, %v4959
    %v4961 = vpop.f32.mrb[0].mxu0
    %4962 = vdwg.mxu0
    %v4964 = vrot.slane %v4960, 1
    %v4967 = vadd.f32 %v4889, %v4960
    %v4968 = vadd.f32 %v4890, %v4964
    %v4969 = vxor.u32 %v4967, 2147483648
    %v4970 = vxor.u32 %v4968, 2147483648
    %v4971 = vmul.f32 %v4969, 1.442695
    %v4972 = vpow.pop %v4971
    %v4973 = vmul.f32 %v4970, 1.442695
    %v4974 = vpow.pop %v4973
    %v4975 = vadd.f32 %v4972, 1.0
    %v4976 = vadd.f32 %v4974, 1.0
    %v4977 = vrcp.pop %v4975
    %v4978 = vmul.f32 1.0, %v4977
    %v4979 = vrcp.pop %v4976
    %v4980 = vmul.f32 1.0, %v4979
    %v4981 = vtanh.pop %v4967
    %v4982 = vtanh.pop %v4968
    %v4983 = vmul.f32 %v4978, %v4334
    %v4984 = vmul.f32 %v4980, %v4335
    %4987 = vrot.lane.b32.xlu0 %v4981, 64
    %v4988 = vpop.permute.xlu0 %4987
    %4989 = vrot.lane.b32.xlu0 %v4982, 64
    %v4990 = vpop.permute.xlu0 %4989
    %v4993 = vmul.f32 %v4978, %v4988
    %v4994 = vmul.f32 %v4980, %v4990
    %4997 = vrot.lane.b32.xlu0 %v4993, 32
    %v4998 = vpop.permute.xlu0 %4997
    %4999 = vrot.lane.b32.xlu0 %v4994, 32
    %v5000 = vpop.permute.xlu0 %4999
    %v5003 = vadd.f32 %v4983, %v4998
    %v5004 = vadd.f32 %v4984, %v5000
    %v5005 = vtanh.pop %v5003
    %v5006 = vtanh.pop %v5004
    %5009 = vrot.lane.b32.xlu0 %v5005, 64
    %v5010 = vpop.permute.xlu0 %5009
    %5011 = vrot.lane.b32.xlu0 %v5006, 64
    %v5012 = vpop.permute.xlu0 %5011
    %v5015 = vmul.f32 %v4978, %v5010
    %v5016 = vmul.f32 %v4980, %v5012
    %v5017 = vmul.f32 %v5015, %v5015
    %v5018 = vmul.f32 %v5016, %v5016
    %v5021 = vrot.slane %v5018, 7
    %v5022 = vsel %vm332, %v5021, %v5017
    %5023 = vrot.lane.b32.xlu0 %v5022, 32
    %v5024 = vpop.permute.xlu0 %5023
    %v5026 = vsel %vm337, %v5024, 0.0
    %5027 = vadd.xlane.f32.xlu0 %v5026
    %v5028 = vpop.xlane.xlu0 %5027
    %v5029 = vadd.f32 %v5028, 1e-16
    %v5030 = vrsqrt.pop %v5029
    %v5032 = vrot.slane %v5030, 1
    %v5035 = vmul.f32 %v5015, %v5030
    %v5036 = vmul.f32 %v5016, %v5032
    %v5037 = vmul.f32 %v4872, %v4872
    %v5038 = vmul.f32 %v4873, %v4873
    %v5039 = vmul.f32 %v4874, %v4874
    %v5040 = vmul.f32 %v4875, %v4875
    %v5041 = vmul.f32 %v4876, %v4876
    %v5042 = vmul.f32 %v4877, %v4877
    %v5043 = vmul.f32 %v4878, %v4878
    %v5044 = vsel %vm191, %v5037, 0.0
    %5045 = vadd.xlane.f32.xlu0 %v5044
    %v5046 = vpop.xlane.xlu0 %5045
    %v5047 = vsel %vm191, %v5038, 0.0
    %5048 = vadd.xlane.f32.xlu0 %v5047
    %v5049 = vpop.xlane.xlu0 %5048
    %v5050 = vsel %vm191, %v5039, 0.0
    %5051 = vadd.xlane.f32.xlu0 %v5050
    %v5052 = vpop.xlane.xlu0 %5051
    %v5053 = vsel %vm191, %v5040, 0.0
    %5054 = vadd.xlane.f32.xlu0 %v5053
    %v5055 = vpop.xlane.xlu0 %5054
    %v5056 = vsel %vm191, %v5041, 0.0
    %5057 = vadd.xlane.f32.xlu0 %v5056
    %v5058 = vpop.xlane.xlu0 %5057
    %v5059 = vsel %vm191, %v5042, 0.0
    %5060 = vadd.xlane.f32.xlu0 %v5059
    %v5061 = vpop.xlane.xlu0 %5060
    %v5062 = vsel %vm337, %v5043, 0.0
    %5063 = vadd.xlane.f32.xlu0 %v5062
    %v5064 = vpop.xlane.xlu0 %5063
    %v5065 = vadd.f32 %v5046, 1e-16
    %v5066 = vadd.f32 %v5049, 1e-16
    %v5067 = vadd.f32 %v5052, 1e-16
    %v5068 = vadd.f32 %v5055, 1e-16
    %v5069 = vadd.f32 %v5058, 1e-16
    %v5070 = vadd.f32 %v5061, 1e-16
    %v5071 = vadd.f32 %v5064, 1e-16
    %v5072 = vrsqrt.pop %v5065
    %v5073 = vrsqrt.pop %v5066
    %v5074 = vrsqrt.pop %v5067
    %v5075 = vrsqrt.pop %v5068
    %v5076 = vrsqrt.pop %v5069
    %v5077 = vrsqrt.pop %v5070
    %v5078 = vrsqrt.pop %v5071
    %v5079 = vmul.f32 %v4872, %v5072
    %v5080 = vmul.f32 %v4873, %v5073
    %v5081 = vmul.f32 %v4874, %v5074
    %v5082 = vmul.f32 %v4875, %v5075
    %v5083 = vmul.f32 %v4876, %v5076
    %v5084 = vmul.f32 %v4877, %v5077
    %v5085 = vmul.f32 %v4878, %v5078
    %v5088 = vrot.slane %v5036, 7
    %v5089 = vsel %vm332, %v5088, %v5035
    %5090 = vrot.lane.b32.xlu0 %v5089, 32
    %v5091 = vpop.permute.xlu0 %5090
    %v5092 = vsel %vm191, %v5091, 0
    %v5095 = vsel %vm191, %v5079, 0
    %v5098 = vsel %vm191, %v5080, 0
    %v5101 = vsel %vm191, %v5081, 0
    %v5104 = vsel %vm191, %v5082, 0
    %v5107 = vsel %vm191, %v5083, 0
    %v5110 = vsel %vm191, %v5084, 0
    %v5113 = vsel %vm191, %v5085, 0
    %5115 = vmatprep.subr.mxu0 0.0
    %5116 = vmatpush1.xpose.msra.mxu0 %v5095
    %5117 = vmatprep.subr.mxu0 0.0
    %5118 = vmatpush1.xpose.msra.mxu0 %v5098
    %5119 = vmatprep.subr.mxu0 0.0
    %5120 = vmatpush1.xpose.msra.mxu0 %v5101
    %5121 = vmatprep.subr.mxu0 0.0
    %5122 = vmatpush1.xpose.msra.mxu0 %v5104
    %5123 = vmatprep.subr.mxu0 0.0
    %5124 = vmatpush1.xpose.msra.mxu0 %v5107
    %5125 = vmatprep.subr.mxu0 0.0
    %5126 = vmatpush1.xpose.msra.mxu0 %v5110
    %5127 = vmatprep.subr.mxu0 0.0
    %5128 = vmatpush1.xpose.msra.mxu0 %v5113
    %5129 = vmatprep.subr.mxu0 0.0
    %5130 = vmatpush1.xpose.msra.mxu0 0.0
    %5131 = vmatprep.subr.mxu0 0.0
    %5132 = vmatpush1.xpose.msra.mxu0 0.0
    %5133 = vmatprep.subr.mxu0 0.0
    %5134 = vmatpush1.xpose.msra.mxu0 0.0
    %5135 = vmatprep.subr.mxu0 0.0
    %5136 = vmatpush1.xpose.msra.mxu0 0.0
    %5137 = vmatprep.subr.mxu0 0.0
    %5138 = vmatpush1.xpose.msra.mxu0 0.0
    %5139 = vmatprep.subr.mxu0 0.0
    %5140 = vmatpush1.xpose.msra.mxu0 0.0
    %5141 = vmatprep.subr.mxu0 0.0
    %5142 = vmatpush1.xpose.msra.mxu0 0.0
    %5143 = vmatprep.subr.mxu0 0.0
    %5144 = vmatpush1.xpose.msra.mxu0 0.0
    %5145 = vmatprep.subr.mxu0 0.0
    %5146 = vmatpush1.xpose.msra.mxu0 0.0
    %5147 = vmatprep.subr.mxu0 0.0
    %5148 = vmatpush1.xpose.msra.mxu0 0.0
    %5149 = vmatprep.subr.mxu0 0.0
    %5150 = vmatpush1.xpose.msra.mxu0 0.0
    %5151 = vmatprep.subr.mxu0 0.0
    %5152 = vmatpush1.xpose.msra.mxu0 0.0
    %5153 = vmatprep.subr.mxu0 0.0
    %5154 = vmatpush1.xpose.msra.mxu0 0.0
    %5155 = vmatprep.subr.mxu0 0.0
    %5156 = vmatpush1.xpose.msra.mxu0 0.0
    %5157 = vmatprep.subr.mxu0 0.0
    %5158 = vmatpush1.xpose.msra.mxu0 0.0
    %5159 = vmatprep.subr.mxu0 0.0
    %5160 = vmatpush1.xpose.msra.mxu0 0.0
    %5161 = vmatprep.subr.mxu0 0.0
    %5162 = vmatpush1.xpose.msra.mxu0 0.0
    %5163 = vmatprep.subr.mxu0 0.0
    %5164 = vmatpush1.xpose.msra.mxu0 0.0
    %5165 = vmatprep.subr.mxu0 0.0
    %5166 = vmatpush1.xpose.msra.mxu0 0.0
    %5167 = vmatprep.subr.mxu0 0.0
    %5168 = vmatpush1.xpose.msra.mxu0 0.0
    %5169 = vmatprep.subr.mxu0 0.0
    %5170 = vmatpush1.xpose.msra.mxu0 0.0
    %5171 = vmatprep.subr.mxu0 0.0
    %5172 = vmatpush1.xpose.msra.mxu0 0.0
    %5173 = vmatprep.subr.mxu0 0.0
    %5174 = vmatpush1.xpose.msra.mxu0 0.0
    %5175 = vmatprep.subr.mxu0 0.0
    %5176 = vmatpush1.xpose.msra.mxu0 0.0
    %5177 = vmatprep.subr.mxu0 0.0
    %5178 = vmatpush1.xpose.msra.mxu0 0.0
    %5179 = vmatprep.mubr.f32.mxu0 0.0
    %5180 = vmatmul.mubr.f32.gmra.mrb[0].mxu0 %v5092
    %v5181 = vpop.f32.mrb[0].mxu0
    %v5182 = vadd.f32 0.0, %v5181
    %v5183 = vpop.f32.mrb[0].mxu0
    %5184 = vdwg.mxu0
    %v5185 = vsel %vm497, %v5182, -inf
    %5186 = vmax.xlane.f32.xlu0 %v5185
    %v5187 = vpop.xlane.xlu0 %5186
    %v5188 = vsub.f32 %v5182, %v5187
    %v5189 = vmul.f32 %v5188, 1.442695
    %v5190 = vpow.pop %v5189
    %v5191 = vsel %vm497, %v5190, 0.0
    %5192 = vadd.xlane.f32.xlu0 %v5191
    %v5193 = vpop.xlane.xlu0 %5192
    %v5194 = vrcp.pop %v5193
    %v5195 = vmul.f32 %v5190, %v5194
    %v5197 = vsel %vm509, %v5195, 0
    %v5200 = vsel %vm513, %v4878, 0
    %5202 = vmatprep.subr.mxu0 0.0
    %5203 = vmatpush1.msra.mxu0 %v4872
    %5204 = vmatprep.subr.mxu0 0.0
    %5205 = vmatpush1.msra.mxu0 %v4873
    %5206 = vmatprep.subr.mxu0 0.0
    %5207 = vmatpush1.msra.mxu0 %v4874
    %5208 = vmatprep.subr.mxu0 0.0
    %5209 = vmatpush1.msra.mxu0 %v4875
    %5210 = vmatprep.subr.mxu0 0.0
    %5211 = vmatpush1.msra.mxu0 %v4876
    %5212 = vmatprep.subr.mxu0 0.0
    %5213 = vmatpush1.msra.mxu0 %v4877
    %5214 = vmatprep.subr.mxu0 0.0
    %5215 = vmatpush1.msra.mxu0 %v5200
    %5216 = vmatprep.subr.mxu0 0.0
    %5217 = vmatpush1.msra.mxu0 0.0
    %5218 = vmatprep.subr.mxu0 0.0
    %5219 = vmatpush1.msra.mxu0 0.0
    %5220 = vmatprep.subr.mxu0 0.0
    %5221 = vmatpush1.msra.mxu0 0.0
    %5222 = vmatprep.subr.mxu0 0.0
    %5223 = vmatpush1.msra.mxu0 0.0
    %5224 = vmatprep.subr.mxu0 0.0
    %5225 = vmatpush1.msra.mxu0 0.0
    %5226 = vmatprep.subr.mxu0 0.0
    %5227 = vmatpush1.msra.mxu0 0.0
    %5228 = vmatprep.subr.mxu0 0.0
    %5229 = vmatpush1.msra.mxu0 0.0
    %5230 = vmatprep.subr.mxu0 0.0
    %5231 = vmatpush1.msra.mxu0 0.0
    %5232 = vmatprep.subr.mxu0 0.0
    %5233 = vmatpush1.msra.mxu0 0.0
    %5234 = vmatprep.subr.mxu0 0.0
    %5235 = vmatpush1.msra.mxu0 0.0
    %5236 = vmatprep.subr.mxu0 0.0
    %5237 = vmatpush1.msra.mxu0 0.0
    %5238 = vmatprep.subr.mxu0 0.0
    %5239 = vmatpush1.msra.mxu0 0.0
    %5240 = vmatprep.subr.mxu0 0.0
    %5241 = vmatpush1.msra.mxu0 0.0
    %5242 = vmatprep.subr.mxu0 0.0
    %5243 = vmatpush1.msra.mxu0 0.0
    %5244 = vmatprep.subr.mxu0 0.0
    %5245 = vmatpush1.msra.mxu0 0.0
    %5246 = vmatprep.subr.mxu0 0.0
    %5247 = vmatpush1.msra.mxu0 0.0
    %5248 = vmatprep.subr.mxu0 0.0
    %5249 = vmatpush1.msra.mxu0 0.0
    %5250 = vmatprep.subr.mxu0 0.0
    %5251 = vmatpush1.msra.mxu0 0.0
    %5252 = vmatprep.subr.mxu0 0.0
    %5253 = vmatpush1.msra.mxu0 0.0
    %5254 = vmatprep.subr.mxu0 0.0
    %5255 = vmatpush1.msra.mxu0 0.0
    %5256 = vmatprep.subr.mxu0 0.0
    %5257 = vmatpush1.msra.mxu0 0.0
    %5258 = vmatprep.subr.mxu0 0.0
    %5259 = vmatpush1.msra.mxu0 0.0
    %5260 = vmatprep.subr.mxu0 0.0
    %5261 = vmatpush1.msra.mxu0 0.0
    %5262 = vmatprep.subr.mxu0 0.0
    %5263 = vmatpush1.msra.mxu0 0.0
    %5264 = vmatprep.subr.mxu0 0.0
    %5265 = vmatpush1.msra.mxu0 0.0
    %5266 = vmatprep.mubr.f32.mxu0 0.0
    %5267 = vmatmul.mubr.f32.gmra.mrb[0].mxu0 %v5197
    %v5268 = vpop.f32.mrb[0].mxu0
    %v5269 = vadd.f32 0.0, %v5268
    %v5270 = vpop.f32.mrb[0].mxu0
    %5271 = vdwg.mxu0
    %v5274 = vrot.slane %v5016, 7
    %v5275 = vsel %vm332, %v5274, %v5015
    %5276 = vrot.lane.b32.xlu0 %v5275, 32
    %v5277 = vpop.permute.xlu0 %5276
    %5280 = vrot.lane.b32.xlu0 %v5269, 32
    %v5281 = vpop.permute.xlu0 %5280
    %v5283 = vsel %vm191, %v5277, %v5281
    %v5286 = vunpack.c.l.s4 1966171168
    %v5287 = vunpack.c.0.s8 %v5286
    %v5288 = vlaneseq
    %v5289 = vshrl.u32 %v5288, 7
    %v5290 = vsub.s32 %v5287, %v5289
    %v5291 = vrot.slane %v5283, %v5290
    %v5292 = vcombine.high %v5291, %v5291
    %v5294 = vunpack.c.l.s4 1966171168
    %v5295 = vunpack.c.0.s8 %v5294
    %v5296 = vlaneseq
    %v5297 = vshrl.u32 %v5296, 7
    %v5298 = vsub.s32 %v5295, %v5297
    %v5299 = vrot.slane %v5291, %v5298
    %v5301 = vunpack.c.l.s4 1966171168
    %v5302 = vunpack.c.0.s8 %v5301
    %v5303 = vlaneseq
    %v5304 = vshrl.u32 %v5303, 7
    %v5305 = vsub.s32 %v5302, %v5304
    %v5306 = vrot.slane %v5292, %v5305
    %5309 = vst.msk [vmem:[#allocation14 + $0x7] sm:$0x1] %vm624, %v5299
    %5310 = vst.msk [vmem:[#allocation14 + $0xf] sm:$0x1] %vm624, %v5306
    %v5311 = vsel %vm497, %v4888, inf
    %5312 = vmin.xlane.f32.xlu0 %v5311
    %v5313 = vpop.xlane.xlu0 %5312
    %vm5314 = vcmp.eq.f32.partialorder %v4888, %v5313
    %v5315 = vsel %vm5314, %v82, 50
    %v5316 = vsel %vm497, %v5315, 2147483647
    %v5317 = vand.u32 %v5316, 65535
    %v5318 = vshra.s32 %v5316, 16
    %v5319 = vcvt.s32.f32 %v5317
    %v5320 = vcvt.s32.f32 %v5318
    %5321 = vmin.xlane.f32.xlu0 %v5320
    %v5322 = vpop.xlane.xlu0 %5321
    %vm5323 = vcmp.eq.f32.partialorder %v5320, %v5322
    %v5324 = vsel %vm5323, %v5319, inf
    %5325 = vmin.xlane.f32.xlu0 %v5324
    %v5326 = vpop.xlane.xlu0 %5325
    %v5327 = vcvt.f32.s32 %v5326
    %v5328 = vcvt.f32.s32 %v5322
    %v5329 = vshll.u32 %v5328, 16
    %v5330 = vadd.s32 %v5329, %v5327
    %vm5331 = vcmp.eq.s32.totalorder %v82, %v5330
    %v5332 = vsel %vm5331, 1, 0
    %v5333 = vcvt.s32.f32 %v5332
    %v5334 = vmul.f32 %v5333, 0.59868765
    %v5335 = vmul.f32 %v4526, 0.40131235
    %v5336 = vadd.f32 %v5335, %v5334
    %5337 = vxpose.xlu0.b32.start [1/16] %v5336, 128
    %5338 = vxpose.xlu0.b32.cont [2/16] 0.0, 128
    %5339 = vxpose.xlu0.b32.cont [3/16] 0.0, 128
    %5340 = vxpose.xlu0.b32.cont [4/16] 0.0, 128
    %5341 = vxpose.xlu0.b32.cont [5/16] 0.0, 128
    %5342 = vxpose.xlu0.b32.cont [6/16] 0.0, 128
    %5343 = vxpose.xlu0.b32.cont [7/16] 0.0, 128
    %5344 = vxpose.xlu0.b32.cont [8/16] 0.0, 128
    %5345 = vxpose.xlu0.b32.cont [9/16] 0.0, 128
    %5346 = vxpose.xlu0.b32.cont [10/16] 0.0, 128
    %5347 = vxpose.xlu0.b32.cont [11/16] 0.0, 128
    %5348 = vxpose.xlu0.b32.cont [12/16] 0.0, 128
    %5349 = vxpose.xlu0.b32.cont [13/16] 0.0, 128
    %5350 = vxpose.xlu0.b32.cont [14/16] 0.0, 128
    %5351 = vxpose.xlu0.b32.cont [15/16] 0.0, 128
    %5352 = vxpose.xlu0.b32.end [16/16] 0.0, 128
    %v5353 = vpop.trf.xlu0
    %v5354 = vpop.trf.xlu0
    %v5355 = vpop.trf.xlu0
    %v5356 = vpop.trf.xlu0
    %v5357 = vpop.trf.xlu0
    %v5358 = vpop.trf.xlu0
    %v5359 = vpop.trf.xlu0
    %v5360 = vpop.trf.xlu0
    %v5361 = vpop.trf.xlu0
    %v5362 = vpop.trf.xlu0
    %v5363 = vpop.trf.xlu0
    %v5364 = vpop.trf.xlu0
    %v5365 = vpop.trf.xlu0
    %v5366 = vpop.trf.xlu0
    %v5367 = vpop.trf.xlu0
    %v5368 = vpop.trf.xlu0
    %v5370 = vsel %vm685, %v5353, 0
    %v5373 = vsel %vm685, %v5354, 0
    %v5376 = vsel %vm685, %v5355, 0
    %v5379 = vsel %vm685, %v5356, 0
    %v5382 = vsel %vm685, %v5357, 0
    %v5385 = vsel %vm685, %v5358, 0
    %v5388 = vsel %vm685, %v5359, 0
    %v5390 = vsel %vm513, %v5277, 0
    %5392 = vmatprep.subr.mxu0 0.0
    %5393 = vmatpush1.msra.mxu0 %v5390
    %5394 = vmatprep.subr.mxu0 0.0
    %5395 = vmatpush1.msra.mxu0 0.0
    %5396 = vmatprep.subr.mxu0 0.0
    %5397 = vmatpush1.msra.mxu0 0.0
    %5398 = vmatprep.subr.mxu0 0.0
    %5399 = vmatpush1.msra.mxu0 0.0
    %5400 = vmatprep.subr.mxu0 0.0
    %5401 = vmatpush1.msra.mxu0 0.0
    %5402 = vmatprep.subr.mxu0 0.0
    %5403 = vmatpush1.msra.mxu0 0.0
    %5404 = vmatprep.subr.mxu0 0.0
    %5405 = vmatpush1.msra.mxu0 0.0
    %5406 = vmatprep.subr.mxu0 0.0
    %5407 = vmatpush1.msra.mxu0 0.0
    %5408 = vmatprep.subr.mxu0 0.0
    %5409 = vmatpush1.msra.mxu0 0.0
    %5410 = vmatprep.subr.mxu0 0.0
    %5411 = vmatpush1.msra.mxu0 0.0
    %5412 = vmatprep.subr.mxu0 0.0
    %5413 = vmatpush1.msra.mxu0 0.0
    %5414 = vmatprep.subr.mxu0 0.0
    %5415 = vmatpush1.msra.mxu0 0.0
    %5416 = vmatprep.subr.mxu0 0.0
    %5417 = vmatpush1.msra.mxu0 0.0
    %5418 = vmatprep.subr.mxu0 0.0
    %5419 = vmatpush1.msra.mxu0 0.0
    %5420 = vmatprep.subr.mxu0 0.0
    %5421 = vmatpush1.msra.mxu0 0.0
    %5422 = vmatprep.subr.mxu0 0.0
    %5423 = vmatpush1.msra.mxu0 0.0
    %5424 = vmatprep.subr.mxu0 0.0
    %5425 = vmatpush1.msra.mxu0 0.0
    %5426 = vmatprep.subr.mxu0 0.0
    %5427 = vmatpush1.msra.mxu0 0.0
    %5428 = vmatprep.subr.mxu0 0.0
    %5429 = vmatpush1.msra.mxu0 0.0
    %5430 = vmatprep.subr.mxu0 0.0
    %5431 = vmatpush1.msra.mxu0 0.0
    %5432 = vmatprep.subr.mxu0 0.0
    %5433 = vmatpush1.msra.mxu0 0.0
    %5434 = vmatprep.subr.mxu0 0.0
    %5435 = vmatpush1.msra.mxu0 0.0
    %5436 = vmatprep.subr.mxu0 0.0
    %5437 = vmatpush1.msra.mxu0 0.0
    %5438 = vmatprep.subr.mxu0 0.0
    %5439 = vmatpush1.msra.mxu0 0.0
    %5440 = vmatprep.subr.mxu0 0.0
    %5441 = vmatpush1.msra.mxu0 0.0
    %5442 = vmatprep.subr.mxu0 0.0
    %5443 = vmatpush1.msra.mxu0 0.0
    %5444 = vmatprep.subr.mxu0 0.0
    %5445 = vmatpush1.msra.mxu0 0.0
    %5446 = vmatprep.subr.mxu0 0.0
    %5447 = vmatpush1.msra.mxu0 0.0
    %5448 = vmatprep.subr.mxu0 0.0
    %5449 = vmatpush1.msra.mxu0 0.0
    %5450 = vmatprep.subr.mxu0 0.0
    %5451 = vmatpush1.msra.mxu0 0.0
    %5452 = vmatprep.subr.mxu0 0.0
    %5453 = vmatpush1.msra.mxu0 0.0
    %5454 = vmatprep.subr.mxu0 0.0
    %5455 = vmatpush1.msra.mxu0 0.0
    %5456 = vmatprep.mubr.f32.mxu0 0.0
    %5457 = vmatmul.mubr.f32.gmra.mrb[0].mxu0 %v5370
    %v5458 = vpop.f32.mrb[0].mxu0
    %v5459 = vadd.f32 0.0, %v5458
    %v5460 = vpop.f32.mrb[0].mxu0
    %5461 = vmatprep.mubr.f32.mxu0 0.0
    %5462 = vmatmul.mubr.f32.gmra.mrb[0].mxu0 %v5373
    %v5463 = vpop.f32.mrb[0].mxu0
    %v5464 = vadd.f32 0.0, %v5463
    %v5465 = vpop.f32.mrb[0].mxu0
    %5466 = vmatprep.mubr.f32.mxu0 0.0
    %5467 = vmatmul.mubr.f32.gmra.mrb[0].mxu0 %v5376
    %v5468 = vpop.f32.mrb[0].mxu0
    %v5469 = vadd.f32 0.0, %v5468
    %v5470 = vpop.f32.mrb[0].mxu0
    %5471 = vmatprep.mubr.f32.mxu0 0.0
    %5472 = vmatmul.mubr.f32.gmra.mrb[0].mxu0 %v5379
    %v5473 = vpop.f32.mrb[0].mxu0
    %v5474 = vadd.f32 0.0, %v5473
    %v5475 = vpop.f32.mrb[0].mxu0
    %5476 = vmatprep.mubr.f32.mxu0 0.0
    %5477 = vmatmul.mubr.f32.gmra.mrb[0].mxu0 %v5382
    %v5478 = vpop.f32.mrb[0].mxu0
    %v5479 = vadd.f32 0.0, %v5478
    %v5480 = vpop.f32.mrb[0].mxu0
    %5481 = vmatprep.mubr.f32.mxu0 0.0
    %5482 = vmatmul.mubr.f32.gmra.mrb[0].mxu0 %v5385
    %v5483 = vpop.f32.mrb[0].mxu0
    %v5484 = vadd.f32 0.0, %v5483
    %v5485 = vpop.f32.mrb[0].mxu0
    %5486 = vmatprep.mubr.f32.mxu0 0.0
    %5487 = vmatmul.mubr.f32.gmra.mrb[0].mxu0 %v5388
    %v5488 = vpop.f32.mrb[0].mxu0
    %v5489 = vadd.f32 0.0, %v5488
    %v5490 = vpop.f32.mrb[0].mxu0
    %5491 = vdwg.mxu0
    %v5492 = vadd.f32 %v4872, %v5459
    %v5493 = vadd.f32 %v4873, %v5464
    %v5494 = vadd.f32 %v4874, %v5469
    %v5495 = vadd.f32 %v4875, %v5474
    %v5496 = vadd.f32 %v4876, %v5479
    %v5497 = vadd.f32 %v4877, %v5484
    %v5498 = vadd.f32 %v4878, %v5489
    %v5499 = vmul.f32 %v5492, %v5492
    %v5500 = vmul.f32 %v5493, %v5493
    %v5501 = vmul.f32 %v5494, %v5494
    %v5502 = vmul.f32 %v5495, %v5495
    %v5503 = vmul.f32 %v5496, %v5496
    %v5504 = vmul.f32 %v5497, %v5497
    %v5505 = vmul.f32 %v5498, %v5498
    %v5506 = vsel %vm191, %v5499, 0.0
    %5507 = vadd.xlane.f32.xlu0 %v5506
    %v5508 = vpop.xlane.xlu0 %5507
    %v5509 = vsel %vm191, %v5500, 0.0
    %5510 = vadd.xlane.f32.xlu0 %v5509
    %v5511 = vpop.xlane.xlu0 %5510
    %v5512 = vsel %vm191, %v5501, 0.0
    %5513 = vadd.xlane.f32.xlu0 %v5512
    %v5514 = vpop.xlane.xlu0 %5513
    %v5515 = vsel %vm191, %v5502, 0.0
    %5516 = vadd.xlane.f32.xlu0 %v5515
    %v5517 = vpop.xlane.xlu0 %5516
    %v5518 = vsel %vm191, %v5503, 0.0
    %5519 = vadd.xlane.f32.xlu0 %v5518
    %v5520 = vpop.xlane.xlu0 %5519
    %v5521 = vsel %vm191, %v5504, 0.0
    %5522 = vadd.xlane.f32.xlu0 %v5521
    %v5523 = vpop.xlane.xlu0 %5522
    %v5524 = vsel %vm337, %v5505, 0.0
    %5525 = vadd.xlane.f32.xlu0 %v5524
    %v5526 = vpop.xlane.xlu0 %5525
    %v5527 = vrsqrt.pop %v5508
    %v5528 = vrsqrt.pop %v5511
    %v5529 = vrsqrt.pop %v5514
    %v5530 = vrsqrt.pop %v5517
    %v5531 = vrsqrt.pop %v5520
    %v5532 = vrsqrt.pop %v5523
    %v5533 = vrsqrt.pop %v5526
    %v5534 = vmin.f32 %v5527, 1e+12
    %v5535 = vmin.f32 %v5528, 1e+12
    %v5536 = vmin.f32 %v5529, 1e+12
    %v5537 = vmin.f32 %v5530, 1e+12
    %v5538 = vmin.f32 %v5531, 1e+12
    %v5539 = vmin.f32 %v5532, 1e+12
    %v5540 = vmin.f32 %v5533, 1e+12
    %v5541 = vmul.f32 %v5492, %v5534
    %v5542 = vmul.f32 %v5493, %v5535
    %v5543 = vmul.f32 %v5494, %v5536
    %v5544 = vmul.f32 %v5495, %v5537
    %v5545 = vmul.f32 %v5496, %v5538
    %v5546 = vmul.f32 %v5497, %v5539
    %v5547 = vmul.f32 %v5498, %v5540
    %v5548 = vmul.f32 %v4888, 0.3
    %v5549 = vadd.f32 %v5548, %v5195
    %v5550 = vadd.f32 %v5549, %v5336
    %v5551 = vmul.f32 %v5550, %v5550
    %v5552 = vsel %vm497, %v5551, 0.0
    %5553 = vadd.xlane.f32.xlu0 %v5552
    %v5554 = vpop.xlane.xlu0 %5553
    %v5555 = vrsqrt.pop %v5554
    %v5556 = vmin.f32 %v5555, 1e+12
    %v5557 = vmul.f32 %v5550, %v5556
    %5558 = vst.msk [vmem:[#allocation2] sm:$0x3] %vm337, %v5277
    %v5561 = vrot.slane %v5004, 7
    %v5562 = vsel %vm332, %v5561, %v5003
    %5563 = vrot.lane.b32.xlu0 %v5562, 96
    %v5564 = vpop.permute.xlu0 %5563
    %5566 = vst.msk [vmem:[#allocation3] sm:$0x3] %vm337, %v5564
    %5567 = vst.msk [vmem:[#allocation4] sm:$0xff] %vm191, %v5541
    %5568 = vst.msk [vmem:[#allocation4 + $0x8] sm:$0xff] %vm191, %v5542
    %5569 = vst.msk [vmem:[#allocation4 + $0x10] sm:$0xff] %vm191, %v5543
    %5570 = vst.msk [vmem:[#allocation4 + $0x18] sm:$0xff] %vm191, %v5544
    %5571 = vst.msk [vmem:[#allocation4 + $0x20] sm:$0xff] %vm191, %v5545
    %5572 = vst.msk [vmem:[#allocation4 + $0x28] sm:$0xff] %vm191, %v5546
    %5573 = vst.msk [vmem:[#allocation4 + $0x30] sm:$0x3] %vm337, %v5547
    %5574 = vst.msk [vmem:[#allocation5] sm:$0x3] %vm497, %v5557
    %5575 = vst.msk [vmem:[#allocation6] sm:$0x3] %vm497, %v5195
    // Predicated region
    $region34: #{tpu_custom_call.1} parent=1 // pred_check
      _
    $region35: #{tpu_custom_call.1} parent=1 // pred_check_branch
      %5577 = sbr.rel (0) target = $region37
    $region36: #{tpu_custom_call.1} parent=1 // pred_region
      %s5579 = ssub.s32 256, 256
      %5580 = vsyncadd [#allocation10], %s5579
      %s5581 = sshll.u32 [#allocation14], 4
      %s5582 = int_to_ptr.vmem [resolvable:$true] %s5581
      %5587 = dma.vmem_to_hbm [thread:$0]  %s5582, 256, %s4, [#allocation10], 128, 128, 8
    $region37: #{tpu_custom_call.1} parent=1 // pred_fallthru
      _
    // Predicated region
    $region38: #{tpu_custom_call.1} parent=1 // pred_check
      _
    $region39: #{tpu_custom_call.1} parent=1 // pred_check_branch
      %5589 = sbr.rel (0) target = $region41
    $region40: #{tpu_custom_call.1} parent=1 // pred_region
      %5590 = dma.done [#allocation10], 256
    $region41: #{tpu_custom_call.1} parent=1 // pred_fallthru
      _
    %5591 = vsyncpa [#allocation9], 1
    %5592 = vsyncpa [#allocation12], 1
    %5593 = vsyncpa [#allocation10], 1

</llo_original>
